<compile_context>
chip_gen: v5e
topology: v5e:2x2
jax: 0.10.0
libtpu: 0.0.40
codegen_flags: <defaults>
</compile_context>

<pallas_src>
import numpy as np
import jax
import jax.numpy as jnp
from jax.experimental import pallas as pl
from jax.experimental.pallas import tpu as pltpu

BN_EPS = 1e-5


# ---------------------------------------------------------------------------
# Ahead-of-time lowering of Conv2d / ConvTranspose2d (+ folded BN) to matrices
# ---------------------------------------------------------------------------
def _bn_fold_factors(key, cout):
    kg, kb, km, kv = jax.random.split(key, 4)
    gamma = 1.0 + 0.1 * jax.random.normal(kg, (cout,), jnp.float32)
    beta = 0.1 * jax.random.normal(kb, (cout,), jnp.float32)
    mean = 0.1 * jax.random.normal(km, (cout,), jnp.float32)
    var = 1.0 + 0.1 * jax.random.uniform(kv, (cout,), jnp.float32)
    scale = gamma / jnp.sqrt(var + BN_EPS)
    shift = beta - mean * scale
    return np.asarray(scale, np.float32), np.asarray(shift, np.float32)


def _conv_matrices(w, b, Hin, Win, Hout, Wout, stride, n_batch, rmax, cmax):
    """Lower a 3x3 Conv2d(padding=1, stride) to (R[3], W[3], bias_row)."""
    cout, cin = w.shape[0], w.shape[1]
    R = np.zeros((3, rmax, rmax), np.float32)
    W = np.zeros((3, cmax, cmax), np.float32)
    for dy in range(3):
        for n in range(n_batch):
            for oy in range(Hout):
                iy = stride * oy + dy - 1
                if 0 <= iy < Hin:
                    R[dy, n * Hout + oy, n * Hin + iy] = 1.0
        for ox in range(Wout):
            for dx in range(3):
                ix = stride * ox + dx - 1
                if 0 <= ix < Win:
                    W[dy, ix * cin:(ix + 1) * cin,
                      ox * cout:(ox + 1) * cout] = w[:, :, dy, dx].T
    B = np.zeros((1, cmax), np.float32)
    B[0, :Wout * cout] = np.tile(b, Wout)
    return R, W, B


def _deconv_matrices(w, b, Hin, Win, k, n_batch, hout, rmax, cmax):
    """Lower ConvTranspose2d(kernel=stride=k, padding=0) to (U[k], M[k], bias)."""
    cin, cout = w.shape[0], w.shape[1]
    U = np.zeros((k, n_batch * hout, rmax), np.float32)
    M = np.zeros((k, cmax, cmax), np.float32)
    for dy in range(k):
        for n in range(n_batch):
            for y in range(Hin):
                U[dy, n * hout + k * y + dy, n * Hin + y] = 1.0
        for x in range(Win):
            for dx in range(k):
                M[dy, x * cin:(x + 1) * cin,
                  (k * x + dx) * cout:(k * x + dx + 1) * cout] = w[:, :, dy, dx]
    B = np.zeros((1, cmax), np.float32)
    B[0, :k * Win * cout] = np.tile(b, k * Win)
    return U, M, B


def init_cob_params(key, n_batch, height, width, in_ch, hid_ch):
    hout, wout = height // 2, width // 2

    # conv layer geometry: (Hin, Win, Cin, Hout, Wout, Cout, stride, relu, bn)
    geom = []
    h, w = height, width
    geom.append((h, w, in_ch, h // 2, w // 2, in_ch, 2, True, True)); h, w = h // 2, w // 2
    geom += [(h, w, in_ch, h, w, in_ch, 1, True, True)] * 3            # block_1
    geom.append((h, w, in_ch, h // 2, w // 2, in_ch, 2, True, True)); h, w = h // 2, w // 2
    geom += [(h, w, in_ch, h, w, in_ch, 1, True, True)] * 5            # block_2
    geom.append((h, w, in_ch, h // 2, w // 2, hid_ch, 2, True, True)); h, w = h // 2, w // 2
    geom += [(h, w, hid_ch, h, w, hid_ch, 1, False, False)] * 5        # block_3 (plain convs)

    rmax = n_batch * height
    cmax = max([g[1] * g[2] for g in geom] + [g[4] * g[5] for g in geom] + [wout * hid_ch])

    kit = iter(jax.random.split(key, 64))

    Rs, Ws, Bs, relu_flags = [], [], [], []
    for (Hin, Win, Cin, Hout, Wout, Cout, stride, relu, bn) in geom:
        wc = np.asarray(jax.random.normal(next(kit), (Cout, Cin, 3, 3), jnp.float32),
                        np.float32) / (3.0 * np.sqrt(Cin))
        bc = 0.05 * np.asarray(jax.random.normal(next(kit), (Cout,), jnp.float32), np.float32)
        kbn = next(kit)
        if bn:  # fold eval-mode BN into the conv weights/bias
            scale, shift = _bn_fold_factors(kbn, Cout)
            wc = wc * scale[:, None, None, None]
            bc = bc * scale + shift
        R, Wm, B = _conv_matrices(wc, bc, Hin, Win, Hout, Wout, stride, n_batch, rmax, cmax)
        Rs.append(R); Ws.append(Wm); Bs.append(B); relu_flags.append(relu)

    # deconvs: (Hin, Win, Cin, k); sources are block_3 / block_2 / block_1 outputs
    dec_geom = [(height // 8, width // 8, hid_ch, 4),
                (height // 4, width // 4, in_ch, 2),
                (height // 2, width // 2, in_ch, 1)]
    Us, Ms, Bds = [], [], []
    for (Hin, Win, Cin, k) in dec_geom:
        wd = np.asarray(jax.random.normal(next(kit), (Cin, hid_ch, k, k), jnp.float32),
                        np.float32) / (k * np.sqrt(Cin))
        bd = 0.05 * np.asarray(jax.random.normal(next(kit), (hid_ch,), jnp.float32), np.float32)
        scale, shift = _bn_fold_factors(next(kit), hid_ch)
        wd = wd * scale[None, :, None, None]
        bd = bd * scale + shift
        U, M, Bd = _deconv_matrices(wd, bd, Hin, Win, k, n_batch, hout, rmax, cmax)
        Us.append(U); Ms.append(M); Bds.append(Bd)

    params = dict(
        Rconv=jnp.asarray(np.concatenate(Rs, axis=0), jnp.bfloat16),  # (3*L, rmax, rmax)
        Wconv=jnp.asarray(np.concatenate(Ws, axis=0), jnp.bfloat16),  # (3*L, cmax, cmax)
        Bconv=jnp.asarray(np.stack(Bs, axis=0), jnp.float32),         # (L, 1, cmax)
        Udec=jnp.asarray(np.concatenate(Us, axis=0), jnp.bfloat16),   # (7, N*hout, rmax)
        Mdec=jnp.asarray(np.concatenate(Ms, axis=0), jnp.bfloat16),   # (7, cmax, cmax)
        Bdec=jnp.asarray(np.stack(Bds, axis=0), jnp.float32),         # (3, 1, cmax)
    )
    meta = dict(rmax=rmax, cmax=cmax, hout=hout, wout=wout, n_batch=n_batch,
                hid=hid_ch, relu=tuple(relu_flags),
                dec_k=tuple(g[3] for g in dec_geom), n_block=(4, 6, 6))
    return params, meta


# ---------------------------------------------------------------------------
# The single fused Pallas kernel
# ---------------------------------------------------------------------------
def _make_cob_kernel(meta):
    rmax, cmax = meta["rmax"], meta["cmax"]
    rout = meta["n_batch"] * meta["hout"]
    relu_flags = meta["relu"]
    dec_k = meta["dec_k"]
    n1, n2, n3 = meta["n_block"]

    def kernel(x_ref, r_ref, w_ref, bc_ref, u_ref, m_ref, bd_ref, out_ref):
        def conv_layer(a, l):
            ab = a.astype(jnp.bfloat16)
            acc = jnp.zeros((rmax, cmax), jnp.float32)
            for dy in range(3):
                # Row selection (vertical tap / stride / H-padding), then the
                # banded weight matmul (horizontal taps / stride / W-padding +
                # channels).  bf16 MXU inputs, f32 accumulation.
                t = jnp.dot(r_ref[3 * l + dy], ab, preferred_element_type=jnp.float32)
                acc = acc + jnp.dot(t.astype(jnp.bfloat16), w_ref[3 * l + dy],
                                    preferred_element_type=jnp.float32)
            acc = acc + bc_ref[l]                  # f32 epilogue (v5e-friendly)
            if relu_flags[l]:
                acc = jnp.maximum(acc, 0.0)
            return acc

        def deconv(a, first, k, d):
            ab = a.astype(jnp.bfloat16)
            acc = jnp.zeros((rout, cmax), jnp.float32)
            for j in range(k):
                t = jnp.dot(u_ref[first + j], ab, preferred_element_type=jnp.float32)
                acc = acc + jnp.dot(t.astype(jnp.bfloat16), m_ref[first + j],
                                    preferred_element_type=jnp.float32)
            return acc + bd_ref[d]

        a = x_ref[...]
        layer = 0
        for _ in range(n1):                        # block_1
            a = conv_layer(a, layer); layer += 1
        a_skip_1 = a
        for _ in range(n2):                        # block_2
            a = conv_layer(a, layer); layer += 1
        a_skip_2 = a
        for _ in range(n3):                        # block_3
            a = conv_layer(a, layer); layer += 1

        # deconv_1(block_3 out), deconv_2(block_2 out), deconv_3(block_1 out);
        # writing the three channel groups of one output buffer == torch.cat(dim=1).
        out_ref[0] = deconv(a, 0, dec_k[0], 0)
        out_ref[1] = deconv(a_skip_2, dec_k[0], dec_k[1], 1)
        out_ref[2] = deconv(a_skip_1, dec_k[0] + dec_k[1], dec_k[2], 2)

    return kernel


def cob_forward(params, meta, x_nchw):
    n, c, h, w = x_nchw.shape
    rmax, cmax = meta["rmax"], meta["cmax"]
    hout, wout, hid = meta["hout"], meta["wout"], meta["hid"]
    rout = n * hout

    # NCHW -> flattened "row image" (rows = n*h, lanes = w*c), zero-padded to
    # the kernel's fixed (rmax, cmax) working shape (no-op at the test shape).
    a0 = jnp.transpose(x_nchw, (0, 2, 3, 1)).reshape(n * h, w * c)
    a0 = jnp.pad(a0, ((0, rmax - n * h), (0, cmax - w * c)))

    args = (a0, params["Rconv"], params["Wconv"], params["Bconv"],
            params["Udec"], params["Mdec"], params["Bdec"])

    def full_spec(arr):
        nd = arr.ndim
        return pl.BlockSpec(arr.shape, lambda i, _nd=nd: (0,) * _nd)

    out3 = pl.pallas_call(
        _make_cob_kernel(meta),
        out_shape=jax.ShapeDtypeStruct((3, rout, cmax), jnp.float32),
        grid=(1,),
        in_specs=[full_spec(a) for a in args],
        out_specs=pl.BlockSpec((3, rout, cmax), lambda i: (0, 0, 0)),
        compiler_params=pltpu.CompilerParams(dimension_semantics=("arbitrary",)),
    )(*args)

    # (d, n*hout + Y, X*hid + ch)  ->  NCHW with channels [deconv_1|deconv_2|deconv_3]
    out = out3[:, :, :wout * hid].reshape(3, n, hout, wout, hid)
    out = jnp.transpose(out, (1, 0, 4, 2, 3))
    return out.reshape(n, 3 * hid, hout, wout)


if __name__ == "__main__":
    N, in_channels, hidden_channels, H, W = 2, 4, 8, 16, 16

    key = jax.random.PRNGKey(0)
    kx, kp = jax.random.split(key)
    x = jax.random.normal(kx, (N, in_channels, H, W), jnp.float32)
    params, meta = init_cob_params(kp, N, H, W, in_channels, hidden_channels)

    fwd = jax.jit(lambda xx: cob_forward(params, meta, xx))
    out = fwd(x)
    jax.block_until_ready(out)

    # block_1 halves spatial; deconvs bring everything back to H/2 x W/2;
    # channels = 3 * hidden_channels after the concat.
    assert out.shape == (N, 3 * hidden_channels, H // 2, W // 2), out.shape
    assert bool(jnp.all(jnp.isfinite(out)))
    print("KERNEL_OK")
</pallas_src>

<mosaic_0001>
module attributes {stable_mosaic.version = 11 : i64} {
  func.func @kernel(%arg0: i32, %arg1: memref<32x64xf32, #tpu.memory_space<vmem>>, %arg2: memref<48x32x32xbf16, #tpu.memory_space<vmem>>, %arg3: memref<48x64x64xbf16, #tpu.memory_space<vmem>>, %arg4: memref<16x1x64xf32, #tpu.memory_space<vmem>>, %arg5: memref<7x16x32xbf16, #tpu.memory_space<vmem>>, %arg6: memref<7x64x64xbf16, #tpu.memory_space<vmem>>, %arg7: memref<3x1x64xf32, #tpu.memory_space<vmem>>, %arg8: memref<3x16x64xf32, #tpu.memory_space<vmem>>) attributes {dimension_semantics = [#tpu.dimension_semantics<arbitrary>], iteration_bounds = array<i64: 1>, scalar_prefetch = 0 : i64, scratch_operands = 0 : i64, tpu.core_type = #tpu.core_type<tc>, window_params = [{pipeline_mode = #tpu.pipeline_mode<synchronous>, transform_indices = @transform_0, window_bounds = array<i64: 32, 64>}, {pipeline_mode = #tpu.pipeline_mode<synchronous>, transform_indices = @transform_1, window_bounds = array<i64: 48, 32, 32>}, {pipeline_mode = #tpu.pipeline_mode<synchronous>, transform_indices = @transform_2, window_bounds = array<i64: 48, 64, 64>}, {pipeline_mode = #tpu.pipeline_mode<synchronous>, transform_indices = @transform_3, window_bounds = array<i64: 16, 1, 64>}, {pipeline_mode = #tpu.pipeline_mode<synchronous>, transform_indices = @transform_4, window_bounds = array<i64: 7, 16, 32>}, {pipeline_mode = #tpu.pipeline_mode<synchronous>, transform_indices = @transform_5, window_bounds = array<i64: 7, 64, 64>}, {pipeline_mode = #tpu.pipeline_mode<synchronous>, transform_indices = @transform_6, window_bounds = array<i64: 3, 1, 64>}, {pipeline_mode = #tpu.pipeline_mode<synchronous>, transform_indices = @transform_7, window_bounds = array<i64: 3, 16, 64>}]} {
    %c0 = arith.constant 0 : index
    %c0_0 = arith.constant 0 : index
    %0 = vector.load %arg1[%c0, %c0_0] : memref<32x64xf32, #tpu.memory_space<vmem>>, vector<32x64xf32>
    %1 = arith.truncf %0 : vector<32x64xf32> to vector<32x64xbf16>
    %cst = arith.constant 0.000000e+00 : f32
    %2 = vector.broadcast %cst : f32 to vector<32x64xf32>
    %c0_1 = arith.constant 0 : index
    %c0_2 = arith.constant 0 : index
    %c0_3 = arith.constant 0 : index
    %3 = vector.load %arg2[%c0_1, %c0_2, %c0_3] : memref<48x32x32xbf16, #tpu.memory_space<vmem>>, vector<1x32x32xbf16>
    %4 = vector.shape_cast %3 : vector<1x32x32xbf16> to vector<32x32xbf16>
    %cst_4 = arith.constant dense<0.000000e+00> : vector<32x64xf32>
    %5 = tpu.matmul %4, %1, %cst_4 {dimension_numbers = #tpu.dot_dimension_numbers<[1], [0], [0], [1], [0, 0, 1, 1], [], []>} : vector<32x32xbf16>, vector<32x64xbf16>, vector<32x64xf32> -> vector<32x64xf32>
    %6 = arith.truncf %5 : vector<32x64xf32> to vector<32x64xbf16>
    %c0_5 = arith.constant 0 : index
    %c0_6 = arith.constant 0 : index
    %c0_7 = arith.constant 0 : index
    %7 = vector.load %arg3[%c0_5, %c0_6, %c0_7] : memref<48x64x64xbf16, #tpu.memory_space<vmem>>, vector<1x64x64xbf16>
    %8 = vector.shape_cast %7 : vector<1x64x64xbf16> to vector<64x64xbf16>
    %cst_8 = arith.constant dense<0.000000e+00> : vector<32x64xf32>
    %9 = tpu.matmul %6, %8, %cst_8 {dimension_numbers = #tpu.dot_dimension_numbers<[1], [0], [0], [1], [0, 0, 1, 1], [], []>} : vector<32x64xbf16>, vector<64x64xbf16>, vector<32x64xf32> -> vector<32x64xf32>
    %10 = arith.addf %2, %9 : vector<32x64xf32>
    %c1 = arith.constant 1 : index
    %c0_9 = arith.constant 0 : index
    %c0_10 = arith.constant 0 : index
    %11 = vector.load %arg2[%c1, %c0_9, %c0_10] : memref<48x32x32xbf16, #tpu.memory_space<vmem>>, vector<1x32x32xbf16>
    %12 = vector.shape_cast %11 : vector<1x32x32xbf16> to vector<32x32xbf16>
    %cst_11 = arith.constant dense<0.000000e+00> : vector<32x64xf32>
    %13 = tpu.matmul %12, %1, %cst_11 {dimension_numbers = #tpu.dot_dimension_numbers<[1], [0], [0], [1], [0, 0, 1, 1], [], []>} : vector<32x32xbf16>, vector<32x64xbf16>, vector<32x64xf32> -> vector<32x64xf32>
    %14 = arith.truncf %13 : vector<32x64xf32> to vector<32x64xbf16>
    %c1_12 = arith.constant 1 : index
    %c0_13 = arith.constant 0 : index
    %c0_14 = arith.constant 0 : index
    %15 = vector.load %arg3[%c1_12, %c0_13, %c0_14] : memref<48x64x64xbf16, #tpu.memory_space<vmem>>, vector<1x64x64xbf16>
    %16 = vector.shape_cast %15 : vector<1x64x64xbf16> to vector<64x64xbf16>
    %cst_15 = arith.constant dense<0.000000e+00> : vector<32x64xf32>
    %17 = tpu.matmul %14, %16, %cst_15 {dimension_numbers = #tpu.dot_dimension_numbers<[1], [0], [0], [1], [0, 0, 1, 1], [], []>} : vector<32x64xbf16>, vector<64x64xbf16>, vector<32x64xf32> -> vector<32x64xf32>
    %18 = arith.addf %10, %17 : vector<32x64xf32>
    %c2 = arith.constant 2 : index
    %c0_16 = arith.constant 0 : index
    %c0_17 = arith.constant 0 : index
    %19 = vector.load %arg2[%c2, %c0_16, %c0_17] : memref<48x32x32xbf16, #tpu.memory_space<vmem>>, vector<1x32x32xbf16>
    %20 = vector.shape_cast %19 : vector<1x32x32xbf16> to vector<32x32xbf16>
    %cst_18 = arith.constant dense<0.000000e+00> : vector<32x64xf32>
    %21 = tpu.matmul %20, %1, %cst_18 {dimension_numbers = #tpu.dot_dimension_numbers<[1], [0], [0], [1], [0, 0, 1, 1], [], []>} : vector<32x32xbf16>, vector<32x64xbf16>, vector<32x64xf32> -> vector<32x64xf32>
    %22 = arith.truncf %21 : vector<32x64xf32> to vector<32x64xbf16>
    %c2_19 = arith.constant 2 : index
    %c0_20 = arith.constant 0 : index
    %c0_21 = arith.constant 0 : index
    %23 = vector.load %arg3[%c2_19, %c0_20, %c0_21] : memref<48x64x64xbf16, #tpu.memory_space<vmem>>, vector<1x64x64xbf16>
    %24 = vector.shape_cast %23 : vector<1x64x64xbf16> to vector<64x64xbf16>
    %cst_22 = arith.constant dense<0.000000e+00> : vector<32x64xf32>
    %25 = tpu.matmul %22, %24, %cst_22 {dimension_numbers = #tpu.dot_dimension_numbers<[1], [0], [0], [1], [0, 0, 1, 1], [], []>} : vector<32x64xbf16>, vector<64x64xbf16>, vector<32x64xf32> -> vector<32x64xf32>
    %26 = arith.addf %18, %25 : vector<32x64xf32>
    %c0_23 = arith.constant 0 : index
    %c0_24 = arith.constant 0 : index
    %c0_25 = arith.constant 0 : index
    %27 = vector.load %arg4[%c0_23, %c0_24, %c0_25] : memref<16x1x64xf32, #tpu.memory_space<vmem>>, vector<1x1x64xf32>
    %28 = vector.shape_cast %27 : vector<1x1x64xf32> to vector<1x64xf32>
    %29 = vector.broadcast %28 : vector<1x64xf32> to vector<32x64xf32>
    %30 = arith.addf %26, %29 : vector<32x64xf32>
    %cst_26 = arith.constant 0.000000e+00 : f32
    %31 = vector.broadcast %cst_26 : f32 to vector<32x64xf32>
    %32 = arith.maximumf %30, %31 : vector<32x64xf32>
    %33 = arith.truncf %32 : vector<32x64xf32> to vector<32x64xbf16>
    %cst_27 = arith.constant 0.000000e+00 : f32
    %34 = vector.broadcast %cst_27 : f32 to vector<32x64xf32>
    %c3 = arith.constant 3 : index
    %c0_28 = arith.constant 0 : index
    %c0_29 = arith.constant 0 : index
    %35 = vector.load %arg2[%c3, %c0_28, %c0_29] : memref<48x32x32xbf16, #tpu.memory_space<vmem>>, vector<1x32x32xbf16>
    %36 = vector.shape_cast %35 : vector<1x32x32xbf16> to vector<32x32xbf16>
    %cst_30 = arith.constant dense<0.000000e+00> : vector<32x64xf32>
    %37 = tpu.matmul %36, %33, %cst_30 {dimension_numbers = #tpu.dot_dimension_numbers<[1], [0], [0], [1], [0, 0, 1, 1], [], []>} : vector<32x32xbf16>, vector<32x64xbf16>, vector<32x64xf32> -> vector<32x64xf32>
    %38 = arith.truncf %37 : vector<32x64xf32> to vector<32x64xbf16>
    %c3_31 = arith.constant 3 : index
    %c0_32 = arith.constant 0 : index
    %c0_33 = arith.constant 0 : index
    %39 = vector.load %arg3[%c3_31, %c0_32, %c0_33] : memref<48x64x64xbf16, #tpu.memory_space<vmem>>, vector<1x64x64xbf16>
    %40 = vector.shape_cast %39 : vector<1x64x64xbf16> to vector<64x64xbf16>
    %cst_34 = arith.constant dense<0.000000e+00> : vector<32x64xf32>
    %41 = tpu.matmul %38, %40, %cst_34 {dimension_numbers = #tpu.dot_dimension_numbers<[1], [0], [0], [1], [0, 0, 1, 1], [], []>} : vector<32x64xbf16>, vector<64x64xbf16>, vector<32x64xf32> -> vector<32x64xf32>
    %42 = arith.addf %34, %41 : vector<32x64xf32>
    %c4 = arith.constant 4 : index
    %c0_35 = arith.constant 0 : index
    %c0_36 = arith.constant 0 : index
    %43 = vector.load %arg2[%c4, %c0_35, %c0_36] : memref<48x32x32xbf16, #tpu.memory_space<vmem>>, vector<1x32x32xbf16>
    %44 = vector.shape_cast %43 : vector<1x32x32xbf16> to vector<32x32xbf16>
    %cst_37 = arith.constant dense<0.000000e+00> : vector<32x64xf32>
    %45 = tpu.matmul %44, %33, %cst_37 {dimension_numbers = #tpu.dot_dimension_numbers<[1], [0], [0], [1], [0, 0, 1, 1], [], []>} : vector<32x32xbf16>, vector<32x64xbf16>, vector<32x64xf32> -> vector<32x64xf32>
    %46 = arith.truncf %45 : vector<32x64xf32> to vector<32x64xbf16>
    %c4_38 = arith.constant 4 : index
    %c0_39 = arith.constant 0 : index
    %c0_40 = arith.constant 0 : index
    %47 = vector.load %arg3[%c4_38, %c0_39, %c0_40] : memref<48x64x64xbf16, #tpu.memory_space<vmem>>, vector<1x64x64xbf16>
    %48 = vector.shape_cast %47 : vector<1x64x64xbf16> to vector<64x64xbf16>
    %cst_41 = arith.constant dense<0.000000e+00> : vector<32x64xf32>
    %49 = tpu.matmul %46, %48, %cst_41 {dimension_numbers = #tpu.dot_dimension_numbers<[1], [0], [0], [1], [0, 0, 1, 1], [], []>} : vector<32x64xbf16>, vector<64x64xbf16>, vector<32x64xf32> -> vector<32x64xf32>
    %50 = arith.addf %42, %49 : vector<32x64xf32>
    %c5 = arith.constant 5 : index
    %c0_42 = arith.constant 0 : index
    %c0_43 = arith.constant 0 : index
    %51 = vector.load %arg2[%c5, %c0_42, %c0_43] : memref<48x32x32xbf16, #tpu.memory_space<vmem>>, vector<1x32x32xbf16>
    %52 = vector.shape_cast %51 : vector<1x32x32xbf16> to vector<32x32xbf16>
    %cst_44 = arith.constant dense<0.000000e+00> : vector<32x64xf32>
    %53 = tpu.matmul %52, %33, %cst_44 {dimension_numbers = #tpu.dot_dimension_numbers<[1], [0], [0], [1], [0, 0, 1, 1], [], []>} : vector<32x32xbf16>, vector<32x64xbf16>, vector<32x64xf32> -> vector<32x64xf32>
    %54 = arith.truncf %53 : vector<32x64xf32> to vector<32x64xbf16>
    %c5_45 = arith.constant 5 : index
    %c0_46 = arith.constant 0 : index
    %c0_47 = arith.constant 0 : index
    %55 = vector.load %arg3[%c5_45, %c0_46, %c0_47] : memref<48x64x64xbf16, #tpu.memory_space<vmem>>, vector<1x64x64xbf16>
    %56 = vector.shape_cast %55 : vector<1x64x64xbf16> to vector<64x64xbf16>
    %cst_48 = arith.constant dense<0.000000e+00> : vector<32x64xf32>
    %57 = tpu.matmul %54, %56, %cst_48 {dimension_numbers = #tpu.dot_dimension_numbers<[1], [0], [0], [1], [0, 0, 1, 1], [], []>} : vector<32x64xbf16>, vector<64x64xbf16>, vector<32x64xf32> -> vector<32x64xf32>
    %58 = arith.addf %50, %57 : vector<32x64xf32>
    %c1_49 = arith.constant 1 : index
    %c0_50 = arith.constant 0 : index
    %c0_51 = arith.constant 0 : index
    %59 = vector.load %arg4[%c1_49, %c0_50, %c0_51] : memref<16x1x64xf32, #tpu.memory_space<vmem>>, vector<1x1x64xf32>
    %60 = vector.shape_cast %59 : vector<1x1x64xf32> to vector<1x64xf32>
    %61 = vector.broadcast %60 : vector<1x64xf32> to vector<32x64xf32>
    %62 = arith.addf %58, %61 : vector<32x64xf32>
    %cst_52 = arith.constant 0.000000e+00 : f32
    %63 = vector.broadcast %cst_52 : f32 to vector<32x64xf32>
    %64 = arith.maximumf %62, %63 : vector<32x64xf32>
    %65 = arith.truncf %64 : vector<32x64xf32> to vector<32x64xbf16>
    %cst_53 = arith.constant 0.000000e+00 : f32
    %66 = vector.broadcast %cst_53 : f32 to vector<32x64xf32>
    %c6 = arith.constant 6 : index
    %c0_54 = arith.constant 0 : index
    %c0_55 = arith.constant 0 : index
    %67 = vector.load %arg2[%c6, %c0_54, %c0_55] : memref<48x32x32xbf16, #tpu.memory_space<vmem>>, vector<1x32x32xbf16>
    %68 = vector.shape_cast %67 : vector<1x32x32xbf16> to vector<32x32xbf16>
    %cst_56 = arith.constant dense<0.000000e+00> : vector<32x64xf32>
    %69 = tpu.matmul %68, %65, %cst_56 {dimension_numbers = #tpu.dot_dimension_numbers<[1], [0], [0], [1], [0, 0, 1, 1], [], []>} : vector<32x32xbf16>, vector<32x64xbf16>, vector<32x64xf32> -> vector<32x64xf32>
    %70 = arith.truncf %69 : vector<32x64xf32> to vector<32x64xbf16>
    %c6_57 = arith.constant 6 : index
    %c0_58 = arith.constant 0 : index
    %c0_59 = arith.constant 0 : index
    %71 = vector.load %arg3[%c6_57, %c0_58, %c0_59] : memref<48x64x64xbf16, #tpu.memory_space<vmem>>, vector<1x64x64xbf16>
    %72 = vector.shape_cast %71 : vector<1x64x64xbf16> to vector<64x64xbf16>
    %cst_60 = arith.constant dense<0.000000e+00> : vector<32x64xf32>
    %73 = tpu.matmul %70, %72, %cst_60 {dimension_numbers = #tpu.dot_dimension_numbers<[1], [0], [0], [1], [0, 0, 1, 1], [], []>} : vector<32x64xbf16>, vector<64x64xbf16>, vector<32x64xf32> -> vector<32x64xf32>
    %74 = arith.addf %66, %73 : vector<32x64xf32>
    %c7 = arith.constant 7 : index
    %c0_61 = arith.constant 0 : index
    %c0_62 = arith.constant 0 : index
    %75 = vector.load %arg2[%c7, %c0_61, %c0_62] : memref<48x32x32xbf16, #tpu.memory_space<vmem>>, vector<1x32x32xbf16>
    %76 = vector.shape_cast %75 : vector<1x32x32xbf16> to vector<32x32xbf16>
    %cst_63 = arith.constant dense<0.000000e+00> : vector<32x64xf32>
    %77 = tpu.matmul %76, %65, %cst_63 {dimension_numbers = #tpu.dot_dimension_numbers<[1], [0], [0], [1], [0, 0, 1, 1], [], []>} : vector<32x32xbf16>, vector<32x64xbf16>, vector<32x64xf32> -> vector<32x64xf32>
    %78 = arith.truncf %77 : vector<32x64xf32> to vector<32x64xbf16>
    %c7_64 = arith.constant 7 : index
    %c0_65 = arith.constant 0 : index
    %c0_66 = arith.constant 0 : index
    %79 = vector.load %arg3[%c7_64, %c0_65, %c0_66] : memref<48x64x64xbf16, #tpu.memory_space<vmem>>, vector<1x64x64xbf16>
    %80 = vector.shape_cast %79 : vector<1x64x64xbf16> to vector<64x64xbf16>
    %cst_67 = arith.constant dense<0.000000e+00> : vector<32x64xf32>
    %81 = tpu.matmul %78, %80, %cst_67 {dimension_numbers = #tpu.dot_dimension_numbers<[1], [0], [0], [1], [0, 0, 1, 1], [], []>} : vector<32x64xbf16>, vector<64x64xbf16>, vector<32x64xf32> -> vector<32x64xf32>
    %82 = arith.addf %74, %81 : vector<32x64xf32>
    %c8 = arith.constant 8 : index
    %c0_68 = arith.constant 0 : index
    %c0_69 = arith.constant 0 : index
    %83 = vector.load %arg2[%c8, %c0_68, %c0_69] : memref<48x32x32xbf16, #tpu.memory_space<vmem>>, vector<1x32x32xbf16>
    %84 = vector.shape_cast %83 : vector<1x32x32xbf16> to vector<32x32xbf16>
    %cst_70 = arith.constant dense<0.000000e+00> : vector<32x64xf32>
    %85 = tpu.matmul %84, %65, %cst_70 {dimension_numbers = #tpu.dot_dimension_numbers<[1], [0], [0], [1], [0, 0, 1, 1], [], []>} : vector<32x32xbf16>, vector<32x64xbf16>, vector<32x64xf32> -> vector<32x64xf32>
    %86 = arith.truncf %85 : vector<32x64xf32> to vector<32x64xbf16>
    %c8_71 = arith.constant 8 : index
    %c0_72 = arith.constant 0 : index
    %c0_73 = arith.constant 0 : index
    %87 = vector.load %arg3[%c8_71, %c0_72, %c0_73] : memref<48x64x64xbf16, #tpu.memory_space<vmem>>, vector<1x64x64xbf16>
    %88 = vector.shape_cast %87 : vector<1x64x64xbf16> to vector<64x64xbf16>
    %cst_74 = arith.constant dense<0.000000e+00> : vector<32x64xf32>
    %89 = tpu.matmul %86, %88, %cst_74 {dimension_numbers = #tpu.dot_dimension_numbers<[1], [0], [0], [1], [0, 0, 1, 1], [], []>} : vector<32x64xbf16>, vector<64x64xbf16>, vector<32x64xf32> -> vector<32x64xf32>
    %90 = arith.addf %82, %89 : vector<32x64xf32>
    %c2_75 = arith.constant 2 : index
    %c0_76 = arith.constant 0 : index
    %c0_77 = arith.constant 0 : index
    %91 = vector.load %arg4[%c2_75, %c0_76, %c0_77] : memref<16x1x64xf32, #tpu.memory_space<vmem>>, vector<1x1x64xf32>
    %92 = vector.shape_cast %91 : vector<1x1x64xf32> to vector<1x64xf32>
    %93 = vector.broadcast %92 : vector<1x64xf32> to vector<32x64xf32>
    %94 = arith.addf %90, %93 : vector<32x64xf32>
    %cst_78 = arith.constant 0.000000e+00 : f32
    %95 = vector.broadcast %cst_78 : f32 to vector<32x64xf32>
    %96 = arith.maximumf %94, %95 : vector<32x64xf32>
    %97 = arith.truncf %96 : vector<32x64xf32> to vector<32x64xbf16>
    %cst_79 = arith.constant 0.000000e+00 : f32
    %98 = vector.broadcast %cst_79 : f32 to vector<32x64xf32>
    %c9 = arith.constant 9 : index
    %c0_80 = arith.constant 0 : index
    %c0_81 = arith.constant 0 : index
    %99 = vector.load %arg2[%c9, %c0_80, %c0_81] : memref<48x32x32xbf16, #tpu.memory_space<vmem>>, vector<1x32x32xbf16>
    %100 = vector.shape_cast %99 : vector<1x32x32xbf16> to vector<32x32xbf16>
    %cst_82 = arith.constant dense<0.000000e+00> : vector<32x64xf32>
    %101 = tpu.matmul %100, %97, %cst_82 {dimension_numbers = #tpu.dot_dimension_numbers<[1], [0], [0], [1], [0, 0, 1, 1], [], []>} : vector<32x32xbf16>, vector<32x64xbf16>, vector<32x64xf32> -> vector<32x64xf32>
    %102 = arith.truncf %101 : vector<32x64xf32> to vector<32x64xbf16>
    %c9_83 = arith.constant 9 : index
    %c0_84 = arith.constant 0 : index
    %c0_85 = arith.constant 0 : index
    %103 = vector.load %arg3[%c9_83, %c0_84, %c0_85] : memref<48x64x64xbf16, #tpu.memory_space<vmem>>, vector<1x64x64xbf16>
    %104 = vector.shape_cast %103 : vector<1x64x64xbf16> to vector<64x64xbf16>
    %cst_86 = arith.constant dense<0.000000e+00> : vector<32x64xf32>
    %105 = tpu.matmul %102, %104, %cst_86 {dimension_numbers = #tpu.dot_dimension_numbers<[1], [0], [0], [1], [0, 0, 1, 1], [], []>} : vector<32x64xbf16>, vector<64x64xbf16>, vector<32x64xf32> -> vector<32x64xf32>
    %106 = arith.addf %98, %105 : vector<32x64xf32>
    %c10 = arith.constant 10 : index
    %c0_87 = arith.constant 0 : index
    %c0_88 = arith.constant 0 : index
    %107 = vector.load %arg2[%c10, %c0_87, %c0_88] : memref<48x32x32xbf16, #tpu.memory_space<vmem>>, vector<1x32x32xbf16>
    %108 = vector.shape_cast %107 : vector<1x32x32xbf16> to vector<32x32xbf16>
    %cst_89 = arith.constant dense<0.000000e+00> : vector<32x64xf32>
    %109 = tpu.matmul %108, %97, %cst_89 {dimension_numbers = #tpu.dot_dimension_numbers<[1], [0], [0], [1], [0, 0, 1, 1], [], []>} : vector<32x32xbf16>, vector<32x64xbf16>, vector<32x64xf32> -> vector<32x64xf32>
    %110 = arith.truncf %109 : vector<32x64xf32> to vector<32x64xbf16>
    %c10_90 = arith.constant 10 : index
    %c0_91 = arith.constant 0 : index
    %c0_92 = arith.constant 0 : index
    %111 = vector.load %arg3[%c10_90, %c0_91, %c0_92] : memref<48x64x64xbf16, #tpu.memory_space<vmem>>, vector<1x64x64xbf16>
    %112 = vector.shape_cast %111 : vector<1x64x64xbf16> to vector<64x64xbf16>
    %cst_93 = arith.constant dense<0.000000e+00> : vector<32x64xf32>
    %113 = tpu.matmul %110, %112, %cst_93 {dimension_numbers = #tpu.dot_dimension_numbers<[1], [0], [0], [1], [0, 0, 1, 1], [], []>} : vector<32x64xbf16>, vector<64x64xbf16>, vector<32x64xf32> -> vector<32x64xf32>
    %114 = arith.addf %106, %113 : vector<32x64xf32>
    %c11 = arith.constant 11 : index
    %c0_94 = arith.constant 0 : index
    %c0_95 = arith.constant 0 : index
    %115 = vector.load %arg2[%c11, %c0_94, %c0_95] : memref<48x32x32xbf16, #tpu.memory_space<vmem>>, vector<1x32x32xbf16>
    %116 = vector.shape_cast %115 : vector<1x32x32xbf16> to vector<32x32xbf16>
    %cst_96 = arith.constant dense<0.000000e+00> : vector<32x64xf32>
    %117 = tpu.matmul %116, %97, %cst_96 {dimension_numbers = #tpu.dot_dimension_numbers<[1], [0], [0], [1], [0, 0, 1, 1], [], []>} : vector<32x32xbf16>, vector<32x64xbf16>, vector<32x64xf32> -> vector<32x64xf32>
    %118 = arith.truncf %117 : vector<32x64xf32> to vector<32x64xbf16>
    %c11_97 = arith.constant 11 : index
    %c0_98 = arith.constant 0 : index
    %c0_99 = arith.constant 0 : index
    %119 = vector.load %arg3[%c11_97, %c0_98, %c0_99] : memref<48x64x64xbf16, #tpu.memory_space<vmem>>, vector<1x64x64xbf16>
    %120 = vector.shape_cast %119 : vector<1x64x64xbf16> to vector<64x64xbf16>
    %cst_100 = arith.constant dense<0.000000e+00> : vector<32x64xf32>
    %121 = tpu.matmul %118, %120, %cst_100 {dimension_numbers = #tpu.dot_dimension_numbers<[1], [0], [0], [1], [0, 0, 1, 1], [], []>} : vector<32x64xbf16>, vector<64x64xbf16>, vector<32x64xf32> -> vector<32x64xf32>
    %122 = arith.addf %114, %121 : vector<32x64xf32>
    %c3_101 = arith.constant 3 : index
    %c0_102 = arith.constant 0 : index
    %c0_103 = arith.constant 0 : index
    %123 = vector.load %arg4[%c3_101, %c0_102, %c0_103] : memref<16x1x64xf32, #tpu.memory_space<vmem>>, vector<1x1x64xf32>
    %124 = vector.shape_cast %123 : vector<1x1x64xf32> to vector<1x64xf32>
    %125 = vector.broadcast %124 : vector<1x64xf32> to vector<32x64xf32>
    %126 = arith.addf %122, %125 : vector<32x64xf32>
    %cst_104 = arith.constant 0.000000e+00 : f32
    %127 = vector.broadcast %cst_104 : f32 to vector<32x64xf32>
    %128 = arith.maximumf %126, %127 : vector<32x64xf32>
    %129 = arith.truncf %128 : vector<32x64xf32> to vector<32x64xbf16>
    %cst_105 = arith.constant 0.000000e+00 : f32
    %130 = vector.broadcast %cst_105 : f32 to vector<32x64xf32>
    %c12 = arith.constant 12 : index
    %c0_106 = arith.constant 0 : index
    %c0_107 = arith.constant 0 : index
    %131 = vector.load %arg2[%c12, %c0_106, %c0_107] : memref<48x32x32xbf16, #tpu.memory_space<vmem>>, vector<1x32x32xbf16>
    %132 = vector.shape_cast %131 : vector<1x32x32xbf16> to vector<32x32xbf16>
    %cst_108 = arith.constant dense<0.000000e+00> : vector<32x64xf32>
    %133 = tpu.matmul %132, %129, %cst_108 {dimension_numbers = #tpu.dot_dimension_numbers<[1], [0], [0], [1], [0, 0, 1, 1], [], []>} : vector<32x32xbf16>, vector<32x64xbf16>, vector<32x64xf32> -> vector<32x64xf32>
    %134 = arith.truncf %133 : vector<32x64xf32> to vector<32x64xbf16>
    %c12_109 = arith.constant 12 : index
    %c0_110 = arith.constant 0 : index
    %c0_111 = arith.constant 0 : index
    %135 = vector.load %arg3[%c12_109, %c0_110, %c0_111] : memref<48x64x64xbf16, #tpu.memory_space<vmem>>, vector<1x64x64xbf16>
    %136 = vector.shape_cast %135 : vector<1x64x64xbf16> to vector<64x64xbf16>
    %cst_112 = arith.constant dense<0.000000e+00> : vector<32x64xf32>
    %137 = tpu.matmul %134, %136, %cst_112 {dimension_numbers = #tpu.dot_dimension_numbers<[1], [0], [0], [1], [0, 0, 1, 1], [], []>} : vector<32x64xbf16>, vector<64x64xbf16>, vector<32x64xf32> -> vector<32x64xf32>
    %138 = arith.addf %130, %137 : vector<32x64xf32>
    %c13 = arith.constant 13 : index
    %c0_113 = arith.constant 0 : index
    %c0_114 = arith.constant 0 : index
    %139 = vector.load %arg2[%c13, %c0_113, %c0_114] : memref<48x32x32xbf16, #tpu.memory_space<vmem>>, vector<1x32x32xbf16>
    %140 = vector.shape_cast %139 : vector<1x32x32xbf16> to vector<32x32xbf16>
    %cst_115 = arith.constant dense<0.000000e+00> : vector<32x64xf32>
    %141 = tpu.matmul %140, %129, %cst_115 {dimension_numbers = #tpu.dot_dimension_numbers<[1], [0], [0], [1], [0, 0, 1, 1], [], []>} : vector<32x32xbf16>, vector<32x64xbf16>, vector<32x64xf32> -> vector<32x64xf32>
    %142 = arith.truncf %141 : vector<32x64xf32> to vector<32x64xbf16>
    %c13_116 = arith.constant 13 : index
    %c0_117 = arith.constant 0 : index
    %c0_118 = arith.constant 0 : index
    %143 = vector.load %arg3[%c13_116, %c0_117, %c0_118] : memref<48x64x64xbf16, #tpu.memory_space<vmem>>, vector<1x64x64xbf16>
    %144 = vector.shape_cast %143 : vector<1x64x64xbf16> to vector<64x64xbf16>
    %cst_119 = arith.constant dense<0.000000e+00> : vector<32x64xf32>
    %145 = tpu.matmul %142, %144, %cst_119 {dimension_numbers = #tpu.dot_dimension_numbers<[1], [0], [0], [1], [0, 0, 1, 1], [], []>} : vector<32x64xbf16>, vector<64x64xbf16>, vector<32x64xf32> -> vector<32x64xf32>
    %146 = arith.addf %138, %145 : vector<32x64xf32>
    %c14 = arith.constant 14 : index
    %c0_120 = arith.constant 0 : index
    %c0_121 = arith.constant 0 : index
    %147 = vector.load %arg2[%c14, %c0_120, %c0_121] : memref<48x32x32xbf16, #tpu.memory_space<vmem>>, vector<1x32x32xbf16>
    %148 = vector.shape_cast %147 : vector<1x32x32xbf16> to vector<32x32xbf16>
    %cst_122 = arith.constant dense<0.000000e+00> : vector<32x64xf32>
    %149 = tpu.matmul %148, %129, %cst_122 {dimension_numbers = #tpu.dot_dimension_numbers<[1], [0], [0], [1], [0, 0, 1, 1], [], []>} : vector<32x32xbf16>, vector<32x64xbf16>, vector<32x64xf32> -> vector<32x64xf32>
    %150 = arith.truncf %149 : vector<32x64xf32> to vector<32x64xbf16>
    %c14_123 = arith.constant 14 : index
    %c0_124 = arith.constant 0 : index
    %c0_125 = arith.constant 0 : index
    %151 = vector.load %arg3[%c14_123, %c0_124, %c0_125] : memref<48x64x64xbf16, #tpu.memory_space<vmem>>, vector<1x64x64xbf16>
    %152 = vector.shape_cast %151 : vector<1x64x64xbf16> to vector<64x64xbf16>
    %cst_126 = arith.constant dense<0.000000e+00> : vector<32x64xf32>
    %153 = tpu.matmul %150, %152, %cst_126 {dimension_numbers = #tpu.dot_dimension_numbers<[1], [0], [0], [1], [0, 0, 1, 1], [], []>} : vector<32x64xbf16>, vector<64x64xbf16>, vector<32x64xf32> -> vector<32x64xf32>
    %154 = arith.addf %146, %153 : vector<32x64xf32>
    %c4_127 = arith.constant 4 : index
    %c0_128 = arith.constant 0 : index
    %c0_129 = arith.constant 0 : index
    %155 = vector.load %arg4[%c4_127, %c0_128, %c0_129] : memref<16x1x64xf32, #tpu.memory_space<vmem>>, vector<1x1x64xf32>
    %156 = vector.shape_cast %155 : vector<1x1x64xf32> to vector<1x64xf32>
    %157 = vector.broadcast %156 : vector<1x64xf32> to vector<32x64xf32>
    %158 = arith.addf %154, %157 : vector<32x64xf32>
    %cst_130 = arith.constant 0.000000e+00 : f32
    %159 = vector.broadcast %cst_130 : f32 to vector<32x64xf32>
    %160 = arith.maximumf %158, %159 : vector<32x64xf32>
    %161 = arith.truncf %160 : vector<32x64xf32> to vector<32x64xbf16>
    %cst_131 = arith.constant 0.000000e+00 : f32
    %162 = vector.broadcast %cst_131 : f32 to vector<32x64xf32>
    %c15 = arith.constant 15 : index
    %c0_132 = arith.constant 0 : index
    %c0_133 = arith.constant 0 : index
    %163 = vector.load %arg2[%c15, %c0_132, %c0_133] : memref<48x32x32xbf16, #tpu.memory_space<vmem>>, vector<1x32x32xbf16>
    %164 = vector.shape_cast %163 : vector<1x32x32xbf16> to vector<32x32xbf16>
    %cst_134 = arith.constant dense<0.000000e+00> : vector<32x64xf32>
    %165 = tpu.matmul %164, %161, %cst_134 {dimension_numbers = #tpu.dot_dimension_numbers<[1], [0], [0], [1], [0, 0, 1, 1], [], []>} : vector<32x32xbf16>, vector<32x64xbf16>, vector<32x64xf32> -> vector<32x64xf32>
    %166 = arith.truncf %165 : vector<32x64xf32> to vector<32x64xbf16>
    %c15_135 = arith.constant 15 : index
    %c0_136 = arith.constant 0 : index
    %c0_137 = arith.constant 0 : index
    %167 = vector.load %arg3[%c15_135, %c0_136, %c0_137] : memref<48x64x64xbf16, #tpu.memory_space<vmem>>, vector<1x64x64xbf16>
    %168 = vector.shape_cast %167 : vector<1x64x64xbf16> to vector<64x64xbf16>
    %cst_138 = arith.constant dense<0.000000e+00> : vector<32x64xf32>
    %169 = tpu.matmul %166, %168, %cst_138 {dimension_numbers = #tpu.dot_dimension_numbers<[1], [0], [0], [1], [0, 0, 1, 1], [], []>} : vector<32x64xbf16>, vector<64x64xbf16>, vector<32x64xf32> -> vector<32x64xf32>
    %170 = arith.addf %162, %169 : vector<32x64xf32>
    %c16 = arith.constant 16 : index
    %c0_139 = arith.constant 0 : index
    %c0_140 = arith.constant 0 : index
    %171 = vector.load %arg2[%c16, %c0_139, %c0_140] : memref<48x32x32xbf16, #tpu.memory_space<vmem>>, vector<1x32x32xbf16>
    %172 = vector.shape_cast %171 : vector<1x32x32xbf16> to vector<32x32xbf16>
    %cst_141 = arith.constant dense<0.000000e+00> : vector<32x64xf32>
    %173 = tpu.matmul %172, %161, %cst_141 {dimension_numbers = #tpu.dot_dimension_numbers<[1], [0], [0], [1], [0, 0, 1, 1], [], []>} : vector<32x32xbf16>, vector<32x64xbf16>, vector<32x64xf32> -> vector<32x64xf32>
    %174 = arith.truncf %173 : vector<32x64xf32> to vector<32x64xbf16>
    %c16_142 = arith.constant 16 : index
    %c0_143 = arith.constant 0 : index
    %c0_144 = arith.constant 0 : index
    %175 = vector.load %arg3[%c16_142, %c0_143, %c0_144] : memref<48x64x64xbf16, #tpu.memory_space<vmem>>, vector<1x64x64xbf16>
    %176 = vector.shape_cast %175 : vector<1x64x64xbf16> to vector<64x64xbf16>
    %cst_145 = arith.constant dense<0.000000e+00> : vector<32x64xf32>
    %177 = tpu.matmul %174, %176, %cst_145 {dimension_numbers = #tpu.dot_dimension_numbers<[1], [0], [0], [1], [0, 0, 1, 1], [], []>} : vector<32x64xbf16>, vector<64x64xbf16>, vector<32x64xf32> -> vector<32x64xf32>
    %178 = arith.addf %170, %177 : vector<32x64xf32>
    %c17 = arith.constant 17 : index
    %c0_146 = arith.constant 0 : index
    %c0_147 = arith.constant 0 : index
    %179 = vector.load %arg2[%c17, %c0_146, %c0_147] : memref<48x32x32xbf16, #tpu.memory_space<vmem>>, vector<1x32x32xbf16>
    %180 = vector.shape_cast %179 : vector<1x32x32xbf16> to vector<32x32xbf16>
    %cst_148 = arith.constant dense<0.000000e+00> : vector<32x64xf32>
    %181 = tpu.matmul %180, %161, %cst_148 {dimension_numbers = #tpu.dot_dimension_numbers<[1], [0], [0], [1], [0, 0, 1, 1], [], []>} : vector<32x32xbf16>, vector<32x64xbf16>, vector<32x64xf32> -> vector<32x64xf32>
    %182 = arith.truncf %181 : vector<32x64xf32> to vector<32x64xbf16>
    %c17_149 = arith.constant 17 : index
    %c0_150 = arith.constant 0 : index
    %c0_151 = arith.constant 0 : index
    %183 = vector.load %arg3[%c17_149, %c0_150, %c0_151] : memref<48x64x64xbf16, #tpu.memory_space<vmem>>, vector<1x64x64xbf16>
    %184 = vector.shape_cast %183 : vector<1x64x64xbf16> to vector<64x64xbf16>
    %cst_152 = arith.constant dense<0.000000e+00> : vector<32x64xf32>
    %185 = tpu.matmul %182, %184, %cst_152 {dimension_numbers = #tpu.dot_dimension_numbers<[1], [0], [0], [1], [0, 0, 1, 1], [], []>} : vector<32x64xbf16>, vector<64x64xbf16>, vector<32x64xf32> -> vector<32x64xf32>
    %186 = arith.addf %178, %185 : vector<32x64xf32>
    %c5_153 = arith.constant 5 : index
    %c0_154 = arith.constant 0 : index
    %c0_155 = arith.constant 0 : index
    %187 = vector.load %arg4[%c5_153, %c0_154, %c0_155] : memref<16x1x64xf32, #tpu.memory_space<vmem>>, vector<1x1x64xf32>
    %188 = vector.shape_cast %187 : vector<1x1x64xf32> to vector<1x64xf32>
    %189 = vector.broadcast %188 : vector<1x64xf32> to vector<32x64xf32>
    %190 = arith.addf %186, %189 : vector<32x64xf32>
    %cst_156 = arith.constant 0.000000e+00 : f32
    %191 = vector.broadcast %cst_156 : f32 to vector<32x64xf32>
    %192 = arith.maximumf %190, %191 : vector<32x64xf32>
    %193 = arith.truncf %192 : vector<32x64xf32> to vector<32x64xbf16>
    %cst_157 = arith.constant 0.000000e+00 : f32
    %194 = vector.broadcast %cst_157 : f32 to vector<32x64xf32>
    %c18 = arith.constant 18 : index
    %c0_158 = arith.constant 0 : index
    %c0_159 = arith.constant 0 : index
    %195 = vector.load %arg2[%c18, %c0_158, %c0_159] : memref<48x32x32xbf16, #tpu.memory_space<vmem>>, vector<1x32x32xbf16>
    %196 = vector.shape_cast %195 : vector<1x32x32xbf16> to vector<32x32xbf16>
    %cst_160 = arith.constant dense<0.000000e+00> : vector<32x64xf32>
    %197 = tpu.matmul %196, %193, %cst_160 {dimension_numbers = #tpu.dot_dimension_numbers<[1], [0], [0], [1], [0, 0, 1, 1], [], []>} : vector<32x32xbf16>, vector<32x64xbf16>, vector<32x64xf32> -> vector<32x64xf32>
    %198 = arith.truncf %197 : vector<32x64xf32> to vector<32x64xbf16>
    %c18_161 = arith.constant 18 : index
    %c0_162 = arith.constant 0 : index
    %c0_163 = arith.constant 0 : index
    %199 = vector.load %arg3[%c18_161, %c0_162, %c0_163] : memref<48x64x64xbf16, #tpu.memory_space<vmem>>, vector<1x64x64xbf16>
    %200 = vector.shape_cast %199 : vector<1x64x64xbf16> to vector<64x64xbf16>
    %cst_164 = arith.constant dense<0.000000e+00> : vector<32x64xf32>
    %201 = tpu.matmul %198, %200, %cst_164 {dimension_numbers = #tpu.dot_dimension_numbers<[1], [0], [0], [1], [0, 0, 1, 1], [], []>} : vector<32x64xbf16>, vector<64x64xbf16>, vector<32x64xf32> -> vector<32x64xf32>
    %202 = arith.addf %194, %201 : vector<32x64xf32>
    %c19 = arith.constant 19 : index
    %c0_165 = arith.constant 0 : index
    %c0_166 = arith.constant 0 : index
    %203 = vector.load %arg2[%c19, %c0_165, %c0_166] : memref<48x32x32xbf16, #tpu.memory_space<vmem>>, vector<1x32x32xbf16>
    %204 = vector.shape_cast %203 : vector<1x32x32xbf16> to vector<32x32xbf16>
    %cst_167 = arith.constant dense<0.000000e+00> : vector<32x64xf32>
    %205 = tpu.matmul %204, %193, %cst_167 {dimension_numbers = #tpu.dot_dimension_numbers<[1], [0], [0], [1], [0, 0, 1, 1], [], []>} : vector<32x32xbf16>, vector<32x64xbf16>, vector<32x64xf32> -> vector<32x64xf32>
    %206 = arith.truncf %205 : vector<32x64xf32> to vector<32x64xbf16>
    %c19_168 = arith.constant 19 : index
    %c0_169 = arith.constant 0 : index
    %c0_170 = arith.constant 0 : index
    %207 = vector.load %arg3[%c19_168, %c0_169, %c0_170] : memref<48x64x64xbf16, #tpu.memory_space<vmem>>, vector<1x64x64xbf16>
    %208 = vector.shape_cast %207 : vector<1x64x64xbf16> to vector<64x64xbf16>
    %cst_171 = arith.constant dense<0.000000e+00> : vector<32x64xf32>
    %209 = tpu.matmul %206, %208, %cst_171 {dimension_numbers = #tpu.dot_dimension_numbers<[1], [0], [0], [1], [0, 0, 1, 1], [], []>} : vector<32x64xbf16>, vector<64x64xbf16>, vector<32x64xf32> -> vector<32x64xf32>
    %210 = arith.addf %202, %209 : vector<32x64xf32>
    %c20 = arith.constant 20 : index
    %c0_172 = arith.constant 0 : index
    %c0_173 = arith.constant 0 : index
    %211 = vector.load %arg2[%c20, %c0_172, %c0_173] : memref<48x32x32xbf16, #tpu.memory_space<vmem>>, vector<1x32x32xbf16>
    %212 = vector.shape_cast %211 : vector<1x32x32xbf16> to vector<32x32xbf16>
    %cst_174 = arith.constant dense<0.000000e+00> : vector<32x64xf32>
    %213 = tpu.matmul %212, %193, %cst_174 {dimension_numbers = #tpu.dot_dimension_numbers<[1], [0], [0], [1], [0, 0, 1, 1], [], []>} : vector<32x32xbf16>, vector<32x64xbf16>, vector<32x64xf32> -> vector<32x64xf32>
    %214 = arith.truncf %213 : vector<32x64xf32> to vector<32x64xbf16>
    %c20_175 = arith.constant 20 : index
    %c0_176 = arith.constant 0 : index
    %c0_177 = arith.constant 0 : index
    %215 = vector.load %arg3[%c20_175, %c0_176, %c0_177] : memref<48x64x64xbf16, #tpu.memory_space<vmem>>, vector<1x64x64xbf16>
    %216 = vector.shape_cast %215 : vector<1x64x64xbf16> to vector<64x64xbf16>
    %cst_178 = arith.constant dense<0.000000e+00> : vector<32x64xf32>
    %217 = tpu.matmul %214, %216, %cst_178 {dimension_numbers = #tpu.dot_dimension_numbers<[1], [0], [0], [1], [0, 0, 1, 1], [], []>} : vector<32x64xbf16>, vector<64x64xbf16>, vector<32x64xf32> -> vector<32x64xf32>
    %218 = arith.addf %210, %217 : vector<32x64xf32>
    %c6_179 = arith.constant 6 : index
    %c0_180 = arith.constant 0 : index
    %c0_181 = arith.constant 0 : index
    %219 = vector.load %arg4[%c6_179, %c0_180, %c0_181] : memref<16x1x64xf32, #tpu.memory_space<vmem>>, vector<1x1x64xf32>
    %220 = vector.shape_cast %219 : vector<1x1x64xf32> to vector<1x64xf32>
    %221 = vector.broadcast %220 : vector<1x64xf32> to vector<32x64xf32>
    %222 = arith.addf %218, %221 : vector<32x64xf32>
    %cst_182 = arith.constant 0.000000e+00 : f32
    %223 = vector.broadcast %cst_182 : f32 to vector<32x64xf32>
    %224 = arith.maximumf %222, %223 : vector<32x64xf32>
    %225 = arith.truncf %224 : vector<32x64xf32> to vector<32x64xbf16>
    %cst_183 = arith.constant 0.000000e+00 : f32
    %226 = vector.broadcast %cst_183 : f32 to vector<32x64xf32>
    %c21 = arith.constant 21 : index
    %c0_184 = arith.constant 0 : index
    %c0_185 = arith.constant 0 : index
    %227 = vector.load %arg2[%c21, %c0_184, %c0_185] : memref<48x32x32xbf16, #tpu.memory_space<vmem>>, vector<1x32x32xbf16>
    %228 = vector.shape_cast %227 : vector<1x32x32xbf16> to vector<32x32xbf16>
    %cst_186 = arith.constant dense<0.000000e+00> : vector<32x64xf32>
    %229 = tpu.matmul %228, %225, %cst_186 {dimension_numbers = #tpu.dot_dimension_numbers<[1], [0], [0], [1], [0, 0, 1, 1], [], []>} : vector<32x32xbf16>, vector<32x64xbf16>, vector<32x64xf32> -> vector<32x64xf32>
    %230 = arith.truncf %229 : vector<32x64xf32> to vector<32x64xbf16>
    %c21_187 = arith.constant 21 : index
    %c0_188 = arith.constant 0 : index
    %c0_189 = arith.constant 0 : index
    %231 = vector.load %arg3[%c21_187, %c0_188, %c0_189] : memref<48x64x64xbf16, #tpu.memory_space<vmem>>, vector<1x64x64xbf16>
    %232 = vector.shape_cast %231 : vector<1x64x64xbf16> to vector<64x64xbf16>
    %cst_190 = arith.constant dense<0.000000e+00> : vector<32x64xf32>
    %233 = tpu.matmul %230, %232, %cst_190 {dimension_numbers = #tpu.dot_dimension_numbers<[1], [0], [0], [1], [0, 0, 1, 1], [], []>} : vector<32x64xbf16>, vector<64x64xbf16>, vector<32x64xf32> -> vector<32x64xf32>
    %234 = arith.addf %226, %233 : vector<32x64xf32>
    %c22 = arith.constant 22 : index
    %c0_191 = arith.constant 0 : index
    %c0_192 = arith.constant 0 : index
    %235 = vector.load %arg2[%c22, %c0_191, %c0_192] : memref<48x32x32xbf16, #tpu.memory_space<vmem>>, vector<1x32x32xbf16>
    %236 = vector.shape_cast %235 : vector<1x32x32xbf16> to vector<32x32xbf16>
    %cst_193 = arith.constant dense<0.000000e+00> : vector<32x64xf32>
    %237 = tpu.matmul %236, %225, %cst_193 {dimension_numbers = #tpu.dot_dimension_numbers<[1], [0], [0], [1], [0, 0, 1, 1], [], []>} : vector<32x32xbf16>, vector<32x64xbf16>, vector<32x64xf32> -> vector<32x64xf32>
    %238 = arith.truncf %237 : vector<32x64xf32> to vector<32x64xbf16>
    %c22_194 = arith.constant 22 : index
    %c0_195 = arith.constant 0 : index
    %c0_196 = arith.constant 0 : index
    %239 = vector.load %arg3[%c22_194, %c0_195, %c0_196] : memref<48x64x64xbf16, #tpu.memory_space<vmem>>, vector<1x64x64xbf16>
    %240 = vector.shape_cast %239 : vector<1x64x64xbf16> to vector<64x64xbf16>
    %cst_197 = arith.constant dense<0.000000e+00> : vector<32x64xf32>
    %241 = tpu.matmul %238, %240, %cst_197 {dimension_numbers = #tpu.dot_dimension_numbers<[1], [0], [0], [1], [0, 0, 1, 1], [], []>} : vector<32x64xbf16>, vector<64x64xbf16>, vector<32x64xf32> -> vector<32x64xf32>
    %242 = arith.addf %234, %241 : vector<32x64xf32>
    %c23 = arith.constant 23 : index
    %c0_198 = arith.constant 0 : index
    %c0_199 = arith.constant 0 : index
    %243 = vector.load %arg2[%c23, %c0_198, %c0_199] : memref<48x32x32xbf16, #tpu.memory_space<vmem>>, vector<1x32x32xbf16>
    %244 = vector.shape_cast %243 : vector<1x32x32xbf16> to vector<32x32xbf16>
    %cst_200 = arith.constant dense<0.000000e+00> : vector<32x64xf32>
    %245 = tpu.matmul %244, %225, %cst_200 {dimension_numbers = #tpu.dot_dimension_numbers<[1], [0], [0], [1], [0, 0, 1, 1], [], []>} : vector<32x32xbf16>, vector<32x64xbf16>, vector<32x64xf32> -> vector<32x64xf32>
    %246 = arith.truncf %245 : vector<32x64xf32> to vector<32x64xbf16>
    %c23_201 = arith.constant 23 : index
    %c0_202 = arith.constant 0 : index
    %c0_203 = arith.constant 0 : index
    %247 = vector.load %arg3[%c23_201, %c0_202, %c0_203] : memref<48x64x64xbf16, #tpu.memory_space<vmem>>, vector<1x64x64xbf16>
    %248 = vector.shape_cast %247 : vector<1x64x64xbf16> to vector<64x64xbf16>
    %cst_204 = arith.constant dense<0.000000e+00> : vector<32x64xf32>
    %249 = tpu.matmul %246, %248, %cst_204 {dimension_numbers = #tpu.dot_dimension_numbers<[1], [0], [0], [1], [0, 0, 1, 1], [], []>} : vector<32x64xbf16>, vector<64x64xbf16>, vector<32x64xf32> -> vector<32x64xf32>
    %250 = arith.addf %242, %249 : vector<32x64xf32>
    %c7_205 = arith.constant 7 : index
    %c0_206 = arith.constant 0 : index
    %c0_207 = arith.constant 0 : index
    %251 = vector.load %arg4[%c7_205, %c0_206, %c0_207] : memref<16x1x64xf32, #tpu.memory_space<vmem>>, vector<1x1x64xf32>
    %252 = vector.shape_cast %251 : vector<1x1x64xf32> to vector<1x64xf32>
    %253 = vector.broadcast %252 : vector<1x64xf32> to vector<32x64xf32>
    %254 = arith.addf %250, %253 : vector<32x64xf32>
    %cst_208 = arith.constant 0.000000e+00 : f32
    %255 = vector.broadcast %cst_208 : f32 to vector<32x64xf32>
    %256 = arith.maximumf %254, %255 : vector<32x64xf32>
    %257 = arith.truncf %256 : vector<32x64xf32> to vector<32x64xbf16>
    %cst_209 = arith.constant 0.000000e+00 : f32
    %258 = vector.broadcast %cst_209 : f32 to vector<32x64xf32>
    %c24 = arith.constant 24 : index
    %c0_210 = arith.constant 0 : index
    %c0_211 = arith.constant 0 : index
    %259 = vector.load %arg2[%c24, %c0_210, %c0_211] : memref<48x32x32xbf16, #tpu.memory_space<vmem>>, vector<1x32x32xbf16>
    %260 = vector.shape_cast %259 : vector<1x32x32xbf16> to vector<32x32xbf16>
    %cst_212 = arith.constant dense<0.000000e+00> : vector<32x64xf32>
    %261 = tpu.matmul %260, %257, %cst_212 {dimension_numbers = #tpu.dot_dimension_numbers<[1], [0], [0], [1], [0, 0, 1, 1], [], []>} : vector<32x32xbf16>, vector<32x64xbf16>, vector<32x64xf32> -> vector<32x64xf32>
    %262 = arith.truncf %261 : vector<32x64xf32> to vector<32x64xbf16>
    %c24_213 = arith.constant 24 : index
    %c0_214 = arith.constant 0 : index
    %c0_215 = arith.constant 0 : index
    %263 = vector.load %arg3[%c24_213, %c0_214, %c0_215] : memref<48x64x64xbf16, #tpu.memory_space<vmem>>, vector<1x64x64xbf16>
    %264 = vector.shape_cast %263 : vector<1x64x64xbf16> to vector<64x64xbf16>
    %cst_216 = arith.constant dense<0.000000e+00> : vector<32x64xf32>
    %265 = tpu.matmul %262, %264, %cst_216 {dimension_numbers = #tpu.dot_dimension_numbers<[1], [0], [0], [1], [0, 0, 1, 1], [], []>} : vector<32x64xbf16>, vector<64x64xbf16>, vector<32x64xf32> -> vector<32x64xf32>
    %266 = arith.addf %258, %265 : vector<32x64xf32>
    %c25 = arith.constant 25 : index
    %c0_217 = arith.constant 0 : index
    %c0_218 = arith.constant 0 : index
    %267 = vector.load %arg2[%c25, %c0_217, %c0_218] : memref<48x32x32xbf16, #tpu.memory_space<vmem>>, vector<1x32x32xbf16>
    %268 = vector.shape_cast %267 : vector<1x32x32xbf16> to vector<32x32xbf16>
    %cst_219 = arith.constant dense<0.000000e+00> : vector<32x64xf32>
    %269 = tpu.matmul %268, %257, %cst_219 {dimension_numbers = #tpu.dot_dimension_numbers<[1], [0], [0], [1], [0, 0, 1, 1], [], []>} : vector<32x32xbf16>, vector<32x64xbf16>, vector<32x64xf32> -> vector<32x64xf32>
    %270 = arith.truncf %269 : vector<32x64xf32> to vector<32x64xbf16>
    %c25_220 = arith.constant 25 : index
    %c0_221 = arith.constant 0 : index
    %c0_222 = arith.constant 0 : index
    %271 = vector.load %arg3[%c25_220, %c0_221, %c0_222] : memref<48x64x64xbf16, #tpu.memory_space<vmem>>, vector<1x64x64xbf16>
    %272 = vector.shape_cast %271 : vector<1x64x64xbf16> to vector<64x64xbf16>
    %cst_223 = arith.constant dense<0.000000e+00> : vector<32x64xf32>
    %273 = tpu.matmul %270, %272, %cst_223 {dimension_numbers = #tpu.dot_dimension_numbers<[1], [0], [0], [1], [0, 0, 1, 1], [], []>} : vector<32x64xbf16>, vector<64x64xbf16>, vector<32x64xf32> -> vector<32x64xf32>
    %274 = arith.addf %266, %273 : vector<32x64xf32>
    %c26 = arith.constant 26 : index
    %c0_224 = arith.constant 0 : index
    %c0_225 = arith.constant 0 : index
    %275 = vector.load %arg2[%c26, %c0_224, %c0_225] : memref<48x32x32xbf16, #tpu.memory_space<vmem>>, vector<1x32x32xbf16>
    %276 = vector.shape_cast %275 : vector<1x32x32xbf16> to vector<32x32xbf16>
    %cst_226 = arith.constant dense<0.000000e+00> : vector<32x64xf32>
    %277 = tpu.matmul %276, %257, %cst_226 {dimension_numbers = #tpu.dot_dimension_numbers<[1], [0], [0], [1], [0, 0, 1, 1], [], []>} : vector<32x32xbf16>, vector<32x64xbf16>, vector<32x64xf32> -> vector<32x64xf32>
    %278 = arith.truncf %277 : vector<32x64xf32> to vector<32x64xbf16>
    %c26_227 = arith.constant 26 : index
    %c0_228 = arith.constant 0 : index
    %c0_229 = arith.constant 0 : index
    %279 = vector.load %arg3[%c26_227, %c0_228, %c0_229] : memref<48x64x64xbf16, #tpu.memory_space<vmem>>, vector<1x64x64xbf16>
    %280 = vector.shape_cast %279 : vector<1x64x64xbf16> to vector<64x64xbf16>
    %cst_230 = arith.constant dense<0.000000e+00> : vector<32x64xf32>
    %281 = tpu.matmul %278, %280, %cst_230 {dimension_numbers = #tpu.dot_dimension_numbers<[1], [0], [0], [1], [0, 0, 1, 1], [], []>} : vector<32x64xbf16>, vector<64x64xbf16>, vector<32x64xf32> -> vector<32x64xf32>
    %282 = arith.addf %274, %281 : vector<32x64xf32>
    %c8_231 = arith.constant 8 : index
    %c0_232 = arith.constant 0 : index
    %c0_233 = arith.constant 0 : index
    %283 = vector.load %arg4[%c8_231, %c0_232, %c0_233] : memref<16x1x64xf32, #tpu.memory_space<vmem>>, vector<1x1x64xf32>
    %284 = vector.shape_cast %283 : vector<1x1x64xf32> to vector<1x64xf32>
    %285 = vector.broadcast %284 : vector<1x64xf32> to vector<32x64xf32>
    %286 = arith.addf %282, %285 : vector<32x64xf32>
    %cst_234 = arith.constant 0.000000e+00 : f32
    %287 = vector.broadcast %cst_234 : f32 to vector<32x64xf32>
    %288 = arith.maximumf %286, %287 : vector<32x64xf32>
    %289 = arith.truncf %288 : vector<32x64xf32> to vector<32x64xbf16>
    %cst_235 = arith.constant 0.000000e+00 : f32
    %290 = vector.broadcast %cst_235 : f32 to vector<32x64xf32>
    %c27 = arith.constant 27 : index
    %c0_236 = arith.constant 0 : index
    %c0_237 = arith.constant 0 : index
    %291 = vector.load %arg2[%c27, %c0_236, %c0_237] : memref<48x32x32xbf16, #tpu.memory_space<vmem>>, vector<1x32x32xbf16>
    %292 = vector.shape_cast %291 : vector<1x32x32xbf16> to vector<32x32xbf16>
    %cst_238 = arith.constant dense<0.000000e+00> : vector<32x64xf32>
    %293 = tpu.matmul %292, %289, %cst_238 {dimension_numbers = #tpu.dot_dimension_numbers<[1], [0], [0], [1], [0, 0, 1, 1], [], []>} : vector<32x32xbf16>, vector<32x64xbf16>, vector<32x64xf32> -> vector<32x64xf32>
    %294 = arith.truncf %293 : vector<32x64xf32> to vector<32x64xbf16>
    %c27_239 = arith.constant 27 : index
    %c0_240 = arith.constant 0 : index
    %c0_241 = arith.constant 0 : index
    %295 = vector.load %arg3[%c27_239, %c0_240, %c0_241] : memref<48x64x64xbf16, #tpu.memory_space<vmem>>, vector<1x64x64xbf16>
    %296 = vector.shape_cast %295 : vector<1x64x64xbf16> to vector<64x64xbf16>
    %cst_242 = arith.constant dense<0.000000e+00> : vector<32x64xf32>
    %297 = tpu.matmul %294, %296, %cst_242 {dimension_numbers = #tpu.dot_dimension_numbers<[1], [0], [0], [1], [0, 0, 1, 1], [], []>} : vector<32x64xbf16>, vector<64x64xbf16>, vector<32x64xf32> -> vector<32x64xf32>
    %298 = arith.addf %290, %297 : vector<32x64xf32>
    %c28 = arith.constant 28 : index
    %c0_243 = arith.constant 0 : index
    %c0_244 = arith.constant 0 : index
    %299 = vector.load %arg2[%c28, %c0_243, %c0_244] : memref<48x32x32xbf16, #tpu.memory_space<vmem>>, vector<1x32x32xbf16>
    %300 = vector.shape_cast %299 : vector<1x32x32xbf16> to vector<32x32xbf16>
    %cst_245 = arith.constant dense<0.000000e+00> : vector<32x64xf32>
    %301 = tpu.matmul %300, %289, %cst_245 {dimension_numbers = #tpu.dot_dimension_numbers<[1], [0], [0], [1], [0, 0, 1, 1], [], []>} : vector<32x32xbf16>, vector<32x64xbf16>, vector<32x64xf32> -> vector<32x64xf32>
    %302 = arith.truncf %301 : vector<32x64xf32> to vector<32x64xbf16>
    %c28_246 = arith.constant 28 : index
    %c0_247 = arith.constant 0 : index
    %c0_248 = arith.constant 0 : index
    %303 = vector.load %arg3[%c28_246, %c0_247, %c0_248] : memref<48x64x64xbf16, #tpu.memory_space<vmem>>, vector<1x64x64xbf16>
    %304 = vector.shape_cast %303 : vector<1x64x64xbf16> to vector<64x64xbf16>
    %cst_249 = arith.constant dense<0.000000e+00> : vector<32x64xf32>
    %305 = tpu.matmul %302, %304, %cst_249 {dimension_numbers = #tpu.dot_dimension_numbers<[1], [0], [0], [1], [0, 0, 1, 1], [], []>} : vector<32x64xbf16>, vector<64x64xbf16>, vector<32x64xf32> -> vector<32x64xf32>
    %306 = arith.addf %298, %305 : vector<32x64xf32>
    %c29 = arith.constant 29 : index
    %c0_250 = arith.constant 0 : index
    %c0_251 = arith.constant 0 : index
    %307 = vector.load %arg2[%c29, %c0_250, %c0_251] : memref<48x32x32xbf16, #tpu.memory_space<vmem>>, vector<1x32x32xbf16>
    %308 = vector.shape_cast %307 : vector<1x32x32xbf16> to vector<32x32xbf16>
    %cst_252 = arith.constant dense<0.000000e+00> : vector<32x64xf32>
    %309 = tpu.matmul %308, %289, %cst_252 {dimension_numbers = #tpu.dot_dimension_numbers<[1], [0], [0], [1], [0, 0, 1, 1], [], []>} : vector<32x32xbf16>, vector<32x64xbf16>, vector<32x64xf32> -> vector<32x64xf32>
    %310 = arith.truncf %309 : vector<32x64xf32> to vector<32x64xbf16>
    %c29_253 = arith.constant 29 : index
    %c0_254 = arith.constant 0 : index
    %c0_255 = arith.constant 0 : index
    %311 = vector.load %arg3[%c29_253, %c0_254, %c0_255] : memref<48x64x64xbf16, #tpu.memory_space<vmem>>, vector<1x64x64xbf16>
    %312 = vector.shape_cast %311 : vector<1x64x64xbf16> to vector<64x64xbf16>
    %cst_256 = arith.constant dense<0.000000e+00> : vector<32x64xf32>
    %313 = tpu.matmul %310, %312, %cst_256 {dimension_numbers = #tpu.dot_dimension_numbers<[1], [0], [0], [1], [0, 0, 1, 1], [], []>} : vector<32x64xbf16>, vector<64x64xbf16>, vector<32x64xf32> -> vector<32x64xf32>
    %314 = arith.addf %306, %313 : vector<32x64xf32>
    %c9_257 = arith.constant 9 : index
    %c0_258 = arith.constant 0 : index
    %c0_259 = arith.constant 0 : index
    %315 = vector.load %arg4[%c9_257, %c0_258, %c0_259] : memref<16x1x64xf32, #tpu.memory_space<vmem>>, vector<1x1x64xf32>
    %316 = vector.shape_cast %315 : vector<1x1x64xf32> to vector<1x64xf32>
    %317 = vector.broadcast %316 : vector<1x64xf32> to vector<32x64xf32>
    %318 = arith.addf %314, %317 : vector<32x64xf32>
    %cst_260 = arith.constant 0.000000e+00 : f32
    %319 = vector.broadcast %cst_260 : f32 to vector<32x64xf32>
    %320 = arith.maximumf %318, %319 : vector<32x64xf32>
    %321 = arith.truncf %320 : vector<32x64xf32> to vector<32x64xbf16>
    %cst_261 = arith.constant 0.000000e+00 : f32
    %322 = vector.broadcast %cst_261 : f32 to vector<32x64xf32>
    %c30 = arith.constant 30 : index
    %c0_262 = arith.constant 0 : index
    %c0_263 = arith.constant 0 : index
    %323 = vector.load %arg2[%c30, %c0_262, %c0_263] : memref<48x32x32xbf16, #tpu.memory_space<vmem>>, vector<1x32x32xbf16>
    %324 = vector.shape_cast %323 : vector<1x32x32xbf16> to vector<32x32xbf16>
    %cst_264 = arith.constant dense<0.000000e+00> : vector<32x64xf32>
    %325 = tpu.matmul %324, %321, %cst_264 {dimension_numbers = #tpu.dot_dimension_numbers<[1], [0], [0], [1], [0, 0, 1, 1], [], []>} : vector<32x32xbf16>, vector<32x64xbf16>, vector<32x64xf32> -> vector<32x64xf32>
    %326 = arith.truncf %325 : vector<32x64xf32> to vector<32x64xbf16>
    %c30_265 = arith.constant 30 : index
    %c0_266 = arith.constant 0 : index
    %c0_267 = arith.constant 0 : index
    %327 = vector.load %arg3[%c30_265, %c0_266, %c0_267] : memref<48x64x64xbf16, #tpu.memory_space<vmem>>, vector<1x64x64xbf16>
    %328 = vector.shape_cast %327 : vector<1x64x64xbf16> to vector<64x64xbf16>
    %cst_268 = arith.constant dense<0.000000e+00> : vector<32x64xf32>
    %329 = tpu.matmul %326, %328, %cst_268 {dimension_numbers = #tpu.dot_dimension_numbers<[1], [0], [0], [1], [0, 0, 1, 1], [], []>} : vector<32x64xbf16>, vector<64x64xbf16>, vector<32x64xf32> -> vector<32x64xf32>
    %330 = arith.addf %322, %329 : vector<32x64xf32>
    %c31 = arith.constant 31 : index
    %c0_269 = arith.constant 0 : index
    %c0_270 = arith.constant 0 : index
    %331 = vector.load %arg2[%c31, %c0_269, %c0_270] : memref<48x32x32xbf16, #tpu.memory_space<vmem>>, vector<1x32x32xbf16>
    %332 = vector.shape_cast %331 : vector<1x32x32xbf16> to vector<32x32xbf16>
    %cst_271 = arith.constant dense<0.000000e+00> : vector<32x64xf32>
    %333 = tpu.matmul %332, %321, %cst_271 {dimension_numbers = #tpu.dot_dimension_numbers<[1], [0], [0], [1], [0, 0, 1, 1], [], []>} : vector<32x32xbf16>, vector<32x64xbf16>, vector<32x64xf32> -> vector<32x64xf32>
    %334 = arith.truncf %333 : vector<32x64xf32> to vector<32x64xbf16>
    %c31_272 = arith.constant 31 : index
    %c0_273 = arith.constant 0 : index
    %c0_274 = arith.constant 0 : index
    %335 = vector.load %arg3[%c31_272, %c0_273, %c0_274] : memref<48x64x64xbf16, #tpu.memory_space<vmem>>, vector<1x64x64xbf16>
    %336 = vector.shape_cast %335 : vector<1x64x64xbf16> to vector<64x64xbf16>
    %cst_275 = arith.constant dense<0.000000e+00> : vector<32x64xf32>
    %337 = tpu.matmul %334, %336, %cst_275 {dimension_numbers = #tpu.dot_dimension_numbers<[1], [0], [0], [1], [0, 0, 1, 1], [], []>} : vector<32x64xbf16>, vector<64x64xbf16>, vector<32x64xf32> -> vector<32x64xf32>
    %338 = arith.addf %330, %337 : vector<32x64xf32>
    %c32 = arith.constant 32 : index
    %c0_276 = arith.constant 0 : index
    %c0_277 = arith.constant 0 : index
    %339 = vector.load %arg2[%c32, %c0_276, %c0_277] : memref<48x32x32xbf16, #tpu.memory_space<vmem>>, vector<1x32x32xbf16>
    %340 = vector.shape_cast %339 : vector<1x32x32xbf16> to vector<32x32xbf16>
    %cst_278 = arith.constant dense<0.000000e+00> : vector<32x64xf32>
    %341 = tpu.matmul %340, %321, %cst_278 {dimension_numbers = #tpu.dot_dimension_numbers<[1], [0], [0], [1], [0, 0, 1, 1], [], []>} : vector<32x32xbf16>, vector<32x64xbf16>, vector<32x64xf32> -> vector<32x64xf32>
    %342 = arith.truncf %341 : vector<32x64xf32> to vector<32x64xbf16>
    %c32_279 = arith.constant 32 : index
    %c0_280 = arith.constant 0 : index
    %c0_281 = arith.constant 0 : index
    %343 = vector.load %arg3[%c32_279, %c0_280, %c0_281] : memref<48x64x64xbf16, #tpu.memory_space<vmem>>, vector<1x64x64xbf16>
    %344 = vector.shape_cast %343 : vector<1x64x64xbf16> to vector<64x64xbf16>
    %cst_282 = arith.constant dense<0.000000e+00> : vector<32x64xf32>
    %345 = tpu.matmul %342, %344, %cst_282 {dimension_numbers = #tpu.dot_dimension_numbers<[1], [0], [0], [1], [0, 0, 1, 1], [], []>} : vector<32x64xbf16>, vector<64x64xbf16>, vector<32x64xf32> -> vector<32x64xf32>
    %346 = arith.addf %338, %345 : vector<32x64xf32>
    %c10_283 = arith.constant 10 : index
    %c0_284 = arith.constant 0 : index
    %c0_285 = arith.constant 0 : index
    %347 = vector.load %arg4[%c10_283, %c0_284, %c0_285] : memref<16x1x64xf32, #tpu.memory_space<vmem>>, vector<1x1x64xf32>
    %348 = vector.shape_cast %347 : vector<1x1x64xf32> to vector<1x64xf32>
    %349 = vector.broadcast %348 : vector<1x64xf32> to vector<32x64xf32>
    %350 = arith.addf %346, %349 : vector<32x64xf32>
    %cst_286 = arith.constant 0.000000e+00 : f32
    %351 = vector.broadcast %cst_286 : f32 to vector<32x64xf32>
    %352 = arith.maximumf %350, %351 : vector<32x64xf32>
    %353 = arith.truncf %352 : vector<32x64xf32> to vector<32x64xbf16>
    %cst_287 = arith.constant 0.000000e+00 : f32
    %354 = vector.broadcast %cst_287 : f32 to vector<32x64xf32>
    %c33 = arith.constant 33 : index
    %c0_288 = arith.constant 0 : index
    %c0_289 = arith.constant 0 : index
    %355 = vector.load %arg2[%c33, %c0_288, %c0_289] : memref<48x32x32xbf16, #tpu.memory_space<vmem>>, vector<1x32x32xbf16>
    %356 = vector.shape_cast %355 : vector<1x32x32xbf16> to vector<32x32xbf16>
    %cst_290 = arith.constant dense<0.000000e+00> : vector<32x64xf32>
    %357 = tpu.matmul %356, %353, %cst_290 {dimension_numbers = #tpu.dot_dimension_numbers<[1], [0], [0], [1], [0, 0, 1, 1], [], []>} : vector<32x32xbf16>, vector<32x64xbf16>, vector<32x64xf32> -> vector<32x64xf32>
    %358 = arith.truncf %357 : vector<32x64xf32> to vector<32x64xbf16>
    %c33_291 = arith.constant 33 : index
    %c0_292 = arith.constant 0 : index
    %c0_293 = arith.constant 0 : index
    %359 = vector.load %arg3[%c33_291, %c0_292, %c0_293] : memref<48x64x64xbf16, #tpu.memory_space<vmem>>, vector<1x64x64xbf16>
    %360 = vector.shape_cast %359 : vector<1x64x64xbf16> to vector<64x64xbf16>
    %cst_294 = arith.constant dense<0.000000e+00> : vector<32x64xf32>
    %361 = tpu.matmul %358, %360, %cst_294 {dimension_numbers = #tpu.dot_dimension_numbers<[1], [0], [0], [1], [0, 0, 1, 1], [], []>} : vector<32x64xbf16>, vector<64x64xbf16>, vector<32x64xf32> -> vector<32x64xf32>
    %362 = arith.addf %354, %361 : vector<32x64xf32>
    %c34 = arith.constant 34 : index
    %c0_295 = arith.constant 0 : index
    %c0_296 = arith.constant 0 : index
    %363 = vector.load %arg2[%c34, %c0_295, %c0_296] : memref<48x32x32xbf16, #tpu.memory_space<vmem>>, vector<1x32x32xbf16>
    %364 = vector.shape_cast %363 : vector<1x32x32xbf16> to vector<32x32xbf16>
    %cst_297 = arith.constant dense<0.000000e+00> : vector<32x64xf32>
    %365 = tpu.matmul %364, %353, %cst_297 {dimension_numbers = #tpu.dot_dimension_numbers<[1], [0], [0], [1], [0, 0, 1, 1], [], []>} : vector<32x32xbf16>, vector<32x64xbf16>, vector<32x64xf32> -> vector<32x64xf32>
    %366 = arith.truncf %365 : vector<32x64xf32> to vector<32x64xbf16>
    %c34_298 = arith.constant 34 : index
    %c0_299 = arith.constant 0 : index
    %c0_300 = arith.constant 0 : index
    %367 = vector.load %arg3[%c34_298, %c0_299, %c0_300] : memref<48x64x64xbf16, #tpu.memory_space<vmem>>, vector<1x64x64xbf16>
    %368 = vector.shape_cast %367 : vector<1x64x64xbf16> to vector<64x64xbf16>
    %cst_301 = arith.constant dense<0.000000e+00> : vector<32x64xf32>
    %369 = tpu.matmul %366, %368, %cst_301 {dimension_numbers = #tpu.dot_dimension_numbers<[1], [0], [0], [1], [0, 0, 1, 1], [], []>} : vector<32x64xbf16>, vector<64x64xbf16>, vector<32x64xf32> -> vector<32x64xf32>
    %370 = arith.addf %362, %369 : vector<32x64xf32>
    %c35 = arith.constant 35 : index
    %c0_302 = arith.constant 0 : index
    %c0_303 = arith.constant 0 : index
    %371 = vector.load %arg2[%c35, %c0_302, %c0_303] : memref<48x32x32xbf16, #tpu.memory_space<vmem>>, vector<1x32x32xbf16>
    %372 = vector.shape_cast %371 : vector<1x32x32xbf16> to vector<32x32xbf16>
    %cst_304 = arith.constant dense<0.000000e+00> : vector<32x64xf32>
    %373 = tpu.matmul %372, %353, %cst_304 {dimension_numbers = #tpu.dot_dimension_numbers<[1], [0], [0], [1], [0, 0, 1, 1], [], []>} : vector<32x32xbf16>, vector<32x64xbf16>, vector<32x64xf32> -> vector<32x64xf32>
    %374 = arith.truncf %373 : vector<32x64xf32> to vector<32x64xbf16>
    %c35_305 = arith.constant 35 : index
    %c0_306 = arith.constant 0 : index
    %c0_307 = arith.constant 0 : index
    %375 = vector.load %arg3[%c35_305, %c0_306, %c0_307] : memref<48x64x64xbf16, #tpu.memory_space<vmem>>, vector<1x64x64xbf16>
    %376 = vector.shape_cast %375 : vector<1x64x64xbf16> to vector<64x64xbf16>
    %cst_308 = arith.constant dense<0.000000e+00> : vector<32x64xf32>
    %377 = tpu.matmul %374, %376, %cst_308 {dimension_numbers = #tpu.dot_dimension_numbers<[1], [0], [0], [1], [0, 0, 1, 1], [], []>} : vector<32x64xbf16>, vector<64x64xbf16>, vector<32x64xf32> -> vector<32x64xf32>
    %378 = arith.addf %370, %377 : vector<32x64xf32>
    %c11_309 = arith.constant 11 : index
    %c0_310 = arith.constant 0 : index
    %c0_311 = arith.constant 0 : index
    %379 = vector.load %arg4[%c11_309, %c0_310, %c0_311] : memref<16x1x64xf32, #tpu.memory_space<vmem>>, vector<1x1x64xf32>
    %380 = vector.shape_cast %379 : vector<1x1x64xf32> to vector<1x64xf32>
    %381 = vector.broadcast %380 : vector<1x64xf32> to vector<32x64xf32>
    %382 = arith.addf %378, %381 : vector<32x64xf32>
    %383 = arith.truncf %382 : vector<32x64xf32> to vector<32x64xbf16>
    %cst_312 = arith.constant 0.000000e+00 : f32
    %384 = vector.broadcast %cst_312 : f32 to vector<32x64xf32>
    %c36 = arith.constant 36 : index
    %c0_313 = arith.constant 0 : index
    %c0_314 = arith.constant 0 : index
    %385 = vector.load %arg2[%c36, %c0_313, %c0_314] : memref<48x32x32xbf16, #tpu.memory_space<vmem>>, vector<1x32x32xbf16>
    %386 = vector.shape_cast %385 : vector<1x32x32xbf16> to vector<32x32xbf16>
    %cst_315 = arith.constant dense<0.000000e+00> : vector<32x64xf32>
    %387 = tpu.matmul %386, %383, %cst_315 {dimension_numbers = #tpu.dot_dimension_numbers<[1], [0], [0], [1], [0, 0, 1, 1], [], []>} : vector<32x32xbf16>, vector<32x64xbf16>, vector<32x64xf32> -> vector<32x64xf32>
    %388 = arith.truncf %387 : vector<32x64xf32> to vector<32x64xbf16>
    %c36_316 = arith.constant 36 : index
    %c0_317 = arith.constant 0 : index
    %c0_318 = arith.constant 0 : index
    %389 = vector.load %arg3[%c36_316, %c0_317, %c0_318] : memref<48x64x64xbf16, #tpu.memory_space<vmem>>, vector<1x64x64xbf16>
    %390 = vector.shape_cast %389 : vector<1x64x64xbf16> to vector<64x64xbf16>
    %cst_319 = arith.constant dense<0.000000e+00> : vector<32x64xf32>
    %391 = tpu.matmul %388, %390, %cst_319 {dimension_numbers = #tpu.dot_dimension_numbers<[1], [0], [0], [1], [0, 0, 1, 1], [], []>} : vector<32x64xbf16>, vector<64x64xbf16>, vector<32x64xf32> -> vector<32x64xf32>
    %392 = arith.addf %384, %391 : vector<32x64xf32>
    %c37 = arith.constant 37 : index
    %c0_320 = arith.constant 0 : index
    %c0_321 = arith.constant 0 : index
    %393 = vector.load %arg2[%c37, %c0_320, %c0_321] : memref<48x32x32xbf16, #tpu.memory_space<vmem>>, vector<1x32x32xbf16>
    %394 = vector.shape_cast %393 : vector<1x32x32xbf16> to vector<32x32xbf16>
    %cst_322 = arith.constant dense<0.000000e+00> : vector<32x64xf32>
    %395 = tpu.matmul %394, %383, %cst_322 {dimension_numbers = #tpu.dot_dimension_numbers<[1], [0], [0], [1], [0, 0, 1, 1], [], []>} : vector<32x32xbf16>, vector<32x64xbf16>, vector<32x64xf32> -> vector<32x64xf32>
    %396 = arith.truncf %395 : vector<32x64xf32> to vector<32x64xbf16>
    %c37_323 = arith.constant 37 : index
    %c0_324 = arith.constant 0 : index
    %c0_325 = arith.constant 0 : index
    %397 = vector.load %arg3[%c37_323, %c0_324, %c0_325] : memref<48x64x64xbf16, #tpu.memory_space<vmem>>, vector<1x64x64xbf16>
    %398 = vector.shape_cast %397 : vector<1x64x64xbf16> to vector<64x64xbf16>
    %cst_326 = arith.constant dense<0.000000e+00> : vector<32x64xf32>
    %399 = tpu.matmul %396, %398, %cst_326 {dimension_numbers = #tpu.dot_dimension_numbers<[1], [0], [0], [1], [0, 0, 1, 1], [], []>} : vector<32x64xbf16>, vector<64x64xbf16>, vector<32x64xf32> -> vector<32x64xf32>
    %400 = arith.addf %392, %399 : vector<32x64xf32>
    %c38 = arith.constant 38 : index
    %c0_327 = arith.constant 0 : index
    %c0_328 = arith.constant 0 : index
    %401 = vector.load %arg2[%c38, %c0_327, %c0_328] : memref<48x32x32xbf16, #tpu.memory_space<vmem>>, vector<1x32x32xbf16>
    %402 = vector.shape_cast %401 : vector<1x32x32xbf16> to vector<32x32xbf16>
    %cst_329 = arith.constant dense<0.000000e+00> : vector<32x64xf32>
    %403 = tpu.matmul %402, %383, %cst_329 {dimension_numbers = #tpu.dot_dimension_numbers<[1], [0], [0], [1], [0, 0, 1, 1], [], []>} : vector<32x32xbf16>, vector<32x64xbf16>, vector<32x64xf32> -> vector<32x64xf32>
    %404 = arith.truncf %403 : vector<32x64xf32> to vector<32x64xbf16>
    %c38_330 = arith.constant 38 : index
    %c0_331 = arith.constant 0 : index
    %c0_332 = arith.constant 0 : index
    %405 = vector.load %arg3[%c38_330, %c0_331, %c0_332] : memref<48x64x64xbf16, #tpu.memory_space<vmem>>, vector<1x64x64xbf16>
    %406 = vector.shape_cast %405 : vector<1x64x64xbf16> to vector<64x64xbf16>
    %cst_333 = arith.constant dense<0.000000e+00> : vector<32x64xf32>
    %407 = tpu.matmul %404, %406, %cst_333 {dimension_numbers = #tpu.dot_dimension_numbers<[1], [0], [0], [1], [0, 0, 1, 1], [], []>} : vector<32x64xbf16>, vector<64x64xbf16>, vector<32x64xf32> -> vector<32x64xf32>
    %408 = arith.addf %400, %407 : vector<32x64xf32>
    %c12_334 = arith.constant 12 : index
    %c0_335 = arith.constant 0 : index
    %c0_336 = arith.constant 0 : index
    %409 = vector.load %arg4[%c12_334, %c0_335, %c0_336] : memref<16x1x64xf32, #tpu.memory_space<vmem>>, vector<1x1x64xf32>
    %410 = vector.shape_cast %409 : vector<1x1x64xf32> to vector<1x64xf32>
    %411 = vector.broadcast %410 : vector<1x64xf32> to vector<32x64xf32>
    %412 = arith.addf %408, %411 : vector<32x64xf32>
    %413 = arith.truncf %412 : vector<32x64xf32> to vector<32x64xbf16>
    %cst_337 = arith.constant 0.000000e+00 : f32
    %414 = vector.broadcast %cst_337 : f32 to vector<32x64xf32>
    %c39 = arith.constant 39 : index
    %c0_338 = arith.constant 0 : index
    %c0_339 = arith.constant 0 : index
    %415 = vector.load %arg2[%c39, %c0_338, %c0_339] : memref<48x32x32xbf16, #tpu.memory_space<vmem>>, vector<1x32x32xbf16>
    %416 = vector.shape_cast %415 : vector<1x32x32xbf16> to vector<32x32xbf16>
    %cst_340 = arith.constant dense<0.000000e+00> : vector<32x64xf32>
    %417 = tpu.matmul %416, %413, %cst_340 {dimension_numbers = #tpu.dot_dimension_numbers<[1], [0], [0], [1], [0, 0, 1, 1], [], []>} : vector<32x32xbf16>, vector<32x64xbf16>, vector<32x64xf32> -> vector<32x64xf32>
    %418 = arith.truncf %417 : vector<32x64xf32> to vector<32x64xbf16>
    %c39_341 = arith.constant 39 : index
    %c0_342 = arith.constant 0 : index
    %c0_343 = arith.constant 0 : index
    %419 = vector.load %arg3[%c39_341, %c0_342, %c0_343] : memref<48x64x64xbf16, #tpu.memory_space<vmem>>, vector<1x64x64xbf16>
    %420 = vector.shape_cast %419 : vector<1x64x64xbf16> to vector<64x64xbf16>
    %cst_344 = arith.constant dense<0.000000e+00> : vector<32x64xf32>
    %421 = tpu.matmul %418, %420, %cst_344 {dimension_numbers = #tpu.dot_dimension_numbers<[1], [0], [0], [1], [0, 0, 1, 1], [], []>} : vector<32x64xbf16>, vector<64x64xbf16>, vector<32x64xf32> -> vector<32x64xf32>
    %422 = arith.addf %414, %421 : vector<32x64xf32>
    %c40 = arith.constant 40 : index
    %c0_345 = arith.constant 0 : index
    %c0_346 = arith.constant 0 : index
    %423 = vector.load %arg2[%c40, %c0_345, %c0_346] : memref<48x32x32xbf16, #tpu.memory_space<vmem>>, vector<1x32x32xbf16>
    %424 = vector.shape_cast %423 : vector<1x32x32xbf16> to vector<32x32xbf16>
    %cst_347 = arith.constant dense<0.000000e+00> : vector<32x64xf32>
    %425 = tpu.matmul %424, %413, %cst_347 {dimension_numbers = #tpu.dot_dimension_numbers<[1], [0], [0], [1], [0, 0, 1, 1], [], []>} : vector<32x32xbf16>, vector<32x64xbf16>, vector<32x64xf32> -> vector<32x64xf32>
    %426 = arith.truncf %425 : vector<32x64xf32> to vector<32x64xbf16>
    %c40_348 = arith.constant 40 : index
    %c0_349 = arith.constant 0 : index
    %c0_350 = arith.constant 0 : index
    %427 = vector.load %arg3[%c40_348, %c0_349, %c0_350] : memref<48x64x64xbf16, #tpu.memory_space<vmem>>, vector<1x64x64xbf16>
    %428 = vector.shape_cast %427 : vector<1x64x64xbf16> to vector<64x64xbf16>
    %cst_351 = arith.constant dense<0.000000e+00> : vector<32x64xf32>
    %429 = tpu.matmul %426, %428, %cst_351 {dimension_numbers = #tpu.dot_dimension_numbers<[1], [0], [0], [1], [0, 0, 1, 1], [], []>} : vector<32x64xbf16>, vector<64x64xbf16>, vector<32x64xf32> -> vector<32x64xf32>
    %430 = arith.addf %422, %429 : vector<32x64xf32>
    %c41 = arith.constant 41 : index
    %c0_352 = arith.constant 0 : index
    %c0_353 = arith.constant 0 : index
    %431 = vector.load %arg2[%c41, %c0_352, %c0_353] : memref<48x32x32xbf16, #tpu.memory_space<vmem>>, vector<1x32x32xbf16>
    %432 = vector.shape_cast %431 : vector<1x32x32xbf16> to vector<32x32xbf16>
    %cst_354 = arith.constant dense<0.000000e+00> : vector<32x64xf32>
    %433 = tpu.matmul %432, %413, %cst_354 {dimension_numbers = #tpu.dot_dimension_numbers<[1], [0], [0], [1], [0, 0, 1, 1], [], []>} : vector<32x32xbf16>, vector<32x64xbf16>, vector<32x64xf32> -> vector<32x64xf32>
    %434 = arith.truncf %433 : vector<32x64xf32> to vector<32x64xbf16>
    %c41_355 = arith.constant 41 : index
    %c0_356 = arith.constant 0 : index
    %c0_357 = arith.constant 0 : index
    %435 = vector.load %arg3[%c41_355, %c0_356, %c0_357] : memref<48x64x64xbf16, #tpu.memory_space<vmem>>, vector<1x64x64xbf16>
    %436 = vector.shape_cast %435 : vector<1x64x64xbf16> to vector<64x64xbf16>
    %cst_358 = arith.constant dense<0.000000e+00> : vector<32x64xf32>
    %437 = tpu.matmul %434, %436, %cst_358 {dimension_numbers = #tpu.dot_dimension_numbers<[1], [0], [0], [1], [0, 0, 1, 1], [], []>} : vector<32x64xbf16>, vector<64x64xbf16>, vector<32x64xf32> -> vector<32x64xf32>
    %438 = arith.addf %430, %437 : vector<32x64xf32>
    %c13_359 = arith.constant 13 : index
    %c0_360 = arith.constant 0 : index
    %c0_361 = arith.constant 0 : index
    %439 = vector.load %arg4[%c13_359, %c0_360, %c0_361] : memref<16x1x64xf32, #tpu.memory_space<vmem>>, vector<1x1x64xf32>
    %440 = vector.shape_cast %439 : vector<1x1x64xf32> to vector<1x64xf32>
    %441 = vector.broadcast %440 : vector<1x64xf32> to vector<32x64xf32>
    %442 = arith.addf %438, %441 : vector<32x64xf32>
    %443 = arith.truncf %442 : vector<32x64xf32> to vector<32x64xbf16>
    %cst_362 = arith.constant 0.000000e+00 : f32
    %444 = vector.broadcast %cst_362 : f32 to vector<32x64xf32>
    %c42 = arith.constant 42 : index
    %c0_363 = arith.constant 0 : index
    %c0_364 = arith.constant 0 : index
    %445 = vector.load %arg2[%c42, %c0_363, %c0_364] : memref<48x32x32xbf16, #tpu.memory_space<vmem>>, vector<1x32x32xbf16>
    %446 = vector.shape_cast %445 : vector<1x32x32xbf16> to vector<32x32xbf16>
    %cst_365 = arith.constant dense<0.000000e+00> : vector<32x64xf32>
    %447 = tpu.matmul %446, %443, %cst_365 {dimension_numbers = #tpu.dot_dimension_numbers<[1], [0], [0], [1], [0, 0, 1, 1], [], []>} : vector<32x32xbf16>, vector<32x64xbf16>, vector<32x64xf32> -> vector<32x64xf32>
    %448 = arith.truncf %447 : vector<32x64xf32> to vector<32x64xbf16>
    %c42_366 = arith.constant 42 : index
    %c0_367 = arith.constant 0 : index
    %c0_368 = arith.constant 0 : index
    %449 = vector.load %arg3[%c42_366, %c0_367, %c0_368] : memref<48x64x64xbf16, #tpu.memory_space<vmem>>, vector<1x64x64xbf16>
    %450 = vector.shape_cast %449 : vector<1x64x64xbf16> to vector<64x64xbf16>
    %cst_369 = arith.constant dense<0.000000e+00> : vector<32x64xf32>
    %451 = tpu.matmul %448, %450, %cst_369 {dimension_numbers = #tpu.dot_dimension_numbers<[1], [0], [0], [1], [0, 0, 1, 1], [], []>} : vector<32x64xbf16>, vector<64x64xbf16>, vector<32x64xf32> -> vector<32x64xf32>
    %452 = arith.addf %444, %451 : vector<32x64xf32>
    %c43 = arith.constant 43 : index
    %c0_370 = arith.constant 0 : index
    %c0_371 = arith.constant 0 : index
    %453 = vector.load %arg2[%c43, %c0_370, %c0_371] : memref<48x32x32xbf16, #tpu.memory_space<vmem>>, vector<1x32x32xbf16>
    %454 = vector.shape_cast %453 : vector<1x32x32xbf16> to vector<32x32xbf16>
    %cst_372 = arith.constant dense<0.000000e+00> : vector<32x64xf32>
    %455 = tpu.matmul %454, %443, %cst_372 {dimension_numbers = #tpu.dot_dimension_numbers<[1], [0], [0], [1], [0, 0, 1, 1], [], []>} : vector<32x32xbf16>, vector<32x64xbf16>, vector<32x64xf32> -> vector<32x64xf32>
    %456 = arith.truncf %455 : vector<32x64xf32> to vector<32x64xbf16>
    %c43_373 = arith.constant 43 : index
    %c0_374 = arith.constant 0 : index
    %c0_375 = arith.constant 0 : index
    %457 = vector.load %arg3[%c43_373, %c0_374, %c0_375] : memref<48x64x64xbf16, #tpu.memory_space<vmem>>, vector<1x64x64xbf16>
    %458 = vector.shape_cast %457 : vector<1x64x64xbf16> to vector<64x64xbf16>
    %cst_376 = arith.constant dense<0.000000e+00> : vector<32x64xf32>
    %459 = tpu.matmul %456, %458, %cst_376 {dimension_numbers = #tpu.dot_dimension_numbers<[1], [0], [0], [1], [0, 0, 1, 1], [], []>} : vector<32x64xbf16>, vector<64x64xbf16>, vector<32x64xf32> -> vector<32x64xf32>
    %460 = arith.addf %452, %459 : vector<32x64xf32>
    %c44 = arith.constant 44 : index
    %c0_377 = arith.constant 0 : index
    %c0_378 = arith.constant 0 : index
    %461 = vector.load %arg2[%c44, %c0_377, %c0_378] : memref<48x32x32xbf16, #tpu.memory_space<vmem>>, vector<1x32x32xbf16>
    %462 = vector.shape_cast %461 : vector<1x32x32xbf16> to vector<32x32xbf16>
    %cst_379 = arith.constant dense<0.000000e+00> : vector<32x64xf32>
    %463 = tpu.matmul %462, %443, %cst_379 {dimension_numbers = #tpu.dot_dimension_numbers<[1], [0], [0], [1], [0, 0, 1, 1], [], []>} : vector<32x32xbf16>, vector<32x64xbf16>, vector<32x64xf32> -> vector<32x64xf32>
    %464 = arith.truncf %463 : vector<32x64xf32> to vector<32x64xbf16>
    %c44_380 = arith.constant 44 : index
    %c0_381 = arith.constant 0 : index
    %c0_382 = arith.constant 0 : index
    %465 = vector.load %arg3[%c44_380, %c0_381, %c0_382] : memref<48x64x64xbf16, #tpu.memory_space<vmem>>, vector<1x64x64xbf16>
    %466 = vector.shape_cast %465 : vector<1x64x64xbf16> to vector<64x64xbf16>
    %cst_383 = arith.constant dense<0.000000e+00> : vector<32x64xf32>
    %467 = tpu.matmul %464, %466, %cst_383 {dimension_numbers = #tpu.dot_dimension_numbers<[1], [0], [0], [1], [0, 0, 1, 1], [], []>} : vector<32x64xbf16>, vector<64x64xbf16>, vector<32x64xf32> -> vector<32x64xf32>
    %468 = arith.addf %460, %467 : vector<32x64xf32>
    %c14_384 = arith.constant 14 : index
    %c0_385 = arith.constant 0 : index
    %c0_386 = arith.constant 0 : index
    %469 = vector.load %arg4[%c14_384, %c0_385, %c0_386] : memref<16x1x64xf32, #tpu.memory_space<vmem>>, vector<1x1x64xf32>
    %470 = vector.shape_cast %469 : vector<1x1x64xf32> to vector<1x64xf32>
    %471 = vector.broadcast %470 : vector<1x64xf32> to vector<32x64xf32>
    %472 = arith.addf %468, %471 : vector<32x64xf32>
    %473 = arith.truncf %472 : vector<32x64xf32> to vector<32x64xbf16>
    %cst_387 = arith.constant 0.000000e+00 : f32
    %474 = vector.broadcast %cst_387 : f32 to vector<32x64xf32>
    %c45 = arith.constant 45 : index
    %c0_388 = arith.constant 0 : index
    %c0_389 = arith.constant 0 : index
    %475 = vector.load %arg2[%c45, %c0_388, %c0_389] : memref<48x32x32xbf16, #tpu.memory_space<vmem>>, vector<1x32x32xbf16>
    %476 = vector.shape_cast %475 : vector<1x32x32xbf16> to vector<32x32xbf16>
    %cst_390 = arith.constant dense<0.000000e+00> : vector<32x64xf32>
    %477 = tpu.matmul %476, %473, %cst_390 {dimension_numbers = #tpu.dot_dimension_numbers<[1], [0], [0], [1], [0, 0, 1, 1], [], []>} : vector<32x32xbf16>, vector<32x64xbf16>, vector<32x64xf32> -> vector<32x64xf32>
    %478 = arith.truncf %477 : vector<32x64xf32> to vector<32x64xbf16>
    %c45_391 = arith.constant 45 : index
    %c0_392 = arith.constant 0 : index
    %c0_393 = arith.constant 0 : index
    %479 = vector.load %arg3[%c45_391, %c0_392, %c0_393] : memref<48x64x64xbf16, #tpu.memory_space<vmem>>, vector<1x64x64xbf16>
    %480 = vector.shape_cast %479 : vector<1x64x64xbf16> to vector<64x64xbf16>
    %cst_394 = arith.constant dense<0.000000e+00> : vector<32x64xf32>
    %481 = tpu.matmul %478, %480, %cst_394 {dimension_numbers = #tpu.dot_dimension_numbers<[1], [0], [0], [1], [0, 0, 1, 1], [], []>} : vector<32x64xbf16>, vector<64x64xbf16>, vector<32x64xf32> -> vector<32x64xf32>
    %482 = arith.addf %474, %481 : vector<32x64xf32>
    %c46 = arith.constant 46 : index
    %c0_395 = arith.constant 0 : index
    %c0_396 = arith.constant 0 : index
    %483 = vector.load %arg2[%c46, %c0_395, %c0_396] : memref<48x32x32xbf16, #tpu.memory_space<vmem>>, vector<1x32x32xbf16>
    %484 = vector.shape_cast %483 : vector<1x32x32xbf16> to vector<32x32xbf16>
    %cst_397 = arith.constant dense<0.000000e+00> : vector<32x64xf32>
    %485 = tpu.matmul %484, %473, %cst_397 {dimension_numbers = #tpu.dot_dimension_numbers<[1], [0], [0], [1], [0, 0, 1, 1], [], []>} : vector<32x32xbf16>, vector<32x64xbf16>, vector<32x64xf32> -> vector<32x64xf32>
    %486 = arith.truncf %485 : vector<32x64xf32> to vector<32x64xbf16>
    %c46_398 = arith.constant 46 : index
    %c0_399 = arith.constant 0 : index
    %c0_400 = arith.constant 0 : index
    %487 = vector.load %arg3[%c46_398, %c0_399, %c0_400] : memref<48x64x64xbf16, #tpu.memory_space<vmem>>, vector<1x64x64xbf16>
    %488 = vector.shape_cast %487 : vector<1x64x64xbf16> to vector<64x64xbf16>
    %cst_401 = arith.constant dense<0.000000e+00> : vector<32x64xf32>
    %489 = tpu.matmul %486, %488, %cst_401 {dimension_numbers = #tpu.dot_dimension_numbers<[1], [0], [0], [1], [0, 0, 1, 1], [], []>} : vector<32x64xbf16>, vector<64x64xbf16>, vector<32x64xf32> -> vector<32x64xf32>
    %490 = arith.addf %482, %489 : vector<32x64xf32>
    %c47 = arith.constant 47 : index
    %c0_402 = arith.constant 0 : index
    %c0_403 = arith.constant 0 : index
    %491 = vector.load %arg2[%c47, %c0_402, %c0_403] : memref<48x32x32xbf16, #tpu.memory_space<vmem>>, vector<1x32x32xbf16>
    %492 = vector.shape_cast %491 : vector<1x32x32xbf16> to vector<32x32xbf16>
    %cst_404 = arith.constant dense<0.000000e+00> : vector<32x64xf32>
    %493 = tpu.matmul %492, %473, %cst_404 {dimension_numbers = #tpu.dot_dimension_numbers<[1], [0], [0], [1], [0, 0, 1, 1], [], []>} : vector<32x32xbf16>, vector<32x64xbf16>, vector<32x64xf32> -> vector<32x64xf32>
    %494 = arith.truncf %493 : vector<32x64xf32> to vector<32x64xbf16>
    %c47_405 = arith.constant 47 : index
    %c0_406 = arith.constant 0 : index
    %c0_407 = arith.constant 0 : index
    %495 = vector.load %arg3[%c47_405, %c0_406, %c0_407] : memref<48x64x64xbf16, #tpu.memory_space<vmem>>, vector<1x64x64xbf16>
    %496 = vector.shape_cast %495 : vector<1x64x64xbf16> to vector<64x64xbf16>
    %cst_408 = arith.constant dense<0.000000e+00> : vector<32x64xf32>
    %497 = tpu.matmul %494, %496, %cst_408 {dimension_numbers = #tpu.dot_dimension_numbers<[1], [0], [0], [1], [0, 0, 1, 1], [], []>} : vector<32x64xbf16>, vector<64x64xbf16>, vector<32x64xf32> -> vector<32x64xf32>
    %498 = arith.addf %490, %497 : vector<32x64xf32>
    %c15_409 = arith.constant 15 : index
    %c0_410 = arith.constant 0 : index
    %c0_411 = arith.constant 0 : index
    %499 = vector.load %arg4[%c15_409, %c0_410, %c0_411] : memref<16x1x64xf32, #tpu.memory_space<vmem>>, vector<1x1x64xf32>
    %500 = vector.shape_cast %499 : vector<1x1x64xf32> to vector<1x64xf32>
    %501 = vector.broadcast %500 : vector<1x64xf32> to vector<32x64xf32>
    %502 = arith.addf %498, %501 : vector<32x64xf32>
    %503 = arith.truncf %502 : vector<32x64xf32> to vector<32x64xbf16>
    %cst_412 = arith.constant 0.000000e+00 : f32
    %504 = vector.broadcast %cst_412 : f32 to vector<16x64xf32>
    %c0_413 = arith.constant 0 : index
    %c0_414 = arith.constant 0 : index
    %c0_415 = arith.constant 0 : index
    %505 = vector.load %arg5[%c0_413, %c0_414, %c0_415] : memref<7x16x32xbf16, #tpu.memory_space<vmem>>, vector<1x16x32xbf16>
    %506 = vector.shape_cast %505 : vector<1x16x32xbf16> to vector<16x32xbf16>
    %cst_416 = arith.constant dense<0.000000e+00> : vector<16x64xf32>
    %507 = tpu.matmul %506, %503, %cst_416 {dimension_numbers = #tpu.dot_dimension_numbers<[1], [0], [0], [1], [0, 0, 1, 1], [], []>} : vector<16x32xbf16>, vector<32x64xbf16>, vector<16x64xf32> -> vector<16x64xf32>
    %508 = arith.truncf %507 : vector<16x64xf32> to vector<16x64xbf16>
    %c0_417 = arith.constant 0 : index
    %c0_418 = arith.constant 0 : index
    %c0_419 = arith.constant 0 : index
    %509 = vector.load %arg6[%c0_417, %c0_418, %c0_419] : memref<7x64x64xbf16, #tpu.memory_space<vmem>>, vector<1x64x64xbf16>
    %510 = vector.shape_cast %509 : vector<1x64x64xbf16> to vector<64x64xbf16>
    %cst_420 = arith.constant dense<0.000000e+00> : vector<16x64xf32>
    %511 = tpu.matmul %508, %510, %cst_420 {dimension_numbers = #tpu.dot_dimension_numbers<[1], [0], [0], [1], [0, 0, 1, 1], [], []>} : vector<16x64xbf16>, vector<64x64xbf16>, vector<16x64xf32> -> vector<16x64xf32>
    %512 = arith.addf %504, %511 : vector<16x64xf32>
    %c1_421 = arith.constant 1 : index
    %c0_422 = arith.constant 0 : index
    %c0_423 = arith.constant 0 : index
    %513 = vector.load %arg5[%c1_421, %c0_422, %c0_423] : memref<7x16x32xbf16, #tpu.memory_space<vmem>>, vector<1x16x32xbf16>
    %514 = vector.shape_cast %513 : vector<1x16x32xbf16> to vector<16x32xbf16>
    %cst_424 = arith.constant dense<0.000000e+00> : vector<16x64xf32>
    %515 = tpu.matmul %514, %503, %cst_424 {dimension_numbers = #tpu.dot_dimension_numbers<[1], [0], [0], [1], [0, 0, 1, 1], [], []>} : vector<16x32xbf16>, vector<32x64xbf16>, vector<16x64xf32> -> vector<16x64xf32>
    %516 = arith.truncf %515 : vector<16x64xf32> to vector<16x64xbf16>
    %c1_425 = arith.constant 1 : index
    %c0_426 = arith.constant 0 : index
    %c0_427 = arith.constant 0 : index
    %517 = vector.load %arg6[%c1_425, %c0_426, %c0_427] : memref<7x64x64xbf16, #tpu.memory_space<vmem>>, vector<1x64x64xbf16>
    %518 = vector.shape_cast %517 : vector<1x64x64xbf16> to vector<64x64xbf16>
    %cst_428 = arith.constant dense<0.000000e+00> : vector<16x64xf32>
    %519 = tpu.matmul %516, %518, %cst_428 {dimension_numbers = #tpu.dot_dimension_numbers<[1], [0], [0], [1], [0, 0, 1, 1], [], []>} : vector<16x64xbf16>, vector<64x64xbf16>, vector<16x64xf32> -> vector<16x64xf32>
    %520 = arith.addf %512, %519 : vector<16x64xf32>
    %c2_429 = arith.constant 2 : index
    %c0_430 = arith.constant 0 : index
    %c0_431 = arith.constant 0 : index
    %521 = vector.load %arg5[%c2_429, %c0_430, %c0_431] : memref<7x16x32xbf16, #tpu.memory_space<vmem>>, vector<1x16x32xbf16>
    %522 = vector.shape_cast %521 : vector<1x16x32xbf16> to vector<16x32xbf16>
    %cst_432 = arith.constant dense<0.000000e+00> : vector<16x64xf32>
    %523 = tpu.matmul %522, %503, %cst_432 {dimension_numbers = #tpu.dot_dimension_numbers<[1], [0], [0], [1], [0, 0, 1, 1], [], []>} : vector<16x32xbf16>, vector<32x64xbf16>, vector<16x64xf32> -> vector<16x64xf32>
    %524 = arith.truncf %523 : vector<16x64xf32> to vector<16x64xbf16>
    %c2_433 = arith.constant 2 : index
    %c0_434 = arith.constant 0 : index
    %c0_435 = arith.constant 0 : index
    %525 = vector.load %arg6[%c2_433, %c0_434, %c0_435] : memref<7x64x64xbf16, #tpu.memory_space<vmem>>, vector<1x64x64xbf16>
    %526 = vector.shape_cast %525 : vector<1x64x64xbf16> to vector<64x64xbf16>
    %cst_436 = arith.constant dense<0.000000e+00> : vector<16x64xf32>
    %527 = tpu.matmul %524, %526, %cst_436 {dimension_numbers = #tpu.dot_dimension_numbers<[1], [0], [0], [1], [0, 0, 1, 1], [], []>} : vector<16x64xbf16>, vector<64x64xbf16>, vector<16x64xf32> -> vector<16x64xf32>
    %528 = arith.addf %520, %527 : vector<16x64xf32>
    %c3_437 = arith.constant 3 : index
    %c0_438 = arith.constant 0 : index
    %c0_439 = arith.constant 0 : index
    %529 = vector.load %arg5[%c3_437, %c0_438, %c0_439] : memref<7x16x32xbf16, #tpu.memory_space<vmem>>, vector<1x16x32xbf16>
    %530 = vector.shape_cast %529 : vector<1x16x32xbf16> to vector<16x32xbf16>
    %cst_440 = arith.constant dense<0.000000e+00> : vector<16x64xf32>
    %531 = tpu.matmul %530, %503, %cst_440 {dimension_numbers = #tpu.dot_dimension_numbers<[1], [0], [0], [1], [0, 0, 1, 1], [], []>} : vector<16x32xbf16>, vector<32x64xbf16>, vector<16x64xf32> -> vector<16x64xf32>
    %532 = arith.truncf %531 : vector<16x64xf32> to vector<16x64xbf16>
    %c3_441 = arith.constant 3 : index
    %c0_442 = arith.constant 0 : index
    %c0_443 = arith.constant 0 : index
    %533 = vector.load %arg6[%c3_441, %c0_442, %c0_443] : memref<7x64x64xbf16, #tpu.memory_space<vmem>>, vector<1x64x64xbf16>
    %534 = vector.shape_cast %533 : vector<1x64x64xbf16> to vector<64x64xbf16>
    %cst_444 = arith.constant dense<0.000000e+00> : vector<16x64xf32>
    %535 = tpu.matmul %532, %534, %cst_444 {dimension_numbers = #tpu.dot_dimension_numbers<[1], [0], [0], [1], [0, 0, 1, 1], [], []>} : vector<16x64xbf16>, vector<64x64xbf16>, vector<16x64xf32> -> vector<16x64xf32>
    %536 = arith.addf %528, %535 : vector<16x64xf32>
    %c0_445 = arith.constant 0 : index
    %c0_446 = arith.constant 0 : index
    %c0_447 = arith.constant 0 : index
    %537 = vector.load %arg7[%c0_445, %c0_446, %c0_447] : memref<3x1x64xf32, #tpu.memory_space<vmem>>, vector<1x1x64xf32>
    %538 = vector.shape_cast %537 : vector<1x1x64xf32> to vector<1x64xf32>
    %539 = vector.broadcast %538 : vector<1x64xf32> to vector<16x64xf32>
    %540 = arith.addf %536, %539 : vector<16x64xf32>
    %c0_448 = arith.constant 0 : index
    %c0_449 = arith.constant 0 : index
    %c0_450 = arith.constant 0 : index
    %541 = vector.load %arg8[%c0_448, %c0_449, %c0_450] : memref<3x16x64xf32, #tpu.memory_space<vmem>>, vector<1x16x64xf32>
    %542 = vector.shape_cast %541 : vector<1x16x64xf32> to vector<16x64xf32>
    %543 = vector.shape_cast %540 : vector<16x64xf32> to vector<1x16x64xf32>
    tpu.vector_store %arg8[%c0_448, %c0_449, %c0_450], %543 {strides = array<i32>} : memref<3x16x64xf32, #tpu.memory_space<vmem>>, vector<1x16x64xf32>,
    %544 = arith.truncf %320 : vector<32x64xf32> to vector<32x64xbf16>
    %cst_451 = arith.constant 0.000000e+00 : f32
    %545 = vector.broadcast %cst_451 : f32 to vector<16x64xf32>
    %c4_452 = arith.constant 4 : index
    %c0_453 = arith.constant 0 : index
    %c0_454 = arith.constant 0 : index
    %546 = vector.load %arg5[%c4_452, %c0_453, %c0_454] : memref<7x16x32xbf16, #tpu.memory_space<vmem>>, vector<1x16x32xbf16>
    %547 = vector.shape_cast %546 : vector<1x16x32xbf16> to vector<16x32xbf16>
    %cst_455 = arith.constant dense<0.000000e+00> : vector<16x64xf32>
    %548 = tpu.matmul %547, %544, %cst_455 {dimension_numbers = #tpu.dot_dimension_numbers<[1], [0], [0], [1], [0, 0, 1, 1], [], []>} : vector<16x32xbf16>, vector<32x64xbf16>, vector<16x64xf32> -> vector<16x64xf32>
    %549 = arith.truncf %548 : vector<16x64xf32> to vector<16x64xbf16>
    %c4_456 = arith.constant 4 : index
    %c0_457 = arith.constant 0 : index
    %c0_458 = arith.constant 0 : index
    %550 = vector.load %arg6[%c4_456, %c0_457, %c0_458] : memref<7x64x64xbf16, #tpu.memory_space<vmem>>, vector<1x64x64xbf16>
    %551 = vector.shape_cast %550 : vector<1x64x64xbf16> to vector<64x64xbf16>
    %cst_459 = arith.constant dense<0.000000e+00> : vector<16x64xf32>
    %552 = tpu.matmul %549, %551, %cst_459 {dimension_numbers = #tpu.dot_dimension_numbers<[1], [0], [0], [1], [0, 0, 1, 1], [], []>} : vector<16x64xbf16>, vector<64x64xbf16>, vector<16x64xf32> -> vector<16x64xf32>
    %553 = arith.addf %545, %552 : vector<16x64xf32>
    %c5_460 = arith.constant 5 : index
    %c0_461 = arith.constant 0 : index
    %c0_462 = arith.constant 0 : index
    %554 = vector.load %arg5[%c5_460, %c0_461, %c0_462] : memref<7x16x32xbf16, #tpu.memory_space<vmem>>, vector<1x16x32xbf16>
    %555 = vector.shape_cast %554 : vector<1x16x32xbf16> to vector<16x32xbf16>
    %cst_463 = arith.constant dense<0.000000e+00> : vector<16x64xf32>
    %556 = tpu.matmul %555, %544, %cst_463 {dimension_numbers = #tpu.dot_dimension_numbers<[1], [0], [0], [1], [0, 0, 1, 1], [], []>} : vector<16x32xbf16>, vector<32x64xbf16>, vector<16x64xf32> -> vector<16x64xf32>
    %557 = arith.truncf %556 : vector<16x64xf32> to vector<16x64xbf16>
    %c5_464 = arith.constant 5 : index
    %c0_465 = arith.constant 0 : index
    %c0_466 = arith.constant 0 : index
    %558 = vector.load %arg6[%c5_464, %c0_465, %c0_466] : memref<7x64x64xbf16, #tpu.memory_space<vmem>>, vector<1x64x64xbf16>
    %559 = vector.shape_cast %558 : vector<1x64x64xbf16> to vector<64x64xbf16>
    %cst_467 = arith.constant dense<0.000000e+00> : vector<16x64xf32>
    %560 = tpu.matmul %557, %559, %cst_467 {dimension_numbers = #tpu.dot_dimension_numbers<[1], [0], [0], [1], [0, 0, 1, 1], [], []>} : vector<16x64xbf16>, vector<64x64xbf16>, vector<16x64xf32> -> vector<16x64xf32>
    %561 = arith.addf %553, %560 : vector<16x64xf32>
    %c1_468 = arith.constant 1 : index
    %c0_469 = arith.constant 0 : index
    %c0_470 = arith.constant 0 : index
    %562 = vector.load %arg7[%c1_468, %c0_469, %c0_470] : memref<3x1x64xf32, #tpu.memory_space<vmem>>, vector<1x1x64xf32>
    %563 = vector.shape_cast %562 : vector<1x1x64xf32> to vector<1x64xf32>
    %564 = vector.broadcast %563 : vector<1x64xf32> to vector<16x64xf32>
    %565 = arith.addf %561, %564 : vector<16x64xf32>
    %c1_471 = arith.constant 1 : index
    %c0_472 = arith.constant 0 : index
    %c0_473 = arith.constant 0 : index
    %566 = vector.load %arg8[%c1_471, %c0_472, %c0_473] : memref<3x16x64xf32, #tpu.memory_space<vmem>>, vector<1x16x64xf32>
    %567 = vector.shape_cast %566 : vector<1x16x64xf32> to vector<16x64xf32>
    %568 = vector.shape_cast %565 : vector<16x64xf32> to vector<1x16x64xf32>
    tpu.vector_store %arg8[%c1_471, %c0_472, %c0_473], %568 {strides = array<i32>} : memref<3x16x64xf32, #tpu.memory_space<vmem>>, vector<1x16x64xf32>,
    %569 = arith.truncf %128 : vector<32x64xf32> to vector<32x64xbf16>
    %cst_474 = arith.constant 0.000000e+00 : f32
    %570 = vector.broadcast %cst_474 : f32 to vector<16x64xf32>
    %c6_475 = arith.constant 6 : index
    %c0_476 = arith.constant 0 : index
    %c0_477 = arith.constant 0 : index
    %571 = vector.load %arg5[%c6_475, %c0_476, %c0_477] : memref<7x16x32xbf16, #tpu.memory_space<vmem>>, vector<1x16x32xbf16>
    %572 = vector.shape_cast %571 : vector<1x16x32xbf16> to vector<16x32xbf16>
    %cst_478 = arith.constant dense<0.000000e+00> : vector<16x64xf32>
    %573 = tpu.matmul %572, %569, %cst_478 {dimension_numbers = #tpu.dot_dimension_numbers<[1], [0], [0], [1], [0, 0, 1, 1], [], []>} : vector<16x32xbf16>, vector<32x64xbf16>, vector<16x64xf32> -> vector<16x64xf32>
    %574 = arith.truncf %573 : vector<16x64xf32> to vector<16x64xbf16>
    %c6_479 = arith.constant 6 : index
    %c0_480 = arith.constant 0 : index
    %c0_481 = arith.constant 0 : index
    %575 = vector.load %arg6[%c6_479, %c0_480, %c0_481] : memref<7x64x64xbf16, #tpu.memory_space<vmem>>, vector<1x64x64xbf16>
    %576 = vector.shape_cast %575 : vector<1x64x64xbf16> to vector<64x64xbf16>
    %cst_482 = arith.constant dense<0.000000e+00> : vector<16x64xf32>
    %577 = tpu.matmul %574, %576, %cst_482 {dimension_numbers = #tpu.dot_dimension_numbers<[1], [0], [0], [1], [0, 0, 1, 1], [], []>} : vector<16x64xbf16>, vector<64x64xbf16>, vector<16x64xf32> -> vector<16x64xf32>
    %578 = arith.addf %570, %577 : vector<16x64xf32>
    %c2_483 = arith.constant 2 : index
    %c0_484 = arith.constant 0 : index
    %c0_485 = arith.constant 0 : index
    %579 = vector.load %arg7[%c2_483, %c0_484, %c0_485] : memref<3x1x64xf32, #tpu.memory_space<vmem>>, vector<1x1x64xf32>
    %580 = vector.shape_cast %579 : vector<1x1x64xf32> to vector<1x64xf32>
    %581 = vector.broadcast %580 : vector<1x64xf32> to vector<16x64xf32>
    %582 = arith.addf %578, %581 : vector<16x64xf32>
    %c2_486 = arith.constant 2 : index
    %c0_487 = arith.constant 0 : index
    %c0_488 = arith.constant 0 : index
    %583 = vector.load %arg8[%c2_486, %c0_487, %c0_488] : memref<3x16x64xf32, #tpu.memory_space<vmem>>, vector<1x16x64xf32>
    %584 = vector.shape_cast %583 : vector<1x16x64xf32> to vector<16x64xf32>
    %585 = vector.shape_cast %582 : vector<16x64xf32> to vector<1x16x64xf32>
    tpu.vector_store %arg8[%c2_486, %c0_487, %c0_488], %585 {strides = array<i32>} : memref<3x16x64xf32, #tpu.memory_space<vmem>>, vector<1x16x64xf32>,
    return
  }
  func.func @transform_0(%arg0: i32) -> (i32, i32) {
    %c0_i32 = arith.constant 0 : i32
    %c0_i32_0 = arith.constant 0 : i32
    %c0_i32_1 = arith.constant 0 : i32
    return %c0_i32, %c0_i32_0 : i32, i32
  }
  func.func @transform_1(%arg0: i32) -> (i32, i32, i32) {
    %c0_i32 = arith.constant 0 : i32
    %c0_i32_0 = arith.constant 0 : i32
    %c0_i32_1 = arith.constant 0 : i32
    %c0_i32_2 = arith.constant 0 : i32
    return %c0_i32, %c0_i32_0, %c0_i32_1 : i32, i32, i32
  }
  func.func @transform_2(%arg0: i32) -> (i32, i32, i32) {
    %c0_i32 = arith.constant 0 : i32
    %c0_i32_0 = arith.constant 0 : i32
    %c0_i32_1 = arith.constant 0 : i32
    %c0_i32_2 = arith.constant 0 : i32
    return %c0_i32, %c0_i32_0, %c0_i32_1 : i32, i32, i32
  }
  func.func @transform_3(%arg0: i32) -> (i32, i32, i32) {
    %c0_i32 = arith.constant 0 : i32
    %c0_i32_0 = arith.constant 0 : i32
    %c0_i32_1 = arith.constant 0 : i32
    %c0_i32_2 = arith.constant 0 : i32
    return %c0_i32, %c0_i32_0, %c0_i32_1 : i32, i32, i32
  }
  func.func @transform_4(%arg0: i32) -> (i32, i32, i32) {
    %c0_i32 = arith.constant 0 : i32
    %c0_i32_0 = arith.constant 0 : i32
    %c0_i32_1 = arith.constant 0 : i32
    %c0_i32_2 = arith.constant 0 : i32
    return %c0_i32, %c0_i32_0, %c0_i32_1 : i32, i32, i32
  }
  func.func @transform_5(%arg0: i32) -> (i32, i32, i32) {
    %c0_i32 = arith.constant 0 : i32
    %c0_i32_0 = arith.constant 0 : i32
    %c0_i32_1 = arith.constant 0 : i32
    %c0_i32_2 = arith.constant 0 : i32
    return %c0_i32, %c0_i32_0, %c0_i32_1 : i32, i32, i32
  }
  func.func @transform_6(%arg0: i32) -> (i32, i32, i32) {
    %c0_i32 = arith.constant 0 : i32
    %c0_i32_0 = arith.constant 0 : i32
    %c0_i32_1 = arith.constant 0 : i32
    %c0_i32_2 = arith.constant 0 : i32
    return %c0_i32, %c0_i32_0, %c0_i32_1 : i32, i32, i32
  }
  func.func @transform_7(%arg0: i32) -> (i32, i32, i32) {
    %c0_i32 = arith.constant 0 : i32
    %c0_i32_0 = arith.constant 0 : i32
    %c0_i32_1 = arith.constant 0 : i32
    %c0_i32_2 = arith.constant 0 : i32
    return %c0_i32, %c0_i32_0, %c0_i32_1 : i32, i32, i32
  }
}

</mosaic_0001>

<llo_original>
// kernel: _lambda_.1
$region0: #{_lambda_.1}
  #allocation0 [shape = 'u32[]', space=smem, size = 0x4, offset = 0x4, fixed_abs, tag = 'smem constant byte address 0x4 - core index']
  #allocation1 [shape = 'u32[72,128]{1,0:T(1,128)}', space=vmem, size = 0x9000, scoped, tag = 'internal scratch']
  %s0 = inlined_call_operand.vmem [shape: f32[32,64], index: 0, kind: input, shape index: {}]
  %s1 = inlined_call_operand.hbm [shape: bf16[48,32,32], index: 1, kind: input, shape index: {}]
  %s2 = inlined_call_operand.hbm [shape: bf16[48,64,64], index: 2, kind: input, shape index: {}]
  %s3 = inlined_call_operand.vmem [shape: f32[16,1,64], index: 3, kind: input, shape index: {}]
  %s4 = inlined_call_operand.vmem [shape: bf16[7,16,32], index: 4, kind: input, shape index: {}]
  %s5 = inlined_call_operand.vmem [shape: bf16[7,64,64], index: 5, kind: input, shape index: {}]
  %s6 = inlined_call_operand.vmem [shape: f32[3,1,64], index: 6, kind: input, shape index: {}]
  %s7 = inlined_call_operand.vmem [shape: f32[3,16,64], index: 7, kind: output, shape index: {}]
  %s8 = sld [smem:[#allocation0]]
  $region46: #{_lambda_.1} parent=0
    _
  %s10 = ssub.s32 1, %s8
  %s11 = scalar_select 0, %s10, %s8
  $region1: #{_lambda_.1} parent=0
    #allocation2 [shape = 'u8[393216]{0}', space=vmem, size = 0x60000, scoped, tag = 'input window, operand 1, single buffered']
    #allocation3 [shape = 's32[1]{0}', space=sflag, size = 0x4, scoped, tag = 'scoped memory for _lambda_.1']
    #allocation4 [shape = 'u8[786432]{0}', space=vmem, size = 0xc0000, scoped, tag = 'input window, operand 2, single buffered']
    #allocation5 [shape = 's32[1]{0}', space=sflag, size = 0x4, scoped, tag = 'scoped memory for _lambda_.1']
    %12 = vsyncpa [#allocation3], 0
    %13 = vsyncpa [#allocation5], 0
    // Predicated region
    $region2: #{_lambda_.1} parent=1 // pred_check
      _
    $region3: #{_lambda_.1} parent=1 // pred_check_branch
      %15 = sbr.rel (0) target = $region5
    $region4: #{_lambda_.1} parent=1 // pred_region
      _
    $region5: #{_lambda_.1} parent=1 // pred_fallthru
      _
    // Predicated region
    $region6: #{_lambda_.1} parent=1 // pred_check
      _
    $region7: #{_lambda_.1} parent=1 // pred_check_branch
      %17 = sbr.rel (0) target = $region9
    $region8: #{_lambda_.1} parent=1 // pred_region
      %19 = vsyncadd [#allocation3], 0
      %s20 = sshll.u32 %s1, 4
      %s21 = int_to_ptr.hbm [resolvable:$true] %s20
      %s22 = sshll.u32 [#allocation2], 4
      %s23 = int_to_ptr.vmem [resolvable:$true] %s22
      %28 = dma.hbm_to_vmem [thread:$0]  %s21, 12288, %s23, [#allocation3], 64, 64, 4
    $region9: #{_lambda_.1} parent=1 // pred_fallthru
      _
    // Predicated region
    $region10: #{_lambda_.1} parent=1 // pred_check
      _
    $region11: #{_lambda_.1} parent=1 // pred_check_branch
      %30 = sbr.rel (0) target = $region13
    $region12: #{_lambda_.1} parent=1 // pred_region
      %32 = vsyncadd [#allocation5], 0
      %s33 = sshll.u32 %s2, 4
      %s34 = int_to_ptr.hbm [resolvable:$true] %s33
      %s35 = sshll.u32 [#allocation4], 4
      %s36 = int_to_ptr.vmem [resolvable:$true] %s35
      %41 = dma.hbm_to_vmem [thread:$0]  %s34, 24576, %s36, [#allocation5], 64, 64, 4
    $region13: #{_lambda_.1} parent=1 // pred_fallthru
      _
    // Predicated region
    $region14: #{_lambda_.1} parent=1 // pred_check
      _
    $region15: #{_lambda_.1} parent=1 // pred_check_branch
      %43 = sbr.rel (0) target = $region17
    $region16: #{_lambda_.1} parent=1 // pred_region
      _
    $region17: #{_lambda_.1} parent=1 // pred_fallthru
      _
    // Predicated region
    $region18: #{_lambda_.1} parent=1 // pred_check
      _
    $region19: #{_lambda_.1} parent=1 // pred_check_branch
      %45 = sbr.rel (0) target = $region21
    $region20: #{_lambda_.1} parent=1 // pred_region
      _
    $region21: #{_lambda_.1} parent=1 // pred_fallthru
      _
    // Predicated region
    $region22: #{_lambda_.1} parent=1 // pred_check
      _
    $region23: #{_lambda_.1} parent=1 // pred_check_branch
      %47 = sbr.rel (0) target = $region25
    $region24: #{_lambda_.1} parent=1 // pred_region
      _
    $region25: #{_lambda_.1} parent=1 // pred_fallthru
      _
    // Predicated region
    $region26: #{_lambda_.1} parent=1 // pred_check
      _
    $region27: #{_lambda_.1} parent=1 // pred_check_branch
      %49 = sbr.rel (0) target = $region29
    $region28: #{_lambda_.1} parent=1 // pred_region
      _
    $region29: #{_lambda_.1} parent=1 // pred_fallthru
      _
    // Predicated region
    $region30: #{_lambda_.1} parent=1 // pred_check
      _
    $region31: #{_lambda_.1} parent=1 // pred_check_branch
      %51 = sbr.rel (0) target = $region33
    $region32: #{_lambda_.1} parent=1 // pred_region
      %53 = dma.done [#allocation3], 12288
    $region33: #{_lambda_.1} parent=1 // pred_fallthru
      _
    // Predicated region
    $region34: #{_lambda_.1} parent=1 // pred_check
      _
    $region35: #{_lambda_.1} parent=1 // pred_check_branch
      %55 = sbr.rel (0) target = $region37
    $region36: #{_lambda_.1} parent=1 // pred_region
      %57 = dma.done [#allocation5], 24576
    $region37: #{_lambda_.1} parent=1 // pred_fallthru
      _
    %v59 = vld [vmem:[%s0] sm:$0xff]
    %v60 = vld [vmem:[%s0 + $0x8] sm:$0xff]
    %v61 = vld [vmem:[%s0 + $0x10] sm:$0xff]
    %v62 = vld [vmem:[%s0 + $0x18] sm:$0xff]
    %v63 = vpack.c.bf16 %v60, %v59
    %v64 = vpack.c.bf16 %v62, %v61
    %v65 = vld [vmem:[#allocation2] sm:$0xf]
    %v66 = vld [vmem:[#allocation2 + $0x4] sm:$0xf]
    %v67 = vld [vmem:[#allocation2 + $0x8] sm:$0xf]
    %v68 = vld [vmem:[#allocation2 + $0xc] sm:$0xf]
    %v73 = vunpack.c.l.b16 %v65
    %v74 = vunpack.c.l.b16 %v66
    %v75 = vunpack.c.l.b16 %v67
    %v76 = vunpack.c.l.b16 %v68
    %v77 = vpack.c.b16 %v74, %v73
    %v78 = vpack.c.b16 %v76, %v75
    %vm79 = vcmask 261120
    %v81 = vsel %vm79, %v77, 0
    %v84 = vsel %vm79, %v78, 0
    %86 = vmatpush.bf16.msra.mxu0 0
    %87 = vmatpush.bf16.msra.mxu0 0
    %88 = vmatpush.bf16.msra.mxu0 0
    %89 = vmatpush.bf16.msra.mxu0 0
    %90 = vmatpush.bf16.msra.mxu0 0
    %91 = vmatpush.bf16.msra.mxu0 0
    %92 = vmatpush.bf16.msra.mxu0 %v64
    %93 = vmatpush.bf16.msra.mxu0 %v63
    %94 = vmatmul.bf16.gmra.mxu0 %v81
    %v95 = vpop.f32.mrf.mxu0
    %v96 = vadd.f32 0.0, %v95
    %v97 = vpop.f32.mrf.mxu0
    %v98 = vadd.f32 0.0, %v97
    %99 = vmatmul.bf16.gmra.mxu0 %v84
    %v100 = vpop.f32.mrf.mxu0
    %v101 = vadd.f32 0.0, %v100
    %v102 = vpop.f32.mrf.mxu0
    %v103 = vadd.f32 0.0, %v102
    %104 = vdwg.mxu0
    %v105 = vpack.c.bf16 %v98, %v96
    %v106 = vpack.c.bf16 %v103, %v101
    %v107 = vld [vmem:[#allocation4] sm:$0xf]
    %v108 = vld [vmem:[#allocation4 + $0x4] sm:$0xf]
    %v109 = vld [vmem:[#allocation4 + $0x8] sm:$0xf]
    %v110 = vld [vmem:[#allocation4 + $0xc] sm:$0xf]
    %v111 = vld [vmem:[#allocation4 + $0x10] sm:$0xf]
    %v112 = vld [vmem:[#allocation4 + $0x14] sm:$0xf]
    %v113 = vld [vmem:[#allocation4 + $0x18] sm:$0xf]
    %v114 = vld [vmem:[#allocation4 + $0x1c] sm:$0xf]
    %s115 = scalar_lea.vmem [#allocation2], 16
    %v116 = vld [vmem:[%s115] sm:$0xf]
    %v117 = vld [vmem:[%s115 + $0x4] sm:$0xf]
    %v118 = vld [vmem:[%s115 + $0x8] sm:$0xf]
    %v119 = vld [vmem:[%s115 + $0xc] sm:$0xf]
    %v124 = vunpack.c.l.b16 %v116
    %v125 = vunpack.c.l.b16 %v117
    %v126 = vunpack.c.l.b16 %v118
    %v127 = vunpack.c.l.b16 %v119
    %v128 = vpack.c.b16 %v125, %v124
    %v129 = vpack.c.b16 %v127, %v126
    %v131 = vsel %vm79, %v128, 0
    %v134 = vsel %vm79, %v129, 0
    %136 = vmatpush.bf16.msra.mxu0 0
    %137 = vmatpush.bf16.msra.mxu0 0
    %138 = vmatpush.bf16.msra.mxu0 0
    %139 = vmatpush.bf16.msra.mxu0 0
    %140 = vmatpush.bf16.msra.mxu0 0
    %141 = vmatpush.bf16.msra.mxu0 0
    %142 = vmatpush.bf16.msra.mxu0 %v64
    %143 = vmatpush.bf16.msra.mxu0 %v63
    %144 = vmatmul.bf16.gmra.mxu0 %v131
    %v145 = vpop.f32.mrf.mxu0
    %v146 = vadd.f32 0.0, %v145
    %v147 = vpop.f32.mrf.mxu0
    %v148 = vadd.f32 0.0, %v147
    %149 = vmatmul.bf16.gmra.mxu0 %v134
    %v150 = vpop.f32.mrf.mxu0
    %v151 = vadd.f32 0.0, %v150
    %v152 = vpop.f32.mrf.mxu0
    %v153 = vadd.f32 0.0, %v152
    %154 = vdwg.mxu0
    %v155 = vpack.c.bf16 %v148, %v146
    %v156 = vpack.c.bf16 %v153, %v151
    %s157 = scalar_lea.vmem [#allocation4], 32
    %v158 = vld [vmem:[%s157] sm:$0xf]
    %v159 = vld [vmem:[%s157 + $0x4] sm:$0xf]
    %v160 = vld [vmem:[%s157 + $0x8] sm:$0xf]
    %v161 = vld [vmem:[%s157 + $0xc] sm:$0xf]
    %v162 = vld [vmem:[%s157 + $0x10] sm:$0xf]
    %v163 = vld [vmem:[%s157 + $0x14] sm:$0xf]
    %v164 = vld [vmem:[%s157 + $0x18] sm:$0xf]
    %v165 = vld [vmem:[%s157 + $0x1c] sm:$0xf]
    %v174 = vunpack.c.l.b16 %v158
    %v175 = vunpack.c.l.b16 %v159
    %v176 = vunpack.c.l.b16 %v160
    %v177 = vunpack.c.l.b16 %v161
    %v178 = vunpack.c.l.b16 %v162
    %v179 = vunpack.c.l.b16 %v163
    %v180 = vunpack.c.l.b16 %v164
    %v181 = vunpack.c.l.b16 %v165
    %v182 = vpack.c.b16 %v175, %v174
    %v183 = vpack.c.b16 %v177, %v176
    %v184 = vpack.c.b16 %v179, %v178
    %v185 = vpack.c.b16 %v181, %v180
    %vm190 = vcmask 523264
    %v192 = vsel %vm190, %v155, 0
    %v195 = vsel %vm190, %v156, 0
    %197 = vmatpush.bf16.msra.mxu0 0
    %198 = vmatpush.bf16.msra.mxu0 0
    %199 = vmatpush.bf16.msra.mxu0 0
    %200 = vmatpush.bf16.msra.mxu0 0
    %201 = vmatpush.bf16.msra.mxu0 %v185
    %202 = vmatpush.bf16.msra.mxu0 %v184
    %203 = vmatpush.bf16.msra.mxu0 %v183
    %204 = vmatpush.bf16.msra.mxu0 %v182
    %205 = vmatmul.bf16.gmra.mxu0 %v192
    %v206 = vpop.f32.mrf.mxu0
    %v207 = vadd.f32 0.0, %v206
    %v208 = vpop.f32.mrf.mxu0
    %v209 = vadd.f32 0.0, %v208
    %210 = vmatmul.bf16.gmra.mxu0 %v195
    %v211 = vpop.f32.mrf.mxu0
    %v212 = vadd.f32 0.0, %v211
    %v213 = vpop.f32.mrf.mxu0
    %v214 = vadd.f32 0.0, %v213
    %215 = vdwg.mxu0
    %v224 = vunpack.c.l.b16 %v107
    %v225 = vunpack.c.l.b16 %v108
    %v226 = vunpack.c.l.b16 %v109
    %v227 = vunpack.c.l.b16 %v110
    %v228 = vunpack.c.l.b16 %v111
    %v229 = vunpack.c.l.b16 %v112
    %v230 = vunpack.c.l.b16 %v113
    %v231 = vunpack.c.l.b16 %v114
    %v232 = vpack.c.b16 %v225, %v224
    %v233 = vpack.c.b16 %v227, %v226
    %v234 = vpack.c.b16 %v229, %v228
    %v235 = vpack.c.b16 %v231, %v230
    %v241 = vsel %vm190, %v105, 0
    %v244 = vsel %vm190, %v106, 0
    %246 = vmatpush.bf16.msra.mxu0 0
    %247 = vmatpush.bf16.msra.mxu0 0
    %248 = vmatpush.bf16.msra.mxu0 0
    %249 = vmatpush.bf16.msra.mxu0 0
    %250 = vmatpush.bf16.msra.mxu0 %v235
    %251 = vmatpush.bf16.msra.mxu0 %v234
    %252 = vmatpush.bf16.msra.mxu0 %v233
    %253 = vmatpush.bf16.msra.mxu0 %v232
    %254 = vmatmul.bf16.gmra.mxu0 %v241
    %v255 = vpop.f32.mrf.mxu0
    %v256 = vadd.f32 %v207, %v255
    %v257 = vpop.f32.mrf.mxu0
    %v258 = vadd.f32 %v209, %v257
    %259 = vmatmul.bf16.gmra.mxu0 %v244
    %v260 = vpop.f32.mrf.mxu0
    %v261 = vadd.f32 %v212, %v260
    %v262 = vpop.f32.mrf.mxu0
    %v263 = vadd.f32 %v214, %v262
    %264 = vdwg.mxu0
    %s265 = scalar_lea.vmem [#allocation2], 32
    %v266 = vld [vmem:[%s265] sm:$0xf]
    %v267 = vld [vmem:[%s265 + $0x4] sm:$0xf]
    %v268 = vld [vmem:[%s265 + $0x8] sm:$0xf]
    %v269 = vld [vmem:[%s265 + $0xc] sm:$0xf]
    %v274 = vunpack.c.l.b16 %v266
    %v275 = vunpack.c.l.b16 %v267
    %v276 = vunpack.c.l.b16 %v268
    %v277 = vunpack.c.l.b16 %v269
    %v278 = vpack.c.b16 %v275, %v274
    %v279 = vpack.c.b16 %v277, %v276
    %v281 = vsel %vm79, %v278, 0
    %v284 = vsel %vm79, %v279, 0
    %286 = vmatpush.bf16.msra.mxu0 0
    %287 = vmatpush.bf16.msra.mxu0 0
    %288 = vmatpush.bf16.msra.mxu0 0
    %289 = vmatpush.bf16.msra.mxu0 0
    %290 = vmatpush.bf16.msra.mxu0 0
    %291 = vmatpush.bf16.msra.mxu0 0
    %292 = vmatpush.bf16.msra.mxu0 %v64
    %293 = vmatpush.bf16.msra.mxu0 %v63
    %294 = vmatmul.bf16.gmra.mxu0 %v281
    %v295 = vpop.f32.mrf.mxu0
    %v296 = vadd.f32 0.0, %v295
    %v297 = vpop.f32.mrf.mxu0
    %v298 = vadd.f32 0.0, %v297
    %299 = vmatmul.bf16.gmra.mxu0 %v284
    %v300 = vpop.f32.mrf.mxu0
    %v301 = vadd.f32 0.0, %v300
    %v302 = vpop.f32.mrf.mxu0
    %v303 = vadd.f32 0.0, %v302
    %304 = vdwg.mxu0
    %v305 = vpack.c.bf16 %v298, %v296
    %v306 = vpack.c.bf16 %v303, %v301
    %s307 = scalar_lea.vmem [#allocation4], 64
    %v308 = vld [vmem:[%s307] sm:$0xf]
    %v309 = vld [vmem:[%s307 + $0x4] sm:$0xf]
    %v310 = vld [vmem:[%s307 + $0x8] sm:$0xf]
    %v311 = vld [vmem:[%s307 + $0xc] sm:$0xf]
    %v312 = vld [vmem:[%s307 + $0x10] sm:$0xf]
    %v313 = vld [vmem:[%s307 + $0x14] sm:$0xf]
    %v314 = vld [vmem:[%s307 + $0x18] sm:$0xf]
    %v315 = vld [vmem:[%s307 + $0x1c] sm:$0xf]
    %v324 = vunpack.c.l.b16 %v308
    %v325 = vunpack.c.l.b16 %v309
    %v326 = vunpack.c.l.b16 %v310
    %v327 = vunpack.c.l.b16 %v311
    %v328 = vunpack.c.l.b16 %v312
    %v329 = vunpack.c.l.b16 %v313
    %v330 = vunpack.c.l.b16 %v314
    %v331 = vunpack.c.l.b16 %v315
    %v332 = vpack.c.b16 %v325, %v324
    %v333 = vpack.c.b16 %v327, %v326
    %v334 = vpack.c.b16 %v329, %v328
    %v335 = vpack.c.b16 %v331, %v330
    %v341 = vsel %vm190, %v305, 0
    %v344 = vsel %vm190, %v306, 0
    %346 = vmatpush.bf16.msra.mxu0 0
    %347 = vmatpush.bf16.msra.mxu0 0
    %348 = vmatpush.bf16.msra.mxu0 0
    %349 = vmatpush.bf16.msra.mxu0 0
    %350 = vmatpush.bf16.msra.mxu0 %v335
    %351 = vmatpush.bf16.msra.mxu0 %v334
    %352 = vmatpush.bf16.msra.mxu0 %v333
    %353 = vmatpush.bf16.msra.mxu0 %v332
    %354 = vmatmul.bf16.gmra.mxu0 %v341
    %v355 = vpop.f32.mrf.mxu0
    %v356 = vadd.f32 0.0, %v355
    %v357 = vpop.f32.mrf.mxu0
    %v358 = vadd.f32 0.0, %v357
    %359 = vmatmul.bf16.gmra.mxu0 %v344
    %v360 = vpop.f32.mrf.mxu0
    %v361 = vadd.f32 0.0, %v360
    %v362 = vpop.f32.mrf.mxu0
    %v363 = vadd.f32 0.0, %v362
    %364 = vdwg.mxu0
    %v365 = vadd.f32 %v256, %v356
    %v366 = vadd.f32 %v258, %v358
    %v367 = vadd.f32 %v261, %v361
    %v368 = vadd.f32 %v263, %v363
    %v369 = vld [vmem:[%s3] sm:$0x1]
    %v371 = vperm.slane %v369, 0
    %v373 = vadd.f32 %v365, %v371
    %v374 = vadd.f32 %v366, %v371
    %v375 = vadd.f32 %v367, %v371
    %v376 = vadd.f32 %v368, %v371
    %v377 = vmax.f32 %v373, 0.0
    %v378 = vmax.f32 %v374, 0.0
    %v379 = vmax.f32 %v375, 0.0
    %v380 = vmax.f32 %v376, 0.0
    %v381 = vpack.c.bf16 %v378, %v377
    %v382 = vpack.c.bf16 %v380, %v379
    %s383 = scalar_lea.vmem [#allocation2], 48
    %v384 = vld [vmem:[%s383] sm:$0xf]
    %v385 = vld [vmem:[%s383 + $0x4] sm:$0xf]
    %v386 = vld [vmem:[%s383 + $0x8] sm:$0xf]
    %v387 = vld [vmem:[%s383 + $0xc] sm:$0xf]
    %v392 = vunpack.c.l.b16 %v384
    %v393 = vunpack.c.l.b16 %v385
    %v394 = vunpack.c.l.b16 %v386
    %v395 = vunpack.c.l.b16 %v387
    %v396 = vpack.c.b16 %v393, %v392
    %v397 = vpack.c.b16 %v395, %v394
    %v399 = vsel %vm79, %v396, 0
    %v402 = vsel %vm79, %v397, 0
    %404 = vmatpush.bf16.msra.mxu0 0
    %405 = vmatpush.bf16.msra.mxu0 0
    %406 = vmatpush.bf16.msra.mxu0 0
    %407 = vmatpush.bf16.msra.mxu0 0
    %408 = vmatpush.bf16.msra.mxu0 0
    %409 = vmatpush.bf16.msra.mxu0 0
    %410 = vmatpush.bf16.msra.mxu0 %v382
    %411 = vmatpush.bf16.msra.mxu0 %v381
    %412 = vmatmul.bf16.gmra.mxu0 %v399
    %v413 = vpop.f32.mrf.mxu0
    %v414 = vadd.f32 0.0, %v413
    %v415 = vpop.f32.mrf.mxu0
    %v416 = vadd.f32 0.0, %v415
    %417 = vmatmul.bf16.gmra.mxu0 %v402
    %v418 = vpop.f32.mrf.mxu0
    %v419 = vadd.f32 0.0, %v418
    %v420 = vpop.f32.mrf.mxu0
    %v421 = vadd.f32 0.0, %v420
    %422 = vdwg.mxu0
    %v423 = vpack.c.bf16 %v416, %v414
    %v424 = vpack.c.bf16 %v421, %v419
    %s425 = scalar_lea.vmem [#allocation4], 96
    %v426 = vld [vmem:[%s425] sm:$0xf]
    %v427 = vld [vmem:[%s425 + $0x4] sm:$0xf]
    %v428 = vld [vmem:[%s425 + $0x8] sm:$0xf]
    %v429 = vld [vmem:[%s425 + $0xc] sm:$0xf]
    %v430 = vld [vmem:[%s425 + $0x10] sm:$0xf]
    %v431 = vld [vmem:[%s425 + $0x14] sm:$0xf]
    %v432 = vld [vmem:[%s425 + $0x18] sm:$0xf]
    %v433 = vld [vmem:[%s425 + $0x1c] sm:$0xf]
    %s434 = scalar_lea.vmem [#allocation2], 64
    %v435 = vld [vmem:[%s434] sm:$0xf]
    %v436 = vld [vmem:[%s434 + $0x4] sm:$0xf]
    %v437 = vld [vmem:[%s434 + $0x8] sm:$0xf]
    %v438 = vld [vmem:[%s434 + $0xc] sm:$0xf]
    %v443 = vunpack.c.l.b16 %v435
    %v444 = vunpack.c.l.b16 %v436
    %v445 = vunpack.c.l.b16 %v437
    %v446 = vunpack.c.l.b16 %v438
    %v447 = vpack.c.b16 %v444, %v443
    %v448 = vpack.c.b16 %v446, %v445
    %v450 = vsel %vm79, %v447, 0
    %v453 = vsel %vm79, %v448, 0
    %455 = vmatpush.bf16.msra.mxu0 0
    %456 = vmatpush.bf16.msra.mxu0 0
    %457 = vmatpush.bf16.msra.mxu0 0
    %458 = vmatpush.bf16.msra.mxu0 0
    %459 = vmatpush.bf16.msra.mxu0 0
    %460 = vmatpush.bf16.msra.mxu0 0
    %461 = vmatpush.bf16.msra.mxu0 %v382
    %462 = vmatpush.bf16.msra.mxu0 %v381
    %463 = vmatmul.bf16.gmra.mxu0 %v450
    %v464 = vpop.f32.mrf.mxu0
    %v465 = vadd.f32 0.0, %v464
    %v466 = vpop.f32.mrf.mxu0
    %v467 = vadd.f32 0.0, %v466
    %468 = vmatmul.bf16.gmra.mxu0 %v453
    %v469 = vpop.f32.mrf.mxu0
    %v470 = vadd.f32 0.0, %v469
    %v471 = vpop.f32.mrf.mxu0
    %v472 = vadd.f32 0.0, %v471
    %473 = vdwg.mxu0
    %v474 = vpack.c.bf16 %v467, %v465
    %v475 = vpack.c.bf16 %v472, %v470
    %s476 = scalar_lea.vmem [#allocation4], 128
    %v477 = vld [vmem:[%s476] sm:$0xf]
    %v478 = vld [vmem:[%s476 + $0x4] sm:$0xf]
    %v479 = vld [vmem:[%s476 + $0x8] sm:$0xf]
    %v480 = vld [vmem:[%s476 + $0xc] sm:$0xf]
    %v481 = vld [vmem:[%s476 + $0x10] sm:$0xf]
    %v482 = vld [vmem:[%s476 + $0x14] sm:$0xf]
    %v483 = vld [vmem:[%s476 + $0x18] sm:$0xf]
    %v484 = vld [vmem:[%s476 + $0x1c] sm:$0xf]
    %v493 = vunpack.c.l.b16 %v477
    %v494 = vunpack.c.l.b16 %v478
    %v495 = vunpack.c.l.b16 %v479
    %v496 = vunpack.c.l.b16 %v480
    %v497 = vunpack.c.l.b16 %v481
    %v498 = vunpack.c.l.b16 %v482
    %v499 = vunpack.c.l.b16 %v483
    %v500 = vunpack.c.l.b16 %v484
    %v501 = vpack.c.b16 %v494, %v493
    %v502 = vpack.c.b16 %v496, %v495
    %v503 = vpack.c.b16 %v498, %v497
    %v504 = vpack.c.b16 %v500, %v499
    %v510 = vsel %vm190, %v474, 0
    %v513 = vsel %vm190, %v475, 0
    %515 = vmatpush.bf16.msra.mxu0 0
    %516 = vmatpush.bf16.msra.mxu0 0
    %517 = vmatpush.bf16.msra.mxu0 0
    %518 = vmatpush.bf16.msra.mxu0 0
    %519 = vmatpush.bf16.msra.mxu0 %v504
    %520 = vmatpush.bf16.msra.mxu0 %v503
    %521 = vmatpush.bf16.msra.mxu0 %v502
    %522 = vmatpush.bf16.msra.mxu0 %v501
    %523 = vmatmul.bf16.gmra.mxu0 %v510
    %v524 = vpop.f32.mrf.mxu0
    %v525 = vadd.f32 0.0, %v524
    %v526 = vpop.f32.mrf.mxu0
    %v527 = vadd.f32 0.0, %v526
    %528 = vmatmul.bf16.gmra.mxu0 %v513
    %v529 = vpop.f32.mrf.mxu0
    %v530 = vadd.f32 0.0, %v529
    %v531 = vpop.f32.mrf.mxu0
    %v532 = vadd.f32 0.0, %v531
    %533 = vdwg.mxu0
    %v542 = vunpack.c.l.b16 %v426
    %v543 = vunpack.c.l.b16 %v427
    %v544 = vunpack.c.l.b16 %v428
    %v545 = vunpack.c.l.b16 %v429
    %v546 = vunpack.c.l.b16 %v430
    %v547 = vunpack.c.l.b16 %v431
    %v548 = vunpack.c.l.b16 %v432
    %v549 = vunpack.c.l.b16 %v433
    %v550 = vpack.c.b16 %v543, %v542
    %v551 = vpack.c.b16 %v545, %v544
    %v552 = vpack.c.b16 %v547, %v546
    %v553 = vpack.c.b16 %v549, %v548
    %v559 = vsel %vm190, %v423, 0
    %v562 = vsel %vm190, %v424, 0
    %564 = vmatpush.bf16.msra.mxu0 0
    %565 = vmatpush.bf16.msra.mxu0 0
    %566 = vmatpush.bf16.msra.mxu0 0
    %567 = vmatpush.bf16.msra.mxu0 0
    %568 = vmatpush.bf16.msra.mxu0 %v553
    %569 = vmatpush.bf16.msra.mxu0 %v552
    %570 = vmatpush.bf16.msra.mxu0 %v551
    %571 = vmatpush.bf16.msra.mxu0 %v550
    %572 = vmatmul.bf16.gmra.mxu0 %v559
    %v573 = vpop.f32.mrf.mxu0
    %v574 = vadd.f32 %v525, %v573
    %v575 = vpop.f32.mrf.mxu0
    %v576 = vadd.f32 %v527, %v575
    %577 = vmatmul.bf16.gmra.mxu0 %v562
    %v578 = vpop.f32.mrf.mxu0
    %v579 = vadd.f32 %v530, %v578
    %v580 = vpop.f32.mrf.mxu0
    %v581 = vadd.f32 %v532, %v580
    %582 = vdwg.mxu0
    %s583 = scalar_lea.vmem [#allocation2], 80
    %v584 = vld [vmem:[%s583] sm:$0xf]
    %v585 = vld [vmem:[%s583 + $0x4] sm:$0xf]
    %v586 = vld [vmem:[%s583 + $0x8] sm:$0xf]
    %v587 = vld [vmem:[%s583 + $0xc] sm:$0xf]
    %v592 = vunpack.c.l.b16 %v584
    %v593 = vunpack.c.l.b16 %v585
    %v594 = vunpack.c.l.b16 %v586
    %v595 = vunpack.c.l.b16 %v587
    %v596 = vpack.c.b16 %v593, %v592
    %v597 = vpack.c.b16 %v595, %v594
    %v599 = vsel %vm79, %v596, 0
    %v602 = vsel %vm79, %v597, 0
    %604 = vmatpush.bf16.msra.mxu0 0
    %605 = vmatpush.bf16.msra.mxu0 0
    %606 = vmatpush.bf16.msra.mxu0 0
    %607 = vmatpush.bf16.msra.mxu0 0
    %608 = vmatpush.bf16.msra.mxu0 0
    %609 = vmatpush.bf16.msra.mxu0 0
    %610 = vmatpush.bf16.msra.mxu0 %v382
    %611 = vmatpush.bf16.msra.mxu0 %v381
    %612 = vmatmul.bf16.gmra.mxu0 %v599
    %v613 = vpop.f32.mrf.mxu0
    %v614 = vadd.f32 0.0, %v613
    %v615 = vpop.f32.mrf.mxu0
    %v616 = vadd.f32 0.0, %v615
    %617 = vmatmul.bf16.gmra.mxu0 %v602
    %v618 = vpop.f32.mrf.mxu0
    %v619 = vadd.f32 0.0, %v618
    %v620 = vpop.f32.mrf.mxu0
    %v621 = vadd.f32 0.0, %v620
    %622 = vdwg.mxu0
    %v623 = vpack.c.bf16 %v616, %v614
    %v624 = vpack.c.bf16 %v621, %v619
    %s625 = scalar_lea.vmem [#allocation4], 160
    %v626 = vld [vmem:[%s625] sm:$0xf]
    %v627 = vld [vmem:[%s625 + $0x4] sm:$0xf]
    %v628 = vld [vmem:[%s625 + $0x8] sm:$0xf]
    %v629 = vld [vmem:[%s625 + $0xc] sm:$0xf]
    %v630 = vld [vmem:[%s625 + $0x10] sm:$0xf]
    %v631 = vld [vmem:[%s625 + $0x14] sm:$0xf]
    %v632 = vld [vmem:[%s625 + $0x18] sm:$0xf]
    %v633 = vld [vmem:[%s625 + $0x1c] sm:$0xf]
    %v642 = vunpack.c.l.b16 %v626
    %v643 = vunpack.c.l.b16 %v627
    %v644 = vunpack.c.l.b16 %v628
    %v645 = vunpack.c.l.b16 %v629
    %v646 = vunpack.c.l.b16 %v630
    %v647 = vunpack.c.l.b16 %v631
    %v648 = vunpack.c.l.b16 %v632
    %v649 = vunpack.c.l.b16 %v633
    %v650 = vpack.c.b16 %v643, %v642
    %v651 = vpack.c.b16 %v645, %v644
    %v652 = vpack.c.b16 %v647, %v646
    %v653 = vpack.c.b16 %v649, %v648
    %v659 = vsel %vm190, %v623, 0
    %v662 = vsel %vm190, %v624, 0
    %664 = vmatpush.bf16.msra.mxu0 0
    %665 = vmatpush.bf16.msra.mxu0 0
    %666 = vmatpush.bf16.msra.mxu0 0
    %667 = vmatpush.bf16.msra.mxu0 0
    %668 = vmatpush.bf16.msra.mxu0 %v653
    %669 = vmatpush.bf16.msra.mxu0 %v652
    %670 = vmatpush.bf16.msra.mxu0 %v651
    %671 = vmatpush.bf16.msra.mxu0 %v650
    %672 = vmatmul.bf16.gmra.mxu0 %v659
    %v673 = vpop.f32.mrf.mxu0
    %v674 = vadd.f32 0.0, %v673
    %v675 = vpop.f32.mrf.mxu0
    %v676 = vadd.f32 0.0, %v675
    %677 = vmatmul.bf16.gmra.mxu0 %v662
    %v678 = vpop.f32.mrf.mxu0
    %v679 = vadd.f32 0.0, %v678
    %v680 = vpop.f32.mrf.mxu0
    %v681 = vadd.f32 0.0, %v680
    %682 = vdwg.mxu0
    %v683 = vadd.f32 %v574, %v674
    %v684 = vadd.f32 %v576, %v676
    %v685 = vadd.f32 %v579, %v679
    %v686 = vadd.f32 %v581, %v681
    %s687 = scalar_lea.vmem %s3, 1
    %v688 = vld [vmem:[%s687] sm:$0x1]
    %v690 = vperm.slane %v688, 0
    %v692 = vadd.f32 %v683, %v690
    %v693 = vadd.f32 %v684, %v690
    %v694 = vadd.f32 %v685, %v690
    %v695 = vadd.f32 %v686, %v690
    %v696 = vmax.f32 %v692, 0.0
    %v697 = vmax.f32 %v693, 0.0
    %v698 = vmax.f32 %v694, 0.0
    %v699 = vmax.f32 %v695, 0.0
    %v700 = vpack.c.bf16 %v697, %v696
    %v701 = vpack.c.bf16 %v699, %v698
    %s702 = scalar_lea.vmem [#allocation2], 96
    %v703 = vld [vmem:[%s702] sm:$0xf]
    %v704 = vld [vmem:[%s702 + $0x4] sm:$0xf]
    %v705 = vld [vmem:[%s702 + $0x8] sm:$0xf]
    %v706 = vld [vmem:[%s702 + $0xc] sm:$0xf]
    %v711 = vunpack.c.l.b16 %v703
    %v712 = vunpack.c.l.b16 %v704
    %v713 = vunpack.c.l.b16 %v705
    %v714 = vunpack.c.l.b16 %v706
    %v715 = vpack.c.b16 %v712, %v711
    %v716 = vpack.c.b16 %v714, %v713
    %v718 = vsel %vm79, %v715, 0
    %v721 = vsel %vm79, %v716, 0
    %723 = vmatpush.bf16.msra.mxu0 0
    %724 = vmatpush.bf16.msra.mxu0 0
    %725 = vmatpush.bf16.msra.mxu0 0
    %726 = vmatpush.bf16.msra.mxu0 0
    %727 = vmatpush.bf16.msra.mxu0 0
    %728 = vmatpush.bf16.msra.mxu0 0
    %729 = vmatpush.bf16.msra.mxu0 %v701
    %730 = vmatpush.bf16.msra.mxu0 %v700
    %731 = vmatmul.bf16.gmra.mxu0 %v718
    %v732 = vpop.f32.mrf.mxu0
    %v733 = vadd.f32 0.0, %v732
    %v734 = vpop.f32.mrf.mxu0
    %v735 = vadd.f32 0.0, %v734
    %736 = vmatmul.bf16.gmra.mxu0 %v721
    %v737 = vpop.f32.mrf.mxu0
    %v738 = vadd.f32 0.0, %v737
    %v739 = vpop.f32.mrf.mxu0
    %v740 = vadd.f32 0.0, %v739
    %741 = vdwg.mxu0
    %v742 = vpack.c.bf16 %v735, %v733
    %v743 = vpack.c.bf16 %v740, %v738
    %s744 = scalar_lea.vmem [#allocation4], 192
    %v745 = vld [vmem:[%s744] sm:$0xf]
    %v746 = vld [vmem:[%s744 + $0x4] sm:$0xf]
    %v747 = vld [vmem:[%s744 + $0x8] sm:$0xf]
    %v748 = vld [vmem:[%s744 + $0xc] sm:$0xf]
    %v749 = vld [vmem:[%s744 + $0x10] sm:$0xf]
    %v750 = vld [vmem:[%s744 + $0x14] sm:$0xf]
    %v751 = vld [vmem:[%s744 + $0x18] sm:$0xf]
    %v752 = vld [vmem:[%s744 + $0x1c] sm:$0xf]
    %s753 = scalar_lea.vmem [#allocation2], 112
    %v754 = vld [vmem:[%s753] sm:$0xf]
    %v755 = vld [vmem:[%s753 + $0x4] sm:$0xf]
    %v756 = vld [vmem:[%s753 + $0x8] sm:$0xf]
    %v757 = vld [vmem:[%s753 + $0xc] sm:$0xf]
    %v762 = vunpack.c.l.b16 %v754
    %v763 = vunpack.c.l.b16 %v755
    %v764 = vunpack.c.l.b16 %v756
    %v765 = vunpack.c.l.b16 %v757
    %v766 = vpack.c.b16 %v763, %v762
    %v767 = vpack.c.b16 %v765, %v764
    %v769 = vsel %vm79, %v766, 0
    %v772 = vsel %vm79, %v767, 0
    %774 = vmatpush.bf16.msra.mxu0 0
    %775 = vmatpush.bf16.msra.mxu0 0
    %776 = vmatpush.bf16.msra.mxu0 0
    %777 = vmatpush.bf16.msra.mxu0 0
    %778 = vmatpush.bf16.msra.mxu0 0
    %779 = vmatpush.bf16.msra.mxu0 0
    %780 = vmatpush.bf16.msra.mxu0 %v701
    %781 = vmatpush.bf16.msra.mxu0 %v700
    %782 = vmatmul.bf16.gmra.mxu0 %v769
    %v783 = vpop.f32.mrf.mxu0
    %v784 = vadd.f32 0.0, %v783
    %v785 = vpop.f32.mrf.mxu0
    %v786 = vadd.f32 0.0, %v785
    %787 = vmatmul.bf16.gmra.mxu0 %v772
    %v788 = vpop.f32.mrf.mxu0
    %v789 = vadd.f32 0.0, %v788
    %v790 = vpop.f32.mrf.mxu0
    %v791 = vadd.f32 0.0, %v790
    %792 = vdwg.mxu0
    %v793 = vpack.c.bf16 %v786, %v784
    %v794 = vpack.c.bf16 %v791, %v789
    %s795 = scalar_lea.vmem [#allocation4], 224
    %v796 = vld [vmem:[%s795] sm:$0xf]
    %v797 = vld [vmem:[%s795 + $0x4] sm:$0xf]
    %v798 = vld [vmem:[%s795 + $0x8] sm:$0xf]
    %v799 = vld [vmem:[%s795 + $0xc] sm:$0xf]
    %v800 = vld [vmem:[%s795 + $0x10] sm:$0xf]
    %v801 = vld [vmem:[%s795 + $0x14] sm:$0xf]
    %v802 = vld [vmem:[%s795 + $0x18] sm:$0xf]
    %v803 = vld [vmem:[%s795 + $0x1c] sm:$0xf]
    %v812 = vunpack.c.l.b16 %v796
    %v813 = vunpack.c.l.b16 %v797
    %v814 = vunpack.c.l.b16 %v798
    %v815 = vunpack.c.l.b16 %v799
    %v816 = vunpack.c.l.b16 %v800
    %v817 = vunpack.c.l.b16 %v801
    %v818 = vunpack.c.l.b16 %v802
    %v819 = vunpack.c.l.b16 %v803
    %v820 = vpack.c.b16 %v813, %v812
    %v821 = vpack.c.b16 %v815, %v814
    %v822 = vpack.c.b16 %v817, %v816
    %v823 = vpack.c.b16 %v819, %v818
    %v829 = vsel %vm190, %v793, 0
    %v832 = vsel %vm190, %v794, 0
    %834 = vmatpush.bf16.msra.mxu0 0
    %835 = vmatpush.bf16.msra.mxu0 0
    %836 = vmatpush.bf16.msra.mxu0 0
    %837 = vmatpush.bf16.msra.mxu0 0
    %838 = vmatpush.bf16.msra.mxu0 %v823
    %839 = vmatpush.bf16.msra.mxu0 %v822
    %840 = vmatpush.bf16.msra.mxu0 %v821
    %841 = vmatpush.bf16.msra.mxu0 %v820
    %842 = vmatmul.bf16.gmra.mxu0 %v829
    %v843 = vpop.f32.mrf.mxu0
    %v844 = vadd.f32 0.0, %v843
    %v845 = vpop.f32.mrf.mxu0
    %v846 = vadd.f32 0.0, %v845
    %847 = vmatmul.bf16.gmra.mxu0 %v832
    %v848 = vpop.f32.mrf.mxu0
    %v849 = vadd.f32 0.0, %v848
    %v850 = vpop.f32.mrf.mxu0
    %v851 = vadd.f32 0.0, %v850
    %852 = vdwg.mxu0
    %v861 = vunpack.c.l.b16 %v745
    %v862 = vunpack.c.l.b16 %v746
    %v863 = vunpack.c.l.b16 %v747
    %v864 = vunpack.c.l.b16 %v748
    %v865 = vunpack.c.l.b16 %v749
    %v866 = vunpack.c.l.b16 %v750
    %v867 = vunpack.c.l.b16 %v751
    %v868 = vunpack.c.l.b16 %v752
    %v869 = vpack.c.b16 %v862, %v861
    %v870 = vpack.c.b16 %v864, %v863
    %v871 = vpack.c.b16 %v866, %v865
    %v872 = vpack.c.b16 %v868, %v867
    %v878 = vsel %vm190, %v742, 0
    %v881 = vsel %vm190, %v743, 0
    %883 = vmatpush.bf16.msra.mxu0 0
    %884 = vmatpush.bf16.msra.mxu0 0
    %885 = vmatpush.bf16.msra.mxu0 0
    %886 = vmatpush.bf16.msra.mxu0 0
    %887 = vmatpush.bf16.msra.mxu0 %v872
    %888 = vmatpush.bf16.msra.mxu0 %v871
    %889 = vmatpush.bf16.msra.mxu0 %v870
    %890 = vmatpush.bf16.msra.mxu0 %v869
    %891 = vmatmul.bf16.gmra.mxu0 %v878
    %v892 = vpop.f32.mrf.mxu0
    %v893 = vadd.f32 %v844, %v892
    %v894 = vpop.f32.mrf.mxu0
    %v895 = vadd.f32 %v846, %v894
    %896 = vmatmul.bf16.gmra.mxu0 %v881
    %v897 = vpop.f32.mrf.mxu0
    %v898 = vadd.f32 %v849, %v897
    %v899 = vpop.f32.mrf.mxu0
    %v900 = vadd.f32 %v851, %v899
    %901 = vdwg.mxu0
    %s902 = scalar_lea.vmem [#allocation2], 128
    %v903 = vld [vmem:[%s902] sm:$0xf]
    %v904 = vld [vmem:[%s902 + $0x4] sm:$0xf]
    %v905 = vld [vmem:[%s902 + $0x8] sm:$0xf]
    %v906 = vld [vmem:[%s902 + $0xc] sm:$0xf]
    %v911 = vunpack.c.l.b16 %v903
    %v912 = vunpack.c.l.b16 %v904
    %v913 = vunpack.c.l.b16 %v905
    %v914 = vunpack.c.l.b16 %v906
    %v915 = vpack.c.b16 %v912, %v911
    %v916 = vpack.c.b16 %v914, %v913
    %v918 = vsel %vm79, %v915, 0
    %v921 = vsel %vm79, %v916, 0
    %923 = vmatpush.bf16.msra.mxu0 0
    %924 = vmatpush.bf16.msra.mxu0 0
    %925 = vmatpush.bf16.msra.mxu0 0
    %926 = vmatpush.bf16.msra.mxu0 0
    %927 = vmatpush.bf16.msra.mxu0 0
    %928 = vmatpush.bf16.msra.mxu0 0
    %929 = vmatpush.bf16.msra.mxu0 %v701
    %930 = vmatpush.bf16.msra.mxu0 %v700
    %931 = vmatmul.bf16.gmra.mxu0 %v918
    %v932 = vpop.f32.mrf.mxu0
    %v933 = vadd.f32 0.0, %v932
    %v934 = vpop.f32.mrf.mxu0
    %v935 = vadd.f32 0.0, %v934
    %936 = vmatmul.bf16.gmra.mxu0 %v921
    %v937 = vpop.f32.mrf.mxu0
    %v938 = vadd.f32 0.0, %v937
    %v939 = vpop.f32.mrf.mxu0
    %v940 = vadd.f32 0.0, %v939
    %941 = vdwg.mxu0
    %v942 = vpack.c.bf16 %v935, %v933
    %v943 = vpack.c.bf16 %v940, %v938
    %s944 = scalar_lea.vmem [#allocation4], 256
    %v945 = vld [vmem:[%s944] sm:$0xf]
    %v946 = vld [vmem:[%s944 + $0x4] sm:$0xf]
    %v947 = vld [vmem:[%s944 + $0x8] sm:$0xf]
    %v948 = vld [vmem:[%s944 + $0xc] sm:$0xf]
    %v949 = vld [vmem:[%s944 + $0x10] sm:$0xf]
    %v950 = vld [vmem:[%s944 + $0x14] sm:$0xf]
    %v951 = vld [vmem:[%s944 + $0x18] sm:$0xf]
    %v952 = vld [vmem:[%s944 + $0x1c] sm:$0xf]
    %v961 = vunpack.c.l.b16 %v945
    %v962 = vunpack.c.l.b16 %v946
    %v963 = vunpack.c.l.b16 %v947
    %v964 = vunpack.c.l.b16 %v948
    %v965 = vunpack.c.l.b16 %v949
    %v966 = vunpack.c.l.b16 %v950
    %v967 = vunpack.c.l.b16 %v951
    %v968 = vunpack.c.l.b16 %v952
    %v969 = vpack.c.b16 %v962, %v961
    %v970 = vpack.c.b16 %v964, %v963
    %v971 = vpack.c.b16 %v966, %v965
    %v972 = vpack.c.b16 %v968, %v967
    %v978 = vsel %vm190, %v942, 0
    %v981 = vsel %vm190, %v943, 0
    %983 = vmatpush.bf16.msra.mxu0 0
    %984 = vmatpush.bf16.msra.mxu0 0
    %985 = vmatpush.bf16.msra.mxu0 0
    %986 = vmatpush.bf16.msra.mxu0 0
    %987 = vmatpush.bf16.msra.mxu0 %v972
    %988 = vmatpush.bf16.msra.mxu0 %v971
    %989 = vmatpush.bf16.msra.mxu0 %v970
    %990 = vmatpush.bf16.msra.mxu0 %v969
    %991 = vmatmul.bf16.gmra.mxu0 %v978
    %v992 = vpop.f32.mrf.mxu0
    %v993 = vadd.f32 0.0, %v992
    %v994 = vpop.f32.mrf.mxu0
    %v995 = vadd.f32 0.0, %v994
    %996 = vmatmul.bf16.gmra.mxu0 %v981
    %v997 = vpop.f32.mrf.mxu0
    %v998 = vadd.f32 0.0, %v997
    %v999 = vpop.f32.mrf.mxu0
    %v1000 = vadd.f32 0.0, %v999
    %1001 = vdwg.mxu0
    %v1002 = vadd.f32 %v893, %v993
    %v1003 = vadd.f32 %v895, %v995
    %v1004 = vadd.f32 %v898, %v998
    %v1005 = vadd.f32 %v900, %v1000
    %s1006 = scalar_lea.vmem %s3, 2
    %v1007 = vld [vmem:[%s1006] sm:$0x1]
    %v1009 = vperm.slane %v1007, 0
    %v1011 = vadd.f32 %v1002, %v1009
    %v1012 = vadd.f32 %v1003, %v1009
    %v1013 = vadd.f32 %v1004, %v1009
    %v1014 = vadd.f32 %v1005, %v1009
    %v1015 = vmax.f32 %v1011, 0.0
    %v1016 = vmax.f32 %v1012, 0.0
    %v1017 = vmax.f32 %v1013, 0.0
    %v1018 = vmax.f32 %v1014, 0.0
    %v1019 = vpack.c.bf16 %v1016, %v1015
    %v1020 = vpack.c.bf16 %v1018, %v1017
    %s1021 = scalar_lea.vmem [#allocation2], 144
    %v1022 = vld [vmem:[%s1021] sm:$0xf]
    %v1023 = vld [vmem:[%s1021 + $0x4] sm:$0xf]
    %v1024 = vld [vmem:[%s1021 + $0x8] sm:$0xf]
    %v1025 = vld [vmem:[%s1021 + $0xc] sm:$0xf]
    %v1030 = vunpack.c.l.b16 %v1022
    %v1031 = vunpack.c.l.b16 %v1023
    %v1032 = vunpack.c.l.b16 %v1024
    %v1033 = vunpack.c.l.b16 %v1025
    %v1034 = vpack.c.b16 %v1031, %v1030
    %v1035 = vpack.c.b16 %v1033, %v1032
    %v1037 = vsel %vm79, %v1034, 0
    %v1040 = vsel %vm79, %v1035, 0
    %1042 = vmatpush.bf16.msra.mxu0 0
    %1043 = vmatpush.bf16.msra.mxu0 0
    %1044 = vmatpush.bf16.msra.mxu0 0
    %1045 = vmatpush.bf16.msra.mxu0 0
    %1046 = vmatpush.bf16.msra.mxu0 0
    %1047 = vmatpush.bf16.msra.mxu0 0
    %1048 = vmatpush.bf16.msra.mxu0 %v1020
    %1049 = vmatpush.bf16.msra.mxu0 %v1019
    %1050 = vmatmul.bf16.gmra.mxu0 %v1037
    %v1051 = vpop.f32.mrf.mxu0
    %v1052 = vadd.f32 0.0, %v1051
    %v1053 = vpop.f32.mrf.mxu0
    %v1054 = vadd.f32 0.0, %v1053
    %1055 = vmatmul.bf16.gmra.mxu0 %v1040
    %v1056 = vpop.f32.mrf.mxu0
    %v1057 = vadd.f32 0.0, %v1056
    %v1058 = vpop.f32.mrf.mxu0
    %v1059 = vadd.f32 0.0, %v1058
    %1060 = vdwg.mxu0
    %v1061 = vpack.c.bf16 %v1054, %v1052
    %v1062 = vpack.c.bf16 %v1059, %v1057
    %s1063 = scalar_lea.vmem [#allocation4], 288
    %v1064 = vld [vmem:[%s1063] sm:$0xf]
    %v1065 = vld [vmem:[%s1063 + $0x4] sm:$0xf]
    %v1066 = vld [vmem:[%s1063 + $0x8] sm:$0xf]
    %v1067 = vld [vmem:[%s1063 + $0xc] sm:$0xf]
    %v1068 = vld [vmem:[%s1063 + $0x10] sm:$0xf]
    %v1069 = vld [vmem:[%s1063 + $0x14] sm:$0xf]
    %v1070 = vld [vmem:[%s1063 + $0x18] sm:$0xf]
    %v1071 = vld [vmem:[%s1063 + $0x1c] sm:$0xf]
    %s1072 = scalar_lea.vmem [#allocation2], 160
    %v1073 = vld [vmem:[%s1072] sm:$0xf]
    %v1074 = vld [vmem:[%s1072 + $0x4] sm:$0xf]
    %v1075 = vld [vmem:[%s1072 + $0x8] sm:$0xf]
    %v1076 = vld [vmem:[%s1072 + $0xc] sm:$0xf]
    %v1081 = vunpack.c.l.b16 %v1073
    %v1082 = vunpack.c.l.b16 %v1074
    %v1083 = vunpack.c.l.b16 %v1075
    %v1084 = vunpack.c.l.b16 %v1076
    %v1085 = vpack.c.b16 %v1082, %v1081
    %v1086 = vpack.c.b16 %v1084, %v1083
    %v1088 = vsel %vm79, %v1085, 0
    %v1091 = vsel %vm79, %v1086, 0
    %1093 = vmatpush.bf16.msra.mxu0 0
    %1094 = vmatpush.bf16.msra.mxu0 0
    %1095 = vmatpush.bf16.msra.mxu0 0
    %1096 = vmatpush.bf16.msra.mxu0 0
    %1097 = vmatpush.bf16.msra.mxu0 0
    %1098 = vmatpush.bf16.msra.mxu0 0
    %1099 = vmatpush.bf16.msra.mxu0 %v1020
    %1100 = vmatpush.bf16.msra.mxu0 %v1019
    %1101 = vmatmul.bf16.gmra.mxu0 %v1088
    %v1102 = vpop.f32.mrf.mxu0
    %v1103 = vadd.f32 0.0, %v1102
    %v1104 = vpop.f32.mrf.mxu0
    %v1105 = vadd.f32 0.0, %v1104
    %1106 = vmatmul.bf16.gmra.mxu0 %v1091
    %v1107 = vpop.f32.mrf.mxu0
    %v1108 = vadd.f32 0.0, %v1107
    %v1109 = vpop.f32.mrf.mxu0
    %v1110 = vadd.f32 0.0, %v1109
    %1111 = vdwg.mxu0
    %v1112 = vpack.c.bf16 %v1105, %v1103
    %v1113 = vpack.c.bf16 %v1110, %v1108
    %s1114 = scalar_lea.vmem [#allocation4], 320
    %v1115 = vld [vmem:[%s1114] sm:$0xf]
    %v1116 = vld [vmem:[%s1114 + $0x4] sm:$0xf]
    %v1117 = vld [vmem:[%s1114 + $0x8] sm:$0xf]
    %v1118 = vld [vmem:[%s1114 + $0xc] sm:$0xf]
    %v1119 = vld [vmem:[%s1114 + $0x10] sm:$0xf]
    %v1120 = vld [vmem:[%s1114 + $0x14] sm:$0xf]
    %v1121 = vld [vmem:[%s1114 + $0x18] sm:$0xf]
    %v1122 = vld [vmem:[%s1114 + $0x1c] sm:$0xf]
    %v1131 = vunpack.c.l.b16 %v1115
    %v1132 = vunpack.c.l.b16 %v1116
    %v1133 = vunpack.c.l.b16 %v1117
    %v1134 = vunpack.c.l.b16 %v1118
    %v1135 = vunpack.c.l.b16 %v1119
    %v1136 = vunpack.c.l.b16 %v1120
    %v1137 = vunpack.c.l.b16 %v1121
    %v1138 = vunpack.c.l.b16 %v1122
    %v1139 = vpack.c.b16 %v1132, %v1131
    %v1140 = vpack.c.b16 %v1134, %v1133
    %v1141 = vpack.c.b16 %v1136, %v1135
    %v1142 = vpack.c.b16 %v1138, %v1137
    %v1148 = vsel %vm190, %v1112, 0
    %v1151 = vsel %vm190, %v1113, 0
    %1153 = vmatpush.bf16.msra.mxu0 0
    %1154 = vmatpush.bf16.msra.mxu0 0
    %1155 = vmatpush.bf16.msra.mxu0 0
    %1156 = vmatpush.bf16.msra.mxu0 0
    %1157 = vmatpush.bf16.msra.mxu0 %v1142
    %1158 = vmatpush.bf16.msra.mxu0 %v1141
    %1159 = vmatpush.bf16.msra.mxu0 %v1140
    %1160 = vmatpush.bf16.msra.mxu0 %v1139
    %1161 = vmatmul.bf16.gmra.mxu0 %v1148
    %v1162 = vpop.f32.mrf.mxu0
    %v1163 = vadd.f32 0.0, %v1162
    %v1164 = vpop.f32.mrf.mxu0
    %v1165 = vadd.f32 0.0, %v1164
    %1166 = vmatmul.bf16.gmra.mxu0 %v1151
    %v1167 = vpop.f32.mrf.mxu0
    %v1168 = vadd.f32 0.0, %v1167
    %v1169 = vpop.f32.mrf.mxu0
    %v1170 = vadd.f32 0.0, %v1169
    %1171 = vdwg.mxu0
    %v1180 = vunpack.c.l.b16 %v1064
    %v1181 = vunpack.c.l.b16 %v1065
    %v1182 = vunpack.c.l.b16 %v1066
    %v1183 = vunpack.c.l.b16 %v1067
    %v1184 = vunpack.c.l.b16 %v1068
    %v1185 = vunpack.c.l.b16 %v1069
    %v1186 = vunpack.c.l.b16 %v1070
    %v1187 = vunpack.c.l.b16 %v1071
    %v1188 = vpack.c.b16 %v1181, %v1180
    %v1189 = vpack.c.b16 %v1183, %v1182
    %v1190 = vpack.c.b16 %v1185, %v1184
    %v1191 = vpack.c.b16 %v1187, %v1186
    %v1197 = vsel %vm190, %v1061, 0
    %v1200 = vsel %vm190, %v1062, 0
    %1202 = vmatpush.bf16.msra.mxu0 0
    %1203 = vmatpush.bf16.msra.mxu0 0
    %1204 = vmatpush.bf16.msra.mxu0 0
    %1205 = vmatpush.bf16.msra.mxu0 0
    %1206 = vmatpush.bf16.msra.mxu0 %v1191
    %1207 = vmatpush.bf16.msra.mxu0 %v1190
    %1208 = vmatpush.bf16.msra.mxu0 %v1189
    %1209 = vmatpush.bf16.msra.mxu0 %v1188
    %1210 = vmatmul.bf16.gmra.mxu0 %v1197
    %v1211 = vpop.f32.mrf.mxu0
    %v1212 = vadd.f32 %v1163, %v1211
    %v1213 = vpop.f32.mrf.mxu0
    %v1214 = vadd.f32 %v1165, %v1213
    %1215 = vmatmul.bf16.gmra.mxu0 %v1200
    %v1216 = vpop.f32.mrf.mxu0
    %v1217 = vadd.f32 %v1168, %v1216
    %v1218 = vpop.f32.mrf.mxu0
    %v1219 = vadd.f32 %v1170, %v1218
    %1220 = vdwg.mxu0
    %s1221 = scalar_lea.vmem [#allocation2], 176
    %v1222 = vld [vmem:[%s1221] sm:$0xf]
    %v1223 = vld [vmem:[%s1221 + $0x4] sm:$0xf]
    %v1224 = vld [vmem:[%s1221 + $0x8] sm:$0xf]
    %v1225 = vld [vmem:[%s1221 + $0xc] sm:$0xf]
    %v1230 = vunpack.c.l.b16 %v1222
    %v1231 = vunpack.c.l.b16 %v1223
    %v1232 = vunpack.c.l.b16 %v1224
    %v1233 = vunpack.c.l.b16 %v1225
    %v1234 = vpack.c.b16 %v1231, %v1230
    %v1235 = vpack.c.b16 %v1233, %v1232
    %v1237 = vsel %vm79, %v1234, 0
    %v1240 = vsel %vm79, %v1235, 0
    %1242 = vmatpush.bf16.msra.mxu0 0
    %1243 = vmatpush.bf16.msra.mxu0 0
    %1244 = vmatpush.bf16.msra.mxu0 0
    %1245 = vmatpush.bf16.msra.mxu0 0
    %1246 = vmatpush.bf16.msra.mxu0 0
    %1247 = vmatpush.bf16.msra.mxu0 0
    %1248 = vmatpush.bf16.msra.mxu0 %v1020
    %1249 = vmatpush.bf16.msra.mxu0 %v1019
    %1250 = vmatmul.bf16.gmra.mxu0 %v1237
    %v1251 = vpop.f32.mrf.mxu0
    %v1252 = vadd.f32 0.0, %v1251
    %v1253 = vpop.f32.mrf.mxu0
    %v1254 = vadd.f32 0.0, %v1253
    %1255 = vmatmul.bf16.gmra.mxu0 %v1240
    %v1256 = vpop.f32.mrf.mxu0
    %v1257 = vadd.f32 0.0, %v1256
    %v1258 = vpop.f32.mrf.mxu0
    %v1259 = vadd.f32 0.0, %v1258
    %1260 = vdwg.mxu0
    %v1261 = vpack.c.bf16 %v1254, %v1252
    %v1262 = vpack.c.bf16 %v1259, %v1257
    %s1263 = scalar_lea.vmem [#allocation4], 352
    %v1264 = vld [vmem:[%s1263] sm:$0xf]
    %v1265 = vld [vmem:[%s1263 + $0x4] sm:$0xf]
    %v1266 = vld [vmem:[%s1263 + $0x8] sm:$0xf]
    %v1267 = vld [vmem:[%s1263 + $0xc] sm:$0xf]
    %v1268 = vld [vmem:[%s1263 + $0x10] sm:$0xf]
    %v1269 = vld [vmem:[%s1263 + $0x14] sm:$0xf]
    %v1270 = vld [vmem:[%s1263 + $0x18] sm:$0xf]
    %v1271 = vld [vmem:[%s1263 + $0x1c] sm:$0xf]
    %v1280 = vunpack.c.l.b16 %v1264
    %v1281 = vunpack.c.l.b16 %v1265
    %v1282 = vunpack.c.l.b16 %v1266
    %v1283 = vunpack.c.l.b16 %v1267
    %v1284 = vunpack.c.l.b16 %v1268
    %v1285 = vunpack.c.l.b16 %v1269
    %v1286 = vunpack.c.l.b16 %v1270
    %v1287 = vunpack.c.l.b16 %v1271
    %v1288 = vpack.c.b16 %v1281, %v1280
    %v1289 = vpack.c.b16 %v1283, %v1282
    %v1290 = vpack.c.b16 %v1285, %v1284
    %v1291 = vpack.c.b16 %v1287, %v1286
    %v1297 = vsel %vm190, %v1261, 0
    %v1300 = vsel %vm190, %v1262, 0
    %1302 = vmatpush.bf16.msra.mxu0 0
    %1303 = vmatpush.bf16.msra.mxu0 0
    %1304 = vmatpush.bf16.msra.mxu0 0
    %1305 = vmatpush.bf16.msra.mxu0 0
    %1306 = vmatpush.bf16.msra.mxu0 %v1291
    %1307 = vmatpush.bf16.msra.mxu0 %v1290
    %1308 = vmatpush.bf16.msra.mxu0 %v1289
    %1309 = vmatpush.bf16.msra.mxu0 %v1288
    %1310 = vmatmul.bf16.gmra.mxu0 %v1297
    %v1311 = vpop.f32.mrf.mxu0
    %v1312 = vadd.f32 0.0, %v1311
    %v1313 = vpop.f32.mrf.mxu0
    %v1314 = vadd.f32 0.0, %v1313
    %1315 = vmatmul.bf16.gmra.mxu0 %v1300
    %v1316 = vpop.f32.mrf.mxu0
    %v1317 = vadd.f32 0.0, %v1316
    %v1318 = vpop.f32.mrf.mxu0
    %v1319 = vadd.f32 0.0, %v1318
    %1320 = vdwg.mxu0
    %v1321 = vadd.f32 %v1212, %v1312
    %v1322 = vadd.f32 %v1214, %v1314
    %v1323 = vadd.f32 %v1217, %v1317
    %v1324 = vadd.f32 %v1219, %v1319
    %s1325 = scalar_lea.vmem %s3, 3
    %v1326 = vld [vmem:[%s1325] sm:$0x1]
    %v1328 = vperm.slane %v1326, 0
    %v1330 = vadd.f32 %v1321, %v1328
    %v1331 = vadd.f32 %v1322, %v1328
    %v1332 = vadd.f32 %v1323, %v1328
    %v1333 = vadd.f32 %v1324, %v1328
    %v1334 = vmax.f32 %v1330, 0.0
    %v1335 = vmax.f32 %v1331, 0.0
    %v1336 = vmax.f32 %v1332, 0.0
    %v1337 = vmax.f32 %v1333, 0.0
    %v1338 = vpack.c.bf16 %v1335, %v1334
    %v1339 = vpack.c.bf16 %v1337, %v1336
    %s1340 = scalar_lea.vmem [#allocation2], 192
    %v1341 = vld [vmem:[%s1340] sm:$0xf]
    %v1342 = vld [vmem:[%s1340 + $0x4] sm:$0xf]
    %v1343 = vld [vmem:[%s1340 + $0x8] sm:$0xf]
    %v1344 = vld [vmem:[%s1340 + $0xc] sm:$0xf]
    %v1349 = vunpack.c.l.b16 %v1341
    %v1350 = vunpack.c.l.b16 %v1342
    %v1351 = vunpack.c.l.b16 %v1343
    %v1352 = vunpack.c.l.b16 %v1344
    %v1353 = vpack.c.b16 %v1350, %v1349
    %v1354 = vpack.c.b16 %v1352, %v1351
    %v1356 = vsel %vm79, %v1353, 0
    %v1359 = vsel %vm79, %v1354, 0
    %1361 = vmatpush.bf16.msra.mxu0 0
    %1362 = vmatpush.bf16.msra.mxu0 0
    %1363 = vmatpush.bf16.msra.mxu0 0
    %1364 = vmatpush.bf16.msra.mxu0 0
    %1365 = vmatpush.bf16.msra.mxu0 0
    %1366 = vmatpush.bf16.msra.mxu0 0
    %1367 = vmatpush.bf16.msra.mxu0 %v1339
    %1368 = vmatpush.bf16.msra.mxu0 %v1338
    %1369 = vmatmul.bf16.gmra.mxu0 %v1356
    %v1370 = vpop.f32.mrf.mxu0
    %v1371 = vadd.f32 0.0, %v1370
    %v1372 = vpop.f32.mrf.mxu0
    %v1373 = vadd.f32 0.0, %v1372
    %1374 = vmatmul.bf16.gmra.mxu0 %v1359
    %v1375 = vpop.f32.mrf.mxu0
    %v1376 = vadd.f32 0.0, %v1375
    %v1377 = vpop.f32.mrf.mxu0
    %v1378 = vadd.f32 0.0, %v1377
    %1379 = vdwg.mxu0
    %v1380 = vpack.c.bf16 %v1373, %v1371
    %v1381 = vpack.c.bf16 %v1378, %v1376
    %s1382 = scalar_lea.vmem [#allocation4], 384
    %v1383 = vld [vmem:[%s1382] sm:$0xf]
    %v1384 = vld [vmem:[%s1382 + $0x4] sm:$0xf]
    %v1385 = vld [vmem:[%s1382 + $0x8] sm:$0xf]
    %v1386 = vld [vmem:[%s1382 + $0xc] sm:$0xf]
    %v1387 = vld [vmem:[%s1382 + $0x10] sm:$0xf]
    %v1388 = vld [vmem:[%s1382 + $0x14] sm:$0xf]
    %v1389 = vld [vmem:[%s1382 + $0x18] sm:$0xf]
    %v1390 = vld [vmem:[%s1382 + $0x1c] sm:$0xf]
    %s1391 = scalar_lea.vmem [#allocation2], 208
    %v1392 = vld [vmem:[%s1391] sm:$0xf]
    %v1393 = vld [vmem:[%s1391 + $0x4] sm:$0xf]
    %v1394 = vld [vmem:[%s1391 + $0x8] sm:$0xf]
    %v1395 = vld [vmem:[%s1391 + $0xc] sm:$0xf]
    %v1400 = vunpack.c.l.b16 %v1392
    %v1401 = vunpack.c.l.b16 %v1393
    %v1402 = vunpack.c.l.b16 %v1394
    %v1403 = vunpack.c.l.b16 %v1395
    %v1404 = vpack.c.b16 %v1401, %v1400
    %v1405 = vpack.c.b16 %v1403, %v1402
    %v1407 = vsel %vm79, %v1404, 0
    %v1410 = vsel %vm79, %v1405, 0
    %1412 = vmatpush.bf16.msra.mxu0 0
    %1413 = vmatpush.bf16.msra.mxu0 0
    %1414 = vmatpush.bf16.msra.mxu0 0
    %1415 = vmatpush.bf16.msra.mxu0 0
    %1416 = vmatpush.bf16.msra.mxu0 0
    %1417 = vmatpush.bf16.msra.mxu0 0
    %1418 = vmatpush.bf16.msra.mxu0 %v1339
    %1419 = vmatpush.bf16.msra.mxu0 %v1338
    %1420 = vmatmul.bf16.gmra.mxu0 %v1407
    %v1421 = vpop.f32.mrf.mxu0
    %v1422 = vadd.f32 0.0, %v1421
    %v1423 = vpop.f32.mrf.mxu0
    %v1424 = vadd.f32 0.0, %v1423
    %1425 = vmatmul.bf16.gmra.mxu0 %v1410
    %v1426 = vpop.f32.mrf.mxu0
    %v1427 = vadd.f32 0.0, %v1426
    %v1428 = vpop.f32.mrf.mxu0
    %v1429 = vadd.f32 0.0, %v1428
    %1430 = vdwg.mxu0
    %v1431 = vpack.c.bf16 %v1424, %v1422
    %v1432 = vpack.c.bf16 %v1429, %v1427
    %s1433 = scalar_lea.vmem [#allocation4], 416
    %v1434 = vld [vmem:[%s1433] sm:$0xf]
    %v1435 = vld [vmem:[%s1433 + $0x4] sm:$0xf]
    %v1436 = vld [vmem:[%s1433 + $0x8] sm:$0xf]
    %v1437 = vld [vmem:[%s1433 + $0xc] sm:$0xf]
    %v1438 = vld [vmem:[%s1433 + $0x10] sm:$0xf]
    %v1439 = vld [vmem:[%s1433 + $0x14] sm:$0xf]
    %v1440 = vld [vmem:[%s1433 + $0x18] sm:$0xf]
    %v1441 = vld [vmem:[%s1433 + $0x1c] sm:$0xf]
    %v1450 = vunpack.c.l.b16 %v1434
    %v1451 = vunpack.c.l.b16 %v1435
    %v1452 = vunpack.c.l.b16 %v1436
    %v1453 = vunpack.c.l.b16 %v1437
    %v1454 = vunpack.c.l.b16 %v1438
    %v1455 = vunpack.c.l.b16 %v1439
    %v1456 = vunpack.c.l.b16 %v1440
    %v1457 = vunpack.c.l.b16 %v1441
    %v1458 = vpack.c.b16 %v1451, %v1450
    %v1459 = vpack.c.b16 %v1453, %v1452
    %v1460 = vpack.c.b16 %v1455, %v1454
    %v1461 = vpack.c.b16 %v1457, %v1456
    %v1467 = vsel %vm190, %v1431, 0
    %v1470 = vsel %vm190, %v1432, 0
    %1472 = vmatpush.bf16.msra.mxu0 0
    %1473 = vmatpush.bf16.msra.mxu0 0
    %1474 = vmatpush.bf16.msra.mxu0 0
    %1475 = vmatpush.bf16.msra.mxu0 0
    %1476 = vmatpush.bf16.msra.mxu0 %v1461
    %1477 = vmatpush.bf16.msra.mxu0 %v1460
    %1478 = vmatpush.bf16.msra.mxu0 %v1459
    %1479 = vmatpush.bf16.msra.mxu0 %v1458
    %1480 = vmatmul.bf16.gmra.mxu0 %v1467
    %v1481 = vpop.f32.mrf.mxu0
    %v1482 = vadd.f32 0.0, %v1481
    %v1483 = vpop.f32.mrf.mxu0
    %v1484 = vadd.f32 0.0, %v1483
    %1485 = vmatmul.bf16.gmra.mxu0 %v1470
    %v1486 = vpop.f32.mrf.mxu0
    %v1487 = vadd.f32 0.0, %v1486
    %v1488 = vpop.f32.mrf.mxu0
    %v1489 = vadd.f32 0.0, %v1488
    %1490 = vdwg.mxu0
    %v1499 = vunpack.c.l.b16 %v1383
    %v1500 = vunpack.c.l.b16 %v1384
    %v1501 = vunpack.c.l.b16 %v1385
    %v1502 = vunpack.c.l.b16 %v1386
    %v1503 = vunpack.c.l.b16 %v1387
    %v1504 = vunpack.c.l.b16 %v1388
    %v1505 = vunpack.c.l.b16 %v1389
    %v1506 = vunpack.c.l.b16 %v1390
    %v1507 = vpack.c.b16 %v1500, %v1499
    %v1508 = vpack.c.b16 %v1502, %v1501
    %v1509 = vpack.c.b16 %v1504, %v1503
    %v1510 = vpack.c.b16 %v1506, %v1505
    %v1516 = vsel %vm190, %v1380, 0
    %v1519 = vsel %vm190, %v1381, 0
    %1521 = vmatpush.bf16.msra.mxu0 0
    %1522 = vmatpush.bf16.msra.mxu0 0
    %1523 = vmatpush.bf16.msra.mxu0 0
    %1524 = vmatpush.bf16.msra.mxu0 0
    %1525 = vmatpush.bf16.msra.mxu0 %v1510
    %1526 = vmatpush.bf16.msra.mxu0 %v1509
    %1527 = vmatpush.bf16.msra.mxu0 %v1508
    %1528 = vmatpush.bf16.msra.mxu0 %v1507
    %1529 = vmatmul.bf16.gmra.mxu0 %v1516
    %v1530 = vpop.f32.mrf.mxu0
    %v1531 = vadd.f32 %v1482, %v1530
    %v1532 = vpop.f32.mrf.mxu0
    %v1533 = vadd.f32 %v1484, %v1532
    %1534 = vmatmul.bf16.gmra.mxu0 %v1519
    %v1535 = vpop.f32.mrf.mxu0
    %v1536 = vadd.f32 %v1487, %v1535
    %v1537 = vpop.f32.mrf.mxu0
    %v1538 = vadd.f32 %v1489, %v1537
    %1539 = vdwg.mxu0
    %s1540 = scalar_lea.vmem [#allocation2], 224
    %v1541 = vld [vmem:[%s1540] sm:$0xf]
    %v1542 = vld [vmem:[%s1540 + $0x4] sm:$0xf]
    %v1543 = vld [vmem:[%s1540 + $0x8] sm:$0xf]
    %v1544 = vld [vmem:[%s1540 + $0xc] sm:$0xf]
    %v1549 = vunpack.c.l.b16 %v1541
    %v1550 = vunpack.c.l.b16 %v1542
    %v1551 = vunpack.c.l.b16 %v1543
    %v1552 = vunpack.c.l.b16 %v1544
    %v1553 = vpack.c.b16 %v1550, %v1549
    %v1554 = vpack.c.b16 %v1552, %v1551
    %v1556 = vsel %vm79, %v1553, 0
    %v1559 = vsel %vm79, %v1554, 0
    %1561 = vmatpush.bf16.msra.mxu0 0
    %1562 = vmatpush.bf16.msra.mxu0 0
    %1563 = vmatpush.bf16.msra.mxu0 0
    %1564 = vmatpush.bf16.msra.mxu0 0
    %1565 = vmatpush.bf16.msra.mxu0 0
    %1566 = vmatpush.bf16.msra.mxu0 0
    %1567 = vmatpush.bf16.msra.mxu0 %v1339
    %1568 = vmatpush.bf16.msra.mxu0 %v1338
    %1569 = vmatmul.bf16.gmra.mxu0 %v1556
    %v1570 = vpop.f32.mrf.mxu0
    %v1571 = vadd.f32 0.0, %v1570
    %v1572 = vpop.f32.mrf.mxu0
    %v1573 = vadd.f32 0.0, %v1572
    %1574 = vmatmul.bf16.gmra.mxu0 %v1559
    %v1575 = vpop.f32.mrf.mxu0
    %v1576 = vadd.f32 0.0, %v1575
    %v1577 = vpop.f32.mrf.mxu0
    %v1578 = vadd.f32 0.0, %v1577
    %1579 = vdwg.mxu0
    %v1580 = vpack.c.bf16 %v1573, %v1571
    %v1581 = vpack.c.bf16 %v1578, %v1576
    %s1582 = scalar_lea.vmem [#allocation4], 448
    %v1583 = vld [vmem:[%s1582] sm:$0xf]
    %v1584 = vld [vmem:[%s1582 + $0x4] sm:$0xf]
    %v1585 = vld [vmem:[%s1582 + $0x8] sm:$0xf]
    %v1586 = vld [vmem:[%s1582 + $0xc] sm:$0xf]
    %v1587 = vld [vmem:[%s1582 + $0x10] sm:$0xf]
    %v1588 = vld [vmem:[%s1582 + $0x14] sm:$0xf]
    %v1589 = vld [vmem:[%s1582 + $0x18] sm:$0xf]
    %v1590 = vld [vmem:[%s1582 + $0x1c] sm:$0xf]
    %v1599 = vunpack.c.l.b16 %v1583
    %v1600 = vunpack.c.l.b16 %v1584
    %v1601 = vunpack.c.l.b16 %v1585
    %v1602 = vunpack.c.l.b16 %v1586
    %v1603 = vunpack.c.l.b16 %v1587
    %v1604 = vunpack.c.l.b16 %v1588
    %v1605 = vunpack.c.l.b16 %v1589
    %v1606 = vunpack.c.l.b16 %v1590
    %v1607 = vpack.c.b16 %v1600, %v1599
    %v1608 = vpack.c.b16 %v1602, %v1601
    %v1609 = vpack.c.b16 %v1604, %v1603
    %v1610 = vpack.c.b16 %v1606, %v1605
    %v1616 = vsel %vm190, %v1580, 0
    %v1619 = vsel %vm190, %v1581, 0
    %1621 = vmatpush.bf16.msra.mxu0 0
    %1622 = vmatpush.bf16.msra.mxu0 0
    %1623 = vmatpush.bf16.msra.mxu0 0
    %1624 = vmatpush.bf16.msra.mxu0 0
    %1625 = vmatpush.bf16.msra.mxu0 %v1610
    %1626 = vmatpush.bf16.msra.mxu0 %v1609
    %1627 = vmatpush.bf16.msra.mxu0 %v1608
    %1628 = vmatpush.bf16.msra.mxu0 %v1607
    %1629 = vmatmul.bf16.gmra.mxu0 %v1616
    %v1630 = vpop.f32.mrf.mxu0
    %v1631 = vadd.f32 0.0, %v1630
    %v1632 = vpop.f32.mrf.mxu0
    %v1633 = vadd.f32 0.0, %v1632
    %1634 = vmatmul.bf16.gmra.mxu0 %v1619
    %v1635 = vpop.f32.mrf.mxu0
    %v1636 = vadd.f32 0.0, %v1635
    %v1637 = vpop.f32.mrf.mxu0
    %v1638 = vadd.f32 0.0, %v1637
    %1639 = vdwg.mxu0
    %v1640 = vadd.f32 %v1531, %v1631
    %v1641 = vadd.f32 %v1533, %v1633
    %v1642 = vadd.f32 %v1536, %v1636
    %v1643 = vadd.f32 %v1538, %v1638
    %s1644 = scalar_lea.vmem %s3, 4
    %v1645 = vld [vmem:[%s1644] sm:$0x1]
    %v1647 = vperm.slane %v1645, 0
    %v1649 = vadd.f32 %v1640, %v1647
    %v1650 = vadd.f32 %v1641, %v1647
    %v1651 = vadd.f32 %v1642, %v1647
    %v1652 = vadd.f32 %v1643, %v1647
    %v1653 = vmax.f32 %v1649, 0.0
    %v1654 = vmax.f32 %v1650, 0.0
    %v1655 = vmax.f32 %v1651, 0.0
    %v1656 = vmax.f32 %v1652, 0.0
    %v1657 = vpack.c.bf16 %v1654, %v1653
    %v1658 = vpack.c.bf16 %v1656, %v1655
    %s1659 = scalar_lea.vmem [#allocation2], 240
    %v1660 = vld [vmem:[%s1659] sm:$0xf]
    %v1661 = vld [vmem:[%s1659 + $0x4] sm:$0xf]
    %v1662 = vld [vmem:[%s1659 + $0x8] sm:$0xf]
    %v1663 = vld [vmem:[%s1659 + $0xc] sm:$0xf]
    %v1668 = vunpack.c.l.b16 %v1660
    %v1669 = vunpack.c.l.b16 %v1661
    %v1670 = vunpack.c.l.b16 %v1662
    %v1671 = vunpack.c.l.b16 %v1663
    %v1672 = vpack.c.b16 %v1669, %v1668
    %v1673 = vpack.c.b16 %v1671, %v1670
    %v1675 = vsel %vm79, %v1672, 0
    %v1678 = vsel %vm79, %v1673, 0
    %1680 = vmatpush.bf16.msra.mxu0 0
    %1681 = vmatpush.bf16.msra.mxu0 0
    %1682 = vmatpush.bf16.msra.mxu0 0
    %1683 = vmatpush.bf16.msra.mxu0 0
    %1684 = vmatpush.bf16.msra.mxu0 0
    %1685 = vmatpush.bf16.msra.mxu0 0
    %1686 = vmatpush.bf16.msra.mxu0 %v1658
    %1687 = vmatpush.bf16.msra.mxu0 %v1657
    %1688 = vmatmul.bf16.gmra.mxu0 %v1675
    %v1689 = vpop.f32.mrf.mxu0
    %v1690 = vadd.f32 0.0, %v1689
    %v1691 = vpop.f32.mrf.mxu0
    %v1692 = vadd.f32 0.0, %v1691
    %1693 = vmatmul.bf16.gmra.mxu0 %v1678
    %v1694 = vpop.f32.mrf.mxu0
    %v1695 = vadd.f32 0.0, %v1694
    %v1696 = vpop.f32.mrf.mxu0
    %v1697 = vadd.f32 0.0, %v1696
    %1698 = vdwg.mxu0
    %v1699 = vpack.c.bf16 %v1692, %v1690
    %v1700 = vpack.c.bf16 %v1697, %v1695
    %s1701 = scalar_lea.vmem [#allocation4], 480
    %v1702 = vld [vmem:[%s1701] sm:$0xf]
    %v1703 = vld [vmem:[%s1701 + $0x4] sm:$0xf]
    %v1704 = vld [vmem:[%s1701 + $0x8] sm:$0xf]
    %v1705 = vld [vmem:[%s1701 + $0xc] sm:$0xf]
    %v1706 = vld [vmem:[%s1701 + $0x10] sm:$0xf]
    %v1707 = vld [vmem:[%s1701 + $0x14] sm:$0xf]
    %v1708 = vld [vmem:[%s1701 + $0x18] sm:$0xf]
    %v1709 = vld [vmem:[%s1701 + $0x1c] sm:$0xf]
    %s1710 = scalar_lea.vmem [#allocation2], 256
    %v1711 = vld [vmem:[%s1710] sm:$0xf]
    %v1712 = vld [vmem:[%s1710 + $0x4] sm:$0xf]
    %v1713 = vld [vmem:[%s1710 + $0x8] sm:$0xf]
    %v1714 = vld [vmem:[%s1710 + $0xc] sm:$0xf]
    %v1719 = vunpack.c.l.b16 %v1711
    %v1720 = vunpack.c.l.b16 %v1712
    %v1721 = vunpack.c.l.b16 %v1713
    %v1722 = vunpack.c.l.b16 %v1714
    %v1723 = vpack.c.b16 %v1720, %v1719
    %v1724 = vpack.c.b16 %v1722, %v1721
    %v1726 = vsel %vm79, %v1723, 0
    %v1729 = vsel %vm79, %v1724, 0
    %1731 = vmatpush.bf16.msra.mxu0 0
    %1732 = vmatpush.bf16.msra.mxu0 0
    %1733 = vmatpush.bf16.msra.mxu0 0
    %1734 = vmatpush.bf16.msra.mxu0 0
    %1735 = vmatpush.bf16.msra.mxu0 0
    %1736 = vmatpush.bf16.msra.mxu0 0
    %1737 = vmatpush.bf16.msra.mxu0 %v1658
    %1738 = vmatpush.bf16.msra.mxu0 %v1657
    %1739 = vmatmul.bf16.gmra.mxu0 %v1726
    %v1740 = vpop.f32.mrf.mxu0
    %v1741 = vadd.f32 0.0, %v1740
    %v1742 = vpop.f32.mrf.mxu0
    %v1743 = vadd.f32 0.0, %v1742
    %1744 = vmatmul.bf16.gmra.mxu0 %v1729
    %v1745 = vpop.f32.mrf.mxu0
    %v1746 = vadd.f32 0.0, %v1745
    %v1747 = vpop.f32.mrf.mxu0
    %v1748 = vadd.f32 0.0, %v1747
    %1749 = vdwg.mxu0
    %v1750 = vpack.c.bf16 %v1743, %v1741
    %v1751 = vpack.c.bf16 %v1748, %v1746
    %s1752 = scalar_lea.vmem [#allocation4], 512
    %v1753 = vld [vmem:[%s1752] sm:$0xf]
    %v1754 = vld [vmem:[%s1752 + $0x4] sm:$0xf]
    %v1755 = vld [vmem:[%s1752 + $0x8] sm:$0xf]
    %v1756 = vld [vmem:[%s1752 + $0xc] sm:$0xf]
    %v1757 = vld [vmem:[%s1752 + $0x10] sm:$0xf]
    %v1758 = vld [vmem:[%s1752 + $0x14] sm:$0xf]
    %v1759 = vld [vmem:[%s1752 + $0x18] sm:$0xf]
    %v1760 = vld [vmem:[%s1752 + $0x1c] sm:$0xf]
    %v1769 = vunpack.c.l.b16 %v1753
    %v1770 = vunpack.c.l.b16 %v1754
    %v1771 = vunpack.c.l.b16 %v1755
    %v1772 = vunpack.c.l.b16 %v1756
    %v1773 = vunpack.c.l.b16 %v1757
    %v1774 = vunpack.c.l.b16 %v1758
    %v1775 = vunpack.c.l.b16 %v1759
    %v1776 = vunpack.c.l.b16 %v1760
    %v1777 = vpack.c.b16 %v1770, %v1769
    %v1778 = vpack.c.b16 %v1772, %v1771
    %v1779 = vpack.c.b16 %v1774, %v1773
    %v1780 = vpack.c.b16 %v1776, %v1775
    %v1786 = vsel %vm190, %v1750, 0
    %v1789 = vsel %vm190, %v1751, 0
    %1791 = vmatpush.bf16.msra.mxu0 0
    %1792 = vmatpush.bf16.msra.mxu0 0
    %1793 = vmatpush.bf16.msra.mxu0 0
    %1794 = vmatpush.bf16.msra.mxu0 0
    %1795 = vmatpush.bf16.msra.mxu0 %v1780
    %1796 = vmatpush.bf16.msra.mxu0 %v1779
    %1797 = vmatpush.bf16.msra.mxu0 %v1778
    %1798 = vmatpush.bf16.msra.mxu0 %v1777
    %1799 = vmatmul.bf16.gmra.mxu0 %v1786
    %v1800 = vpop.f32.mrf.mxu0
    %v1801 = vadd.f32 0.0, %v1800
    %v1802 = vpop.f32.mrf.mxu0
    %v1803 = vadd.f32 0.0, %v1802
    %1804 = vmatmul.bf16.gmra.mxu0 %v1789
    %v1805 = vpop.f32.mrf.mxu0
    %v1806 = vadd.f32 0.0, %v1805
    %v1807 = vpop.f32.mrf.mxu0
    %v1808 = vadd.f32 0.0, %v1807
    %1809 = vdwg.mxu0
    %v1818 = vunpack.c.l.b16 %v1702
    %v1819 = vunpack.c.l.b16 %v1703
    %v1820 = vunpack.c.l.b16 %v1704
    %v1821 = vunpack.c.l.b16 %v1705
    %v1822 = vunpack.c.l.b16 %v1706
    %v1823 = vunpack.c.l.b16 %v1707
    %v1824 = vunpack.c.l.b16 %v1708
    %v1825 = vunpack.c.l.b16 %v1709
    %v1826 = vpack.c.b16 %v1819, %v1818
    %v1827 = vpack.c.b16 %v1821, %v1820
    %v1828 = vpack.c.b16 %v1823, %v1822
    %v1829 = vpack.c.b16 %v1825, %v1824
    %v1835 = vsel %vm190, %v1699, 0
    %v1838 = vsel %vm190, %v1700, 0
    %1840 = vmatpush.bf16.msra.mxu0 0
    %1841 = vmatpush.bf16.msra.mxu0 0
    %1842 = vmatpush.bf16.msra.mxu0 0
    %1843 = vmatpush.bf16.msra.mxu0 0
    %1844 = vmatpush.bf16.msra.mxu0 %v1829
    %1845 = vmatpush.bf16.msra.mxu0 %v1828
    %1846 = vmatpush.bf16.msra.mxu0 %v1827
    %1847 = vmatpush.bf16.msra.mxu0 %v1826
    %1848 = vmatmul.bf16.gmra.mxu0 %v1835
    %v1849 = vpop.f32.mrf.mxu0
    %v1850 = vadd.f32 %v1801, %v1849
    %v1851 = vpop.f32.mrf.mxu0
    %v1852 = vadd.f32 %v1803, %v1851
    %1853 = vmatmul.bf16.gmra.mxu0 %v1838
    %v1854 = vpop.f32.mrf.mxu0
    %v1855 = vadd.f32 %v1806, %v1854
    %v1856 = vpop.f32.mrf.mxu0
    %v1857 = vadd.f32 %v1808, %v1856
    %1858 = vdwg.mxu0
    %s1859 = scalar_lea.vmem [#allocation2], 272
    %v1860 = vld [vmem:[%s1859] sm:$0xf]
    %v1861 = vld [vmem:[%s1859 + $0x4] sm:$0xf]
    %v1862 = vld [vmem:[%s1859 + $0x8] sm:$0xf]
    %v1863 = vld [vmem:[%s1859 + $0xc] sm:$0xf]
    %v1868 = vunpack.c.l.b16 %v1860
    %v1869 = vunpack.c.l.b16 %v1861
    %v1870 = vunpack.c.l.b16 %v1862
    %v1871 = vunpack.c.l.b16 %v1863
    %v1872 = vpack.c.b16 %v1869, %v1868
    %v1873 = vpack.c.b16 %v1871, %v1870
    %v1875 = vsel %vm79, %v1872, 0
    %v1878 = vsel %vm79, %v1873, 0
    %1880 = vmatpush.bf16.msra.mxu0 0
    %1881 = vmatpush.bf16.msra.mxu0 0
    %1882 = vmatpush.bf16.msra.mxu0 0
    %1883 = vmatpush.bf16.msra.mxu0 0
    %1884 = vmatpush.bf16.msra.mxu0 0
    %1885 = vmatpush.bf16.msra.mxu0 0
    %1886 = vmatpush.bf16.msra.mxu0 %v1658
    %1887 = vmatpush.bf16.msra.mxu0 %v1657
    %1888 = vmatmul.bf16.gmra.mxu0 %v1875
    %v1889 = vpop.f32.mrf.mxu0
    %v1890 = vadd.f32 0.0, %v1889
    %v1891 = vpop.f32.mrf.mxu0
    %v1892 = vadd.f32 0.0, %v1891
    %1893 = vmatmul.bf16.gmra.mxu0 %v1878
    %v1894 = vpop.f32.mrf.mxu0
    %v1895 = vadd.f32 0.0, %v1894
    %v1896 = vpop.f32.mrf.mxu0
    %v1897 = vadd.f32 0.0, %v1896
    %1898 = vdwg.mxu0
    %v1899 = vpack.c.bf16 %v1892, %v1890
    %v1900 = vpack.c.bf16 %v1897, %v1895
    %s1901 = scalar_lea.vmem [#allocation4], 544
    %v1902 = vld [vmem:[%s1901] sm:$0xf]
    %v1903 = vld [vmem:[%s1901 + $0x4] sm:$0xf]
    %v1904 = vld [vmem:[%s1901 + $0x8] sm:$0xf]
    %v1905 = vld [vmem:[%s1901 + $0xc] sm:$0xf]
    %v1906 = vld [vmem:[%s1901 + $0x10] sm:$0xf]
    %v1907 = vld [vmem:[%s1901 + $0x14] sm:$0xf]
    %v1908 = vld [vmem:[%s1901 + $0x18] sm:$0xf]
    %v1909 = vld [vmem:[%s1901 + $0x1c] sm:$0xf]
    %v1918 = vunpack.c.l.b16 %v1902
    %v1919 = vunpack.c.l.b16 %v1903
    %v1920 = vunpack.c.l.b16 %v1904
    %v1921 = vunpack.c.l.b16 %v1905
    %v1922 = vunpack.c.l.b16 %v1906
    %v1923 = vunpack.c.l.b16 %v1907
    %v1924 = vunpack.c.l.b16 %v1908
    %v1925 = vunpack.c.l.b16 %v1909
    %v1926 = vpack.c.b16 %v1919, %v1918
    %v1927 = vpack.c.b16 %v1921, %v1920
    %v1928 = vpack.c.b16 %v1923, %v1922
    %v1929 = vpack.c.b16 %v1925, %v1924
    %v1935 = vsel %vm190, %v1899, 0
    %v1938 = vsel %vm190, %v1900, 0
    %1940 = vmatpush.bf16.msra.mxu0 0
    %1941 = vmatpush.bf16.msra.mxu0 0
    %1942 = vmatpush.bf16.msra.mxu0 0
    %1943 = vmatpush.bf16.msra.mxu0 0
    %1944 = vmatpush.bf16.msra.mxu0 %v1929
    %1945 = vmatpush.bf16.msra.mxu0 %v1928
    %1946 = vmatpush.bf16.msra.mxu0 %v1927
    %1947 = vmatpush.bf16.msra.mxu0 %v1926
    %1948 = vmatmul.bf16.gmra.mxu0 %v1935
    %v1949 = vpop.f32.mrf.mxu0
    %v1950 = vadd.f32 0.0, %v1949
    %v1951 = vpop.f32.mrf.mxu0
    %v1952 = vadd.f32 0.0, %v1951
    %1953 = vmatmul.bf16.gmra.mxu0 %v1938
    %v1954 = vpop.f32.mrf.mxu0
    %v1955 = vadd.f32 0.0, %v1954
    %v1956 = vpop.f32.mrf.mxu0
    %v1957 = vadd.f32 0.0, %v1956
    %1958 = vdwg.mxu0
    %v1959 = vadd.f32 %v1850, %v1950
    %v1960 = vadd.f32 %v1852, %v1952
    %v1961 = vadd.f32 %v1855, %v1955
    %v1962 = vadd.f32 %v1857, %v1957
    %s1963 = scalar_lea.vmem %s3, 5
    %v1964 = vld [vmem:[%s1963] sm:$0x1]
    %v1966 = vperm.slane %v1964, 0
    %v1968 = vadd.f32 %v1959, %v1966
    %v1969 = vadd.f32 %v1960, %v1966
    %v1970 = vadd.f32 %v1961, %v1966
    %v1971 = vadd.f32 %v1962, %v1966
    %v1972 = vmax.f32 %v1968, 0.0
    %v1973 = vmax.f32 %v1969, 0.0
    %v1974 = vmax.f32 %v1970, 0.0
    %v1975 = vmax.f32 %v1971, 0.0
    %v1976 = vpack.c.bf16 %v1973, %v1972
    %v1977 = vpack.c.bf16 %v1975, %v1974
    %s1978 = scalar_lea.vmem [#allocation2], 288
    %v1979 = vld [vmem:[%s1978] sm:$0xf]
    %v1980 = vld [vmem:[%s1978 + $0x4] sm:$0xf]
    %v1981 = vld [vmem:[%s1978 + $0x8] sm:$0xf]
    %v1982 = vld [vmem:[%s1978 + $0xc] sm:$0xf]
    %v1987 = vunpack.c.l.b16 %v1979
    %v1988 = vunpack.c.l.b16 %v1980
    %v1989 = vunpack.c.l.b16 %v1981
    %v1990 = vunpack.c.l.b16 %v1982
    %v1991 = vpack.c.b16 %v1988, %v1987
    %v1992 = vpack.c.b16 %v1990, %v1989
    %v1994 = vsel %vm79, %v1991, 0
    %v1997 = vsel %vm79, %v1992, 0
    %1999 = vmatpush.bf16.msra.mxu0 0
    %2000 = vmatpush.bf16.msra.mxu0 0
    %2001 = vmatpush.bf16.msra.mxu0 0
    %2002 = vmatpush.bf16.msra.mxu0 0
    %2003 = vmatpush.bf16.msra.mxu0 0
    %2004 = vmatpush.bf16.msra.mxu0 0
    %2005 = vmatpush.bf16.msra.mxu0 %v1977
    %2006 = vmatpush.bf16.msra.mxu0 %v1976
    %2007 = vmatmul.bf16.gmra.mxu0 %v1994
    %v2008 = vpop.f32.mrf.mxu0
    %v2009 = vadd.f32 0.0, %v2008
    %v2010 = vpop.f32.mrf.mxu0
    %v2011 = vadd.f32 0.0, %v2010
    %2012 = vmatmul.bf16.gmra.mxu0 %v1997
    %v2013 = vpop.f32.mrf.mxu0
    %v2014 = vadd.f32 0.0, %v2013
    %v2015 = vpop.f32.mrf.mxu0
    %v2016 = vadd.f32 0.0, %v2015
    %2017 = vdwg.mxu0
    %v2018 = vpack.c.bf16 %v2011, %v2009
    %v2019 = vpack.c.bf16 %v2016, %v2014
    %s2020 = scalar_lea.vmem [#allocation4], 576
    %v2021 = vld [vmem:[%s2020] sm:$0xf]
    %v2022 = vld [vmem:[%s2020 + $0x4] sm:$0xf]
    %v2023 = vld [vmem:[%s2020 + $0x8] sm:$0xf]
    %v2024 = vld [vmem:[%s2020 + $0xc] sm:$0xf]
    %v2025 = vld [vmem:[%s2020 + $0x10] sm:$0xf]
    %v2026 = vld [vmem:[%s2020 + $0x14] sm:$0xf]
    %v2027 = vld [vmem:[%s2020 + $0x18] sm:$0xf]
    %v2028 = vld [vmem:[%s2020 + $0x1c] sm:$0xf]
    %s2029 = scalar_lea.vmem [#allocation2], 304
    %v2030 = vld [vmem:[%s2029] sm:$0xf]
    %v2031 = vld [vmem:[%s2029 + $0x4] sm:$0xf]
    %v2032 = vld [vmem:[%s2029 + $0x8] sm:$0xf]
    %v2033 = vld [vmem:[%s2029 + $0xc] sm:$0xf]
    %v2038 = vunpack.c.l.b16 %v2030
    %v2039 = vunpack.c.l.b16 %v2031
    %v2040 = vunpack.c.l.b16 %v2032
    %v2041 = vunpack.c.l.b16 %v2033
    %v2042 = vpack.c.b16 %v2039, %v2038
    %v2043 = vpack.c.b16 %v2041, %v2040
    %v2045 = vsel %vm79, %v2042, 0
    %v2048 = vsel %vm79, %v2043, 0
    %2050 = vmatpush.bf16.msra.mxu0 0
    %2051 = vmatpush.bf16.msra.mxu0 0
    %2052 = vmatpush.bf16.msra.mxu0 0
    %2053 = vmatpush.bf16.msra.mxu0 0
    %2054 = vmatpush.bf16.msra.mxu0 0
    %2055 = vmatpush.bf16.msra.mxu0 0
    %2056 = vmatpush.bf16.msra.mxu0 %v1977
    %2057 = vmatpush.bf16.msra.mxu0 %v1976
    %2058 = vmatmul.bf16.gmra.mxu0 %v2045
    %v2059 = vpop.f32.mrf.mxu0
    %v2060 = vadd.f32 0.0, %v2059
    %v2061 = vpop.f32.mrf.mxu0
    %v2062 = vadd.f32 0.0, %v2061
    %2063 = vmatmul.bf16.gmra.mxu0 %v2048
    %v2064 = vpop.f32.mrf.mxu0
    %v2065 = vadd.f32 0.0, %v2064
    %v2066 = vpop.f32.mrf.mxu0
    %v2067 = vadd.f32 0.0, %v2066
    %2068 = vdwg.mxu0
    %v2069 = vpack.c.bf16 %v2062, %v2060
    %v2070 = vpack.c.bf16 %v2067, %v2065
    %s2071 = scalar_lea.vmem [#allocation4], 608
    %v2072 = vld [vmem:[%s2071] sm:$0xf]
    %v2073 = vld [vmem:[%s2071 + $0x4] sm:$0xf]
    %v2074 = vld [vmem:[%s2071 + $0x8] sm:$0xf]
    %v2075 = vld [vmem:[%s2071 + $0xc] sm:$0xf]
    %v2076 = vld [vmem:[%s2071 + $0x10] sm:$0xf]
    %v2077 = vld [vmem:[%s2071 + $0x14] sm:$0xf]
    %v2078 = vld [vmem:[%s2071 + $0x18] sm:$0xf]
    %v2079 = vld [vmem:[%s2071 + $0x1c] sm:$0xf]
    %v2088 = vunpack.c.l.b16 %v2072
    %v2089 = vunpack.c.l.b16 %v2073
    %v2090 = vunpack.c.l.b16 %v2074
    %v2091 = vunpack.c.l.b16 %v2075
    %v2092 = vunpack.c.l.b16 %v2076
    %v2093 = vunpack.c.l.b16 %v2077
    %v2094 = vunpack.c.l.b16 %v2078
    %v2095 = vunpack.c.l.b16 %v2079
    %v2096 = vpack.c.b16 %v2089, %v2088
    %v2097 = vpack.c.b16 %v2091, %v2090
    %v2098 = vpack.c.b16 %v2093, %v2092
    %v2099 = vpack.c.b16 %v2095, %v2094
    %v2105 = vsel %vm190, %v2069, 0
    %v2108 = vsel %vm190, %v2070, 0
    %2110 = vmatpush.bf16.msra.mxu0 0
    %2111 = vmatpush.bf16.msra.mxu0 0
    %2112 = vmatpush.bf16.msra.mxu0 0
    %2113 = vmatpush.bf16.msra.mxu0 0
    %2114 = vmatpush.bf16.msra.mxu0 %v2099
    %2115 = vmatpush.bf16.msra.mxu0 %v2098
    %2116 = vmatpush.bf16.msra.mxu0 %v2097
    %2117 = vmatpush.bf16.msra.mxu0 %v2096
    %2118 = vmatmul.bf16.gmra.mxu0 %v2105
    %v2119 = vpop.f32.mrf.mxu0
    %v2120 = vadd.f32 0.0, %v2119
    %v2121 = vpop.f32.mrf.mxu0
    %v2122 = vadd.f32 0.0, %v2121
    %2123 = vmatmul.bf16.gmra.mxu0 %v2108
    %v2124 = vpop.f32.mrf.mxu0
    %v2125 = vadd.f32 0.0, %v2124
    %v2126 = vpop.f32.mrf.mxu0
    %v2127 = vadd.f32 0.0, %v2126
    %2128 = vdwg.mxu0
    %v2137 = vunpack.c.l.b16 %v2021
    %v2138 = vunpack.c.l.b16 %v2022
    %v2139 = vunpack.c.l.b16 %v2023
    %v2140 = vunpack.c.l.b16 %v2024
    %v2141 = vunpack.c.l.b16 %v2025
    %v2142 = vunpack.c.l.b16 %v2026
    %v2143 = vunpack.c.l.b16 %v2027
    %v2144 = vunpack.c.l.b16 %v2028
    %v2145 = vpack.c.b16 %v2138, %v2137
    %v2146 = vpack.c.b16 %v2140, %v2139
    %v2147 = vpack.c.b16 %v2142, %v2141
    %v2148 = vpack.c.b16 %v2144, %v2143
    %v2154 = vsel %vm190, %v2018, 0
    %v2157 = vsel %vm190, %v2019, 0
    %2159 = vmatpush.bf16.msra.mxu0 0
    %2160 = vmatpush.bf16.msra.mxu0 0
    %2161 = vmatpush.bf16.msra.mxu0 0
    %2162 = vmatpush.bf16.msra.mxu0 0
    %2163 = vmatpush.bf16.msra.mxu0 %v2148
    %2164 = vmatpush.bf16.msra.mxu0 %v2147
    %2165 = vmatpush.bf16.msra.mxu0 %v2146
    %2166 = vmatpush.bf16.msra.mxu0 %v2145
    %2167 = vmatmul.bf16.gmra.mxu0 %v2154
    %v2168 = vpop.f32.mrf.mxu0
    %v2169 = vadd.f32 %v2120, %v2168
    %v2170 = vpop.f32.mrf.mxu0
    %v2171 = vadd.f32 %v2122, %v2170
    %2172 = vmatmul.bf16.gmra.mxu0 %v2157
    %v2173 = vpop.f32.mrf.mxu0
    %v2174 = vadd.f32 %v2125, %v2173
    %v2175 = vpop.f32.mrf.mxu0
    %v2176 = vadd.f32 %v2127, %v2175
    %2177 = vdwg.mxu0
    %s2178 = scalar_lea.vmem [#allocation2], 320
    %v2179 = vld [vmem:[%s2178] sm:$0xf]
    %v2180 = vld [vmem:[%s2178 + $0x4] sm:$0xf]
    %v2181 = vld [vmem:[%s2178 + $0x8] sm:$0xf]
    %v2182 = vld [vmem:[%s2178 + $0xc] sm:$0xf]
    %v2187 = vunpack.c.l.b16 %v2179
    %v2188 = vunpack.c.l.b16 %v2180
    %v2189 = vunpack.c.l.b16 %v2181
    %v2190 = vunpack.c.l.b16 %v2182
    %v2191 = vpack.c.b16 %v2188, %v2187
    %v2192 = vpack.c.b16 %v2190, %v2189
    %v2194 = vsel %vm79, %v2191, 0
    %v2197 = vsel %vm79, %v2192, 0
    %2199 = vmatpush.bf16.msra.mxu0 0
    %2200 = vmatpush.bf16.msra.mxu0 0
    %2201 = vmatpush.bf16.msra.mxu0 0
    %2202 = vmatpush.bf16.msra.mxu0 0
    %2203 = vmatpush.bf16.msra.mxu0 0
    %2204 = vmatpush.bf16.msra.mxu0 0
    %2205 = vmatpush.bf16.msra.mxu0 %v1977
    %2206 = vmatpush.bf16.msra.mxu0 %v1976
    %2207 = vmatmul.bf16.gmra.mxu0 %v2194
    %v2208 = vpop.f32.mrf.mxu0
    %v2209 = vadd.f32 0.0, %v2208
    %v2210 = vpop.f32.mrf.mxu0
    %v2211 = vadd.f32 0.0, %v2210
    %2212 = vmatmul.bf16.gmra.mxu0 %v2197
    %v2213 = vpop.f32.mrf.mxu0
    %v2214 = vadd.f32 0.0, %v2213
    %v2215 = vpop.f32.mrf.mxu0
    %v2216 = vadd.f32 0.0, %v2215
    %2217 = vdwg.mxu0
    %v2218 = vpack.c.bf16 %v2211, %v2209
    %v2219 = vpack.c.bf16 %v2216, %v2214
    %s2220 = scalar_lea.vmem [#allocation4], 640
    %v2221 = vld [vmem:[%s2220] sm:$0xf]
    %v2222 = vld [vmem:[%s2220 + $0x4] sm:$0xf]
    %v2223 = vld [vmem:[%s2220 + $0x8] sm:$0xf]
    %v2224 = vld [vmem:[%s2220 + $0xc] sm:$0xf]
    %v2225 = vld [vmem:[%s2220 + $0x10] sm:$0xf]
    %v2226 = vld [vmem:[%s2220 + $0x14] sm:$0xf]
    %v2227 = vld [vmem:[%s2220 + $0x18] sm:$0xf]
    %v2228 = vld [vmem:[%s2220 + $0x1c] sm:$0xf]
    %v2237 = vunpack.c.l.b16 %v2221
    %v2238 = vunpack.c.l.b16 %v2222
    %v2239 = vunpack.c.l.b16 %v2223
    %v2240 = vunpack.c.l.b16 %v2224
    %v2241 = vunpack.c.l.b16 %v2225
    %v2242 = vunpack.c.l.b16 %v2226
    %v2243 = vunpack.c.l.b16 %v2227
    %v2244 = vunpack.c.l.b16 %v2228
    %v2245 = vpack.c.b16 %v2238, %v2237
    %v2246 = vpack.c.b16 %v2240, %v2239
    %v2247 = vpack.c.b16 %v2242, %v2241
    %v2248 = vpack.c.b16 %v2244, %v2243
    %v2254 = vsel %vm190, %v2218, 0
    %v2257 = vsel %vm190, %v2219, 0
    %2259 = vmatpush.bf16.msra.mxu0 0
    %2260 = vmatpush.bf16.msra.mxu0 0
    %2261 = vmatpush.bf16.msra.mxu0 0
    %2262 = vmatpush.bf16.msra.mxu0 0
    %2263 = vmatpush.bf16.msra.mxu0 %v2248
    %2264 = vmatpush.bf16.msra.mxu0 %v2247
    %2265 = vmatpush.bf16.msra.mxu0 %v2246
    %2266 = vmatpush.bf16.msra.mxu0 %v2245
    %2267 = vmatmul.bf16.gmra.mxu0 %v2254
    %v2268 = vpop.f32.mrf.mxu0
    %v2269 = vadd.f32 0.0, %v2268
    %v2270 = vpop.f32.mrf.mxu0
    %v2271 = vadd.f32 0.0, %v2270
    %2272 = vmatmul.bf16.gmra.mxu0 %v2257
    %v2273 = vpop.f32.mrf.mxu0
    %v2274 = vadd.f32 0.0, %v2273
    %v2275 = vpop.f32.mrf.mxu0
    %v2276 = vadd.f32 0.0, %v2275
    %2277 = vdwg.mxu0
    %v2278 = vadd.f32 %v2169, %v2269
    %v2279 = vadd.f32 %v2171, %v2271
    %v2280 = vadd.f32 %v2174, %v2274
    %v2281 = vadd.f32 %v2176, %v2276
    %s2282 = scalar_lea.vmem %s3, 6
    %v2283 = vld [vmem:[%s2282] sm:$0x1]
    %v2285 = vperm.slane %v2283, 0
    %v2287 = vadd.f32 %v2278, %v2285
    %v2288 = vadd.f32 %v2279, %v2285
    %v2289 = vadd.f32 %v2280, %v2285
    %v2290 = vadd.f32 %v2281, %v2285
    %v2291 = vmax.f32 %v2287, 0.0
    %v2292 = vmax.f32 %v2288, 0.0
    %v2293 = vmax.f32 %v2289, 0.0
    %v2294 = vmax.f32 %v2290, 0.0
    %v2295 = vpack.c.bf16 %v2292, %v2291
    %v2296 = vpack.c.bf16 %v2294, %v2293
    %s2297 = scalar_lea.vmem [#allocation2], 336
    %v2298 = vld [vmem:[%s2297] sm:$0xf]
    %v2299 = vld [vmem:[%s2297 + $0x4] sm:$0xf]
    %v2300 = vld [vmem:[%s2297 + $0x8] sm:$0xf]
    %v2301 = vld [vmem:[%s2297 + $0xc] sm:$0xf]
    %v2306 = vunpack.c.l.b16 %v2298
    %v2307 = vunpack.c.l.b16 %v2299
    %v2308 = vunpack.c.l.b16 %v2300
    %v2309 = vunpack.c.l.b16 %v2301
    %v2310 = vpack.c.b16 %v2307, %v2306
    %v2311 = vpack.c.b16 %v2309, %v2308
    %v2313 = vsel %vm79, %v2310, 0
    %v2316 = vsel %vm79, %v2311, 0
    %2318 = vmatpush.bf16.msra.mxu0 0
    %2319 = vmatpush.bf16.msra.mxu0 0
    %2320 = vmatpush.bf16.msra.mxu0 0
    %2321 = vmatpush.bf16.msra.mxu0 0
    %2322 = vmatpush.bf16.msra.mxu0 0
    %2323 = vmatpush.bf16.msra.mxu0 0
    %2324 = vmatpush.bf16.msra.mxu0 %v2296
    %2325 = vmatpush.bf16.msra.mxu0 %v2295
    %2326 = vmatmul.bf16.gmra.mxu0 %v2313
    %v2327 = vpop.f32.mrf.mxu0
    %v2328 = vadd.f32 0.0, %v2327
    %v2329 = vpop.f32.mrf.mxu0
    %v2330 = vadd.f32 0.0, %v2329
    %2331 = vmatmul.bf16.gmra.mxu0 %v2316
    %v2332 = vpop.f32.mrf.mxu0
    %v2333 = vadd.f32 0.0, %v2332
    %v2334 = vpop.f32.mrf.mxu0
    %v2335 = vadd.f32 0.0, %v2334
    %2336 = vdwg.mxu0
    %v2337 = vpack.c.bf16 %v2330, %v2328
    %v2338 = vpack.c.bf16 %v2335, %v2333
    %s2339 = scalar_lea.vmem [#allocation4], 672
    %v2340 = vld [vmem:[%s2339] sm:$0xf]
    %v2341 = vld [vmem:[%s2339 + $0x4] sm:$0xf]
    %v2342 = vld [vmem:[%s2339 + $0x8] sm:$0xf]
    %v2343 = vld [vmem:[%s2339 + $0xc] sm:$0xf]
    %v2344 = vld [vmem:[%s2339 + $0x10] sm:$0xf]
    %v2345 = vld [vmem:[%s2339 + $0x14] sm:$0xf]
    %v2346 = vld [vmem:[%s2339 + $0x18] sm:$0xf]
    %v2347 = vld [vmem:[%s2339 + $0x1c] sm:$0xf]
    %s2348 = scalar_lea.vmem [#allocation2], 352
    %v2349 = vld [vmem:[%s2348] sm:$0xf]
    %v2350 = vld [vmem:[%s2348 + $0x4] sm:$0xf]
    %v2351 = vld [vmem:[%s2348 + $0x8] sm:$0xf]
    %v2352 = vld [vmem:[%s2348 + $0xc] sm:$0xf]
    %v2357 = vunpack.c.l.b16 %v2349
    %v2358 = vunpack.c.l.b16 %v2350
    %v2359 = vunpack.c.l.b16 %v2351
    %v2360 = vunpack.c.l.b16 %v2352
    %v2361 = vpack.c.b16 %v2358, %v2357
    %v2362 = vpack.c.b16 %v2360, %v2359
    %v2364 = vsel %vm79, %v2361, 0
    %v2367 = vsel %vm79, %v2362, 0
    %2369 = vmatpush.bf16.msra.mxu0 0
    %2370 = vmatpush.bf16.msra.mxu0 0
    %2371 = vmatpush.bf16.msra.mxu0 0
    %2372 = vmatpush.bf16.msra.mxu0 0
    %2373 = vmatpush.bf16.msra.mxu0 0
    %2374 = vmatpush.bf16.msra.mxu0 0
    %2375 = vmatpush.bf16.msra.mxu0 %v2296
    %2376 = vmatpush.bf16.msra.mxu0 %v2295
    %2377 = vmatmul.bf16.gmra.mxu0 %v2364
    %v2378 = vpop.f32.mrf.mxu0
    %v2379 = vadd.f32 0.0, %v2378
    %v2380 = vpop.f32.mrf.mxu0
    %v2381 = vadd.f32 0.0, %v2380
    %2382 = vmatmul.bf16.gmra.mxu0 %v2367
    %v2383 = vpop.f32.mrf.mxu0
    %v2384 = vadd.f32 0.0, %v2383
    %v2385 = vpop.f32.mrf.mxu0
    %v2386 = vadd.f32 0.0, %v2385
    %2387 = vdwg.mxu0
    %v2388 = vpack.c.bf16 %v2381, %v2379
    %v2389 = vpack.c.bf16 %v2386, %v2384
    %s2390 = scalar_lea.vmem [#allocation4], 704
    %v2391 = vld [vmem:[%s2390] sm:$0xf]
    %v2392 = vld [vmem:[%s2390 + $0x4] sm:$0xf]
    %v2393 = vld [vmem:[%s2390 + $0x8] sm:$0xf]
    %v2394 = vld [vmem:[%s2390 + $0xc] sm:$0xf]
    %v2395 = vld [vmem:[%s2390 + $0x10] sm:$0xf]
    %v2396 = vld [vmem:[%s2390 + $0x14] sm:$0xf]
    %v2397 = vld [vmem:[%s2390 + $0x18] sm:$0xf]
    %v2398 = vld [vmem:[%s2390 + $0x1c] sm:$0xf]
    %v2407 = vunpack.c.l.b16 %v2391
    %v2408 = vunpack.c.l.b16 %v2392
    %v2409 = vunpack.c.l.b16 %v2393
    %v2410 = vunpack.c.l.b16 %v2394
    %v2411 = vunpack.c.l.b16 %v2395
    %v2412 = vunpack.c.l.b16 %v2396
    %v2413 = vunpack.c.l.b16 %v2397
    %v2414 = vunpack.c.l.b16 %v2398
    %v2415 = vpack.c.b16 %v2408, %v2407
    %v2416 = vpack.c.b16 %v2410, %v2409
    %v2417 = vpack.c.b16 %v2412, %v2411
    %v2418 = vpack.c.b16 %v2414, %v2413
    %v2424 = vsel %vm190, %v2388, 0
    %v2427 = vsel %vm190, %v2389, 0
    %2429 = vmatpush.bf16.msra.mxu0 0
    %2430 = vmatpush.bf16.msra.mxu0 0
    %2431 = vmatpush.bf16.msra.mxu0 0
    %2432 = vmatpush.bf16.msra.mxu0 0
    %2433 = vmatpush.bf16.msra.mxu0 %v2418
    %2434 = vmatpush.bf16.msra.mxu0 %v2417
    %2435 = vmatpush.bf16.msra.mxu0 %v2416
    %2436 = vmatpush.bf16.msra.mxu0 %v2415
    %2437 = vmatmul.bf16.gmra.mxu0 %v2424
    %v2438 = vpop.f32.mrf.mxu0
    %v2439 = vadd.f32 0.0, %v2438
    %v2440 = vpop.f32.mrf.mxu0
    %v2441 = vadd.f32 0.0, %v2440
    %2442 = vmatmul.bf16.gmra.mxu0 %v2427
    %v2443 = vpop.f32.mrf.mxu0
    %v2444 = vadd.f32 0.0, %v2443
    %v2445 = vpop.f32.mrf.mxu0
    %v2446 = vadd.f32 0.0, %v2445
    %2447 = vdwg.mxu0
    %v2456 = vunpack.c.l.b16 %v2340
    %v2457 = vunpack.c.l.b16 %v2341
    %v2458 = vunpack.c.l.b16 %v2342
    %v2459 = vunpack.c.l.b16 %v2343
    %v2460 = vunpack.c.l.b16 %v2344
    %v2461 = vunpack.c.l.b16 %v2345
    %v2462 = vunpack.c.l.b16 %v2346
    %v2463 = vunpack.c.l.b16 %v2347
    %v2464 = vpack.c.b16 %v2457, %v2456
    %v2465 = vpack.c.b16 %v2459, %v2458
    %v2466 = vpack.c.b16 %v2461, %v2460
    %v2467 = vpack.c.b16 %v2463, %v2462
    %v2473 = vsel %vm190, %v2337, 0
    %v2476 = vsel %vm190, %v2338, 0
    %2478 = vmatpush.bf16.msra.mxu0 0
    %2479 = vmatpush.bf16.msra.mxu0 0
    %2480 = vmatpush.bf16.msra.mxu0 0
    %2481 = vmatpush.bf16.msra.mxu0 0
    %2482 = vmatpush.bf16.msra.mxu0 %v2467
    %2483 = vmatpush.bf16.msra.mxu0 %v2466
    %2484 = vmatpush.bf16.msra.mxu0 %v2465
    %2485 = vmatpush.bf16.msra.mxu0 %v2464
    %2486 = vmatmul.bf16.gmra.mxu0 %v2473
    %v2487 = vpop.f32.mrf.mxu0
    %v2488 = vadd.f32 %v2439, %v2487
    %v2489 = vpop.f32.mrf.mxu0
    %v2490 = vadd.f32 %v2441, %v2489
    %2491 = vmatmul.bf16.gmra.mxu0 %v2476
    %v2492 = vpop.f32.mrf.mxu0
    %v2493 = vadd.f32 %v2444, %v2492
    %v2494 = vpop.f32.mrf.mxu0
    %v2495 = vadd.f32 %v2446, %v2494
    %2496 = vdwg.mxu0
    %s2497 = scalar_lea.vmem [#allocation2], 368
    %v2498 = vld [vmem:[%s2497] sm:$0xf]
    %v2499 = vld [vmem:[%s2497 + $0x4] sm:$0xf]
    %v2500 = vld [vmem:[%s2497 + $0x8] sm:$0xf]
    %v2501 = vld [vmem:[%s2497 + $0xc] sm:$0xf]
    %v2506 = vunpack.c.l.b16 %v2498
    %v2507 = vunpack.c.l.b16 %v2499
    %v2508 = vunpack.c.l.b16 %v2500
    %v2509 = vunpack.c.l.b16 %v2501
    %v2510 = vpack.c.b16 %v2507, %v2506
    %v2511 = vpack.c.b16 %v2509, %v2508
    %v2513 = vsel %vm79, %v2510, 0
    %v2516 = vsel %vm79, %v2511, 0
    %2518 = vmatpush.bf16.msra.mxu0 0
    %2519 = vmatpush.bf16.msra.mxu0 0
    %2520 = vmatpush.bf16.msra.mxu0 0
    %2521 = vmatpush.bf16.msra.mxu0 0
    %2522 = vmatpush.bf16.msra.mxu0 0
    %2523 = vmatpush.bf16.msra.mxu0 0
    %2524 = vmatpush.bf16.msra.mxu0 %v2296
    %2525 = vmatpush.bf16.msra.mxu0 %v2295
    %2526 = vmatmul.bf16.gmra.mxu0 %v2513
    %v2527 = vpop.f32.mrf.mxu0
    %v2528 = vadd.f32 0.0, %v2527
    %v2529 = vpop.f32.mrf.mxu0
    %v2530 = vadd.f32 0.0, %v2529
    %2531 = vmatmul.bf16.gmra.mxu0 %v2516
    %v2532 = vpop.f32.mrf.mxu0
    %v2533 = vadd.f32 0.0, %v2532
    %v2534 = vpop.f32.mrf.mxu0
    %v2535 = vadd.f32 0.0, %v2534
    %2536 = vdwg.mxu0
    %v2537 = vpack.c.bf16 %v2530, %v2528
    %v2538 = vpack.c.bf16 %v2535, %v2533
    %s2539 = scalar_lea.vmem [#allocation4], 736
    %v2540 = vld [vmem:[%s2539] sm:$0xf]
    %v2541 = vld [vmem:[%s2539 + $0x4] sm:$0xf]
    %v2542 = vld [vmem:[%s2539 + $0x8] sm:$0xf]
    %v2543 = vld [vmem:[%s2539 + $0xc] sm:$0xf]
    %v2544 = vld [vmem:[%s2539 + $0x10] sm:$0xf]
    %v2545 = vld [vmem:[%s2539 + $0x14] sm:$0xf]
    %v2546 = vld [vmem:[%s2539 + $0x18] sm:$0xf]
    %v2547 = vld [vmem:[%s2539 + $0x1c] sm:$0xf]
    %v2556 = vunpack.c.l.b16 %v2540
    %v2557 = vunpack.c.l.b16 %v2541
    %v2558 = vunpack.c.l.b16 %v2542
    %v2559 = vunpack.c.l.b16 %v2543
    %v2560 = vunpack.c.l.b16 %v2544
    %v2561 = vunpack.c.l.b16 %v2545
    %v2562 = vunpack.c.l.b16 %v2546
    %v2563 = vunpack.c.l.b16 %v2547
    %v2564 = vpack.c.b16 %v2557, %v2556
    %v2565 = vpack.c.b16 %v2559, %v2558
    %v2566 = vpack.c.b16 %v2561, %v2560
    %v2567 = vpack.c.b16 %v2563, %v2562
    %v2573 = vsel %vm190, %v2537, 0
    %v2576 = vsel %vm190, %v2538, 0
    %2578 = vmatpush.bf16.msra.mxu0 0
    %2579 = vmatpush.bf16.msra.mxu0 0
    %2580 = vmatpush.bf16.msra.mxu0 0
    %2581 = vmatpush.bf16.msra.mxu0 0
    %2582 = vmatpush.bf16.msra.mxu0 %v2567
    %2583 = vmatpush.bf16.msra.mxu0 %v2566
    %2584 = vmatpush.bf16.msra.mxu0 %v2565
    %2585 = vmatpush.bf16.msra.mxu0 %v2564
    %2586 = vmatmul.bf16.gmra.mxu0 %v2573
    %v2587 = vpop.f32.mrf.mxu0
    %v2588 = vadd.f32 0.0, %v2587
    %v2589 = vpop.f32.mrf.mxu0
    %v2590 = vadd.f32 0.0, %v2589
    %2591 = vmatmul.bf16.gmra.mxu0 %v2576
    %v2592 = vpop.f32.mrf.mxu0
    %v2593 = vadd.f32 0.0, %v2592
    %v2594 = vpop.f32.mrf.mxu0
    %v2595 = vadd.f32 0.0, %v2594
    %2596 = vdwg.mxu0
    %v2597 = vadd.f32 %v2488, %v2588
    %v2598 = vadd.f32 %v2490, %v2590
    %v2599 = vadd.f32 %v2493, %v2593
    %v2600 = vadd.f32 %v2495, %v2595
    %s2601 = scalar_lea.vmem %s3, 7
    %v2602 = vld [vmem:[%s2601] sm:$0x1]
    %v2604 = vperm.slane %v2602, 0
    %v2606 = vadd.f32 %v2597, %v2604
    %v2607 = vadd.f32 %v2598, %v2604
    %v2608 = vadd.f32 %v2599, %v2604
    %v2609 = vadd.f32 %v2600, %v2604
    %v2610 = vmax.f32 %v2606, 0.0
    %v2611 = vmax.f32 %v2607, 0.0
    %v2612 = vmax.f32 %v2608, 0.0
    %v2613 = vmax.f32 %v2609, 0.0
    %v2614 = vpack.c.bf16 %v2611, %v2610
    %v2615 = vpack.c.bf16 %v2613, %v2612
    %s2616 = scalar_lea.vmem [#allocation2], 384
    %v2617 = vld [vmem:[%s2616] sm:$0xf]
    %v2618 = vld [vmem:[%s2616 + $0x4] sm:$0xf]
    %v2619 = vld [vmem:[%s2616 + $0x8] sm:$0xf]
    %v2620 = vld [vmem:[%s2616 + $0xc] sm:$0xf]
    %v2625 = vunpack.c.l.b16 %v2617
    %v2626 = vunpack.c.l.b16 %v2618
    %v2627 = vunpack.c.l.b16 %v2619
    %v2628 = vunpack.c.l.b16 %v2620
    %v2629 = vpack.c.b16 %v2626, %v2625
    %v2630 = vpack.c.b16 %v2628, %v2627
    %v2632 = vsel %vm79, %v2629, 0
    %v2635 = vsel %vm79, %v2630, 0
    %2637 = vmatpush.bf16.msra.mxu0 0
    %2638 = vmatpush.bf16.msra.mxu0 0
    %2639 = vmatpush.bf16.msra.mxu0 0
    %2640 = vmatpush.bf16.msra.mxu0 0
    %2641 = vmatpush.bf16.msra.mxu0 0
    %2642 = vmatpush.bf16.msra.mxu0 0
    %2643 = vmatpush.bf16.msra.mxu0 %v2615
    %2644 = vmatpush.bf16.msra.mxu0 %v2614
    %2645 = vmatmul.bf16.gmra.mxu0 %v2632
    %v2646 = vpop.f32.mrf.mxu0
    %v2647 = vadd.f32 0.0, %v2646
    %v2648 = vpop.f32.mrf.mxu0
    %v2649 = vadd.f32 0.0, %v2648
    %2650 = vmatmul.bf16.gmra.mxu0 %v2635
    %v2651 = vpop.f32.mrf.mxu0
    %v2652 = vadd.f32 0.0, %v2651
    %v2653 = vpop.f32.mrf.mxu0
    %v2654 = vadd.f32 0.0, %v2653
    %2655 = vdwg.mxu0
    %v2656 = vpack.c.bf16 %v2649, %v2647
    %v2657 = vpack.c.bf16 %v2654, %v2652
    %s2658 = scalar_lea.vmem [#allocation4], 768
    %v2659 = vld [vmem:[%s2658] sm:$0xf]
    %v2660 = vld [vmem:[%s2658 + $0x4] sm:$0xf]
    %v2661 = vld [vmem:[%s2658 + $0x8] sm:$0xf]
    %v2662 = vld [vmem:[%s2658 + $0xc] sm:$0xf]
    %v2663 = vld [vmem:[%s2658 + $0x10] sm:$0xf]
    %v2664 = vld [vmem:[%s2658 + $0x14] sm:$0xf]
    %v2665 = vld [vmem:[%s2658 + $0x18] sm:$0xf]
    %v2666 = vld [vmem:[%s2658 + $0x1c] sm:$0xf]
    %s2667 = scalar_lea.vmem [#allocation2], 400
    %v2668 = vld [vmem:[%s2667] sm:$0xf]
    %v2669 = vld [vmem:[%s2667 + $0x4] sm:$0xf]
    %v2670 = vld [vmem:[%s2667 + $0x8] sm:$0xf]
    %v2671 = vld [vmem:[%s2667 + $0xc] sm:$0xf]
    %v2676 = vunpack.c.l.b16 %v2668
    %v2677 = vunpack.c.l.b16 %v2669
    %v2678 = vunpack.c.l.b16 %v2670
    %v2679 = vunpack.c.l.b16 %v2671
    %v2680 = vpack.c.b16 %v2677, %v2676
    %v2681 = vpack.c.b16 %v2679, %v2678
    %v2683 = vsel %vm79, %v2680, 0
    %v2686 = vsel %vm79, %v2681, 0
    %2688 = vmatpush.bf16.msra.mxu0 0
    %2689 = vmatpush.bf16.msra.mxu0 0
    %2690 = vmatpush.bf16.msra.mxu0 0
    %2691 = vmatpush.bf16.msra.mxu0 0
    %2692 = vmatpush.bf16.msra.mxu0 0
    %2693 = vmatpush.bf16.msra.mxu0 0
    %2694 = vmatpush.bf16.msra.mxu0 %v2615
    %2695 = vmatpush.bf16.msra.mxu0 %v2614
    %2696 = vmatmul.bf16.gmra.mxu0 %v2683
    %v2697 = vpop.f32.mrf.mxu0
    %v2698 = vadd.f32 0.0, %v2697
    %v2699 = vpop.f32.mrf.mxu0
    %v2700 = vadd.f32 0.0, %v2699
    %2701 = vmatmul.bf16.gmra.mxu0 %v2686
    %v2702 = vpop.f32.mrf.mxu0
    %v2703 = vadd.f32 0.0, %v2702
    %v2704 = vpop.f32.mrf.mxu0
    %v2705 = vadd.f32 0.0, %v2704
    %2706 = vdwg.mxu0
    %v2707 = vpack.c.bf16 %v2700, %v2698
    %v2708 = vpack.c.bf16 %v2705, %v2703
    %s2709 = scalar_lea.vmem [#allocation4], 800
    %v2710 = vld [vmem:[%s2709] sm:$0xf]
    %v2711 = vld [vmem:[%s2709 + $0x4] sm:$0xf]
    %v2712 = vld [vmem:[%s2709 + $0x8] sm:$0xf]
    %v2713 = vld [vmem:[%s2709 + $0xc] sm:$0xf]
    %v2714 = vld [vmem:[%s2709 + $0x10] sm:$0xf]
    %v2715 = vld [vmem:[%s2709 + $0x14] sm:$0xf]
    %v2716 = vld [vmem:[%s2709 + $0x18] sm:$0xf]
    %v2717 = vld [vmem:[%s2709 + $0x1c] sm:$0xf]
    %v2726 = vunpack.c.l.b16 %v2710
    %v2727 = vunpack.c.l.b16 %v2711
    %v2728 = vunpack.c.l.b16 %v2712
    %v2729 = vunpack.c.l.b16 %v2713
    %v2730 = vunpack.c.l.b16 %v2714
    %v2731 = vunpack.c.l.b16 %v2715
    %v2732 = vunpack.c.l.b16 %v2716
    %v2733 = vunpack.c.l.b16 %v2717
    %v2734 = vpack.c.b16 %v2727, %v2726
    %v2735 = vpack.c.b16 %v2729, %v2728
    %v2736 = vpack.c.b16 %v2731, %v2730
    %v2737 = vpack.c.b16 %v2733, %v2732
    %v2743 = vsel %vm190, %v2707, 0
    %v2746 = vsel %vm190, %v2708, 0
    %2748 = vmatpush.bf16.msra.mxu0 0
    %2749 = vmatpush.bf16.msra.mxu0 0
    %2750 = vmatpush.bf16.msra.mxu0 0
    %2751 = vmatpush.bf16.msra.mxu0 0
    %2752 = vmatpush.bf16.msra.mxu0 %v2737
    %2753 = vmatpush.bf16.msra.mxu0 %v2736
    %2754 = vmatpush.bf16.msra.mxu0 %v2735
    %2755 = vmatpush.bf16.msra.mxu0 %v2734
    %2756 = vmatmul.bf16.gmra.mxu0 %v2743
    %v2757 = vpop.f32.mrf.mxu0
    %v2758 = vadd.f32 0.0, %v2757
    %v2759 = vpop.f32.mrf.mxu0
    %v2760 = vadd.f32 0.0, %v2759
    %2761 = vmatmul.bf16.gmra.mxu0 %v2746
    %v2762 = vpop.f32.mrf.mxu0
    %v2763 = vadd.f32 0.0, %v2762
    %v2764 = vpop.f32.mrf.mxu0
    %v2765 = vadd.f32 0.0, %v2764
    %2766 = vdwg.mxu0
    %v2775 = vunpack.c.l.b16 %v2659
    %v2776 = vunpack.c.l.b16 %v2660
    %v2777 = vunpack.c.l.b16 %v2661
    %v2778 = vunpack.c.l.b16 %v2662
    %v2779 = vunpack.c.l.b16 %v2663
    %v2780 = vunpack.c.l.b16 %v2664
    %v2781 = vunpack.c.l.b16 %v2665
    %v2782 = vunpack.c.l.b16 %v2666
    %v2783 = vpack.c.b16 %v2776, %v2775
    %v2784 = vpack.c.b16 %v2778, %v2777
    %v2785 = vpack.c.b16 %v2780, %v2779
    %v2786 = vpack.c.b16 %v2782, %v2781
    %v2792 = vsel %vm190, %v2656, 0
    %v2795 = vsel %vm190, %v2657, 0
    %2797 = vmatpush.bf16.msra.mxu0 0
    %2798 = vmatpush.bf16.msra.mxu0 0
    %2799 = vmatpush.bf16.msra.mxu0 0
    %2800 = vmatpush.bf16.msra.mxu0 0
    %2801 = vmatpush.bf16.msra.mxu0 %v2786
    %2802 = vmatpush.bf16.msra.mxu0 %v2785
    %2803 = vmatpush.bf16.msra.mxu0 %v2784
    %2804 = vmatpush.bf16.msra.mxu0 %v2783
    %2805 = vmatmul.bf16.gmra.mxu0 %v2792
    %v2806 = vpop.f32.mrf.mxu0
    %v2807 = vadd.f32 %v2758, %v2806
    %v2808 = vpop.f32.mrf.mxu0
    %v2809 = vadd.f32 %v2760, %v2808
    %2810 = vmatmul.bf16.gmra.mxu0 %v2795
    %v2811 = vpop.f32.mrf.mxu0
    %v2812 = vadd.f32 %v2763, %v2811
    %v2813 = vpop.f32.mrf.mxu0
    %v2814 = vadd.f32 %v2765, %v2813
    %2815 = vdwg.mxu0
    %s2816 = scalar_lea.vmem [#allocation2], 416
    %v2817 = vld [vmem:[%s2816] sm:$0xf]
    %v2818 = vld [vmem:[%s2816 + $0x4] sm:$0xf]
    %v2819 = vld [vmem:[%s2816 + $0x8] sm:$0xf]
    %v2820 = vld [vmem:[%s2816 + $0xc] sm:$0xf]
    %v2825 = vunpack.c.l.b16 %v2817
    %v2826 = vunpack.c.l.b16 %v2818
    %v2827 = vunpack.c.l.b16 %v2819
    %v2828 = vunpack.c.l.b16 %v2820
    %v2829 = vpack.c.b16 %v2826, %v2825
    %v2830 = vpack.c.b16 %v2828, %v2827
    %v2832 = vsel %vm79, %v2829, 0
    %v2835 = vsel %vm79, %v2830, 0
    %2837 = vmatpush.bf16.msra.mxu0 0
    %2838 = vmatpush.bf16.msra.mxu0 0
    %2839 = vmatpush.bf16.msra.mxu0 0
    %2840 = vmatpush.bf16.msra.mxu0 0
    %2841 = vmatpush.bf16.msra.mxu0 0
    %2842 = vmatpush.bf16.msra.mxu0 0
    %2843 = vmatpush.bf16.msra.mxu0 %v2615
    %2844 = vmatpush.bf16.msra.mxu0 %v2614
    %2845 = vmatmul.bf16.gmra.mxu0 %v2832
    %v2846 = vpop.f32.mrf.mxu0
    %v2847 = vadd.f32 0.0, %v2846
    %v2848 = vpop.f32.mrf.mxu0
    %v2849 = vadd.f32 0.0, %v2848
    %2850 = vmatmul.bf16.gmra.mxu0 %v2835
    %v2851 = vpop.f32.mrf.mxu0
    %v2852 = vadd.f32 0.0, %v2851
    %v2853 = vpop.f32.mrf.mxu0
    %v2854 = vadd.f32 0.0, %v2853
    %2855 = vdwg.mxu0
    %v2856 = vpack.c.bf16 %v2849, %v2847
    %v2857 = vpack.c.bf16 %v2854, %v2852
    %s2858 = scalar_lea.vmem [#allocation4], 832
    %v2859 = vld [vmem:[%s2858] sm:$0xf]
    %v2860 = vld [vmem:[%s2858 + $0x4] sm:$0xf]
    %v2861 = vld [vmem:[%s2858 + $0x8] sm:$0xf]
    %v2862 = vld [vmem:[%s2858 + $0xc] sm:$0xf]
    %v2863 = vld [vmem:[%s2858 + $0x10] sm:$0xf]
    %v2864 = vld [vmem:[%s2858 + $0x14] sm:$0xf]
    %v2865 = vld [vmem:[%s2858 + $0x18] sm:$0xf]
    %v2866 = vld [vmem:[%s2858 + $0x1c] sm:$0xf]
    %v2875 = vunpack.c.l.b16 %v2859
    %v2876 = vunpack.c.l.b16 %v2860
    %v2877 = vunpack.c.l.b16 %v2861
    %v2878 = vunpack.c.l.b16 %v2862
    %v2879 = vunpack.c.l.b16 %v2863
    %v2880 = vunpack.c.l.b16 %v2864
    %v2881 = vunpack.c.l.b16 %v2865
    %v2882 = vunpack.c.l.b16 %v2866
    %v2883 = vpack.c.b16 %v2876, %v2875
    %v2884 = vpack.c.b16 %v2878, %v2877
    %v2885 = vpack.c.b16 %v2880, %v2879
    %v2886 = vpack.c.b16 %v2882, %v2881
    %v2892 = vsel %vm190, %v2856, 0
    %v2895 = vsel %vm190, %v2857, 0
    %2897 = vmatpush.bf16.msra.mxu0 0
    %2898 = vmatpush.bf16.msra.mxu0 0
    %2899 = vmatpush.bf16.msra.mxu0 0
    %2900 = vmatpush.bf16.msra.mxu0 0
    %2901 = vmatpush.bf16.msra.mxu0 %v2886
    %2902 = vmatpush.bf16.msra.mxu0 %v2885
    %2903 = vmatpush.bf16.msra.mxu0 %v2884
    %2904 = vmatpush.bf16.msra.mxu0 %v2883
    %2905 = vmatmul.bf16.gmra.mxu0 %v2892
    %v2906 = vpop.f32.mrf.mxu0
    %v2907 = vadd.f32 0.0, %v2906
    %v2908 = vpop.f32.mrf.mxu0
    %v2909 = vadd.f32 0.0, %v2908
    %2910 = vmatmul.bf16.gmra.mxu0 %v2895
    %v2911 = vpop.f32.mrf.mxu0
    %v2912 = vadd.f32 0.0, %v2911
    %v2913 = vpop.f32.mrf.mxu0
    %v2914 = vadd.f32 0.0, %v2913
    %2915 = vdwg.mxu0
    %v2916 = vadd.f32 %v2807, %v2907
    %v2917 = vadd.f32 %v2809, %v2909
    %v2918 = vadd.f32 %v2812, %v2912
    %v2919 = vadd.f32 %v2814, %v2914
    %s2920 = scalar_lea.vmem %s3, 8
    %v2921 = vld [vmem:[%s2920] sm:$0x1]
    %v2923 = vperm.slane %v2921, 0
    %v2925 = vadd.f32 %v2916, %v2923
    %v2926 = vadd.f32 %v2917, %v2923
    %v2927 = vadd.f32 %v2918, %v2923
    %v2928 = vadd.f32 %v2919, %v2923
    %v2929 = vmax.f32 %v2925, 0.0
    %v2930 = vmax.f32 %v2926, 0.0
    %v2931 = vmax.f32 %v2927, 0.0
    %v2932 = vmax.f32 %v2928, 0.0
    %v2933 = vpack.c.bf16 %v2930, %v2929
    %v2934 = vpack.c.bf16 %v2932, %v2931
    %s2935 = scalar_lea.vmem [#allocation2], 432
    %v2936 = vld [vmem:[%s2935] sm:$0xf]
    %v2937 = vld [vmem:[%s2935 + $0x4] sm:$0xf]
    %v2938 = vld [vmem:[%s2935 + $0x8] sm:$0xf]
    %v2939 = vld [vmem:[%s2935 + $0xc] sm:$0xf]
    %v2944 = vunpack.c.l.b16 %v2936
    %v2945 = vunpack.c.l.b16 %v2937
    %v2946 = vunpack.c.l.b16 %v2938
    %v2947 = vunpack.c.l.b16 %v2939
    %v2948 = vpack.c.b16 %v2945, %v2944
    %v2949 = vpack.c.b16 %v2947, %v2946
    %v2951 = vsel %vm79, %v2948, 0
    %v2954 = vsel %vm79, %v2949, 0
    %2956 = vmatpush.bf16.msra.mxu0 0
    %2957 = vmatpush.bf16.msra.mxu0 0
    %2958 = vmatpush.bf16.msra.mxu0 0
    %2959 = vmatpush.bf16.msra.mxu0 0
    %2960 = vmatpush.bf16.msra.mxu0 0
    %2961 = vmatpush.bf16.msra.mxu0 0
    %2962 = vmatpush.bf16.msra.mxu0 %v2934
    %2963 = vmatpush.bf16.msra.mxu0 %v2933
    %2964 = vmatmul.bf16.gmra.mxu0 %v2951
    %v2965 = vpop.f32.mrf.mxu0
    %v2966 = vadd.f32 0.0, %v2965
    %v2967 = vpop.f32.mrf.mxu0
    %v2968 = vadd.f32 0.0, %v2967
    %2969 = vmatmul.bf16.gmra.mxu0 %v2954
    %v2970 = vpop.f32.mrf.mxu0
    %v2971 = vadd.f32 0.0, %v2970
    %v2972 = vpop.f32.mrf.mxu0
    %v2973 = vadd.f32 0.0, %v2972
    %2974 = vdwg.mxu0
    %v2975 = vpack.c.bf16 %v2968, %v2966
    %v2976 = vpack.c.bf16 %v2973, %v2971
    %s2977 = scalar_lea.vmem [#allocation4], 864
    %v2978 = vld [vmem:[%s2977] sm:$0xf]
    %v2979 = vld [vmem:[%s2977 + $0x4] sm:$0xf]
    %v2980 = vld [vmem:[%s2977 + $0x8] sm:$0xf]
    %v2981 = vld [vmem:[%s2977 + $0xc] sm:$0xf]
    %v2982 = vld [vmem:[%s2977 + $0x10] sm:$0xf]
    %v2983 = vld [vmem:[%s2977 + $0x14] sm:$0xf]
    %v2984 = vld [vmem:[%s2977 + $0x18] sm:$0xf]
    %v2985 = vld [vmem:[%s2977 + $0x1c] sm:$0xf]
    %s2986 = scalar_lea.vmem [#allocation2], 448
    %v2987 = vld [vmem:[%s2986] sm:$0xf]
    %v2988 = vld [vmem:[%s2986 + $0x4] sm:$0xf]
    %v2989 = vld [vmem:[%s2986 + $0x8] sm:$0xf]
    %v2990 = vld [vmem:[%s2986 + $0xc] sm:$0xf]
    %v2995 = vunpack.c.l.b16 %v2987
    %v2996 = vunpack.c.l.b16 %v2988
    %v2997 = vunpack.c.l.b16 %v2989
    %v2998 = vunpack.c.l.b16 %v2990
    %v2999 = vpack.c.b16 %v2996, %v2995
    %v3000 = vpack.c.b16 %v2998, %v2997
    %v3002 = vsel %vm79, %v2999, 0
    %v3005 = vsel %vm79, %v3000, 0
    %3007 = vmatpush.bf16.msra.mxu0 0
    %3008 = vmatpush.bf16.msra.mxu0 0
    %3009 = vmatpush.bf16.msra.mxu0 0
    %3010 = vmatpush.bf16.msra.mxu0 0
    %3011 = vmatpush.bf16.msra.mxu0 0
    %3012 = vmatpush.bf16.msra.mxu0 0
    %3013 = vmatpush.bf16.msra.mxu0 %v2934
    %3014 = vmatpush.bf16.msra.mxu0 %v2933
    %3015 = vmatmul.bf16.gmra.mxu0 %v3002
    %v3016 = vpop.f32.mrf.mxu0
    %v3017 = vadd.f32 0.0, %v3016
    %v3018 = vpop.f32.mrf.mxu0
    %v3019 = vadd.f32 0.0, %v3018
    %3020 = vmatmul.bf16.gmra.mxu0 %v3005
    %v3021 = vpop.f32.mrf.mxu0
    %v3022 = vadd.f32 0.0, %v3021
    %v3023 = vpop.f32.mrf.mxu0
    %v3024 = vadd.f32 0.0, %v3023
    %3025 = vdwg.mxu0
    %v3026 = vpack.c.bf16 %v3019, %v3017
    %v3027 = vpack.c.bf16 %v3024, %v3022
    %s3028 = scalar_lea.vmem [#allocation4], 896
    %v3029 = vld [vmem:[%s3028] sm:$0xf]
    %v3030 = vld [vmem:[%s3028 + $0x4] sm:$0xf]
    %v3031 = vld [vmem:[%s3028 + $0x8] sm:$0xf]
    %v3032 = vld [vmem:[%s3028 + $0xc] sm:$0xf]
    %v3033 = vld [vmem:[%s3028 + $0x10] sm:$0xf]
    %v3034 = vld [vmem:[%s3028 + $0x14] sm:$0xf]
    %v3035 = vld [vmem:[%s3028 + $0x18] sm:$0xf]
    %v3036 = vld [vmem:[%s3028 + $0x1c] sm:$0xf]
    %v3045 = vunpack.c.l.b16 %v3029
    %v3046 = vunpack.c.l.b16 %v3030
    %v3047 = vunpack.c.l.b16 %v3031
    %v3048 = vunpack.c.l.b16 %v3032
    %v3049 = vunpack.c.l.b16 %v3033
    %v3050 = vunpack.c.l.b16 %v3034
    %v3051 = vunpack.c.l.b16 %v3035
    %v3052 = vunpack.c.l.b16 %v3036
    %v3053 = vpack.c.b16 %v3046, %v3045
    %v3054 = vpack.c.b16 %v3048, %v3047
    %v3055 = vpack.c.b16 %v3050, %v3049
    %v3056 = vpack.c.b16 %v3052, %v3051
    %v3062 = vsel %vm190, %v3026, 0
    %v3065 = vsel %vm190, %v3027, 0
    %3067 = vmatpush.bf16.msra.mxu0 0
    %3068 = vmatpush.bf16.msra.mxu0 0
    %3069 = vmatpush.bf16.msra.mxu0 0
    %3070 = vmatpush.bf16.msra.mxu0 0
    %3071 = vmatpush.bf16.msra.mxu0 %v3056
    %3072 = vmatpush.bf16.msra.mxu0 %v3055
    %3073 = vmatpush.bf16.msra.mxu0 %v3054
    %3074 = vmatpush.bf16.msra.mxu0 %v3053
    %3075 = vmatmul.bf16.gmra.mxu0 %v3062
    %v3076 = vpop.f32.mrf.mxu0
    %v3077 = vadd.f32 0.0, %v3076
    %v3078 = vpop.f32.mrf.mxu0
    %v3079 = vadd.f32 0.0, %v3078
    %3080 = vmatmul.bf16.gmra.mxu0 %v3065
    %v3081 = vpop.f32.mrf.mxu0
    %v3082 = vadd.f32 0.0, %v3081
    %v3083 = vpop.f32.mrf.mxu0
    %v3084 = vadd.f32 0.0, %v3083
    %3085 = vdwg.mxu0
    %v3094 = vunpack.c.l.b16 %v2978
    %v3095 = vunpack.c.l.b16 %v2979
    %v3096 = vunpack.c.l.b16 %v2980
    %v3097 = vunpack.c.l.b16 %v2981
    %v3098 = vunpack.c.l.b16 %v2982
    %v3099 = vunpack.c.l.b16 %v2983
    %v3100 = vunpack.c.l.b16 %v2984
    %v3101 = vunpack.c.l.b16 %v2985
    %v3102 = vpack.c.b16 %v3095, %v3094
    %v3103 = vpack.c.b16 %v3097, %v3096
    %v3104 = vpack.c.b16 %v3099, %v3098
    %v3105 = vpack.c.b16 %v3101, %v3100
    %v3111 = vsel %vm190, %v2975, 0
    %v3114 = vsel %vm190, %v2976, 0
    %3116 = vmatpush.bf16.msra.mxu0 0
    %3117 = vmatpush.bf16.msra.mxu0 0
    %3118 = vmatpush.bf16.msra.mxu0 0
    %3119 = vmatpush.bf16.msra.mxu0 0
    %3120 = vmatpush.bf16.msra.mxu0 %v3105
    %3121 = vmatpush.bf16.msra.mxu0 %v3104
    %3122 = vmatpush.bf16.msra.mxu0 %v3103
    %3123 = vmatpush.bf16.msra.mxu0 %v3102
    %3124 = vmatmul.bf16.gmra.mxu0 %v3111
    %v3125 = vpop.f32.mrf.mxu0
    %v3126 = vadd.f32 %v3077, %v3125
    %v3127 = vpop.f32.mrf.mxu0
    %v3128 = vadd.f32 %v3079, %v3127
    %3129 = vmatmul.bf16.gmra.mxu0 %v3114
    %v3130 = vpop.f32.mrf.mxu0
    %v3131 = vadd.f32 %v3082, %v3130
    %v3132 = vpop.f32.mrf.mxu0
    %v3133 = vadd.f32 %v3084, %v3132
    %3134 = vdwg.mxu0
    %s3135 = scalar_lea.vmem [#allocation2], 464
    %v3136 = vld [vmem:[%s3135] sm:$0xf]
    %v3137 = vld [vmem:[%s3135 + $0x4] sm:$0xf]
    %v3138 = vld [vmem:[%s3135 + $0x8] sm:$0xf]
    %v3139 = vld [vmem:[%s3135 + $0xc] sm:$0xf]
    %v3144 = vunpack.c.l.b16 %v3136
    %v3145 = vunpack.c.l.b16 %v3137
    %v3146 = vunpack.c.l.b16 %v3138
    %v3147 = vunpack.c.l.b16 %v3139
    %v3148 = vpack.c.b16 %v3145, %v3144
    %v3149 = vpack.c.b16 %v3147, %v3146
    %v3151 = vsel %vm79, %v3148, 0
    %v3154 = vsel %vm79, %v3149, 0
    %3156 = vmatpush.bf16.msra.mxu0 0
    %3157 = vmatpush.bf16.msra.mxu0 0
    %3158 = vmatpush.bf16.msra.mxu0 0
    %3159 = vmatpush.bf16.msra.mxu0 0
    %3160 = vmatpush.bf16.msra.mxu0 0
    %3161 = vmatpush.bf16.msra.mxu0 0
    %3162 = vmatpush.bf16.msra.mxu0 %v2934
    %3163 = vmatpush.bf16.msra.mxu0 %v2933
    %3164 = vmatmul.bf16.gmra.mxu0 %v3151
    %v3165 = vpop.f32.mrf.mxu0
    %v3166 = vadd.f32 0.0, %v3165
    %v3167 = vpop.f32.mrf.mxu0
    %v3168 = vadd.f32 0.0, %v3167
    %3169 = vmatmul.bf16.gmra.mxu0 %v3154
    %v3170 = vpop.f32.mrf.mxu0
    %v3171 = vadd.f32 0.0, %v3170
    %v3172 = vpop.f32.mrf.mxu0
    %v3173 = vadd.f32 0.0, %v3172
    %3174 = vdwg.mxu0
    %v3175 = vpack.c.bf16 %v3168, %v3166
    %v3176 = vpack.c.bf16 %v3173, %v3171
    %s3177 = scalar_lea.vmem [#allocation4], 928
    %v3178 = vld [vmem:[%s3177] sm:$0xf]
    %v3179 = vld [vmem:[%s3177 + $0x4] sm:$0xf]
    %v3180 = vld [vmem:[%s3177 + $0x8] sm:$0xf]
    %v3181 = vld [vmem:[%s3177 + $0xc] sm:$0xf]
    %v3182 = vld [vmem:[%s3177 + $0x10] sm:$0xf]
    %v3183 = vld [vmem:[%s3177 + $0x14] sm:$0xf]
    %v3184 = vld [vmem:[%s3177 + $0x18] sm:$0xf]
    %v3185 = vld [vmem:[%s3177 + $0x1c] sm:$0xf]
    %v3194 = vunpack.c.l.b16 %v3178
    %v3195 = vunpack.c.l.b16 %v3179
    %v3196 = vunpack.c.l.b16 %v3180
    %v3197 = vunpack.c.l.b16 %v3181
    %v3198 = vunpack.c.l.b16 %v3182
    %v3199 = vunpack.c.l.b16 %v3183
    %v3200 = vunpack.c.l.b16 %v3184
    %v3201 = vunpack.c.l.b16 %v3185
    %v3202 = vpack.c.b16 %v3195, %v3194
    %v3203 = vpack.c.b16 %v3197, %v3196
    %v3204 = vpack.c.b16 %v3199, %v3198
    %v3205 = vpack.c.b16 %v3201, %v3200
    %v3211 = vsel %vm190, %v3175, 0
    %v3214 = vsel %vm190, %v3176, 0
    %3216 = vmatpush.bf16.msra.mxu0 0
    %3217 = vmatpush.bf16.msra.mxu0 0
    %3218 = vmatpush.bf16.msra.mxu0 0
    %3219 = vmatpush.bf16.msra.mxu0 0
    %3220 = vmatpush.bf16.msra.mxu0 %v3205
    %3221 = vmatpush.bf16.msra.mxu0 %v3204
    %3222 = vmatpush.bf16.msra.mxu0 %v3203
    %3223 = vmatpush.bf16.msra.mxu0 %v3202
    %3224 = vmatmul.bf16.gmra.mxu0 %v3211
    %v3225 = vpop.f32.mrf.mxu0
    %v3226 = vadd.f32 0.0, %v3225
    %v3227 = vpop.f32.mrf.mxu0
    %v3228 = vadd.f32 0.0, %v3227
    %3229 = vmatmul.bf16.gmra.mxu0 %v3214
    %v3230 = vpop.f32.mrf.mxu0
    %v3231 = vadd.f32 0.0, %v3230
    %v3232 = vpop.f32.mrf.mxu0
    %v3233 = vadd.f32 0.0, %v3232
    %3234 = vdwg.mxu0
    %v3235 = vadd.f32 %v3126, %v3226
    %v3236 = vadd.f32 %v3128, %v3228
    %v3237 = vadd.f32 %v3131, %v3231
    %v3238 = vadd.f32 %v3133, %v3233
    %s3239 = scalar_lea.vmem %s3, 9
    %v3240 = vld [vmem:[%s3239] sm:$0x1]
    %v3242 = vperm.slane %v3240, 0
    %v3244 = vadd.f32 %v3235, %v3242
    %v3245 = vadd.f32 %v3236, %v3242
    %v3246 = vadd.f32 %v3237, %v3242
    %v3247 = vadd.f32 %v3238, %v3242
    %v3248 = vmax.f32 %v3244, 0.0
    %v3249 = vmax.f32 %v3245, 0.0
    %v3250 = vmax.f32 %v3246, 0.0
    %v3251 = vmax.f32 %v3247, 0.0
    %v3252 = vpack.c.bf16 %v3249, %v3248
    %v3253 = vpack.c.bf16 %v3251, %v3250
    %s3254 = scalar_lea.vmem [#allocation2], 480
    %v3255 = vld [vmem:[%s3254] sm:$0xf]
    %v3256 = vld [vmem:[%s3254 + $0x4] sm:$0xf]
    %v3257 = vld [vmem:[%s3254 + $0x8] sm:$0xf]
    %v3258 = vld [vmem:[%s3254 + $0xc] sm:$0xf]
    %v3263 = vunpack.c.l.b16 %v3255
    %v3264 = vunpack.c.l.b16 %v3256
    %v3265 = vunpack.c.l.b16 %v3257
    %v3266 = vunpack.c.l.b16 %v3258
    %v3267 = vpack.c.b16 %v3264, %v3263
    %v3268 = vpack.c.b16 %v3266, %v3265
    %v3270 = vsel %vm79, %v3267, 0
    %v3273 = vsel %vm79, %v3268, 0
    %3275 = vmatpush.bf16.msra.mxu0 0
    %3276 = vmatpush.bf16.msra.mxu0 0
    %3277 = vmatpush.bf16.msra.mxu0 0
    %3278 = vmatpush.bf16.msra.mxu0 0
    %3279 = vmatpush.bf16.msra.mxu0 0
    %3280 = vmatpush.bf16.msra.mxu0 0
    %3281 = vmatpush.bf16.msra.mxu0 %v3253
    %3282 = vmatpush.bf16.msra.mxu0 %v3252
    %3283 = vmatmul.bf16.gmra.mxu0 %v3270
    %v3284 = vpop.f32.mrf.mxu0
    %v3285 = vadd.f32 0.0, %v3284
    %v3286 = vpop.f32.mrf.mxu0
    %v3287 = vadd.f32 0.0, %v3286
    %3288 = vmatmul.bf16.gmra.mxu0 %v3273
    %v3289 = vpop.f32.mrf.mxu0
    %v3290 = vadd.f32 0.0, %v3289
    %v3291 = vpop.f32.mrf.mxu0
    %v3292 = vadd.f32 0.0, %v3291
    %3293 = vdwg.mxu0
    %v3294 = vpack.c.bf16 %v3287, %v3285
    %v3295 = vpack.c.bf16 %v3292, %v3290
    %s3296 = scalar_lea.vmem [#allocation4], 960
    %v3297 = vld [vmem:[%s3296] sm:$0xf]
    %v3298 = vld [vmem:[%s3296 + $0x4] sm:$0xf]
    %v3299 = vld [vmem:[%s3296 + $0x8] sm:$0xf]
    %v3300 = vld [vmem:[%s3296 + $0xc] sm:$0xf]
    %v3301 = vld [vmem:[%s3296 + $0x10] sm:$0xf]
    %v3302 = vld [vmem:[%s3296 + $0x14] sm:$0xf]
    %v3303 = vld [vmem:[%s3296 + $0x18] sm:$0xf]
    %v3304 = vld [vmem:[%s3296 + $0x1c] sm:$0xf]
    %s3305 = scalar_lea.vmem [#allocation2], 496
    %v3306 = vld [vmem:[%s3305] sm:$0xf]
    %v3307 = vld [vmem:[%s3305 + $0x4] sm:$0xf]
    %v3308 = vld [vmem:[%s3305 + $0x8] sm:$0xf]
    %v3309 = vld [vmem:[%s3305 + $0xc] sm:$0xf]
    %v3314 = vunpack.c.l.b16 %v3306
    %v3315 = vunpack.c.l.b16 %v3307
    %v3316 = vunpack.c.l.b16 %v3308
    %v3317 = vunpack.c.l.b16 %v3309
    %v3318 = vpack.c.b16 %v3315, %v3314
    %v3319 = vpack.c.b16 %v3317, %v3316
    %v3321 = vsel %vm79, %v3318, 0
    %v3324 = vsel %vm79, %v3319, 0
    %3326 = vmatpush.bf16.msra.mxu0 0
    %3327 = vmatpush.bf16.msra.mxu0 0
    %3328 = vmatpush.bf16.msra.mxu0 0
    %3329 = vmatpush.bf16.msra.mxu0 0
    %3330 = vmatpush.bf16.msra.mxu0 0
    %3331 = vmatpush.bf16.msra.mxu0 0
    %3332 = vmatpush.bf16.msra.mxu0 %v3253
    %3333 = vmatpush.bf16.msra.mxu0 %v3252
    %3334 = vmatmul.bf16.gmra.mxu0 %v3321
    %v3335 = vpop.f32.mrf.mxu0
    %v3336 = vadd.f32 0.0, %v3335
    %v3337 = vpop.f32.mrf.mxu0
    %v3338 = vadd.f32 0.0, %v3337
    %3339 = vmatmul.bf16.gmra.mxu0 %v3324
    %v3340 = vpop.f32.mrf.mxu0
    %v3341 = vadd.f32 0.0, %v3340
    %v3342 = vpop.f32.mrf.mxu0
    %v3343 = vadd.f32 0.0, %v3342
    %3344 = vdwg.mxu0
    %v3345 = vpack.c.bf16 %v3338, %v3336
    %v3346 = vpack.c.bf16 %v3343, %v3341
    %s3347 = scalar_lea.vmem [#allocation4], 992
    %v3348 = vld [vmem:[%s3347] sm:$0xf]
    %v3349 = vld [vmem:[%s3347 + $0x4] sm:$0xf]
    %v3350 = vld [vmem:[%s3347 + $0x8] sm:$0xf]
    %v3351 = vld [vmem:[%s3347 + $0xc] sm:$0xf]
    %v3352 = vld [vmem:[%s3347 + $0x10] sm:$0xf]
    %v3353 = vld [vmem:[%s3347 + $0x14] sm:$0xf]
    %v3354 = vld [vmem:[%s3347 + $0x18] sm:$0xf]
    %v3355 = vld [vmem:[%s3347 + $0x1c] sm:$0xf]
    %v3364 = vunpack.c.l.b16 %v3348
    %v3365 = vunpack.c.l.b16 %v3349
    %v3366 = vunpack.c.l.b16 %v3350
    %v3367 = vunpack.c.l.b16 %v3351
    %v3368 = vunpack.c.l.b16 %v3352
    %v3369 = vunpack.c.l.b16 %v3353
    %v3370 = vunpack.c.l.b16 %v3354
    %v3371 = vunpack.c.l.b16 %v3355
    %v3372 = vpack.c.b16 %v3365, %v3364
    %v3373 = vpack.c.b16 %v3367, %v3366
    %v3374 = vpack.c.b16 %v3369, %v3368
    %v3375 = vpack.c.b16 %v3371, %v3370
    %v3381 = vsel %vm190, %v3345, 0
    %v3384 = vsel %vm190, %v3346, 0
    %3386 = vmatpush.bf16.msra.mxu0 0
    %3387 = vmatpush.bf16.msra.mxu0 0
    %3388 = vmatpush.bf16.msra.mxu0 0
    %3389 = vmatpush.bf16.msra.mxu0 0
    %3390 = vmatpush.bf16.msra.mxu0 %v3375
    %3391 = vmatpush.bf16.msra.mxu0 %v3374
    %3392 = vmatpush.bf16.msra.mxu0 %v3373
    %3393 = vmatpush.bf16.msra.mxu0 %v3372
    %3394 = vmatmul.bf16.gmra.mxu0 %v3381
    %v3395 = vpop.f32.mrf.mxu0
    %v3396 = vadd.f32 0.0, %v3395
    %v3397 = vpop.f32.mrf.mxu0
    %v3398 = vadd.f32 0.0, %v3397
    %3399 = vmatmul.bf16.gmra.mxu0 %v3384
    %v3400 = vpop.f32.mrf.mxu0
    %v3401 = vadd.f32 0.0, %v3400
    %v3402 = vpop.f32.mrf.mxu0
    %v3403 = vadd.f32 0.0, %v3402
    %3404 = vdwg.mxu0
    %v3413 = vunpack.c.l.b16 %v3297
    %v3414 = vunpack.c.l.b16 %v3298
    %v3415 = vunpack.c.l.b16 %v3299
    %v3416 = vunpack.c.l.b16 %v3300
    %v3417 = vunpack.c.l.b16 %v3301
    %v3418 = vunpack.c.l.b16 %v3302
    %v3419 = vunpack.c.l.b16 %v3303
    %v3420 = vunpack.c.l.b16 %v3304
    %v3421 = vpack.c.b16 %v3414, %v3413
    %v3422 = vpack.c.b16 %v3416, %v3415
    %v3423 = vpack.c.b16 %v3418, %v3417
    %v3424 = vpack.c.b16 %v3420, %v3419
    %v3430 = vsel %vm190, %v3294, 0
    %v3433 = vsel %vm190, %v3295, 0
    %3435 = vmatpush.bf16.msra.mxu0 0
    %3436 = vmatpush.bf16.msra.mxu0 0
    %3437 = vmatpush.bf16.msra.mxu0 0
    %3438 = vmatpush.bf16.msra.mxu0 0
    %3439 = vmatpush.bf16.msra.mxu0 %v3424
    %3440 = vmatpush.bf16.msra.mxu0 %v3423
    %3441 = vmatpush.bf16.msra.mxu0 %v3422
    %3442 = vmatpush.bf16.msra.mxu0 %v3421
    %3443 = vmatmul.bf16.gmra.mxu0 %v3430
    %v3444 = vpop.f32.mrf.mxu0
    %v3445 = vadd.f32 %v3396, %v3444
    %v3446 = vpop.f32.mrf.mxu0
    %v3447 = vadd.f32 %v3398, %v3446
    %3448 = vmatmul.bf16.gmra.mxu0 %v3433
    %v3449 = vpop.f32.mrf.mxu0
    %v3450 = vadd.f32 %v3401, %v3449
    %v3451 = vpop.f32.mrf.mxu0
    %v3452 = vadd.f32 %v3403, %v3451
    %3453 = vdwg.mxu0
    %s3454 = scalar_lea.vmem [#allocation2], 512
    %v3455 = vld [vmem:[%s3454] sm:$0xf]
    %v3456 = vld [vmem:[%s3454 + $0x4] sm:$0xf]
    %v3457 = vld [vmem:[%s3454 + $0x8] sm:$0xf]
    %v3458 = vld [vmem:[%s3454 + $0xc] sm:$0xf]
    %v3463 = vunpack.c.l.b16 %v3455
    %v3464 = vunpack.c.l.b16 %v3456
    %v3465 = vunpack.c.l.b16 %v3457
    %v3466 = vunpack.c.l.b16 %v3458
    %v3467 = vpack.c.b16 %v3464, %v3463
    %v3468 = vpack.c.b16 %v3466, %v3465
    %v3470 = vsel %vm79, %v3467, 0
    %v3473 = vsel %vm79, %v3468, 0
    %3475 = vmatpush.bf16.msra.mxu0 0
    %3476 = vmatpush.bf16.msra.mxu0 0
    %3477 = vmatpush.bf16.msra.mxu0 0
    %3478 = vmatpush.bf16.msra.mxu0 0
    %3479 = vmatpush.bf16.msra.mxu0 0
    %3480 = vmatpush.bf16.msra.mxu0 0
    %3481 = vmatpush.bf16.msra.mxu0 %v3253
    %3482 = vmatpush.bf16.msra.mxu0 %v3252
    %3483 = vmatmul.bf16.gmra.mxu0 %v3470
    %v3484 = vpop.f32.mrf.mxu0
    %v3485 = vadd.f32 0.0, %v3484
    %v3486 = vpop.f32.mrf.mxu0
    %v3487 = vadd.f32 0.0, %v3486
    %3488 = vmatmul.bf16.gmra.mxu0 %v3473
    %v3489 = vpop.f32.mrf.mxu0
    %v3490 = vadd.f32 0.0, %v3489
    %v3491 = vpop.f32.mrf.mxu0
    %v3492 = vadd.f32 0.0, %v3491
    %3493 = vdwg.mxu0
    %v3494 = vpack.c.bf16 %v3487, %v3485
    %v3495 = vpack.c.bf16 %v3492, %v3490
    %s3496 = scalar_lea.vmem [#allocation4], 1024
    %v3497 = vld [vmem:[%s3496] sm:$0xf]
    %v3498 = vld [vmem:[%s3496 + $0x4] sm:$0xf]
    %v3499 = vld [vmem:[%s3496 + $0x8] sm:$0xf]
    %v3500 = vld [vmem:[%s3496 + $0xc] sm:$0xf]
    %v3501 = vld [vmem:[%s3496 + $0x10] sm:$0xf]
    %v3502 = vld [vmem:[%s3496 + $0x14] sm:$0xf]
    %v3503 = vld [vmem:[%s3496 + $0x18] sm:$0xf]
    %v3504 = vld [vmem:[%s3496 + $0x1c] sm:$0xf]
    %v3513 = vunpack.c.l.b16 %v3497
    %v3514 = vunpack.c.l.b16 %v3498
    %v3515 = vunpack.c.l.b16 %v3499
    %v3516 = vunpack.c.l.b16 %v3500
    %v3517 = vunpack.c.l.b16 %v3501
    %v3518 = vunpack.c.l.b16 %v3502
    %v3519 = vunpack.c.l.b16 %v3503
    %v3520 = vunpack.c.l.b16 %v3504
    %v3521 = vpack.c.b16 %v3514, %v3513
    %v3522 = vpack.c.b16 %v3516, %v3515
    %v3523 = vpack.c.b16 %v3518, %v3517
    %v3524 = vpack.c.b16 %v3520, %v3519
    %v3530 = vsel %vm190, %v3494, 0
    %v3533 = vsel %vm190, %v3495, 0
    %3535 = vmatpush.bf16.msra.mxu0 0
    %3536 = vmatpush.bf16.msra.mxu0 0
    %3537 = vmatpush.bf16.msra.mxu0 0
    %3538 = vmatpush.bf16.msra.mxu0 0
    %3539 = vmatpush.bf16.msra.mxu0 %v3524
    %3540 = vmatpush.bf16.msra.mxu0 %v3523
    %3541 = vmatpush.bf16.msra.mxu0 %v3522
    %3542 = vmatpush.bf16.msra.mxu0 %v3521
    %3543 = vmatmul.bf16.gmra.mxu0 %v3530
    %v3544 = vpop.f32.mrf.mxu0
    %v3545 = vadd.f32 0.0, %v3544
    %v3546 = vpop.f32.mrf.mxu0
    %v3547 = vadd.f32 0.0, %v3546
    %3548 = vmatmul.bf16.gmra.mxu0 %v3533
    %v3549 = vpop.f32.mrf.mxu0
    %v3550 = vadd.f32 0.0, %v3549
    %v3551 = vpop.f32.mrf.mxu0
    %v3552 = vadd.f32 0.0, %v3551
    %3553 = vdwg.mxu0
    %v3554 = vadd.f32 %v3445, %v3545
    %v3555 = vadd.f32 %v3447, %v3547
    %v3556 = vadd.f32 %v3450, %v3550
    %v3557 = vadd.f32 %v3452, %v3552
    %s3558 = scalar_lea.vmem %s3, 10
    %v3559 = vld [vmem:[%s3558] sm:$0x1]
    %v3561 = vperm.slane %v3559, 0
    %v3563 = vadd.f32 %v3554, %v3561
    %v3564 = vadd.f32 %v3555, %v3561
    %v3565 = vadd.f32 %v3556, %v3561
    %v3566 = vadd.f32 %v3557, %v3561
    %v3567 = vmax.f32 %v3563, 0.0
    %v3568 = vmax.f32 %v3564, 0.0
    %v3569 = vmax.f32 %v3565, 0.0
    %v3570 = vmax.f32 %v3566, 0.0
    %v3571 = vpack.c.bf16 %v3568, %v3567
    %v3572 = vpack.c.bf16 %v3570, %v3569
    %s3573 = scalar_lea.vmem [#allocation2], 528
    %v3574 = vld [vmem:[%s3573] sm:$0xf]
    %v3575 = vld [vmem:[%s3573 + $0x4] sm:$0xf]
    %v3576 = vld [vmem:[%s3573 + $0x8] sm:$0xf]
    %v3577 = vld [vmem:[%s3573 + $0xc] sm:$0xf]
    %v3582 = vunpack.c.l.b16 %v3574
    %v3583 = vunpack.c.l.b16 %v3575
    %v3584 = vunpack.c.l.b16 %v3576
    %v3585 = vunpack.c.l.b16 %v3577
    %v3586 = vpack.c.b16 %v3583, %v3582
    %v3587 = vpack.c.b16 %v3585, %v3584
    %v3589 = vsel %vm79, %v3586, 0
    %v3592 = vsel %vm79, %v3587, 0
    %3594 = vmatpush.bf16.msra.mxu0 0
    %3595 = vmatpush.bf16.msra.mxu0 0
    %3596 = vmatpush.bf16.msra.mxu0 0
    %3597 = vmatpush.bf16.msra.mxu0 0
    %3598 = vmatpush.bf16.msra.mxu0 0
    %3599 = vmatpush.bf16.msra.mxu0 0
    %3600 = vmatpush.bf16.msra.mxu0 %v3572
    %3601 = vmatpush.bf16.msra.mxu0 %v3571
    %3602 = vmatmul.bf16.gmra.mxu0 %v3589
    %v3603 = vpop.f32.mrf.mxu0
    %v3604 = vadd.f32 0.0, %v3603
    %v3605 = vpop.f32.mrf.mxu0
    %v3606 = vadd.f32 0.0, %v3605
    %3607 = vmatmul.bf16.gmra.mxu0 %v3592
    %v3608 = vpop.f32.mrf.mxu0
    %v3609 = vadd.f32 0.0, %v3608
    %v3610 = vpop.f32.mrf.mxu0
    %v3611 = vadd.f32 0.0, %v3610
    %3612 = vdwg.mxu0
    %v3613 = vpack.c.bf16 %v3606, %v3604
    %v3614 = vpack.c.bf16 %v3611, %v3609
    %s3615 = scalar_lea.vmem [#allocation4], 1056
    %v3616 = vld [vmem:[%s3615] sm:$0xf]
    %v3617 = vld [vmem:[%s3615 + $0x4] sm:$0xf]
    %v3618 = vld [vmem:[%s3615 + $0x8] sm:$0xf]
    %v3619 = vld [vmem:[%s3615 + $0xc] sm:$0xf]
    %v3620 = vld [vmem:[%s3615 + $0x10] sm:$0xf]
    %v3621 = vld [vmem:[%s3615 + $0x14] sm:$0xf]
    %v3622 = vld [vmem:[%s3615 + $0x18] sm:$0xf]
    %v3623 = vld [vmem:[%s3615 + $0x1c] sm:$0xf]
    %s3624 = scalar_lea.vmem [#allocation2], 544
    %v3625 = vld [vmem:[%s3624] sm:$0xf]
    %v3626 = vld [vmem:[%s3624 + $0x4] sm:$0xf]
    %v3627 = vld [vmem:[%s3624 + $0x8] sm:$0xf]
    %v3628 = vld [vmem:[%s3624 + $0xc] sm:$0xf]
    %v3633 = vunpack.c.l.b16 %v3625
    %v3634 = vunpack.c.l.b16 %v3626
    %v3635 = vunpack.c.l.b16 %v3627
    %v3636 = vunpack.c.l.b16 %v3628
    %v3637 = vpack.c.b16 %v3634, %v3633
    %v3638 = vpack.c.b16 %v3636, %v3635
    %v3640 = vsel %vm79, %v3637, 0
    %v3643 = vsel %vm79, %v3638, 0
    %3645 = vmatpush.bf16.msra.mxu0 0
    %3646 = vmatpush.bf16.msra.mxu0 0
    %3647 = vmatpush.bf16.msra.mxu0 0
    %3648 = vmatpush.bf16.msra.mxu0 0
    %3649 = vmatpush.bf16.msra.mxu0 0
    %3650 = vmatpush.bf16.msra.mxu0 0
    %3651 = vmatpush.bf16.msra.mxu0 %v3572
    %3652 = vmatpush.bf16.msra.mxu0 %v3571
    %3653 = vmatmul.bf16.gmra.mxu0 %v3640
    %v3654 = vpop.f32.mrf.mxu0
    %v3655 = vadd.f32 0.0, %v3654
    %v3656 = vpop.f32.mrf.mxu0
    %v3657 = vadd.f32 0.0, %v3656
    %3658 = vmatmul.bf16.gmra.mxu0 %v3643
    %v3659 = vpop.f32.mrf.mxu0
    %v3660 = vadd.f32 0.0, %v3659
    %v3661 = vpop.f32.mrf.mxu0
    %v3662 = vadd.f32 0.0, %v3661
    %3663 = vdwg.mxu0
    %v3664 = vpack.c.bf16 %v3657, %v3655
    %v3665 = vpack.c.bf16 %v3662, %v3660
    %s3666 = scalar_lea.vmem [#allocation4], 1088
    %v3667 = vld [vmem:[%s3666] sm:$0xf]
    %v3668 = vld [vmem:[%s3666 + $0x4] sm:$0xf]
    %v3669 = vld [vmem:[%s3666 + $0x8] sm:$0xf]
    %v3670 = vld [vmem:[%s3666 + $0xc] sm:$0xf]
    %v3671 = vld [vmem:[%s3666 + $0x10] sm:$0xf]
    %v3672 = vld [vmem:[%s3666 + $0x14] sm:$0xf]
    %v3673 = vld [vmem:[%s3666 + $0x18] sm:$0xf]
    %v3674 = vld [vmem:[%s3666 + $0x1c] sm:$0xf]
    %v3683 = vunpack.c.l.b16 %v3667
    %v3684 = vunpack.c.l.b16 %v3668
    %v3685 = vunpack.c.l.b16 %v3669
    %v3686 = vunpack.c.l.b16 %v3670
    %v3687 = vunpack.c.l.b16 %v3671
    %v3688 = vunpack.c.l.b16 %v3672
    %v3689 = vunpack.c.l.b16 %v3673
    %v3690 = vunpack.c.l.b16 %v3674
    %v3691 = vpack.c.b16 %v3684, %v3683
    %v3692 = vpack.c.b16 %v3686, %v3685
    %v3693 = vpack.c.b16 %v3688, %v3687
    %v3694 = vpack.c.b16 %v3690, %v3689
    %v3700 = vsel %vm190, %v3664, 0
    %v3703 = vsel %vm190, %v3665, 0
    %3705 = vmatpush.bf16.msra.mxu0 0
    %3706 = vmatpush.bf16.msra.mxu0 0
    %3707 = vmatpush.bf16.msra.mxu0 0
    %3708 = vmatpush.bf16.msra.mxu0 0
    %3709 = vmatpush.bf16.msra.mxu0 %v3694
    %3710 = vmatpush.bf16.msra.mxu0 %v3693
    %3711 = vmatpush.bf16.msra.mxu0 %v3692
    %3712 = vmatpush.bf16.msra.mxu0 %v3691
    %3713 = vmatmul.bf16.gmra.mxu0 %v3700
    %v3714 = vpop.f32.mrf.mxu0
    %v3715 = vadd.f32 0.0, %v3714
    %v3716 = vpop.f32.mrf.mxu0
    %v3717 = vadd.f32 0.0, %v3716
    %3718 = vmatmul.bf16.gmra.mxu0 %v3703
    %v3719 = vpop.f32.mrf.mxu0
    %v3720 = vadd.f32 0.0, %v3719
    %v3721 = vpop.f32.mrf.mxu0
    %v3722 = vadd.f32 0.0, %v3721
    %3723 = vdwg.mxu0
    %v3732 = vunpack.c.l.b16 %v3616
    %v3733 = vunpack.c.l.b16 %v3617
    %v3734 = vunpack.c.l.b16 %v3618
    %v3735 = vunpack.c.l.b16 %v3619
    %v3736 = vunpack.c.l.b16 %v3620
    %v3737 = vunpack.c.l.b16 %v3621
    %v3738 = vunpack.c.l.b16 %v3622
    %v3739 = vunpack.c.l.b16 %v3623
    %v3740 = vpack.c.b16 %v3733, %v3732
    %v3741 = vpack.c.b16 %v3735, %v3734
    %v3742 = vpack.c.b16 %v3737, %v3736
    %v3743 = vpack.c.b16 %v3739, %v3738
    %v3749 = vsel %vm190, %v3613, 0
    %v3752 = vsel %vm190, %v3614, 0
    %3754 = vmatpush.bf16.msra.mxu0 0
    %3755 = vmatpush.bf16.msra.mxu0 0
    %3756 = vmatpush.bf16.msra.mxu0 0
    %3757 = vmatpush.bf16.msra.mxu0 0
    %3758 = vmatpush.bf16.msra.mxu0 %v3743
    %3759 = vmatpush.bf16.msra.mxu0 %v3742
    %3760 = vmatpush.bf16.msra.mxu0 %v3741
    %3761 = vmatpush.bf16.msra.mxu0 %v3740
    %3762 = vmatmul.bf16.gmra.mxu0 %v3749
    %v3763 = vpop.f32.mrf.mxu0
    %v3764 = vadd.f32 %v3715, %v3763
    %v3765 = vpop.f32.mrf.mxu0
    %v3766 = vadd.f32 %v3717, %v3765
    %3767 = vmatmul.bf16.gmra.mxu0 %v3752
    %v3768 = vpop.f32.mrf.mxu0
    %v3769 = vadd.f32 %v3720, %v3768
    %v3770 = vpop.f32.mrf.mxu0
    %v3771 = vadd.f32 %v3722, %v3770
    %3772 = vdwg.mxu0
    %s3773 = scalar_lea.vmem [#allocation2], 560
    %v3774 = vld [vmem:[%s3773] sm:$0xf]
    %v3775 = vld [vmem:[%s3773 + $0x4] sm:$0xf]
    %v3776 = vld [vmem:[%s3773 + $0x8] sm:$0xf]
    %v3777 = vld [vmem:[%s3773 + $0xc] sm:$0xf]
    %v3782 = vunpack.c.l.b16 %v3774
    %v3783 = vunpack.c.l.b16 %v3775
    %v3784 = vunpack.c.l.b16 %v3776
    %v3785 = vunpack.c.l.b16 %v3777
    %v3786 = vpack.c.b16 %v3783, %v3782
    %v3787 = vpack.c.b16 %v3785, %v3784
    %v3789 = vsel %vm79, %v3786, 0
    %v3792 = vsel %vm79, %v3787, 0
    %3794 = vmatpush.bf16.msra.mxu0 0
    %3795 = vmatpush.bf16.msra.mxu0 0
    %3796 = vmatpush.bf16.msra.mxu0 0
    %3797 = vmatpush.bf16.msra.mxu0 0
    %3798 = vmatpush.bf16.msra.mxu0 0
    %3799 = vmatpush.bf16.msra.mxu0 0
    %3800 = vmatpush.bf16.msra.mxu0 %v3572
    %3801 = vmatpush.bf16.msra.mxu0 %v3571
    %3802 = vmatmul.bf16.gmra.mxu0 %v3789
    %v3803 = vpop.f32.mrf.mxu0
    %v3804 = vadd.f32 0.0, %v3803
    %v3805 = vpop.f32.mrf.mxu0
    %v3806 = vadd.f32 0.0, %v3805
    %3807 = vmatmul.bf16.gmra.mxu0 %v3792
    %v3808 = vpop.f32.mrf.mxu0
    %v3809 = vadd.f32 0.0, %v3808
    %v3810 = vpop.f32.mrf.mxu0
    %v3811 = vadd.f32 0.0, %v3810
    %3812 = vdwg.mxu0
    %v3813 = vpack.c.bf16 %v3806, %v3804
    %v3814 = vpack.c.bf16 %v3811, %v3809
    %s3815 = scalar_lea.vmem [#allocation4], 1120
    %v3816 = vld [vmem:[%s3815] sm:$0xf]
    %v3817 = vld [vmem:[%s3815 + $0x4] sm:$0xf]
    %v3818 = vld [vmem:[%s3815 + $0x8] sm:$0xf]
    %v3819 = vld [vmem:[%s3815 + $0xc] sm:$0xf]
    %v3820 = vld [vmem:[%s3815 + $0x10] sm:$0xf]
    %v3821 = vld [vmem:[%s3815 + $0x14] sm:$0xf]
    %v3822 = vld [vmem:[%s3815 + $0x18] sm:$0xf]
    %v3823 = vld [vmem:[%s3815 + $0x1c] sm:$0xf]
    %v3832 = vunpack.c.l.b16 %v3816
    %v3833 = vunpack.c.l.b16 %v3817
    %v3834 = vunpack.c.l.b16 %v3818
    %v3835 = vunpack.c.l.b16 %v3819
    %v3836 = vunpack.c.l.b16 %v3820
    %v3837 = vunpack.c.l.b16 %v3821
    %v3838 = vunpack.c.l.b16 %v3822
    %v3839 = vunpack.c.l.b16 %v3823
    %v3840 = vpack.c.b16 %v3833, %v3832
    %v3841 = vpack.c.b16 %v3835, %v3834
    %v3842 = vpack.c.b16 %v3837, %v3836
    %v3843 = vpack.c.b16 %v3839, %v3838
    %v3849 = vsel %vm190, %v3813, 0
    %v3852 = vsel %vm190, %v3814, 0
    %3854 = vmatpush.bf16.msra.mxu0 0
    %3855 = vmatpush.bf16.msra.mxu0 0
    %3856 = vmatpush.bf16.msra.mxu0 0
    %3857 = vmatpush.bf16.msra.mxu0 0
    %3858 = vmatpush.bf16.msra.mxu0 %v3843
    %3859 = vmatpush.bf16.msra.mxu0 %v3842
    %3860 = vmatpush.bf16.msra.mxu0 %v3841
    %3861 = vmatpush.bf16.msra.mxu0 %v3840
    %3862 = vmatmul.bf16.gmra.mxu0 %v3849
    %v3863 = vpop.f32.mrf.mxu0
    %v3864 = vadd.f32 0.0, %v3863
    %v3865 = vpop.f32.mrf.mxu0
    %v3866 = vadd.f32 0.0, %v3865
    %3867 = vmatmul.bf16.gmra.mxu0 %v3852
    %v3868 = vpop.f32.mrf.mxu0
    %v3869 = vadd.f32 0.0, %v3868
    %v3870 = vpop.f32.mrf.mxu0
    %v3871 = vadd.f32 0.0, %v3870
    %3872 = vdwg.mxu0
    %v3873 = vadd.f32 %v3764, %v3864
    %v3874 = vadd.f32 %v3766, %v3866
    %v3875 = vadd.f32 %v3769, %v3869
    %v3876 = vadd.f32 %v3771, %v3871
    %s3877 = scalar_lea.vmem %s3, 11
    %v3878 = vld [vmem:[%s3877] sm:$0x1]
    %v3880 = vperm.slane %v3878, 0
    %v3882 = vadd.f32 %v3873, %v3880
    %v3883 = vadd.f32 %v3874, %v3880
    %v3884 = vadd.f32 %v3875, %v3880
    %v3885 = vadd.f32 %v3876, %v3880
    %v3886 = vpack.c.bf16 %v3883, %v3882
    %v3887 = vpack.c.bf16 %v3885, %v3884
    %s3888 = scalar_lea.vmem [#allocation2], 576
    %v3889 = vld [vmem:[%s3888] sm:$0xf]
    %v3890 = vld [vmem:[%s3888 + $0x4] sm:$0xf]
    %v3891 = vld [vmem:[%s3888 + $0x8] sm:$0xf]
    %v3892 = vld [vmem:[%s3888 + $0xc] sm:$0xf]
    %v3897 = vunpack.c.l.b16 %v3889
    %v3898 = vunpack.c.l.b16 %v3890
    %v3899 = vunpack.c.l.b16 %v3891
    %v3900 = vunpack.c.l.b16 %v3892
    %v3901 = vpack.c.b16 %v3898, %v3897
    %v3902 = vpack.c.b16 %v3900, %v3899
    %v3904 = vsel %vm79, %v3901, 0
    %v3907 = vsel %vm79, %v3902, 0
    %3909 = vmatpush.bf16.msra.mxu0 0
    %3910 = vmatpush.bf16.msra.mxu0 0
    %3911 = vmatpush.bf16.msra.mxu0 0
    %3912 = vmatpush.bf16.msra.mxu0 0
    %3913 = vmatpush.bf16.msra.mxu0 0
    %3914 = vmatpush.bf16.msra.mxu0 0
    %3915 = vmatpush.bf16.msra.mxu0 %v3887
    %3916 = vmatpush.bf16.msra.mxu0 %v3886
    %3917 = vmatmul.bf16.gmra.mxu0 %v3904
    %v3918 = vpop.f32.mrf.mxu0
    %v3919 = vadd.f32 0.0, %v3918
    %v3920 = vpop.f32.mrf.mxu0
    %v3921 = vadd.f32 0.0, %v3920
    %3922 = vmatmul.bf16.gmra.mxu0 %v3907
    %v3923 = vpop.f32.mrf.mxu0
    %v3924 = vadd.f32 0.0, %v3923
    %v3925 = vpop.f32.mrf.mxu0
    %v3926 = vadd.f32 0.0, %v3925
    %3927 = vdwg.mxu0
    %v3928 = vpack.c.bf16 %v3921, %v3919
    %v3929 = vpack.c.bf16 %v3926, %v3924
    %s3930 = scalar_lea.vmem [#allocation4], 1152
    %v3931 = vld [vmem:[%s3930] sm:$0xf]
    %v3932 = vld [vmem:[%s3930 + $0x4] sm:$0xf]
    %v3933 = vld [vmem:[%s3930 + $0x8] sm:$0xf]
    %v3934 = vld [vmem:[%s3930 + $0xc] sm:$0xf]
    %v3935 = vld [vmem:[%s3930 + $0x10] sm:$0xf]
    %v3936 = vld [vmem:[%s3930 + $0x14] sm:$0xf]
    %v3937 = vld [vmem:[%s3930 + $0x18] sm:$0xf]
    %v3938 = vld [vmem:[%s3930 + $0x1c] sm:$0xf]
    %s3939 = scalar_lea.vmem [#allocation2], 592
    %v3940 = vld [vmem:[%s3939] sm:$0xf]
    %v3941 = vld [vmem:[%s3939 + $0x4] sm:$0xf]
    %v3942 = vld [vmem:[%s3939 + $0x8] sm:$0xf]
    %v3943 = vld [vmem:[%s3939 + $0xc] sm:$0xf]
    %v3948 = vunpack.c.l.b16 %v3940
    %v3949 = vunpack.c.l.b16 %v3941
    %v3950 = vunpack.c.l.b16 %v3942
    %v3951 = vunpack.c.l.b16 %v3943
    %v3952 = vpack.c.b16 %v3949, %v3948
    %v3953 = vpack.c.b16 %v3951, %v3950
    %v3955 = vsel %vm79, %v3952, 0
    %v3958 = vsel %vm79, %v3953, 0
    %3960 = vmatpush.bf16.msra.mxu0 0
    %3961 = vmatpush.bf16.msra.mxu0 0
    %3962 = vmatpush.bf16.msra.mxu0 0
    %3963 = vmatpush.bf16.msra.mxu0 0
    %3964 = vmatpush.bf16.msra.mxu0 0
    %3965 = vmatpush.bf16.msra.mxu0 0
    %3966 = vmatpush.bf16.msra.mxu0 %v3887
    %3967 = vmatpush.bf16.msra.mxu0 %v3886
    %3968 = vmatmul.bf16.gmra.mxu0 %v3955
    %v3969 = vpop.f32.mrf.mxu0
    %v3970 = vadd.f32 0.0, %v3969
    %v3971 = vpop.f32.mrf.mxu0
    %v3972 = vadd.f32 0.0, %v3971
    %3973 = vmatmul.bf16.gmra.mxu0 %v3958
    %v3974 = vpop.f32.mrf.mxu0
    %v3975 = vadd.f32 0.0, %v3974
    %v3976 = vpop.f32.mrf.mxu0
    %v3977 = vadd.f32 0.0, %v3976
    %3978 = vdwg.mxu0
    %v3979 = vpack.c.bf16 %v3972, %v3970
    %v3980 = vpack.c.bf16 %v3977, %v3975
    %s3981 = scalar_lea.vmem [#allocation4], 1184
    %v3982 = vld [vmem:[%s3981] sm:$0xf]
    %v3983 = vld [vmem:[%s3981 + $0x4] sm:$0xf]
    %v3984 = vld [vmem:[%s3981 + $0x8] sm:$0xf]
    %v3985 = vld [vmem:[%s3981 + $0xc] sm:$0xf]
    %v3986 = vld [vmem:[%s3981 + $0x10] sm:$0xf]
    %v3987 = vld [vmem:[%s3981 + $0x14] sm:$0xf]
    %v3988 = vld [vmem:[%s3981 + $0x18] sm:$0xf]
    %v3989 = vld [vmem:[%s3981 + $0x1c] sm:$0xf]
    %v3998 = vunpack.c.l.b16 %v3982
    %v3999 = vunpack.c.l.b16 %v3983
    %v4000 = vunpack.c.l.b16 %v3984
    %v4001 = vunpack.c.l.b16 %v3985
    %v4002 = vunpack.c.l.b16 %v3986
    %v4003 = vunpack.c.l.b16 %v3987
    %v4004 = vunpack.c.l.b16 %v3988
    %v4005 = vunpack.c.l.b16 %v3989
    %v4006 = vpack.c.b16 %v3999, %v3998
    %v4007 = vpack.c.b16 %v4001, %v4000
    %v4008 = vpack.c.b16 %v4003, %v4002
    %v4009 = vpack.c.b16 %v4005, %v4004
    %v4015 = vsel %vm190, %v3979, 0
    %v4018 = vsel %vm190, %v3980, 0
    %4020 = vmatpush.bf16.msra.mxu0 0
    %4021 = vmatpush.bf16.msra.mxu0 0
    %4022 = vmatpush.bf16.msra.mxu0 0
    %4023 = vmatpush.bf16.msra.mxu0 0
    %4024 = vmatpush.bf16.msra.mxu0 %v4009
    %4025 = vmatpush.bf16.msra.mxu0 %v4008
    %4026 = vmatpush.bf16.msra.mxu0 %v4007
    %4027 = vmatpush.bf16.msra.mxu0 %v4006
    %4028 = vmatmul.bf16.gmra.mxu0 %v4015
    %v4029 = vpop.f32.mrf.mxu0
    %v4030 = vadd.f32 0.0, %v4029
    %v4031 = vpop.f32.mrf.mxu0
    %v4032 = vadd.f32 0.0, %v4031
    %4033 = vmatmul.bf16.gmra.mxu0 %v4018
    %v4034 = vpop.f32.mrf.mxu0
    %v4035 = vadd.f32 0.0, %v4034
    %v4036 = vpop.f32.mrf.mxu0
    %v4037 = vadd.f32 0.0, %v4036
    %4038 = vdwg.mxu0
    %v4047 = vunpack.c.l.b16 %v3931
    %v4048 = vunpack.c.l.b16 %v3932
    %v4049 = vunpack.c.l.b16 %v3933
    %v4050 = vunpack.c.l.b16 %v3934
    %v4051 = vunpack.c.l.b16 %v3935
    %v4052 = vunpack.c.l.b16 %v3936
    %v4053 = vunpack.c.l.b16 %v3937
    %v4054 = vunpack.c.l.b16 %v3938
    %v4055 = vpack.c.b16 %v4048, %v4047
    %v4056 = vpack.c.b16 %v4050, %v4049
    %v4057 = vpack.c.b16 %v4052, %v4051
    %v4058 = vpack.c.b16 %v4054, %v4053
    %v4064 = vsel %vm190, %v3928, 0
    %v4067 = vsel %vm190, %v3929, 0
    %4069 = vmatpush.bf16.msra.mxu0 0
    %4070 = vmatpush.bf16.msra.mxu0 0
    %4071 = vmatpush.bf16.msra.mxu0 0
    %4072 = vmatpush.bf16.msra.mxu0 0
    %4073 = vmatpush.bf16.msra.mxu0 %v4058
    %4074 = vmatpush.bf16.msra.mxu0 %v4057
    %4075 = vmatpush.bf16.msra.mxu0 %v4056
    %4076 = vmatpush.bf16.msra.mxu0 %v4055
    %4077 = vmatmul.bf16.gmra.mxu0 %v4064
    %v4078 = vpop.f32.mrf.mxu0
    %v4079 = vadd.f32 %v4030, %v4078
    %v4080 = vpop.f32.mrf.mxu0
    %v4081 = vadd.f32 %v4032, %v4080
    %4082 = vmatmul.bf16.gmra.mxu0 %v4067
    %v4083 = vpop.f32.mrf.mxu0
    %v4084 = vadd.f32 %v4035, %v4083
    %v4085 = vpop.f32.mrf.mxu0
    %v4086 = vadd.f32 %v4037, %v4085
    %4087 = vdwg.mxu0
    %s4088 = scalar_lea.vmem [#allocation2], 608
    %v4089 = vld [vmem:[%s4088] sm:$0xf]
    %v4090 = vld [vmem:[%s4088 + $0x4] sm:$0xf]
    %v4091 = vld [vmem:[%s4088 + $0x8] sm:$0xf]
    %v4092 = vld [vmem:[%s4088 + $0xc] sm:$0xf]
    %v4097 = vunpack.c.l.b16 %v4089
    %v4098 = vunpack.c.l.b16 %v4090
    %v4099 = vunpack.c.l.b16 %v4091
    %v4100 = vunpack.c.l.b16 %v4092
    %v4101 = vpack.c.b16 %v4098, %v4097
    %v4102 = vpack.c.b16 %v4100, %v4099
    %v4104 = vsel %vm79, %v4101, 0
    %v4107 = vsel %vm79, %v4102, 0
    %4109 = vmatpush.bf16.msra.mxu0 0
    %4110 = vmatpush.bf16.msra.mxu0 0
    %4111 = vmatpush.bf16.msra.mxu0 0
    %4112 = vmatpush.bf16.msra.mxu0 0
    %4113 = vmatpush.bf16.msra.mxu0 0
    %4114 = vmatpush.bf16.msra.mxu0 0
    %4115 = vmatpush.bf16.msra.mxu0 %v3887
    %4116 = vmatpush.bf16.msra.mxu0 %v3886
    %4117 = vmatmul.bf16.gmra.mxu0 %v4104
    %v4118 = vpop.f32.mrf.mxu0
    %v4119 = vadd.f32 0.0, %v4118
    %v4120 = vpop.f32.mrf.mxu0
    %v4121 = vadd.f32 0.0, %v4120
    %4122 = vmatmul.bf16.gmra.mxu0 %v4107
    %v4123 = vpop.f32.mrf.mxu0
    %v4124 = vadd.f32 0.0, %v4123
    %v4125 = vpop.f32.mrf.mxu0
    %v4126 = vadd.f32 0.0, %v4125
    %4127 = vdwg.mxu0
    %v4128 = vpack.c.bf16 %v4121, %v4119
    %v4129 = vpack.c.bf16 %v4126, %v4124
    %s4130 = scalar_lea.vmem [#allocation4], 1216
    %v4131 = vld [vmem:[%s4130] sm:$0xf]
    %v4132 = vld [vmem:[%s4130 + $0x4] sm:$0xf]
    %v4133 = vld [vmem:[%s4130 + $0x8] sm:$0xf]
    %v4134 = vld [vmem:[%s4130 + $0xc] sm:$0xf]
    %v4135 = vld [vmem:[%s4130 + $0x10] sm:$0xf]
    %v4136 = vld [vmem:[%s4130 + $0x14] sm:$0xf]
    %v4137 = vld [vmem:[%s4130 + $0x18] sm:$0xf]
    %v4138 = vld [vmem:[%s4130 + $0x1c] sm:$0xf]
    %v4147 = vunpack.c.l.b16 %v4131
    %v4148 = vunpack.c.l.b16 %v4132
    %v4149 = vunpack.c.l.b16 %v4133
    %v4150 = vunpack.c.l.b16 %v4134
    %v4151 = vunpack.c.l.b16 %v4135
    %v4152 = vunpack.c.l.b16 %v4136
    %v4153 = vunpack.c.l.b16 %v4137
    %v4154 = vunpack.c.l.b16 %v4138
    %v4155 = vpack.c.b16 %v4148, %v4147
    %v4156 = vpack.c.b16 %v4150, %v4149
    %v4157 = vpack.c.b16 %v4152, %v4151
    %v4158 = vpack.c.b16 %v4154, %v4153
    %v4164 = vsel %vm190, %v4128, 0
    %v4167 = vsel %vm190, %v4129, 0
    %4169 = vmatpush.bf16.msra.mxu0 0
    %4170 = vmatpush.bf16.msra.mxu0 0
    %4171 = vmatpush.bf16.msra.mxu0 0
    %4172 = vmatpush.bf16.msra.mxu0 0
    %4173 = vmatpush.bf16.msra.mxu0 %v4158
    %4174 = vmatpush.bf16.msra.mxu0 %v4157
    %4175 = vmatpush.bf16.msra.mxu0 %v4156
    %4176 = vmatpush.bf16.msra.mxu0 %v4155
    %4177 = vmatmul.bf16.gmra.mxu0 %v4164
    %v4178 = vpop.f32.mrf.mxu0
    %v4179 = vadd.f32 0.0, %v4178
    %v4180 = vpop.f32.mrf.mxu0
    %v4181 = vadd.f32 0.0, %v4180
    %4182 = vmatmul.bf16.gmra.mxu0 %v4167
    %v4183 = vpop.f32.mrf.mxu0
    %v4184 = vadd.f32 0.0, %v4183
    %v4185 = vpop.f32.mrf.mxu0
    %v4186 = vadd.f32 0.0, %v4185
    %4187 = vdwg.mxu0
    %v4188 = vadd.f32 %v4079, %v4179
    %v4189 = vadd.f32 %v4081, %v4181
    %v4190 = vadd.f32 %v4084, %v4184
    %v4191 = vadd.f32 %v4086, %v4186
    %s4192 = scalar_lea.vmem %s3, 12
    %v4193 = vld [vmem:[%s4192] sm:$0x1]
    %v4195 = vperm.slane %v4193, 0
    %v4197 = vadd.f32 %v4188, %v4195
    %v4198 = vadd.f32 %v4189, %v4195
    %v4199 = vadd.f32 %v4190, %v4195
    %v4200 = vadd.f32 %v4191, %v4195
    %v4201 = vpack.c.bf16 %v4198, %v4197
    %v4202 = vpack.c.bf16 %v4200, %v4199
    %s4203 = scalar_lea.vmem [#allocation2], 624
    %v4204 = vld [vmem:[%s4203] sm:$0xf]
    %v4205 = vld [vmem:[%s4203 + $0x4] sm:$0xf]
    %v4206 = vld [vmem:[%s4203 + $0x8] sm:$0xf]
    %v4207 = vld [vmem:[%s4203 + $0xc] sm:$0xf]
    %v4212 = vunpack.c.l.b16 %v4204
    %v4213 = vunpack.c.l.b16 %v4205
    %v4214 = vunpack.c.l.b16 %v4206
    %v4215 = vunpack.c.l.b16 %v4207
    %v4216 = vpack.c.b16 %v4213, %v4212
    %v4217 = vpack.c.b16 %v4215, %v4214
    %v4219 = vsel %vm79, %v4216, 0
    %v4222 = vsel %vm79, %v4217, 0
    %4224 = vmatpush.bf16.msra.mxu0 0
    %4225 = vmatpush.bf16.msra.mxu0 0
    %4226 = vmatpush.bf16.msra.mxu0 0
    %4227 = vmatpush.bf16.msra.mxu0 0
    %4228 = vmatpush.bf16.msra.mxu0 0
    %4229 = vmatpush.bf16.msra.mxu0 0
    %4230 = vmatpush.bf16.msra.mxu0 %v4202
    %4231 = vmatpush.bf16.msra.mxu0 %v4201
    %4232 = vmatmul.bf16.gmra.mxu0 %v4219
    %v4233 = vpop.f32.mrf.mxu0
    %v4234 = vadd.f32 0.0, %v4233
    %v4235 = vpop.f32.mrf.mxu0
    %v4236 = vadd.f32 0.0, %v4235
    %4237 = vmatmul.bf16.gmra.mxu0 %v4222
    %v4238 = vpop.f32.mrf.mxu0
    %v4239 = vadd.f32 0.0, %v4238
    %v4240 = vpop.f32.mrf.mxu0
    %v4241 = vadd.f32 0.0, %v4240
    %4242 = vdwg.mxu0
    %v4243 = vpack.c.bf16 %v4236, %v4234
    %v4244 = vpack.c.bf16 %v4241, %v4239
    %s4245 = scalar_lea.vmem [#allocation4], 1248
    %v4246 = vld [vmem:[%s4245] sm:$0xf]
    %v4247 = vld [vmem:[%s4245 + $0x4] sm:$0xf]
    %v4248 = vld [vmem:[%s4245 + $0x8] sm:$0xf]
    %v4249 = vld [vmem:[%s4245 + $0xc] sm:$0xf]
    %v4250 = vld [vmem:[%s4245 + $0x10] sm:$0xf]
    %v4251 = vld [vmem:[%s4245 + $0x14] sm:$0xf]
    %v4252 = vld [vmem:[%s4245 + $0x18] sm:$0xf]
    %v4253 = vld [vmem:[%s4245 + $0x1c] sm:$0xf]
    %s4254 = scalar_lea.vmem [#allocation2], 640
    %v4255 = vld [vmem:[%s4254] sm:$0xf]
    %v4256 = vld [vmem:[%s4254 + $0x4] sm:$0xf]
    %v4257 = vld [vmem:[%s4254 + $0x8] sm:$0xf]
    %v4258 = vld [vmem:[%s4254 + $0xc] sm:$0xf]
    %v4263 = vunpack.c.l.b16 %v4255
    %v4264 = vunpack.c.l.b16 %v4256
    %v4265 = vunpack.c.l.b16 %v4257
    %v4266 = vunpack.c.l.b16 %v4258
    %v4267 = vpack.c.b16 %v4264, %v4263
    %v4268 = vpack.c.b16 %v4266, %v4265
    %v4270 = vsel %vm79, %v4267, 0
    %v4273 = vsel %vm79, %v4268, 0
    %4275 = vmatpush.bf16.msra.mxu0 0
    %4276 = vmatpush.bf16.msra.mxu0 0
    %4277 = vmatpush.bf16.msra.mxu0 0
    %4278 = vmatpush.bf16.msra.mxu0 0
    %4279 = vmatpush.bf16.msra.mxu0 0
    %4280 = vmatpush.bf16.msra.mxu0 0
    %4281 = vmatpush.bf16.msra.mxu0 %v4202
    %4282 = vmatpush.bf16.msra.mxu0 %v4201
    %4283 = vmatmul.bf16.gmra.mxu0 %v4270
    %v4284 = vpop.f32.mrf.mxu0
    %v4285 = vadd.f32 0.0, %v4284
    %v4286 = vpop.f32.mrf.mxu0
    %v4287 = vadd.f32 0.0, %v4286
    %4288 = vmatmul.bf16.gmra.mxu0 %v4273
    %v4289 = vpop.f32.mrf.mxu0
    %v4290 = vadd.f32 0.0, %v4289
    %v4291 = vpop.f32.mrf.mxu0
    %v4292 = vadd.f32 0.0, %v4291
    %4293 = vdwg.mxu0
    %v4294 = vpack.c.bf16 %v4287, %v4285
    %v4295 = vpack.c.bf16 %v4292, %v4290
    %s4296 = scalar_lea.vmem [#allocation4], 1280
    %v4297 = vld [vmem:[%s4296] sm:$0xf]
    %v4298 = vld [vmem:[%s4296 + $0x4] sm:$0xf]
    %v4299 = vld [vmem:[%s4296 + $0x8] sm:$0xf]
    %v4300 = vld [vmem:[%s4296 + $0xc] sm:$0xf]
    %v4301 = vld [vmem:[%s4296 + $0x10] sm:$0xf]
    %v4302 = vld [vmem:[%s4296 + $0x14] sm:$0xf]
    %v4303 = vld [vmem:[%s4296 + $0x18] sm:$0xf]
    %v4304 = vld [vmem:[%s4296 + $0x1c] sm:$0xf]
    %v4313 = vunpack.c.l.b16 %v4297
    %v4314 = vunpack.c.l.b16 %v4298
    %v4315 = vunpack.c.l.b16 %v4299
    %v4316 = vunpack.c.l.b16 %v4300
    %v4317 = vunpack.c.l.b16 %v4301
    %v4318 = vunpack.c.l.b16 %v4302
    %v4319 = vunpack.c.l.b16 %v4303
    %v4320 = vunpack.c.l.b16 %v4304
    %v4321 = vpack.c.b16 %v4314, %v4313
    %v4322 = vpack.c.b16 %v4316, %v4315
    %v4323 = vpack.c.b16 %v4318, %v4317
    %v4324 = vpack.c.b16 %v4320, %v4319
    %v4330 = vsel %vm190, %v4294, 0
    %v4333 = vsel %vm190, %v4295, 0
    %4335 = vmatpush.bf16.msra.mxu0 0
    %4336 = vmatpush.bf16.msra.mxu0 0
    %4337 = vmatpush.bf16.msra.mxu0 0
    %4338 = vmatpush.bf16.msra.mxu0 0
    %4339 = vmatpush.bf16.msra.mxu0 %v4324
    %4340 = vmatpush.bf16.msra.mxu0 %v4323
    %4341 = vmatpush.bf16.msra.mxu0 %v4322
    %4342 = vmatpush.bf16.msra.mxu0 %v4321
    %4343 = vmatmul.bf16.gmra.mxu0 %v4330
    %v4344 = vpop.f32.mrf.mxu0
    %v4345 = vadd.f32 0.0, %v4344
    %v4346 = vpop.f32.mrf.mxu0
    %v4347 = vadd.f32 0.0, %v4346
    %4348 = vmatmul.bf16.gmra.mxu0 %v4333
    %v4349 = vpop.f32.mrf.mxu0
    %v4350 = vadd.f32 0.0, %v4349
    %v4351 = vpop.f32.mrf.mxu0
    %v4352 = vadd.f32 0.0, %v4351
    %4353 = vdwg.mxu0
    %v4362 = vunpack.c.l.b16 %v4246
    %v4363 = vunpack.c.l.b16 %v4247
    %v4364 = vunpack.c.l.b16 %v4248
    %v4365 = vunpack.c.l.b16 %v4249
    %v4366 = vunpack.c.l.b16 %v4250
    %v4367 = vunpack.c.l.b16 %v4251
    %v4368 = vunpack.c.l.b16 %v4252
    %v4369 = vunpack.c.l.b16 %v4253
    %v4370 = vpack.c.b16 %v4363, %v4362
    %v4371 = vpack.c.b16 %v4365, %v4364
    %v4372 = vpack.c.b16 %v4367, %v4366
    %v4373 = vpack.c.b16 %v4369, %v4368
    %v4379 = vsel %vm190, %v4243, 0
    %v4382 = vsel %vm190, %v4244, 0
    %4384 = vmatpush.bf16.msra.mxu0 0
    %4385 = vmatpush.bf16.msra.mxu0 0
    %4386 = vmatpush.bf16.msra.mxu0 0
    %4387 = vmatpush.bf16.msra.mxu0 0
    %4388 = vmatpush.bf16.msra.mxu0 %v4373
    %4389 = vmatpush.bf16.msra.mxu0 %v4372
    %4390 = vmatpush.bf16.msra.mxu0 %v4371
    %4391 = vmatpush.bf16.msra.mxu0 %v4370
    %4392 = vmatmul.bf16.gmra.mxu0 %v4379
    %v4393 = vpop.f32.mrf.mxu0
    %v4394 = vadd.f32 %v4345, %v4393
    %v4395 = vpop.f32.mrf.mxu0
    %v4396 = vadd.f32 %v4347, %v4395
    %4397 = vmatmul.bf16.gmra.mxu0 %v4382
    %v4398 = vpop.f32.mrf.mxu0
    %v4399 = vadd.f32 %v4350, %v4398
    %v4400 = vpop.f32.mrf.mxu0
    %v4401 = vadd.f32 %v4352, %v4400
    %4402 = vdwg.mxu0
    %s4403 = scalar_lea.vmem [#allocation2], 656
    %v4404 = vld [vmem:[%s4403] sm:$0xf]
    %v4405 = vld [vmem:[%s4403 + $0x4] sm:$0xf]
    %v4406 = vld [vmem:[%s4403 + $0x8] sm:$0xf]
    %v4407 = vld [vmem:[%s4403 + $0xc] sm:$0xf]
    %v4412 = vunpack.c.l.b16 %v4404
    %v4413 = vunpack.c.l.b16 %v4405
    %v4414 = vunpack.c.l.b16 %v4406
    %v4415 = vunpack.c.l.b16 %v4407
    %v4416 = vpack.c.b16 %v4413, %v4412
    %v4417 = vpack.c.b16 %v4415, %v4414
    %v4419 = vsel %vm79, %v4416, 0
    %v4422 = vsel %vm79, %v4417, 0
    %4424 = vmatpush.bf16.msra.mxu0 0
    %4425 = vmatpush.bf16.msra.mxu0 0
    %4426 = vmatpush.bf16.msra.mxu0 0
    %4427 = vmatpush.bf16.msra.mxu0 0
    %4428 = vmatpush.bf16.msra.mxu0 0
    %4429 = vmatpush.bf16.msra.mxu0 0
    %4430 = vmatpush.bf16.msra.mxu0 %v4202
    %4431 = vmatpush.bf16.msra.mxu0 %v4201
    %4432 = vmatmul.bf16.gmra.mxu0 %v4419
    %v4433 = vpop.f32.mrf.mxu0
    %v4434 = vadd.f32 0.0, %v4433
    %v4435 = vpop.f32.mrf.mxu0
    %v4436 = vadd.f32 0.0, %v4435
    %4437 = vmatmul.bf16.gmra.mxu0 %v4422
    %v4438 = vpop.f32.mrf.mxu0
    %v4439 = vadd.f32 0.0, %v4438
    %v4440 = vpop.f32.mrf.mxu0
    %v4441 = vadd.f32 0.0, %v4440
    %4442 = vdwg.mxu0
    %v4443 = vpack.c.bf16 %v4436, %v4434
    %v4444 = vpack.c.bf16 %v4441, %v4439
    %s4445 = scalar_lea.vmem [#allocation4], 1312
    %v4446 = vld [vmem:[%s4445] sm:$0xf]
    %v4447 = vld [vmem:[%s4445 + $0x4] sm:$0xf]
    %v4448 = vld [vmem:[%s4445 + $0x8] sm:$0xf]
    %v4449 = vld [vmem:[%s4445 + $0xc] sm:$0xf]
    %v4450 = vld [vmem:[%s4445 + $0x10] sm:$0xf]
    %v4451 = vld [vmem:[%s4445 + $0x14] sm:$0xf]
    %v4452 = vld [vmem:[%s4445 + $0x18] sm:$0xf]
    %v4453 = vld [vmem:[%s4445 + $0x1c] sm:$0xf]
    %v4462 = vunpack.c.l.b16 %v4446
    %v4463 = vunpack.c.l.b16 %v4447
    %v4464 = vunpack.c.l.b16 %v4448
    %v4465 = vunpack.c.l.b16 %v4449
    %v4466 = vunpack.c.l.b16 %v4450
    %v4467 = vunpack.c.l.b16 %v4451
    %v4468 = vunpack.c.l.b16 %v4452
    %v4469 = vunpack.c.l.b16 %v4453
    %v4470 = vpack.c.b16 %v4463, %v4462
    %v4471 = vpack.c.b16 %v4465, %v4464
    %v4472 = vpack.c.b16 %v4467, %v4466
    %v4473 = vpack.c.b16 %v4469, %v4468
    %v4479 = vsel %vm190, %v4443, 0
    %v4482 = vsel %vm190, %v4444, 0
    %4484 = vmatpush.bf16.msra.mxu0 0
    %4485 = vmatpush.bf16.msra.mxu0 0
    %4486 = vmatpush.bf16.msra.mxu0 0
    %4487 = vmatpush.bf16.msra.mxu0 0
    %4488 = vmatpush.bf16.msra.mxu0 %v4473
    %4489 = vmatpush.bf16.msra.mxu0 %v4472
    %4490 = vmatpush.bf16.msra.mxu0 %v4471
    %4491 = vmatpush.bf16.msra.mxu0 %v4470
    %4492 = vmatmul.bf16.gmra.mxu0 %v4479
    %v4493 = vpop.f32.mrf.mxu0
    %v4494 = vadd.f32 0.0, %v4493
    %v4495 = vpop.f32.mrf.mxu0
    %v4496 = vadd.f32 0.0, %v4495
    %4497 = vmatmul.bf16.gmra.mxu0 %v4482
    %v4498 = vpop.f32.mrf.mxu0
    %v4499 = vadd.f32 0.0, %v4498
    %v4500 = vpop.f32.mrf.mxu0
    %v4501 = vadd.f32 0.0, %v4500
    %4502 = vdwg.mxu0
    %v4503 = vadd.f32 %v4394, %v4494
    %v4504 = vadd.f32 %v4396, %v4496
    %v4505 = vadd.f32 %v4399, %v4499
    %v4506 = vadd.f32 %v4401, %v4501
    %s4507 = scalar_lea.vmem %s3, 13
    %v4508 = vld [vmem:[%s4507] sm:$0x1]
    %v4510 = vperm.slane %v4508, 0
    %v4512 = vadd.f32 %v4503, %v4510
    %v4513 = vadd.f32 %v4504, %v4510
    %v4514 = vadd.f32 %v4505, %v4510
    %v4515 = vadd.f32 %v4506, %v4510
    %v4516 = vpack.c.bf16 %v4513, %v4512
    %v4517 = vpack.c.bf16 %v4515, %v4514
    %s4518 = scalar_lea.vmem [#allocation2], 672
    %v4519 = vld [vmem:[%s4518] sm:$0xf]
    %v4520 = vld [vmem:[%s4518 + $0x4] sm:$0xf]
    %v4521 = vld [vmem:[%s4518 + $0x8] sm:$0xf]
    %v4522 = vld [vmem:[%s4518 + $0xc] sm:$0xf]
    %v4527 = vunpack.c.l.b16 %v4519
    %v4528 = vunpack.c.l.b16 %v4520
    %v4529 = vunpack.c.l.b16 %v4521
    %v4530 = vunpack.c.l.b16 %v4522
    %v4531 = vpack.c.b16 %v4528, %v4527
    %v4532 = vpack.c.b16 %v4530, %v4529
    %v4534 = vsel %vm79, %v4531, 0
    %v4537 = vsel %vm79, %v4532, 0
    %4539 = vmatpush.bf16.msra.mxu0 0
    %4540 = vmatpush.bf16.msra.mxu0 0
    %4541 = vmatpush.bf16.msra.mxu0 0
    %4542 = vmatpush.bf16.msra.mxu0 0
    %4543 = vmatpush.bf16.msra.mxu0 0
    %4544 = vmatpush.bf16.msra.mxu0 0
    %4545 = vmatpush.bf16.msra.mxu0 %v4517
    %4546 = vmatpush.bf16.msra.mxu0 %v4516
    %4547 = vmatmul.bf16.gmra.mxu0 %v4534
    %v4548 = vpop.f32.mrf.mxu0
    %v4549 = vadd.f32 0.0, %v4548
    %v4550 = vpop.f32.mrf.mxu0
    %v4551 = vadd.f32 0.0, %v4550
    %4552 = vmatmul.bf16.gmra.mxu0 %v4537
    %v4553 = vpop.f32.mrf.mxu0
    %v4554 = vadd.f32 0.0, %v4553
    %v4555 = vpop.f32.mrf.mxu0
    %v4556 = vadd.f32 0.0, %v4555
    %4557 = vdwg.mxu0
    %v4558 = vpack.c.bf16 %v4551, %v4549
    %v4559 = vpack.c.bf16 %v4556, %v4554
    %s4560 = scalar_lea.vmem [#allocation4], 1344
    %v4561 = vld [vmem:[%s4560] sm:$0xf]
    %v4562 = vld [vmem:[%s4560 + $0x4] sm:$0xf]
    %v4563 = vld [vmem:[%s4560 + $0x8] sm:$0xf]
    %v4564 = vld [vmem:[%s4560 + $0xc] sm:$0xf]
    %v4565 = vld [vmem:[%s4560 + $0x10] sm:$0xf]
    %v4566 = vld [vmem:[%s4560 + $0x14] sm:$0xf]
    %v4567 = vld [vmem:[%s4560 + $0x18] sm:$0xf]
    %v4568 = vld [vmem:[%s4560 + $0x1c] sm:$0xf]
    %s4569 = scalar_lea.vmem [#allocation2], 688
    %v4570 = vld [vmem:[%s4569] sm:$0xf]
    %v4571 = vld [vmem:[%s4569 + $0x4] sm:$0xf]
    %v4572 = vld [vmem:[%s4569 + $0x8] sm:$0xf]
    %v4573 = vld [vmem:[%s4569 + $0xc] sm:$0xf]
    %v4578 = vunpack.c.l.b16 %v4570
    %v4579 = vunpack.c.l.b16 %v4571
    %v4580 = vunpack.c.l.b16 %v4572
    %v4581 = vunpack.c.l.b16 %v4573
    %v4582 = vpack.c.b16 %v4579, %v4578
    %v4583 = vpack.c.b16 %v4581, %v4580
    %v4585 = vsel %vm79, %v4582, 0
    %v4588 = vsel %vm79, %v4583, 0
    %4590 = vmatpush.bf16.msra.mxu0 0
    %4591 = vmatpush.bf16.msra.mxu0 0
    %4592 = vmatpush.bf16.msra.mxu0 0
    %4593 = vmatpush.bf16.msra.mxu0 0
    %4594 = vmatpush.bf16.msra.mxu0 0
    %4595 = vmatpush.bf16.msra.mxu0 0
    %4596 = vmatpush.bf16.msra.mxu0 %v4517
    %4597 = vmatpush.bf16.msra.mxu0 %v4516
    %4598 = vmatmul.bf16.gmra.mxu0 %v4585
    %v4599 = vpop.f32.mrf.mxu0
    %v4600 = vadd.f32 0.0, %v4599
    %v4601 = vpop.f32.mrf.mxu0
    %v4602 = vadd.f32 0.0, %v4601
    %4603 = vmatmul.bf16.gmra.mxu0 %v4588
    %v4604 = vpop.f32.mrf.mxu0
    %v4605 = vadd.f32 0.0, %v4604
    %v4606 = vpop.f32.mrf.mxu0
    %v4607 = vadd.f32 0.0, %v4606
    %4608 = vdwg.mxu0
    %v4609 = vpack.c.bf16 %v4602, %v4600
    %v4610 = vpack.c.bf16 %v4607, %v4605
    %s4611 = scalar_lea.vmem [#allocation4], 1376
    %v4612 = vld [vmem:[%s4611] sm:$0xf]
    %v4613 = vld [vmem:[%s4611 + $0x4] sm:$0xf]
    %v4614 = vld [vmem:[%s4611 + $0x8] sm:$0xf]
    %v4615 = vld [vmem:[%s4611 + $0xc] sm:$0xf]
    %v4616 = vld [vmem:[%s4611 + $0x10] sm:$0xf]
    %v4617 = vld [vmem:[%s4611 + $0x14] sm:$0xf]
    %v4618 = vld [vmem:[%s4611 + $0x18] sm:$0xf]
    %v4619 = vld [vmem:[%s4611 + $0x1c] sm:$0xf]
    %v4628 = vunpack.c.l.b16 %v4612
    %v4629 = vunpack.c.l.b16 %v4613
    %v4630 = vunpack.c.l.b16 %v4614
    %v4631 = vunpack.c.l.b16 %v4615
    %v4632 = vunpack.c.l.b16 %v4616
    %v4633 = vunpack.c.l.b16 %v4617
    %v4634 = vunpack.c.l.b16 %v4618
    %v4635 = vunpack.c.l.b16 %v4619
    %v4636 = vpack.c.b16 %v4629, %v4628
    %v4637 = vpack.c.b16 %v4631, %v4630
    %v4638 = vpack.c.b16 %v4633, %v4632
    %v4639 = vpack.c.b16 %v4635, %v4634
    %v4645 = vsel %vm190, %v4609, 0
    %v4648 = vsel %vm190, %v4610, 0
    %4650 = vmatpush.bf16.msra.mxu0 0
    %4651 = vmatpush.bf16.msra.mxu0 0
    %4652 = vmatpush.bf16.msra.mxu0 0
    %4653 = vmatpush.bf16.msra.mxu0 0
    %4654 = vmatpush.bf16.msra.mxu0 %v4639
    %4655 = vmatpush.bf16.msra.mxu0 %v4638
    %4656 = vmatpush.bf16.msra.mxu0 %v4637
    %4657 = vmatpush.bf16.msra.mxu0 %v4636
    %4658 = vmatmul.bf16.gmra.mxu0 %v4645
    %v4659 = vpop.f32.mrf.mxu0
    %v4660 = vadd.f32 0.0, %v4659
    %v4661 = vpop.f32.mrf.mxu0
    %v4662 = vadd.f32 0.0, %v4661
    %4663 = vmatmul.bf16.gmra.mxu0 %v4648
    %v4664 = vpop.f32.mrf.mxu0
    %v4665 = vadd.f32 0.0, %v4664
    %v4666 = vpop.f32.mrf.mxu0
    %v4667 = vadd.f32 0.0, %v4666
    %4668 = vdwg.mxu0
    %v4677 = vunpack.c.l.b16 %v4561
    %v4678 = vunpack.c.l.b16 %v4562
    %v4679 = vunpack.c.l.b16 %v4563
    %v4680 = vunpack.c.l.b16 %v4564
    %v4681 = vunpack.c.l.b16 %v4565
    %v4682 = vunpack.c.l.b16 %v4566
    %v4683 = vunpack.c.l.b16 %v4567
    %v4684 = vunpack.c.l.b16 %v4568
    %v4685 = vpack.c.b16 %v4678, %v4677
    %v4686 = vpack.c.b16 %v4680, %v4679
    %v4687 = vpack.c.b16 %v4682, %v4681
    %v4688 = vpack.c.b16 %v4684, %v4683
    %v4694 = vsel %vm190, %v4558, 0
    %v4697 = vsel %vm190, %v4559, 0
    %4699 = vmatpush.bf16.msra.mxu0 0
    %4700 = vmatpush.bf16.msra.mxu0 0
    %4701 = vmatpush.bf16.msra.mxu0 0
    %4702 = vmatpush.bf16.msra.mxu0 0
    %4703 = vmatpush.bf16.msra.mxu0 %v4688
    %4704 = vmatpush.bf16.msra.mxu0 %v4687
    %4705 = vmatpush.bf16.msra.mxu0 %v4686
    %4706 = vmatpush.bf16.msra.mxu0 %v4685
    %4707 = vmatmul.bf16.gmra.mxu0 %v4694
    %v4708 = vpop.f32.mrf.mxu0
    %v4709 = vadd.f32 %v4660, %v4708
    %v4710 = vpop.f32.mrf.mxu0
    %v4711 = vadd.f32 %v4662, %v4710
    %4712 = vmatmul.bf16.gmra.mxu0 %v4697
    %v4713 = vpop.f32.mrf.mxu0
    %v4714 = vadd.f32 %v4665, %v4713
    %v4715 = vpop.f32.mrf.mxu0
    %v4716 = vadd.f32 %v4667, %v4715
    %4717 = vdwg.mxu0
    %s4718 = scalar_lea.vmem [#allocation2], 704
    %v4719 = vld [vmem:[%s4718] sm:$0xf]
    %v4720 = vld [vmem:[%s4718 + $0x4] sm:$0xf]
    %v4721 = vld [vmem:[%s4718 + $0x8] sm:$0xf]
    %v4722 = vld [vmem:[%s4718 + $0xc] sm:$0xf]
    %v4727 = vunpack.c.l.b16 %v4719
    %v4728 = vunpack.c.l.b16 %v4720
    %v4729 = vunpack.c.l.b16 %v4721
    %v4730 = vunpack.c.l.b16 %v4722
    %v4731 = vpack.c.b16 %v4728, %v4727
    %v4732 = vpack.c.b16 %v4730, %v4729
    %v4734 = vsel %vm79, %v4731, 0
    %v4737 = vsel %vm79, %v4732, 0
    %4739 = vmatpush.bf16.msra.mxu0 0
    %4740 = vmatpush.bf16.msra.mxu0 0
    %4741 = vmatpush.bf16.msra.mxu0 0
    %4742 = vmatpush.bf16.msra.mxu0 0
    %4743 = vmatpush.bf16.msra.mxu0 0
    %4744 = vmatpush.bf16.msra.mxu0 0
    %4745 = vmatpush.bf16.msra.mxu0 %v4517
    %4746 = vmatpush.bf16.msra.mxu0 %v4516
    %4747 = vmatmul.bf16.gmra.mxu0 %v4734
    %v4748 = vpop.f32.mrf.mxu0
    %v4749 = vadd.f32 0.0, %v4748
    %v4750 = vpop.f32.mrf.mxu0
    %v4751 = vadd.f32 0.0, %v4750
    %4752 = vmatmul.bf16.gmra.mxu0 %v4737
    %v4753 = vpop.f32.mrf.mxu0
    %v4754 = vadd.f32 0.0, %v4753
    %v4755 = vpop.f32.mrf.mxu0
    %v4756 = vadd.f32 0.0, %v4755
    %4757 = vdwg.mxu0
    %v4758 = vpack.c.bf16 %v4751, %v4749
    %v4759 = vpack.c.bf16 %v4756, %v4754
    %s4760 = scalar_lea.vmem [#allocation4], 1408
    %v4761 = vld [vmem:[%s4760] sm:$0xf]
    %v4762 = vld [vmem:[%s4760 + $0x4] sm:$0xf]
    %v4763 = vld [vmem:[%s4760 + $0x8] sm:$0xf]
    %v4764 = vld [vmem:[%s4760 + $0xc] sm:$0xf]
    %v4765 = vld [vmem:[%s4760 + $0x10] sm:$0xf]
    %v4766 = vld [vmem:[%s4760 + $0x14] sm:$0xf]
    %v4767 = vld [vmem:[%s4760 + $0x18] sm:$0xf]
    %v4768 = vld [vmem:[%s4760 + $0x1c] sm:$0xf]
    %v4777 = vunpack.c.l.b16 %v4761
    %v4778 = vunpack.c.l.b16 %v4762
    %v4779 = vunpack.c.l.b16 %v4763
    %v4780 = vunpack.c.l.b16 %v4764
    %v4781 = vunpack.c.l.b16 %v4765
    %v4782 = vunpack.c.l.b16 %v4766
    %v4783 = vunpack.c.l.b16 %v4767
    %v4784 = vunpack.c.l.b16 %v4768
    %v4785 = vpack.c.b16 %v4778, %v4777
    %v4786 = vpack.c.b16 %v4780, %v4779
    %v4787 = vpack.c.b16 %v4782, %v4781
    %v4788 = vpack.c.b16 %v4784, %v4783
    %v4794 = vsel %vm190, %v4758, 0
    %v4797 = vsel %vm190, %v4759, 0
    %4799 = vmatpush.bf16.msra.mxu0 0
    %4800 = vmatpush.bf16.msra.mxu0 0
    %4801 = vmatpush.bf16.msra.mxu0 0
    %4802 = vmatpush.bf16.msra.mxu0 0
    %4803 = vmatpush.bf16.msra.mxu0 %v4788
    %4804 = vmatpush.bf16.msra.mxu0 %v4787
    %4805 = vmatpush.bf16.msra.mxu0 %v4786
    %4806 = vmatpush.bf16.msra.mxu0 %v4785
    %4807 = vmatmul.bf16.gmra.mxu0 %v4794
    %v4808 = vpop.f32.mrf.mxu0
    %v4809 = vadd.f32 0.0, %v4808
    %v4810 = vpop.f32.mrf.mxu0
    %v4811 = vadd.f32 0.0, %v4810
    %4812 = vmatmul.bf16.gmra.mxu0 %v4797
    %v4813 = vpop.f32.mrf.mxu0
    %v4814 = vadd.f32 0.0, %v4813
    %v4815 = vpop.f32.mrf.mxu0
    %v4816 = vadd.f32 0.0, %v4815
    %4817 = vdwg.mxu0
    %v4818 = vadd.f32 %v4709, %v4809
    %v4819 = vadd.f32 %v4711, %v4811
    %v4820 = vadd.f32 %v4714, %v4814
    %v4821 = vadd.f32 %v4716, %v4816
    %s4822 = scalar_lea.vmem %s3, 14
    %v4823 = vld [vmem:[%s4822] sm:$0x1]
    %v4825 = vperm.slane %v4823, 0
    %v4827 = vadd.f32 %v4818, %v4825
    %v4828 = vadd.f32 %v4819, %v4825
    %v4829 = vadd.f32 %v4820, %v4825
    %v4830 = vadd.f32 %v4821, %v4825
    %v4831 = vpack.c.bf16 %v4828, %v4827
    %v4832 = vpack.c.bf16 %v4830, %v4829
    %s4833 = scalar_lea.vmem [#allocation2], 720
    %v4834 = vld [vmem:[%s4833] sm:$0xf]
    %v4835 = vld [vmem:[%s4833 + $0x4] sm:$0xf]
    %v4836 = vld [vmem:[%s4833 + $0x8] sm:$0xf]
    %v4837 = vld [vmem:[%s4833 + $0xc] sm:$0xf]
    %v4842 = vunpack.c.l.b16 %v4834
    %v4843 = vunpack.c.l.b16 %v4835
    %v4844 = vunpack.c.l.b16 %v4836
    %v4845 = vunpack.c.l.b16 %v4837
    %v4846 = vpack.c.b16 %v4843, %v4842
    %v4847 = vpack.c.b16 %v4845, %v4844
    %v4849 = vsel %vm79, %v4846, 0
    %v4852 = vsel %vm79, %v4847, 0
    %4854 = vmatpush.bf16.msra.mxu0 0
    %4855 = vmatpush.bf16.msra.mxu0 0
    %4856 = vmatpush.bf16.msra.mxu0 0
    %4857 = vmatpush.bf16.msra.mxu0 0
    %4858 = vmatpush.bf16.msra.mxu0 0
    %4859 = vmatpush.bf16.msra.mxu0 0
    %4860 = vmatpush.bf16.msra.mxu0 %v4832
    %4861 = vmatpush.bf16.msra.mxu0 %v4831
    %4862 = vmatmul.bf16.gmra.mxu0 %v4849
    %v4863 = vpop.f32.mrf.mxu0
    %v4864 = vadd.f32 0.0, %v4863
    %v4865 = vpop.f32.mrf.mxu0
    %v4866 = vadd.f32 0.0, %v4865
    %4867 = vmatmul.bf16.gmra.mxu0 %v4852
    %v4868 = vpop.f32.mrf.mxu0
    %v4869 = vadd.f32 0.0, %v4868
    %v4870 = vpop.f32.mrf.mxu0
    %v4871 = vadd.f32 0.0, %v4870
    %4872 = vdwg.mxu0
    %v4873 = vpack.c.bf16 %v4866, %v4864
    %v4874 = vpack.c.bf16 %v4871, %v4869
    %s4875 = scalar_lea.vmem [#allocation4], 1440
    %v4876 = vld [vmem:[%s4875] sm:$0xf]
    %v4877 = vld [vmem:[%s4875 + $0x4] sm:$0xf]
    %v4878 = vld [vmem:[%s4875 + $0x8] sm:$0xf]
    %v4879 = vld [vmem:[%s4875 + $0xc] sm:$0xf]
    %v4880 = vld [vmem:[%s4875 + $0x10] sm:$0xf]
    %v4881 = vld [vmem:[%s4875 + $0x14] sm:$0xf]
    %v4882 = vld [vmem:[%s4875 + $0x18] sm:$0xf]
    %v4883 = vld [vmem:[%s4875 + $0x1c] sm:$0xf]
    %s4884 = scalar_lea.vmem [#allocation2], 736
    %v4885 = vld [vmem:[%s4884] sm:$0xf]
    %v4886 = vld [vmem:[%s4884 + $0x4] sm:$0xf]
    %v4887 = vld [vmem:[%s4884 + $0x8] sm:$0xf]
    %v4888 = vld [vmem:[%s4884 + $0xc] sm:$0xf]
    %v4893 = vunpack.c.l.b16 %v4885
    %v4894 = vunpack.c.l.b16 %v4886
    %v4895 = vunpack.c.l.b16 %v4887
    %v4896 = vunpack.c.l.b16 %v4888
    %v4897 = vpack.c.b16 %v4894, %v4893
    %v4898 = vpack.c.b16 %v4896, %v4895
    %v4900 = vsel %vm79, %v4897, 0
    %v4903 = vsel %vm79, %v4898, 0
    %4905 = vmatpush.bf16.msra.mxu0 0
    %4906 = vmatpush.bf16.msra.mxu0 0
    %4907 = vmatpush.bf16.msra.mxu0 0
    %4908 = vmatpush.bf16.msra.mxu0 0
    %4909 = vmatpush.bf16.msra.mxu0 0
    %4910 = vmatpush.bf16.msra.mxu0 0
    %4911 = vmatpush.bf16.msra.mxu0 %v4832
    %4912 = vmatpush.bf16.msra.mxu0 %v4831
    %4913 = vmatmul.bf16.gmra.mxu0 %v4900
    %v4914 = vpop.f32.mrf.mxu0
    %v4915 = vadd.f32 0.0, %v4914
    %v4916 = vpop.f32.mrf.mxu0
    %v4917 = vadd.f32 0.0, %v4916
    %4918 = vmatmul.bf16.gmra.mxu0 %v4903
    %v4919 = vpop.f32.mrf.mxu0
    %v4920 = vadd.f32 0.0, %v4919
    %v4921 = vpop.f32.mrf.mxu0
    %v4922 = vadd.f32 0.0, %v4921
    %4923 = vdwg.mxu0
    %v4924 = vpack.c.bf16 %v4917, %v4915
    %v4925 = vpack.c.bf16 %v4922, %v4920
    %s4926 = scalar_lea.vmem [#allocation4], 1472
    %v4927 = vld [vmem:[%s4926] sm:$0xf]
    %v4928 = vld [vmem:[%s4926 + $0x4] sm:$0xf]
    %v4929 = vld [vmem:[%s4926 + $0x8] sm:$0xf]
    %v4930 = vld [vmem:[%s4926 + $0xc] sm:$0xf]
    %v4931 = vld [vmem:[%s4926 + $0x10] sm:$0xf]
    %v4932 = vld [vmem:[%s4926 + $0x14] sm:$0xf]
    %v4933 = vld [vmem:[%s4926 + $0x18] sm:$0xf]
    %v4934 = vld [vmem:[%s4926 + $0x1c] sm:$0xf]
    %v4943 = vunpack.c.l.b16 %v4927
    %v4944 = vunpack.c.l.b16 %v4928
    %v4945 = vunpack.c.l.b16 %v4929
    %v4946 = vunpack.c.l.b16 %v4930
    %v4947 = vunpack.c.l.b16 %v4931
    %v4948 = vunpack.c.l.b16 %v4932
    %v4949 = vunpack.c.l.b16 %v4933
    %v4950 = vunpack.c.l.b16 %v4934
    %v4951 = vpack.c.b16 %v4944, %v4943
    %v4952 = vpack.c.b16 %v4946, %v4945
    %v4953 = vpack.c.b16 %v4948, %v4947
    %v4954 = vpack.c.b16 %v4950, %v4949
    %v4960 = vsel %vm190, %v4924, 0
    %v4963 = vsel %vm190, %v4925, 0
    %4965 = vmatpush.bf16.msra.mxu0 0
    %4966 = vmatpush.bf16.msra.mxu0 0
    %4967 = vmatpush.bf16.msra.mxu0 0
    %4968 = vmatpush.bf16.msra.mxu0 0
    %4969 = vmatpush.bf16.msra.mxu0 %v4954
    %4970 = vmatpush.bf16.msra.mxu0 %v4953
    %4971 = vmatpush.bf16.msra.mxu0 %v4952
    %4972 = vmatpush.bf16.msra.mxu0 %v4951
    %4973 = vmatmul.bf16.gmra.mxu0 %v4960
    %v4974 = vpop.f32.mrf.mxu0
    %v4975 = vadd.f32 0.0, %v4974
    %v4976 = vpop.f32.mrf.mxu0
    %v4977 = vadd.f32 0.0, %v4976
    %4978 = vmatmul.bf16.gmra.mxu0 %v4963
    %v4979 = vpop.f32.mrf.mxu0
    %v4980 = vadd.f32 0.0, %v4979
    %v4981 = vpop.f32.mrf.mxu0
    %v4982 = vadd.f32 0.0, %v4981
    %4983 = vdwg.mxu0
    %v4992 = vunpack.c.l.b16 %v4876
    %v4993 = vunpack.c.l.b16 %v4877
    %v4994 = vunpack.c.l.b16 %v4878
    %v4995 = vunpack.c.l.b16 %v4879
    %v4996 = vunpack.c.l.b16 %v4880
    %v4997 = vunpack.c.l.b16 %v4881
    %v4998 = vunpack.c.l.b16 %v4882
    %v4999 = vunpack.c.l.b16 %v4883
    %v5000 = vpack.c.b16 %v4993, %v4992
    %v5001 = vpack.c.b16 %v4995, %v4994
    %v5002 = vpack.c.b16 %v4997, %v4996
    %v5003 = vpack.c.b16 %v4999, %v4998
    %v5009 = vsel %vm190, %v4873, 0
    %v5012 = vsel %vm190, %v4874, 0
    %5014 = vmatpush.bf16.msra.mxu0 0
    %5015 = vmatpush.bf16.msra.mxu0 0
    %5016 = vmatpush.bf16.msra.mxu0 0
    %5017 = vmatpush.bf16.msra.mxu0 0
    %5018 = vmatpush.bf16.msra.mxu0 %v5003
    %5019 = vmatpush.bf16.msra.mxu0 %v5002
    %5020 = vmatpush.bf16.msra.mxu0 %v5001
    %5021 = vmatpush.bf16.msra.mxu0 %v5000
    %5022 = vmatmul.bf16.gmra.mxu0 %v5009
    %v5023 = vpop.f32.mrf.mxu0
    %v5024 = vadd.f32 %v4975, %v5023
    %v5025 = vpop.f32.mrf.mxu0
    %v5026 = vadd.f32 %v4977, %v5025
    %5027 = vmatmul.bf16.gmra.mxu0 %v5012
    %v5028 = vpop.f32.mrf.mxu0
    %v5029 = vadd.f32 %v4980, %v5028
    %v5030 = vpop.f32.mrf.mxu0
    %v5031 = vadd.f32 %v4982, %v5030
    %5032 = vdwg.mxu0
    %s5033 = scalar_lea.vmem [#allocation2], 752
    %v5034 = vld [vmem:[%s5033] sm:$0xf]
    %v5035 = vld [vmem:[%s5033 + $0x4] sm:$0xf]
    %v5036 = vld [vmem:[%s5033 + $0x8] sm:$0xf]
    %v5037 = vld [vmem:[%s5033 + $0xc] sm:$0xf]
    %v5042 = vunpack.c.l.b16 %v5034
    %v5043 = vunpack.c.l.b16 %v5035
    %v5044 = vunpack.c.l.b16 %v5036
    %v5045 = vunpack.c.l.b16 %v5037
    %v5046 = vpack.c.b16 %v5043, %v5042
    %v5047 = vpack.c.b16 %v5045, %v5044
    %v5049 = vsel %vm79, %v5046, 0
    %v5052 = vsel %vm79, %v5047, 0
    %5054 = vmatpush.bf16.msra.mxu0 0
    %5055 = vmatpush.bf16.msra.mxu0 0
    %5056 = vmatpush.bf16.msra.mxu0 0
    %5057 = vmatpush.bf16.msra.mxu0 0
    %5058 = vmatpush.bf16.msra.mxu0 0
    %5059 = vmatpush.bf16.msra.mxu0 0
    %5060 = vmatpush.bf16.msra.mxu0 %v4832
    %5061 = vmatpush.bf16.msra.mxu0 %v4831
    %5062 = vmatmul.bf16.gmra.mxu0 %v5049
    %v5063 = vpop.f32.mrf.mxu0
    %v5064 = vadd.f32 0.0, %v5063
    %v5065 = vpop.f32.mrf.mxu0
    %v5066 = vadd.f32 0.0, %v5065
    %5067 = vmatmul.bf16.gmra.mxu0 %v5052
    %v5068 = vpop.f32.mrf.mxu0
    %v5069 = vadd.f32 0.0, %v5068
    %v5070 = vpop.f32.mrf.mxu0
    %v5071 = vadd.f32 0.0, %v5070
    %5072 = vdwg.mxu0
    %v5073 = vpack.c.bf16 %v5066, %v5064
    %v5074 = vpack.c.bf16 %v5071, %v5069
    %s5075 = scalar_lea.vmem [#allocation4], 1504
    %v5076 = vld [vmem:[%s5075] sm:$0xf]
    %v5077 = vld [vmem:[%s5075 + $0x4] sm:$0xf]
    %v5078 = vld [vmem:[%s5075 + $0x8] sm:$0xf]
    %v5079 = vld [vmem:[%s5075 + $0xc] sm:$0xf]
    %v5080 = vld [vmem:[%s5075 + $0x10] sm:$0xf]
    %v5081 = vld [vmem:[%s5075 + $0x14] sm:$0xf]
    %v5082 = vld [vmem:[%s5075 + $0x18] sm:$0xf]
    %v5083 = vld [vmem:[%s5075 + $0x1c] sm:$0xf]
    %v5092 = vunpack.c.l.b16 %v5076
    %v5093 = vunpack.c.l.b16 %v5077
    %v5094 = vunpack.c.l.b16 %v5078
    %v5095 = vunpack.c.l.b16 %v5079
    %v5096 = vunpack.c.l.b16 %v5080
    %v5097 = vunpack.c.l.b16 %v5081
    %v5098 = vunpack.c.l.b16 %v5082
    %v5099 = vunpack.c.l.b16 %v5083
    %v5100 = vpack.c.b16 %v5093, %v5092
    %v5101 = vpack.c.b16 %v5095, %v5094
    %v5102 = vpack.c.b16 %v5097, %v5096
    %v5103 = vpack.c.b16 %v5099, %v5098
    %v5109 = vsel %vm190, %v5073, 0
    %v5112 = vsel %vm190, %v5074, 0
    %5114 = vmatpush.bf16.msra.mxu0 0
    %5115 = vmatpush.bf16.msra.mxu0 0
    %5116 = vmatpush.bf16.msra.mxu0 0
    %5117 = vmatpush.bf16.msra.mxu0 0
    %5118 = vmatpush.bf16.msra.mxu0 %v5103
    %5119 = vmatpush.bf16.msra.mxu0 %v5102
    %5120 = vmatpush.bf16.msra.mxu0 %v5101
    %5121 = vmatpush.bf16.msra.mxu0 %v5100
    %5122 = vmatmul.bf16.gmra.mxu0 %v5109
    %v5123 = vpop.f32.mrf.mxu0
    %v5124 = vadd.f32 0.0, %v5123
    %v5125 = vpop.f32.mrf.mxu0
    %v5126 = vadd.f32 0.0, %v5125
    %5127 = vmatmul.bf16.gmra.mxu0 %v5112
    %v5128 = vpop.f32.mrf.mxu0
    %v5129 = vadd.f32 0.0, %v5128
    %v5130 = vpop.f32.mrf.mxu0
    %v5131 = vadd.f32 0.0, %v5130
    %5132 = vdwg.mxu0
    %v5133 = vadd.f32 %v5024, %v5124
    %v5134 = vadd.f32 %v5026, %v5126
    %v5135 = vadd.f32 %v5029, %v5129
    %v5136 = vadd.f32 %v5031, %v5131
    %s5137 = scalar_lea.vmem %s3, 15
    %v5138 = vld [vmem:[%s5137] sm:$0x1]
    %v5140 = vperm.slane %v5138, 0
    %v5142 = vadd.f32 %v5133, %v5140
    %v5143 = vadd.f32 %v5134, %v5140
    %v5144 = vadd.f32 %v5135, %v5140
    %v5145 = vadd.f32 %v5136, %v5140
    %v5146 = vpack.c.bf16 %v5143, %v5142
    %v5147 = vpack.c.bf16 %v5145, %v5144
    %v5148 = vld [vmem:[%s4] sm:$0xf]
    %v5149 = vld [vmem:[%s4 + $0x4] sm:$0xf]
    %v5152 = vunpack.c.l.b16 %v5148
    %v5153 = vunpack.c.l.b16 %v5149
    %v5154 = vpack.c.b16 %v5153, %v5152
    %v5156 = vsel %vm79, %v5154, 0
    %5158 = vmatpush.bf16.msra.mxu0 0
    %5159 = vmatpush.bf16.msra.mxu0 0
    %5160 = vmatpush.bf16.msra.mxu0 0
    %5161 = vmatpush.bf16.msra.mxu0 0
    %5162 = vmatpush.bf16.msra.mxu0 0
    %5163 = vmatpush.bf16.msra.mxu0 0
    %5164 = vmatpush.bf16.msra.mxu0 %v5147
    %5165 = vmatpush.bf16.msra.mxu0 %v5146
    %5166 = vmatmul.bf16.gmra.mxu0 %v5156
    %v5167 = vpop.f32.mrf.mxu0
    %v5168 = vadd.f32 0.0, %v5167
    %v5169 = vpop.f32.mrf.mxu0
    %v5170 = vadd.f32 0.0, %v5169
    %5171 = vdwg.mxu0
    %v5172 = vpack.c.bf16 %v5170, %v5168
    %v5173 = vld [vmem:[%s5] sm:$0xf]
    %v5174 = vld [vmem:[%s5 + $0x4] sm:$0xf]
    %v5175 = vld [vmem:[%s5 + $0x8] sm:$0xf]
    %v5176 = vld [vmem:[%s5 + $0xc] sm:$0xf]
    %v5177 = vld [vmem:[%s5 + $0x10] sm:$0xf]
    %v5178 = vld [vmem:[%s5 + $0x14] sm:$0xf]
    %v5179 = vld [vmem:[%s5 + $0x18] sm:$0xf]
    %v5180 = vld [vmem:[%s5 + $0x1c] sm:$0xf]
    %s5181 = scalar_lea.vmem %s4, 8
    %v5182 = vld [vmem:[%s5181] sm:$0xf]
    %v5183 = vld [vmem:[%s5181 + $0x4] sm:$0xf]
    %v5186 = vunpack.c.l.b16 %v5182
    %v5187 = vunpack.c.l.b16 %v5183
    %v5188 = vpack.c.b16 %v5187, %v5186
    %v5190 = vsel %vm79, %v5188, 0
    %5192 = vmatpush.bf16.msra.mxu0 0
    %5193 = vmatpush.bf16.msra.mxu0 0
    %5194 = vmatpush.bf16.msra.mxu0 0
    %5195 = vmatpush.bf16.msra.mxu0 0
    %5196 = vmatpush.bf16.msra.mxu0 0
    %5197 = vmatpush.bf16.msra.mxu0 0
    %5198 = vmatpush.bf16.msra.mxu0 %v5147
    %5199 = vmatpush.bf16.msra.mxu0 %v5146
    %5200 = vmatmul.bf16.gmra.mxu0 %v5190
    %v5201 = vpop.f32.mrf.mxu0
    %v5202 = vadd.f32 0.0, %v5201
    %v5203 = vpop.f32.mrf.mxu0
    %v5204 = vadd.f32 0.0, %v5203
    %5205 = vdwg.mxu0
    %v5206 = vpack.c.bf16 %v5204, %v5202
    %s5207 = scalar_lea.vmem %s5, 32
    %v5208 = vld [vmem:[%s5207] sm:$0xf]
    %v5209 = vld [vmem:[%s5207 + $0x4] sm:$0xf]
    %v5210 = vld [vmem:[%s5207 + $0x8] sm:$0xf]
    %v5211 = vld [vmem:[%s5207 + $0xc] sm:$0xf]
    %v5212 = vld [vmem:[%s5207 + $0x10] sm:$0xf]
    %v5213 = vld [vmem:[%s5207 + $0x14] sm:$0xf]
    %v5214 = vld [vmem:[%s5207 + $0x18] sm:$0xf]
    %v5215 = vld [vmem:[%s5207 + $0x1c] sm:$0xf]
    %v5224 = vunpack.c.l.b16 %v5208
    %v5225 = vunpack.c.l.b16 %v5209
    %v5226 = vunpack.c.l.b16 %v5210
    %v5227 = vunpack.c.l.b16 %v5211
    %v5228 = vunpack.c.l.b16 %v5212
    %v5229 = vunpack.c.l.b16 %v5213
    %v5230 = vunpack.c.l.b16 %v5214
    %v5231 = vunpack.c.l.b16 %v5215
    %v5232 = vpack.c.b16 %v5225, %v5224
    %v5233 = vpack.c.b16 %v5227, %v5226
    %v5234 = vpack.c.b16 %v5229, %v5228
    %v5235 = vpack.c.b16 %v5231, %v5230
    %v5241 = vsel %vm190, %v5206, 0
    %5243 = vmatpush.bf16.msra.mxu0 0
    %5244 = vmatpush.bf16.msra.mxu0 0
    %5245 = vmatpush.bf16.msra.mxu0 0
    %5246 = vmatpush.bf16.msra.mxu0 0
    %5247 = vmatpush.bf16.msra.mxu0 %v5235
    %5248 = vmatpush.bf16.msra.mxu0 %v5234
    %5249 = vmatpush.bf16.msra.mxu0 %v5233
    %5250 = vmatpush.bf16.msra.mxu0 %v5232
    %5251 = vmatmul.bf16.gmra.mxu0 %v5241
    %v5252 = vpop.f32.mrf.mxu0
    %v5253 = vadd.f32 0.0, %v5252
    %v5254 = vpop.f32.mrf.mxu0
    %v5255 = vadd.f32 0.0, %v5254
    %5256 = vdwg.mxu0
    %v5265 = vunpack.c.l.b16 %v5173
    %v5266 = vunpack.c.l.b16 %v5174
    %v5267 = vunpack.c.l.b16 %v5175
    %v5268 = vunpack.c.l.b16 %v5176
    %v5269 = vunpack.c.l.b16 %v5177
    %v5270 = vunpack.c.l.b16 %v5178
    %v5271 = vunpack.c.l.b16 %v5179
    %v5272 = vunpack.c.l.b16 %v5180
    %v5273 = vpack.c.b16 %v5266, %v5265
    %v5274 = vpack.c.b16 %v5268, %v5267
    %v5275 = vpack.c.b16 %v5270, %v5269
    %v5276 = vpack.c.b16 %v5272, %v5271
    %v5282 = vsel %vm190, %v5172, 0
    %5284 = vmatpush.bf16.msra.mxu0 0
    %5285 = vmatpush.bf16.msra.mxu0 0
    %5286 = vmatpush.bf16.msra.mxu0 0
    %5287 = vmatpush.bf16.msra.mxu0 0
    %5288 = vmatpush.bf16.msra.mxu0 %v5276
    %5289 = vmatpush.bf16.msra.mxu0 %v5275
    %5290 = vmatpush.bf16.msra.mxu0 %v5274
    %5291 = vmatpush.bf16.msra.mxu0 %v5273
    %5292 = vmatmul.bf16.gmra.mxu0 %v5282
    %v5293 = vpop.f32.mrf.mxu0
    %v5294 = vadd.f32 %v5253, %v5293
    %v5295 = vpop.f32.mrf.mxu0
    %v5296 = vadd.f32 %v5255, %v5295
    %5297 = vdwg.mxu0
    %s5298 = scalar_lea.vmem %s4, 16
    %v5299 = vld [vmem:[%s5298] sm:$0xf]
    %v5300 = vld [vmem:[%s5298 + $0x4] sm:$0xf]
    %v5303 = vunpack.c.l.b16 %v5299
    %v5304 = vunpack.c.l.b16 %v5300
    %v5305 = vpack.c.b16 %v5304, %v5303
    %v5307 = vsel %vm79, %v5305, 0
    %5309 = vmatpush.bf16.msra.mxu0 0
    %5310 = vmatpush.bf16.msra.mxu0 0
    %5311 = vmatpush.bf16.msra.mxu0 0
    %5312 = vmatpush.bf16.msra.mxu0 0
    %5313 = vmatpush.bf16.msra.mxu0 0
    %5314 = vmatpush.bf16.msra.mxu0 0
    %5315 = vmatpush.bf16.msra.mxu0 %v5147
    %5316 = vmatpush.bf16.msra.mxu0 %v5146
    %5317 = vmatmul.bf16.gmra.mxu0 %v5307
    %v5318 = vpop.f32.mrf.mxu0
    %v5319 = vadd.f32 0.0, %v5318
    %v5320 = vpop.f32.mrf.mxu0
    %v5321 = vadd.f32 0.0, %v5320
    %5322 = vdwg.mxu0
    %v5323 = vpack.c.bf16 %v5321, %v5319
    %s5324 = scalar_lea.vmem %s5, 64
    %v5325 = vld [vmem:[%s5324] sm:$0xf]
    %v5326 = vld [vmem:[%s5324 + $0x4] sm:$0xf]
    %v5327 = vld [vmem:[%s5324 + $0x8] sm:$0xf]
    %v5328 = vld [vmem:[%s5324 + $0xc] sm:$0xf]
    %v5329 = vld [vmem:[%s5324 + $0x10] sm:$0xf]
    %v5330 = vld [vmem:[%s5324 + $0x14] sm:$0xf]
    %v5331 = vld [vmem:[%s5324 + $0x18] sm:$0xf]
    %v5332 = vld [vmem:[%s5324 + $0x1c] sm:$0xf]
    %v5341 = vunpack.c.l.b16 %v5325
    %v5342 = vunpack.c.l.b16 %v5326
    %v5343 = vunpack.c.l.b16 %v5327
    %v5344 = vunpack.c.l.b16 %v5328
    %v5345 = vunpack.c.l.b16 %v5329
    %v5346 = vunpack.c.l.b16 %v5330
    %v5347 = vunpack.c.l.b16 %v5331
    %v5348 = vunpack.c.l.b16 %v5332
    %v5349 = vpack.c.b16 %v5342, %v5341
    %v5350 = vpack.c.b16 %v5344, %v5343
    %v5351 = vpack.c.b16 %v5346, %v5345
    %v5352 = vpack.c.b16 %v5348, %v5347
    %v5358 = vsel %vm190, %v5323, 0
    %5360 = vmatpush.bf16.msra.mxu0 0
    %5361 = vmatpush.bf16.msra.mxu0 0
    %5362 = vmatpush.bf16.msra.mxu0 0
    %5363 = vmatpush.bf16.msra.mxu0 0
    %5364 = vmatpush.bf16.msra.mxu0 %v5352
    %5365 = vmatpush.bf16.msra.mxu0 %v5351
    %5366 = vmatpush.bf16.msra.mxu0 %v5350
    %5367 = vmatpush.bf16.msra.mxu0 %v5349
    %5368 = vmatmul.bf16.gmra.mxu0 %v5358
    %v5369 = vpop.f32.mrf.mxu0
    %v5370 = vadd.f32 0.0, %v5369
    %v5371 = vpop.f32.mrf.mxu0
    %v5372 = vadd.f32 0.0, %v5371
    %5373 = vdwg.mxu0
    %v5374 = vadd.f32 %v5294, %v5370
    %v5375 = vadd.f32 %v5296, %v5372
    %s5376 = scalar_lea.vmem %s4, 24
    %v5377 = vld [vmem:[%s5376] sm:$0xf]
    %v5378 = vld [vmem:[%s5376 + $0x4] sm:$0xf]
    %v5381 = vunpack.c.l.b16 %v5377
    %v5382 = vunpack.c.l.b16 %v5378
    %v5383 = vpack.c.b16 %v5382, %v5381
    %v5385 = vsel %vm79, %v5383, 0
    %5387 = vmatpush.bf16.msra.mxu0 0
    %5388 = vmatpush.bf16.msra.mxu0 0
    %5389 = vmatpush.bf16.msra.mxu0 0
    %5390 = vmatpush.bf16.msra.mxu0 0
    %5391 = vmatpush.bf16.msra.mxu0 0
    %5392 = vmatpush.bf16.msra.mxu0 0
    %5393 = vmatpush.bf16.msra.mxu0 %v5147
    %5394 = vmatpush.bf16.msra.mxu0 %v5146
    %5395 = vmatmul.bf16.gmra.mxu0 %v5385
    %v5396 = vpop.f32.mrf.mxu0
    %v5397 = vadd.f32 0.0, %v5396
    %v5398 = vpop.f32.mrf.mxu0
    %v5399 = vadd.f32 0.0, %v5398
    %5400 = vdwg.mxu0
    %v5401 = vpack.c.bf16 %v5399, %v5397
    %s5402 = scalar_lea.vmem %s5, 96
    %v5403 = vld [vmem:[%s5402] sm:$0xf]
    %v5404 = vld [vmem:[%s5402 + $0x4] sm:$0xf]
    %v5405 = vld [vmem:[%s5402 + $0x8] sm:$0xf]
    %v5406 = vld [vmem:[%s5402 + $0xc] sm:$0xf]
    %v5407 = vld [vmem:[%s5402 + $0x10] sm:$0xf]
    %v5408 = vld [vmem:[%s5402 + $0x14] sm:$0xf]
    %v5409 = vld [vmem:[%s5402 + $0x18] sm:$0xf]
    %v5410 = vld [vmem:[%s5402 + $0x1c] sm:$0xf]
    %v5419 = vunpack.c.l.b16 %v5403
    %v5420 = vunpack.c.l.b16 %v5404
    %v5421 = vunpack.c.l.b16 %v5405
    %v5422 = vunpack.c.l.b16 %v5406
    %v5423 = vunpack.c.l.b16 %v5407
    %v5424 = vunpack.c.l.b16 %v5408
    %v5425 = vunpack.c.l.b16 %v5409
    %v5426 = vunpack.c.l.b16 %v5410
    %v5427 = vpack.c.b16 %v5420, %v5419
    %v5428 = vpack.c.b16 %v5422, %v5421
    %v5429 = vpack.c.b16 %v5424, %v5423
    %v5430 = vpack.c.b16 %v5426, %v5425
    %v5436 = vsel %vm190, %v5401, 0
    %5438 = vmatpush.bf16.msra.mxu0 0
    %5439 = vmatpush.bf16.msra.mxu0 0
    %5440 = vmatpush.bf16.msra.mxu0 0
    %5441 = vmatpush.bf16.msra.mxu0 0
    %5442 = vmatpush.bf16.msra.mxu0 %v5430
    %5443 = vmatpush.bf16.msra.mxu0 %v5429
    %5444 = vmatpush.bf16.msra.mxu0 %v5428
    %5445 = vmatpush.bf16.msra.mxu0 %v5427
    %5446 = vmatmul.bf16.gmra.mxu0 %v5436
    %v5447 = vpop.f32.mrf.mxu0
    %v5448 = vadd.f32 0.0, %v5447
    %v5449 = vpop.f32.mrf.mxu0
    %v5450 = vadd.f32 0.0, %v5449
    %5451 = vdwg.mxu0
    %v5452 = vadd.f32 %v5374, %v5448
    %v5453 = vadd.f32 %v5375, %v5450
    %v5454 = vld [vmem:[%s6] sm:$0x1]
    %v5456 = vperm.slane %v5454, 0
    %v5458 = vadd.f32 %v5452, %v5456
    %v5459 = vadd.f32 %v5453, %v5456
    %5460 = vst.msk [vmem:[%s7] sm:$0xff] %vm190, %v5458
    %5461 = vst.msk [vmem:[%s7 + $0x8] sm:$0xff] %vm190, %v5459
    %s5462 = scalar_lea.vmem %s4, 32
    %v5463 = vld [vmem:[%s5462] sm:$0xf]
    %v5464 = vld [vmem:[%s5462 + $0x4] sm:$0xf]
    %v5467 = vunpack.c.l.b16 %v5463
    %v5468 = vunpack.c.l.b16 %v5464
    %v5469 = vpack.c.b16 %v5468, %v5467
    %v5471 = vsel %vm79, %v5469, 0
    %5473 = vmatpush.bf16.msra.mxu0 0
    %5474 = vmatpush.bf16.msra.mxu0 0
    %5475 = vmatpush.bf16.msra.mxu0 0
    %5476 = vmatpush.bf16.msra.mxu0 0
    %5477 = vmatpush.bf16.msra.mxu0 0
    %5478 = vmatpush.bf16.msra.mxu0 0
    %5479 = vmatpush.bf16.msra.mxu0 %v3253
    %5480 = vmatpush.bf16.msra.mxu0 %v3252
    %5481 = vmatmul.bf16.gmra.mxu0 %v5471
    %v5482 = vpop.f32.mrf.mxu0
    %v5483 = vadd.f32 0.0, %v5482
    %v5484 = vpop.f32.mrf.mxu0
    %v5485 = vadd.f32 0.0, %v5484
    %5486 = vdwg.mxu0
    %v5487 = vpack.c.bf16 %v5485, %v5483
    %s5488 = scalar_lea.vmem %s5, 128
    %v5489 = vld [vmem:[%s5488] sm:$0xf]
    %v5490 = vld [vmem:[%s5488 + $0x4] sm:$0xf]
    %v5491 = vld [vmem:[%s5488 + $0x8] sm:$0xf]
    %v5492 = vld [vmem:[%s5488 + $0xc] sm:$0xf]
    %v5493 = vld [vmem:[%s5488 + $0x10] sm:$0xf]
    %v5494 = vld [vmem:[%s5488 + $0x14] sm:$0xf]
    %v5495 = vld [vmem:[%s5488 + $0x18] sm:$0xf]
    %v5496 = vld [vmem:[%s5488 + $0x1c] sm:$0xf]
    %s5497 = scalar_lea.vmem %s4, 40
    %v5498 = vld [vmem:[%s5497] sm:$0xf]
    %v5499 = vld [vmem:[%s5497 + $0x4] sm:$0xf]
    %v5502 = vunpack.c.l.b16 %v5498
    %v5503 = vunpack.c.l.b16 %v5499
    %v5504 = vpack.c.b16 %v5503, %v5502
    %v5506 = vsel %vm79, %v5504, 0
    %5508 = vmatpush.bf16.msra.mxu0 0
    %5509 = vmatpush.bf16.msra.mxu0 0
    %5510 = vmatpush.bf16.msra.mxu0 0
    %5511 = vmatpush.bf16.msra.mxu0 0
    %5512 = vmatpush.bf16.msra.mxu0 0
    %5513 = vmatpush.bf16.msra.mxu0 0
    %5514 = vmatpush.bf16.msra.mxu0 %v3253
    %5515 = vmatpush.bf16.msra.mxu0 %v3252
    %5516 = vmatmul.bf16.gmra.mxu0 %v5506
    %v5517 = vpop.f32.mrf.mxu0
    %v5518 = vadd.f32 0.0, %v5517
    %v5519 = vpop.f32.mrf.mxu0
    %v5520 = vadd.f32 0.0, %v5519
    %5521 = vdwg.mxu0
    %v5522 = vpack.c.bf16 %v5520, %v5518
    %s5523 = scalar_lea.vmem %s5, 160
    %v5524 = vld [vmem:[%s5523] sm:$0xf]
    %v5525 = vld [vmem:[%s5523 + $0x4] sm:$0xf]
    %v5526 = vld [vmem:[%s5523 + $0x8] sm:$0xf]
    %v5527 = vld [vmem:[%s5523 + $0xc] sm:$0xf]
    %v5528 = vld [vmem:[%s5523 + $0x10] sm:$0xf]
    %v5529 = vld [vmem:[%s5523 + $0x14] sm:$0xf]
    %v5530 = vld [vmem:[%s5523 + $0x18] sm:$0xf]
    %v5531 = vld [vmem:[%s5523 + $0x1c] sm:$0xf]
    %v5540 = vunpack.c.l.b16 %v5524
    %v5541 = vunpack.c.l.b16 %v5525
    %v5542 = vunpack.c.l.b16 %v5526
    %v5543 = vunpack.c.l.b16 %v5527
    %v5544 = vunpack.c.l.b16 %v5528
    %v5545 = vunpack.c.l.b16 %v5529
    %v5546 = vunpack.c.l.b16 %v5530
    %v5547 = vunpack.c.l.b16 %v5531
    %v5548 = vpack.c.b16 %v5541, %v5540
    %v5549 = vpack.c.b16 %v5543, %v5542
    %v5550 = vpack.c.b16 %v5545, %v5544
    %v5551 = vpack.c.b16 %v5547, %v5546
    %v5557 = vsel %vm190, %v5522, 0
    %5559 = vmatpush.bf16.msra.mxu0 0
    %5560 = vmatpush.bf16.msra.mxu0 0
    %5561 = vmatpush.bf16.msra.mxu0 0
    %5562 = vmatpush.bf16.msra.mxu0 0
    %5563 = vmatpush.bf16.msra.mxu0 %v5551
    %5564 = vmatpush.bf16.msra.mxu0 %v5550
    %5565 = vmatpush.bf16.msra.mxu0 %v5549
    %5566 = vmatpush.bf16.msra.mxu0 %v5548
    %5567 = vmatmul.bf16.gmra.mxu0 %v5557
    %v5568 = vpop.f32.mrf.mxu0
    %v5569 = vadd.f32 0.0, %v5568
    %v5570 = vpop.f32.mrf.mxu0
    %v5571 = vadd.f32 0.0, %v5570
    %5572 = vdwg.mxu0
    %v5581 = vunpack.c.l.b16 %v5489
    %v5582 = vunpack.c.l.b16 %v5490
    %v5583 = vunpack.c.l.b16 %v5491
    %v5584 = vunpack.c.l.b16 %v5492
    %v5585 = vunpack.c.l.b16 %v5493
    %v5586 = vunpack.c.l.b16 %v5494
    %v5587 = vunpack.c.l.b16 %v5495
    %v5588 = vunpack.c.l.b16 %v5496
    %v5589 = vpack.c.b16 %v5582, %v5581
    %v5590 = vpack.c.b16 %v5584, %v5583
    %v5591 = vpack.c.b16 %v5586, %v5585
    %v5592 = vpack.c.b16 %v5588, %v5587
    %v5598 = vsel %vm190, %v5487, 0
    %5600 = vmatpush.bf16.msra.mxu0 0
    %5601 = vmatpush.bf16.msra.mxu0 0
    %5602 = vmatpush.bf16.msra.mxu0 0
    %5603 = vmatpush.bf16.msra.mxu0 0
    %5604 = vmatpush.bf16.msra.mxu0 %v5592
    %5605 = vmatpush.bf16.msra.mxu0 %v5591
    %5606 = vmatpush.bf16.msra.mxu0 %v5590
    %5607 = vmatpush.bf16.msra.mxu0 %v5589
    %5608 = vmatmul.bf16.gmra.mxu0 %v5598
    %v5609 = vpop.f32.mrf.mxu0
    %v5610 = vadd.f32 %v5569, %v5609
    %v5611 = vpop.f32.mrf.mxu0
    %v5612 = vadd.f32 %v5571, %v5611
    %5613 = vdwg.mxu0
    %s5614 = scalar_lea.vmem %s6, 1
    %v5615 = vld [vmem:[%s5614] sm:$0x1]
    %v5617 = vperm.slane %v5615, 0
    %v5619 = vadd.f32 %v5610, %v5617
    %v5620 = vadd.f32 %v5612, %v5617
    %s5621 = scalar_lea.vmem %s7, 16
    %5622 = vst.msk [vmem:[%s5621] sm:$0xff] %vm190, %v5619
    %5623 = vst.msk [vmem:[%s5621 + $0x8] sm:$0xff] %vm190, %v5620
    %s5624 = scalar_lea.vmem %s4, 48
    %v5625 = vld [vmem:[%s5624] sm:$0xf]
    %v5626 = vld [vmem:[%s5624 + $0x4] sm:$0xf]
    %v5629 = vunpack.c.l.b16 %v5625
    %v5630 = vunpack.c.l.b16 %v5626
    %v5631 = vpack.c.b16 %v5630, %v5629
    %v5633 = vsel %vm79, %v5631, 0
    %5635 = vmatpush.bf16.msra.mxu0 0
    %5636 = vmatpush.bf16.msra.mxu0 0
    %5637 = vmatpush.bf16.msra.mxu0 0
    %5638 = vmatpush.bf16.msra.mxu0 0
    %5639 = vmatpush.bf16.msra.mxu0 0
    %5640 = vmatpush.bf16.msra.mxu0 0
    %5641 = vmatpush.bf16.msra.mxu0 %v1339
    %5642 = vmatpush.bf16.msra.mxu0 %v1338
    %5643 = vmatmul.bf16.gmra.mxu0 %v5633
    %v5644 = vpop.f32.mrf.mxu0
    %v5645 = vadd.f32 0.0, %v5644
    %v5646 = vpop.f32.mrf.mxu0
    %v5647 = vadd.f32 0.0, %v5646
    %5648 = vdwg.mxu0
    %v5649 = vpack.c.bf16 %v5647, %v5645
    %s5650 = scalar_lea.vmem %s5, 192
    %v5651 = vld [vmem:[%s5650] sm:$0xf]
    %v5652 = vld [vmem:[%s5650 + $0x4] sm:$0xf]
    %v5653 = vld [vmem:[%s5650 + $0x8] sm:$0xf]
    %v5654 = vld [vmem:[%s5650 + $0xc] sm:$0xf]
    %v5655 = vld [vmem:[%s5650 + $0x10] sm:$0xf]
    %v5656 = vld [vmem:[%s5650 + $0x14] sm:$0xf]
    %v5657 = vld [vmem:[%s5650 + $0x18] sm:$0xf]
    %v5658 = vld [vmem:[%s5650 + $0x1c] sm:$0xf]
    %s5659 = scalar_lea.vmem %s6, 2
    %v5660 = vld [vmem:[%s5659] sm:$0x1]
    %v5662 = vperm.slane %v5660, 0
    %v5672 = vunpack.c.l.b16 %v5651
    %v5673 = vunpack.c.l.b16 %v5652
    %v5674 = vunpack.c.l.b16 %v5653
    %v5675 = vunpack.c.l.b16 %v5654
    %v5676 = vunpack.c.l.b16 %v5655
    %v5677 = vunpack.c.l.b16 %v5656
    %v5678 = vunpack.c.l.b16 %v5657
    %v5679 = vunpack.c.l.b16 %v5658
    %v5680 = vpack.c.b16 %v5673, %v5672
    %v5681 = vpack.c.b16 %v5675, %v5674
    %v5682 = vpack.c.b16 %v5677, %v5676
    %v5683 = vpack.c.b16 %v5679, %v5678
    %v5689 = vsel %vm190, %v5649, 0
    %5691 = vmatpush.bf16.msra.mxu0 0
    %5692 = vmatpush.bf16.msra.mxu0 0
    %5693 = vmatpush.bf16.msra.mxu0 0
    %5694 = vmatpush.bf16.msra.mxu0 0
    %5695 = vmatpush.bf16.msra.mxu0 %v5683
    %5696 = vmatpush.bf16.msra.mxu0 %v5682
    %5697 = vmatpush.bf16.msra.mxu0 %v5681
    %5698 = vmatpush.bf16.msra.mxu0 %v5680
    %5699 = vmatmul.bf16.gmra.mxu0 %v5689
    %v5700 = vpop.f32.mrf.mxu0
    %v5701 = vadd.f32 %v5662, %v5700
    %v5702 = vpop.f32.mrf.mxu0
    %v5703 = vadd.f32 %v5662, %v5702
    %5704 = vdwg.mxu0
    %s5705 = scalar_lea.vmem %s7, 32
    %5706 = vst.msk [vmem:[%s5705] sm:$0xff] %vm190, %v5701
    %5707 = vst.msk [vmem:[%s5705 + $0x8] sm:$0xff] %vm190, %v5703
    // Predicated region
    $region38: #{_lambda_.1} parent=1 // pred_check
      _
    $region39: #{_lambda_.1} parent=1 // pred_check_branch
      %5709 = sbr.rel (0) target = $region41
    $region40: #{_lambda_.1} parent=1 // pred_region
      _
    $region41: #{_lambda_.1} parent=1 // pred_fallthru
      _
    // Predicated region
    $region42: #{_lambda_.1} parent=1 // pred_check
      _
    $region43: #{_lambda_.1} parent=1 // pred_check_branch
      %5711 = sbr.rel (0) target = $region45
    $region44: #{_lambda_.1} parent=1 // pred_region
      _
    $region45: #{_lambda_.1} parent=1 // pred_fallthru
      _
    %5712 = vsyncpa [#allocation3], 1
    %5713 = vsyncpa [#allocation5], 1

</llo_original>
